<compile_context>
chip_gen: v5e
topology: v5e:2x2
jax: 0.10.0
libtpu: 0.0.40
codegen_flags: <defaults>
</compile_context>

<pallas_src>
import functools

import numpy as np
import jax
import jax.numpy as jnp
from jax import lax
from jax.experimental import pallas as pl
from jax.experimental.pallas import tpu as pltpu


C1, C2, FC = 16, 32, 128          # conv1 / conv2 channels, fc1 hidden width
_PREC = lax.Precision.HIGHEST     # reference only


# --------------------------- fused forward kernel ---------------------------------------
def _cnn_kernel(x_ref, w1_ref, b1_ref, w2_ref, b2_ref, wf1_ref, ssum_ref,
                bf1_ref, wf2_ref, bf2_ref, o_ref, *, H, W, NB):
    f32, bf16 = jnp.float32, jnp.bfloat16
    NBH = NB * H
    Wo1, Ho2 = W // 2, H // 4
    WC1 = W * C1            # conv1 output lanes (width kept un-decimated)
    WC2 = Wo1 * C2          # conv2 output lanes (width decimation folded in)

    xm = x_ref[...]                                            # (NB*H, W) f32
    row = lax.broadcasted_iota(jnp.int32, (NBH, 1), 0)
    h_img = row % H                                            # row index within image

    # ---- conv1: one matmul, K = 3*W ----------------------------------------------------
    zrow = jnp.zeros((1, W), f32)
    x_up = jnp.where(h_img == 0, 0.0,
                     jnp.concatenate([zrow, xm[:-1, :]], axis=0))      # row h <- x[h-1]
    x_dn = jnp.where(h_img == H - 1, 0.0,
                     jnp.concatenate([xm[1:, :], zrow], axis=0))       # row h <- x[h+1]
    lhs1 = jnp.concatenate([x_up, xm, x_dn], axis=1).astype(bf16)      # (NBH, 3W)
    y1 = jnp.dot(lhs1, w1_ref[...], preferred_element_type=f32)
    y1 = jnp.maximum(y1 + b1_ref[...], 0.0)                            # (NBH, WC1)

    # ---- maxpool1: shift+max only (decimation folded into conv2 / deferred) ------------
    wsh1 = jnp.concatenate([y1[:, C1:], jnp.zeros((NBH, C1), f32)], axis=1)
    wa1 = jnp.maximum(y1, wsh1)                                        # width pair max
    rsh1 = jnp.concatenate([wa1[1:, :], jnp.zeros((1, WC1), f32)], axis=0)
    ra1 = jnp.maximum(wa1, rsh1)                                       # row pair max

    # ---- conv2: one matmul, K = 3*W*C1 (width-pool Sel folded into the weights) --------
    z2 = jnp.zeros((2, WC1), f32)
    u0 = jnp.where(h_img < 2, 0.0,
                   jnp.concatenate([z2, ra1[:-2, :]], axis=0))         # pooled row hp-1
    u2 = jnp.where(h_img >= H - 2, 0.0,
                   jnp.concatenate([ra1[2:, :], z2], axis=0))          # pooled row hp+1
    lhs2 = jnp.concatenate([u0, ra1, u2], axis=1).astype(bf16)         # (NBH, 3*WC1)
    y2 = jnp.dot(lhs2, w2_ref[...], preferred_element_type=f32)
    y2 = jnp.maximum(y2 + b2_ref[...], 0.0)                            # (NBH, WC2), valid @ even rows

    # ---- maxpool2: shift+max only ------------------------------------------------------
    wsh2 = jnp.concatenate([y2[:, C2:], jnp.zeros((NBH, C2), f32)], axis=1)
    wa2 = jnp.maximum(y2, wsh2)
    rsh2 = jnp.concatenate([wa2[2:, :], jnp.zeros((2, WC2), f32)], axis=0)
    ra2 = jnp.maximum(wa2, rsh2)                                       # valid @ rows h = 4*hq

    # ---- fc1 (+relu): one dot vs all Ho2 weight blocks, masked block select, then a
    #      tiny 0/1 summation matmul that also performs the row (pool) decimation -------
    q = jnp.dot(ra2.astype(bf16), wf1_ref[...], preferred_element_type=f32)  # (NBH, Ho2*FC)
    r = jnp.zeros((NBH, FC), f32)
    for i in range(Ho2):
        r = r + jnp.where(h_img == 4 * i, q[:, i * FC:(i + 1) * FC], 0.0)
    h1 = jnp.dot(ssum_ref[...], r.astype(bf16), preferred_element_type=f32)  # (NB, FC)
    h1 = jnp.maximum(h1 + bf1_ref[...], 0.0)

    # ---- fc2 (lane-dense padded output) ------------------------------------------------
    out = jnp.dot(h1.astype(bf16), wf2_ref[...], preferred_element_type=f32)
    o_ref[...] = out + bf2_ref[...]


# --------------------------- weight preprocessing (free at init/jit) --------------------
def _band(Wdim):
    # t[dw, w', w] = 1 iff w' == w + dw - 1   ("same"-padding band along width)
    t = np.zeros((3, Wdim, Wdim), np.float32)
    for dw in range(3):
        for w in range(Wdim):
            wp = w + dw - 1
            if 0 <= wp < Wdim:
                t[dw, wp, w] = 1.0
    return t


def _band_pooled(W_in, Wo):
    # Band + pool-width-decimation fold: source column w' = 2*(wo + dw - 1).
    t = np.zeros((3, W_in, Wo), np.float32)
    for dw in range(3):
        for wo in range(Wo):
            src = wo + dw - 1
            if 0 <= src < Wo:
                t[dw, 2 * src, wo] = 1.0
    return t


def _prepare_weights(params, H, W, out_pad):
    f32, bf16 = jnp.float32, jnp.bfloat16
    Wo1, Ho2, Wo2 = W // 2, H // 4, W // 4
    out_dim = params["w_fc2"].shape[1]

    w1 = params["w_conv1"].astype(f32)                      # (3,3,1,C1)  HWIO
    w2 = params["w_conv2"].astype(f32)                      # (3,3,C1,C2) HWIO
    t1 = jnp.asarray(_band(W))
    t2 = jnp.asarray(_band_pooled(W, Wo1))
    # conv1: rows = (dh, w'), cols = (w, c_out)
    w1k = jnp.einsum("dpw,adc->apwc", t1, w1[:, :, 0, :]).reshape(3 * W, W * C1)
    # conv2: rows = (dh, w', c_in) over the UN-decimated width, cols = (wp, c_out)
    w2k = jnp.einsum("dpw,adic->apiwc", t2, w2).reshape(3 * W * C1, Wo1 * C2)
    b1k = jnp.tile(params["b_conv1"].astype(f32), W).reshape(1, W * C1)
    b2k = jnp.tile(params["b_conv2"].astype(f32), Wo1).reshape(1, Wo1 * C2)

    # fc1: fold (a) PyTorch's NCHW flatten order, (b) the pool-2 width decimation and
    # (c) the pooled-row block structure.  wf1c[:, i*FC:(i+1)*FC] multiplies the
    # (un-decimated-width) activation row of pooled row hq = i.
    wf1 = params["w_fc1"].astype(f32)                        # (C2*Ho2*Wo2, FC)
    g = wf1.reshape(C2, Ho2, Wo2, FC).transpose(1, 2, 0, 3)  # (Ho2, Wo2, C2, FC)
    g = jnp.stack([g, jnp.zeros_like(g)], axis=2)            # odd width groups -> 0
    g = g.reshape(Ho2, Wo1, C2, FC)
    wf1c = g.transpose(1, 2, 0, 3).reshape(Wo1 * C2, Ho2 * FC)
    bf1 = params["b_fc1"].astype(f32).reshape(1, FC)

    # fc2: zero-pad columns to a lane-dense width
    wf2 = params["w_fc2"].astype(f32)
    wf2p = jnp.zeros((FC, out_pad), f32).at[:, :out_dim].set(wf2)
    bf2p = jnp.zeros((1, out_pad), f32).at[:, :out_dim].set(
        params["b_fc2"].astype(f32).reshape(1, -1))

    return (w1k.astype(bf16), b1k, w2k.astype(bf16), b2k,
            wf1c.astype(bf16), bf1, wf2p.astype(bf16), bf2p)


# --------------------------------- full forward -----------------------------------------
def cnn_forward(x_nchw, params, nb=16):
    N, Cin, H, W = x_nchw.shape
    assert Cin == 1 and H % 4 == 0 and W % 4 == 0
    out_dim = params["w_fc2"].shape[1]
    out_pad = pl.cdiv(out_dim, 128) * 128                    # lane-dense output width

    NB = min(nb, N)
    Np = pl.cdiv(N, NB) * NB
    x = x_nchw.astype(jnp.float32)[:, 0]                     # (N, H, W)
    if Np != N:
        x = jnp.concatenate([x, jnp.zeros((Np - N, H, W), jnp.float32)], axis=0)
    xr = x.reshape(Np * H, W)                                # rows = (n, h), h fastest

    w1k, b1k, w2k, b2k, wf1c, bf1, wf2p, bf2p = _prepare_weights(params, H, W, out_pad)
    # per-image row summation matrix used by the fc1 stage
    ssum = jnp.asarray(np.kron(np.eye(NB, dtype=np.float32),
                               np.ones((1, H), np.float32)), dtype=jnp.bfloat16)

    kern = functools.partial(_cnn_kernel, H=H, W=W, NB=NB)
    out = pl.pallas_call(
        kern,
        out_shape=jax.ShapeDtypeStruct((Np, out_pad), jnp.float32),
        grid=(Np // NB,),
        in_specs=[
            pl.BlockSpec((NB * H, W), lambda n: (n, 0)),
            # resident weights: constant index maps (stay in VMEM across steps)
            pl.BlockSpec(w1k.shape, lambda n: (0, 0)),
            pl.BlockSpec(b1k.shape, lambda n: (0, 0)),
            pl.BlockSpec(w2k.shape, lambda n: (0, 0)),
            pl.BlockSpec(b2k.shape, lambda n: (0, 0)),
            pl.BlockSpec(wf1c.shape, lambda n: (0, 0)),
            pl.BlockSpec(ssum.shape, lambda n: (0, 0)),
            pl.BlockSpec(bf1.shape, lambda n: (0, 0)),
            pl.BlockSpec(wf2p.shape, lambda n: (0, 0)),
            pl.BlockSpec(bf2p.shape, lambda n: (0, 0)),
        ],
        out_specs=pl.BlockSpec((NB, out_pad), lambda n: (n, 0)),
        compiler_params=pltpu.CompilerParams(
            dimension_semantics=("parallel",)),
    )(xr, w1k, b1k, w2k, b2k, wf1c, ssum, bf1, wf2p, bf2p)
    return out[:N, :out_dim]


# ------------------------------ pure-JAX reference --------------------------------------
def cnn_reference(x_nchw, params):
    x = jnp.transpose(x_nchw.astype(jnp.float32), (0, 2, 3, 1))

    def conv(x, w, b):
        y = lax.conv_general_dilated(x, w, (1, 1), "SAME",
                                     dimension_numbers=("NHWC", "HWIO", "NHWC"),
                                     precision=_PREC)
        return jax.nn.relu(y + b)

    def pool(x):
        N, H, W, C = x.shape
        return jnp.max(x.reshape(N, H // 2, 2, W // 2, 2, C), axis=(2, 4))

    x = pool(conv(x, params["w_conv1"], params["b_conv1"]))
    x = pool(conv(x, params["w_conv2"], params["b_conv2"]))
    # PyTorch flattens the NCHW tensor, i.e. channel-major (C, H, W) order:
    x = jnp.transpose(x, (0, 3, 1, 2)).reshape(x.shape[0], -1)
    h = jax.nn.relu(jnp.dot(x, params["w_fc1"], precision=_PREC) + params["b_fc1"])
    return jnp.dot(h, params["w_fc2"], precision=_PREC) + params["b_fc2"]


# --------------------------- deterministic parameter init -------------------------------
def init_params(key, H, W, out_dim):
    ks = jax.random.split(key, 8)
    feat = C2 * (H // 4) * (W // 4)

    def u(k, shape, fan_in):
        bound = 1.0 / np.sqrt(fan_in)
        return jax.random.uniform(k, shape, jnp.float32, -bound, bound)

    return {
        "w_conv1": u(ks[0], (3, 3, 1, C1), 9 * 1),            # HWIO
        "b_conv1": u(ks[1], (C1,), 9 * 1),
        "w_conv2": u(ks[2], (3, 3, C1, C2), 9 * C1),
        "b_conv2": u(ks[3], (C2,), 9 * C1),
        "w_fc1":   u(ks[4], (feat, FC), feat),                # torch fc1.weight.T
        "b_fc1":   u(ks[5], (FC,), feat),
        "w_fc2":   u(ks[6], (FC, out_dim), FC),               # torch fc2.weight.T
        "b_fc2":   u(ks[7], (out_dim,), FC),
    }


if __name__ == "__main__":
    key = jax.random.PRNGKey(0)
    kx, kp = jax.random.split(key)

    N, H, W = 32, 16, 16          # 2 batch blocks of 16 -> 2 parallel grid steps
    out_dim = 10
    x = jax.random.normal(kx, (N, 1, H, W), jnp.float32)      # NCHW, like the PyTorch module
    params = init_params(kp, H, W, out_dim)

    fwd = jax.jit(cnn_forward)
    y = jax.block_until_ready(fwd(x, params))
    y_ref = jax.block_until_ready(cnn_reference(x, params))

    assert y.shape == (N, out_dim) and y.dtype == jnp.float32
    # bf16 matmul operands (f32 accumulation) -> slightly looser atol than the f32 version
    np.testing.assert_allclose(np.asarray(y), np.asarray(y_ref), rtol=5e-2, atol=1e-2)
    print("KERNEL_OK")
</pallas_src>

<mosaic_0001>
module attributes {stable_mosaic.version = 11 : i64} {
  func.func @_cnn_kernel(%arg0: i32, %arg1: memref<256x16xf32, #tpu.memory_space<vmem>>, %arg2: memref<48x256xbf16, #tpu.memory_space<vmem>>, %arg3: memref<1x256xf32, #tpu.memory_space<vmem>>, %arg4: memref<768x256xbf16, #tpu.memory_space<vmem>>, %arg5: memref<1x256xf32, #tpu.memory_space<vmem>>, %arg6: memref<256x512xbf16, #tpu.memory_space<vmem>>, %arg7: memref<16x256xbf16, #tpu.memory_space<vmem>>, %arg8: memref<1x128xf32, #tpu.memory_space<vmem>>, %arg9: memref<128x128xbf16, #tpu.memory_space<vmem>>, %arg10: memref<1x128xf32, #tpu.memory_space<vmem>>, %arg11: memref<16x128xf32, #tpu.memory_space<vmem>>) attributes {dimension_semantics = [#tpu.dimension_semantics<parallel>], iteration_bounds = array<i64: 2>, scalar_prefetch = 0 : i64, scratch_operands = 0 : i64, tpu.core_type = #tpu.core_type<tc>, window_params = [{transform_indices = @transform_0, window_bounds = array<i64: 256, 16>}, {pipeline_mode = #tpu.pipeline_mode<synchronous>, transform_indices = @transform_1, window_bounds = array<i64: 48, 256>}, {pipeline_mode = #tpu.pipeline_mode<synchronous>, transform_indices = @transform_2, window_bounds = array<i64: 1, 256>}, {pipeline_mode = #tpu.pipeline_mode<synchronous>, transform_indices = @transform_3, window_bounds = array<i64: 768, 256>}, {pipeline_mode = #tpu.pipeline_mode<synchronous>, transform_indices = @transform_4, window_bounds = array<i64: 1, 256>}, {pipeline_mode = #tpu.pipeline_mode<synchronous>, transform_indices = @transform_5, window_bounds = array<i64: 256, 512>}, {pipeline_mode = #tpu.pipeline_mode<synchronous>, transform_indices = @transform_6, window_bounds = array<i64: 16, 256>}, {pipeline_mode = #tpu.pipeline_mode<synchronous>, transform_indices = @transform_7, window_bounds = array<i64: 1, 128>}, {pipeline_mode = #tpu.pipeline_mode<synchronous>, transform_indices = @transform_8, window_bounds = array<i64: 128, 128>}, {pipeline_mode = #tpu.pipeline_mode<synchronous>, transform_indices = @transform_9, window_bounds = array<i64: 1, 128>}, {transform_indices = @transform_10, window_bounds = array<i64: 16, 128>}]} {
    %c0 = arith.constant 0 : index
    %c0_0 = arith.constant 0 : index
    %0 = vector.load %arg1[%c0, %c0_0] : memref<256x16xf32, #tpu.memory_space<vmem>>, vector<256x16xf32>
    %1 = tpu.iota {dimensions = array<i32: 0>} : vector<256x1xi32>
    %c16_i32 = arith.constant 16 : i32
    %c0_i32 = arith.constant 0 : i32
    %2 = arith.cmpi eq, %c16_i32, %c0_i32 : i32
    %c1_i32 = arith.constant 1 : i32
    %3 = arith.select %2, %c1_i32, %c16_i32 : i32
    %4 = vector.broadcast %3 : i32 to vector<256x1xi32>
    %5 = arith.remsi %1, %4 : vector<256x1xi32>
    %c0_i32_1 = arith.constant 0 : i32
    %6 = vector.broadcast %c0_i32_1 : i32 to vector<256x1xi32>
    %7 = arith.cmpi ne, %5, %6 : vector<256x1xi32>
    %c0_i32_2 = arith.constant 0 : i32
    %8 = vector.broadcast %c0_i32_2 : i32 to vector<256x1xi32>
    %9 = arith.cmpi slt, %5, %8 : vector<256x1xi32>
    %c0_i32_3 = arith.constant 0 : i32
    %10 = arith.cmpi slt, %3, %c0_i32_3 : i32
    %11 = vector.broadcast %10 : i1 to vector<256x1xi1>
    %12 = vector.broadcast %11 : vector<256x1xi1> to vector<256x1xi1>
    %13 = arith.xori %9, %12 : vector<256x1xi1>
    %14 = arith.andi %13, %7 : vector<256x1xi1>
    %15 = vector.broadcast %3 : i32 to vector<256x1xi32>
    %16 = arith.addi %5, %15 : vector<256x1xi32>
    %17 = arith.select %14, %16, %5 : vector<256x1xi1>, vector<256x1xi32>
    %cst = arith.constant 0.000000e+00 : f32
    %18 = vector.broadcast %cst : f32 to vector<1x16xf32>
    %c0_i32_4 = arith.constant 0 : i32
    %19 = vector.broadcast %c0_i32_4 : i32 to vector<256x1xi32>
    %20 = arith.cmpi eq, %17, %19 : vector<256x1xi32>
    %21 = vector.extract_strided_slice %0 {offsets = [0, 0], sizes = [255, 16], strides = [1, 1]} : vector<256x16xf32> to vector<255x16xf32>
    %22 = tpu.concatenate %18, %21 in 0 : vector<1x16xf32>, vector<255x16xf32> -> vector<256x16xf32>
    %cst_5 = arith.constant 0.000000e+00 : f32
    %23 = vector.shape_cast %20 : vector<256x1xi1> to vector<256x1xi1>
    %24 = vector.broadcast %23 : vector<256x1xi1> to vector<256x16xi1>
    %25 = vector.broadcast %cst_5 : f32 to vector<256x16xf32>
    %26 = arith.select %24, %25, %22 : vector<256x16xi1>, vector<256x16xf32>
    %c15_i32 = arith.constant 15 : i32
    %27 = vector.broadcast %c15_i32 : i32 to vector<256x1xi32>
    %28 = arith.cmpi eq, %17, %27 : vector<256x1xi32>
    %29 = vector.extract_strided_slice %0 {offsets = [1, 0], sizes = [255, 16], strides = [1, 1]} : vector<256x16xf32> to vector<255x16xf32>
    %30 = tpu.concatenate %29, %18 in 0 : vector<255x16xf32>, vector<1x16xf32> -> vector<256x16xf32>
    %cst_6 = arith.constant 0.000000e+00 : f32
    %31 = vector.shape_cast %28 : vector<256x1xi1> to vector<256x1xi1>
    %32 = vector.broadcast %31 : vector<256x1xi1> to vector<256x16xi1>
    %33 = vector.broadcast %cst_6 : f32 to vector<256x16xf32>
    %34 = arith.select %32, %33, %30 : vector<256x16xi1>, vector<256x16xf32>
    %35 = tpu.concatenate %26, %0, %34 in 1 : vector<256x16xf32>, vector<256x16xf32>, vector<256x16xf32> -> vector<256x48xf32>
    %36 = arith.truncf %35 : vector<256x48xf32> to vector<256x48xbf16>
    %c0_7 = arith.constant 0 : index
    %c0_8 = arith.constant 0 : index
    %37 = vector.load %arg2[%c0_7, %c0_8] : memref<48x256xbf16, #tpu.memory_space<vmem>>, vector<48x256xbf16>
    %cst_9 = arith.constant dense<0.000000e+00> : vector<256x256xf32>
    %38 = tpu.matmul %36, %37, %cst_9 {dimension_numbers = #tpu.dot_dimension_numbers<[1], [0], [0], [1], [0, 0, 1, 1], [], []>} : vector<256x48xbf16>, vector<48x256xbf16>, vector<256x256xf32> -> vector<256x256xf32>
    %c0_10 = arith.constant 0 : index
    %c0_11 = arith.constant 0 : index
    %39 = vector.load %arg3[%c0_10, %c0_11] : memref<1x256xf32, #tpu.memory_space<vmem>>, vector<1x256xf32>
    %40 = vector.broadcast %39 : vector<1x256xf32> to vector<256x256xf32>
    %41 = arith.addf %38, %40 : vector<256x256xf32>
    %cst_12 = arith.constant 0.000000e+00 : f32
    %42 = vector.broadcast %cst_12 : f32 to vector<256x256xf32>
    %43 = arith.maximumf %41, %42 : vector<256x256xf32>
    %44 = vector.extract_strided_slice %43 {offsets = [0, 16], sizes = [256, 240], strides = [1, 1]} : vector<256x256xf32> to vector<256x240xf32>
    %cst_13 = arith.constant 0.000000e+00 : f32
    %45 = vector.broadcast %cst_13 : f32 to vector<256x16xf32>
    %46 = tpu.concatenate %44, %45 in 1 : vector<256x240xf32>, vector<256x16xf32> -> vector<256x256xf32>
    %47 = arith.maximumf %43, %46 : vector<256x256xf32>
    %48 = vector.extract_strided_slice %47 {offsets = [1, 0], sizes = [255, 256], strides = [1, 1]} : vector<256x256xf32> to vector<255x256xf32>
    %cst_14 = arith.constant 0.000000e+00 : f32
    %49 = vector.broadcast %cst_14 : f32 to vector<1x256xf32>
    %50 = tpu.concatenate %48, %49 in 0 : vector<255x256xf32>, vector<1x256xf32> -> vector<256x256xf32>
    %51 = arith.maximumf %47, %50 : vector<256x256xf32>
    %cst_15 = arith.constant 0.000000e+00 : f32
    %52 = vector.broadcast %cst_15 : f32 to vector<2x256xf32>
    %c2_i32 = arith.constant 2 : i32
    %53 = vector.broadcast %c2_i32 : i32 to vector<256x1xi32>
    %54 = arith.cmpi slt, %17, %53 : vector<256x1xi32>
    %55 = vector.extract_strided_slice %51 {offsets = [0, 0], sizes = [254, 256], strides = [1, 1]} : vector<256x256xf32> to vector<254x256xf32>
    %56 = tpu.concatenate %52, %55 in 0 : vector<2x256xf32>, vector<254x256xf32> -> vector<256x256xf32>
    %cst_16 = arith.constant 0.000000e+00 : f32
    %57 = vector.shape_cast %54 : vector<256x1xi1> to vector<256x1xi1>
    %58 = vector.broadcast %57 : vector<256x1xi1> to vector<256x256xi1>
    %59 = vector.broadcast %cst_16 : f32 to vector<256x256xf32>
    %60 = arith.select %58, %59, %56 : vector<256x256xi1>, vector<256x256xf32>
    %c14_i32 = arith.constant 14 : i32
    %61 = vector.broadcast %c14_i32 : i32 to vector<256x1xi32>
    %62 = arith.cmpi sge, %17, %61 : vector<256x1xi32>
    %63 = vector.extract_strided_slice %51 {offsets = [2, 0], sizes = [254, 256], strides = [1, 1]} : vector<256x256xf32> to vector<254x256xf32>
    %64 = tpu.concatenate %63, %52 in 0 : vector<254x256xf32>, vector<2x256xf32> -> vector<256x256xf32>
    %cst_17 = arith.constant 0.000000e+00 : f32
    %65 = vector.shape_cast %62 : vector<256x1xi1> to vector<256x1xi1>
    %66 = vector.broadcast %65 : vector<256x1xi1> to vector<256x256xi1>
    %67 = vector.broadcast %cst_17 : f32 to vector<256x256xf32>
    %68 = arith.select %66, %67, %64 : vector<256x256xi1>, vector<256x256xf32>
    %69 = tpu.concatenate %60, %51, %68 in 1 : vector<256x256xf32>, vector<256x256xf32>, vector<256x256xf32> -> vector<256x768xf32>
    %70 = arith.truncf %69 : vector<256x768xf32> to vector<256x768xbf16>
    %c0_18 = arith.constant 0 : index
    %c0_19 = arith.constant 0 : index
    %71 = vector.load %arg4[%c0_18, %c0_19] : memref<768x256xbf16, #tpu.memory_space<vmem>>, vector<768x256xbf16>
    %cst_20 = arith.constant dense<0.000000e+00> : vector<256x256xf32>
    %72 = tpu.matmul %70, %71, %cst_20 {dimension_numbers = #tpu.dot_dimension_numbers<[1], [0], [0], [1], [0, 0, 1, 1], [], []>} : vector<256x768xbf16>, vector<768x256xbf16>, vector<256x256xf32> -> vector<256x256xf32>
    %c0_21 = arith.constant 0 : index
    %c0_22 = arith.constant 0 : index
    %73 = vector.load %arg5[%c0_21, %c0_22] : memref<1x256xf32, #tpu.memory_space<vmem>>, vector<1x256xf32>
    %74 = vector.broadcast %73 : vector<1x256xf32> to vector<256x256xf32>
    %75 = arith.addf %72, %74 : vector<256x256xf32>
    %cst_23 = arith.constant 0.000000e+00 : f32
    %76 = vector.broadcast %cst_23 : f32 to vector<256x256xf32>
    %77 = arith.maximumf %75, %76 : vector<256x256xf32>
    %78 = vector.extract_strided_slice %77 {offsets = [0, 32], sizes = [256, 224], strides = [1, 1]} : vector<256x256xf32> to vector<256x224xf32>
    %cst_24 = arith.constant 0.000000e+00 : f32
    %79 = vector.broadcast %cst_24 : f32 to vector<256x32xf32>
    %80 = tpu.concatenate %78, %79 in 1 : vector<256x224xf32>, vector<256x32xf32> -> vector<256x256xf32>
    %81 = arith.maximumf %77, %80 : vector<256x256xf32>
    %82 = vector.extract_strided_slice %81 {offsets = [2, 0], sizes = [254, 256], strides = [1, 1]} : vector<256x256xf32> to vector<254x256xf32>
    %cst_25 = arith.constant 0.000000e+00 : f32
    %83 = vector.broadcast %cst_25 : f32 to vector<2x256xf32>
    %84 = tpu.concatenate %82, %83 in 0 : vector<254x256xf32>, vector<2x256xf32> -> vector<256x256xf32>
    %85 = arith.maximumf %81, %84 : vector<256x256xf32>
    %86 = arith.truncf %85 : vector<256x256xf32> to vector<256x256xbf16>
    %c0_26 = arith.constant 0 : index
    %c0_27 = arith.constant 0 : index
    %87 = vector.load %arg6[%c0_26, %c0_27] : memref<256x512xbf16, #tpu.memory_space<vmem>>, vector<256x512xbf16>
    %cst_28 = arith.constant dense<0.000000e+00> : vector<256x512xf32>
    %88 = tpu.matmul %86, %87, %cst_28 {dimension_numbers = #tpu.dot_dimension_numbers<[1], [0], [0], [1], [0, 0, 1, 1], [], []>} : vector<256x256xbf16>, vector<256x512xbf16>, vector<256x512xf32> -> vector<256x512xf32>
    %cst_29 = arith.constant 0.000000e+00 : f32
    %89 = vector.broadcast %cst_29 : f32 to vector<256x128xf32>
    %c0_i32_30 = arith.constant 0 : i32
    %90 = vector.broadcast %c0_i32_30 : i32 to vector<256x1xi32>
    %91 = arith.cmpi eq, %17, %90 : vector<256x1xi32>
    %92 = vector.extract_strided_slice %88 {offsets = [0, 0], sizes = [256, 128], strides = [1, 1]} : vector<256x512xf32> to vector<256x128xf32>
    %cst_31 = arith.constant 0.000000e+00 : f32
    %93 = vector.shape_cast %91 : vector<256x1xi1> to vector<256x1xi1>
    %94 = vector.broadcast %93 : vector<256x1xi1> to vector<256x128xi1>
    %95 = vector.broadcast %cst_31 : f32 to vector<256x128xf32>
    %96 = arith.select %94, %92, %95 : vector<256x128xi1>, vector<256x128xf32>
    %97 = arith.addf %89, %96 : vector<256x128xf32>
    %c4_i32 = arith.constant 4 : i32
    %98 = vector.broadcast %c4_i32 : i32 to vector<256x1xi32>
    %99 = arith.cmpi eq, %17, %98 : vector<256x1xi32>
    %100 = vector.extract_strided_slice %88 {offsets = [0, 128], sizes = [256, 128], strides = [1, 1]} : vector<256x512xf32> to vector<256x128xf32>
    %cst_32 = arith.constant 0.000000e+00 : f32
    %101 = vector.shape_cast %99 : vector<256x1xi1> to vector<256x1xi1>
    %102 = vector.broadcast %101 : vector<256x1xi1> to vector<256x128xi1>
    %103 = vector.broadcast %cst_32 : f32 to vector<256x128xf32>
    %104 = arith.select %102, %100, %103 : vector<256x128xi1>, vector<256x128xf32>
    %105 = arith.addf %97, %104 : vector<256x128xf32>
    %c8_i32 = arith.constant 8 : i32
    %106 = vector.broadcast %c8_i32 : i32 to vector<256x1xi32>
    %107 = arith.cmpi eq, %17, %106 : vector<256x1xi32>
    %108 = vector.extract_strided_slice %88 {offsets = [0, 256], sizes = [256, 128], strides = [1, 1]} : vector<256x512xf32> to vector<256x128xf32>
    %cst_33 = arith.constant 0.000000e+00 : f32
    %109 = vector.shape_cast %107 : vector<256x1xi1> to vector<256x1xi1>
    %110 = vector.broadcast %109 : vector<256x1xi1> to vector<256x128xi1>
    %111 = vector.broadcast %cst_33 : f32 to vector<256x128xf32>
    %112 = arith.select %110, %108, %111 : vector<256x128xi1>, vector<256x128xf32>
    %113 = arith.addf %105, %112 : vector<256x128xf32>
    %c12_i32 = arith.constant 12 : i32
    %114 = vector.broadcast %c12_i32 : i32 to vector<256x1xi32>
    %115 = arith.cmpi eq, %17, %114 : vector<256x1xi32>
    %116 = vector.extract_strided_slice %88 {offsets = [0, 384], sizes = [256, 128], strides = [1, 1]} : vector<256x512xf32> to vector<256x128xf32>
    %cst_34 = arith.constant 0.000000e+00 : f32
    %117 = vector.shape_cast %115 : vector<256x1xi1> to vector<256x1xi1>
    %118 = vector.broadcast %117 : vector<256x1xi1> to vector<256x128xi1>
    %119 = vector.broadcast %cst_34 : f32 to vector<256x128xf32>
    %120 = arith.select %118, %116, %119 : vector<256x128xi1>, vector<256x128xf32>
    %121 = arith.addf %113, %120 : vector<256x128xf32>
    %c0_35 = arith.constant 0 : index
    %c0_36 = arith.constant 0 : index
    %122 = vector.load %arg7[%c0_35, %c0_36] : memref<16x256xbf16, #tpu.memory_space<vmem>>, vector<16x256xbf16>
    %123 = arith.truncf %121 : vector<256x128xf32> to vector<256x128xbf16>
    %cst_37 = arith.constant dense<0.000000e+00> : vector<16x128xf32>
    %124 = tpu.matmul %122, %123, %cst_37 {dimension_numbers = #tpu.dot_dimension_numbers<[1], [0], [0], [1], [0, 0, 1, 1], [], []>} : vector<16x256xbf16>, vector<256x128xbf16>, vector<16x128xf32> -> vector<16x128xf32>
    %c0_38 = arith.constant 0 : index
    %c0_39 = arith.constant 0 : index
    %125 = vector.load %arg8[%c0_38, %c0_39] : memref<1x128xf32, #tpu.memory_space<vmem>>, vector<1x128xf32>
    %126 = vector.broadcast %125 : vector<1x128xf32> to vector<16x128xf32>
    %127 = arith.addf %124, %126 : vector<16x128xf32>
    %cst_40 = arith.constant 0.000000e+00 : f32
    %128 = vector.broadcast %cst_40 : f32 to vector<16x128xf32>
    %129 = arith.maximumf %127, %128 : vector<16x128xf32>
    %130 = arith.truncf %129 : vector<16x128xf32> to vector<16x128xbf16>
    %c0_41 = arith.constant 0 : index
    %c0_42 = arith.constant 0 : index
    %131 = vector.load %arg9[%c0_41, %c0_42] : memref<128x128xbf16, #tpu.memory_space<vmem>>, vector<128x128xbf16>
    %cst_43 = arith.constant dense<0.000000e+00> : vector<16x128xf32>
    %132 = tpu.matmul %130, %131, %cst_43 {dimension_numbers = #tpu.dot_dimension_numbers<[1], [0], [0], [1], [0, 0, 1, 1], [], []>} : vector<16x128xbf16>, vector<128x128xbf16>, vector<16x128xf32> -> vector<16x128xf32>
    %c0_44 = arith.constant 0 : index
    %c0_45 = arith.constant 0 : index
    %133 = vector.load %arg10[%c0_44, %c0_45] : memref<1x128xf32, #tpu.memory_space<vmem>>, vector<1x128xf32>
    %134 = vector.broadcast %133 : vector<1x128xf32> to vector<16x128xf32>
    %135 = arith.addf %132, %134 : vector<16x128xf32>
    %c0_46 = arith.constant 0 : index
    %c0_47 = arith.constant 0 : index
    %136 = vector.load %arg11[%c0_46, %c0_47] : memref<16x128xf32, #tpu.memory_space<vmem>>, vector<16x128xf32>
    tpu.vector_store %arg11[%c0_46, %c0_47], %135 {strides = array<i32>} : memref<16x128xf32, #tpu.memory_space<vmem>>, vector<16x128xf32>,
    return
  }
  func.func @transform_0(%arg0: i32) -> (i32, i32) {
    %c0_i32 = arith.constant 0 : i32
    %c0_i32_0 = arith.constant 0 : i32
    return %arg0, %c0_i32 : i32, i32
  }
  func.func @transform_1(%arg0: i32) -> (i32, i32) {
    %c0_i32 = arith.constant 0 : i32
    %c0_i32_0 = arith.constant 0 : i32
    %c0_i32_1 = arith.constant 0 : i32
    return %c0_i32, %c0_i32_0 : i32, i32
  }
  func.func @transform_2(%arg0: i32) -> (i32, i32) {
    %c0_i32 = arith.constant 0 : i32
    %c0_i32_0 = arith.constant 0 : i32
    %c0_i32_1 = arith.constant 0 : i32
    return %c0_i32, %c0_i32_0 : i32, i32
  }
  func.func @transform_3(%arg0: i32) -> (i32, i32) {
    %c0_i32 = arith.constant 0 : i32
    %c0_i32_0 = arith.constant 0 : i32
    %c0_i32_1 = arith.constant 0 : i32
    return %c0_i32, %c0_i32_0 : i32, i32
  }
  func.func @transform_4(%arg0: i32) -> (i32, i32) {
    %c0_i32 = arith.constant 0 : i32
    %c0_i32_0 = arith.constant 0 : i32
    %c0_i32_1 = arith.constant 0 : i32
    return %c0_i32, %c0_i32_0 : i32, i32
  }
  func.func @transform_5(%arg0: i32) -> (i32, i32) {
    %c0_i32 = arith.constant 0 : i32
    %c0_i32_0 = arith.constant 0 : i32
    %c0_i32_1 = arith.constant 0 : i32
    return %c0_i32, %c0_i32_0 : i32, i32
  }
  func.func @transform_6(%arg0: i32) -> (i32, i32) {
    %c0_i32 = arith.constant 0 : i32
    %c0_i32_0 = arith.constant 0 : i32
    %c0_i32_1 = arith.constant 0 : i32
    return %c0_i32, %c0_i32_0 : i32, i32
  }
  func.func @transform_7(%arg0: i32) -> (i32, i32) {
    %c0_i32 = arith.constant 0 : i32
    %c0_i32_0 = arith.constant 0 : i32
    %c0_i32_1 = arith.constant 0 : i32
    return %c0_i32, %c0_i32_0 : i32, i32
  }
  func.func @transform_8(%arg0: i32) -> (i32, i32) {
    %c0_i32 = arith.constant 0 : i32
    %c0_i32_0 = arith.constant 0 : i32
    %c0_i32_1 = arith.constant 0 : i32
    return %c0_i32, %c0_i32_0 : i32, i32
  }
  func.func @transform_9(%arg0: i32) -> (i32, i32) {
    %c0_i32 = arith.constant 0 : i32
    %c0_i32_0 = arith.constant 0 : i32
    %c0_i32_1 = arith.constant 0 : i32
    return %c0_i32, %c0_i32_0 : i32, i32
  }
  func.func @transform_10(%arg0: i32) -> (i32, i32) {
    %c0_i32 = arith.constant 0 : i32
    %c0_i32_0 = arith.constant 0 : i32
    return %arg0, %c0_i32 : i32, i32
  }
}

</mosaic_0001>

<llo_original>
// kernel: tile.13
$region0: #{tile.13}
  #allocation0 [shape = 's32[1]{0}', space=sflag, size = 0x4, scoped, tag = 'scoped memory for tile.13']
  %s0 = inlined_call_operand.vmem [shape: f32[16], index: 0, kind: input, shape index: {}]
  %s1 = inlined_call_operand.vmem [shape: f32[16,16], index: 1, kind: output, shape index: {}]
  // Predicated region
  $region2: #{tile.13} parent=0 // pred_check
    _
  $region3: #{tile.13} parent=0 // pred_check_branch
    %3 = sbr.rel (0) target = $region5
  $region4: #{tile.13} parent=0 // pred_region
    _
  $region5: #{tile.13} parent=0 // pred_fallthru
    _
  %v4 = vld [vmem:[%s0] ss:$0 sm:$0xff]
  %5 = vst [vmem:[%s1] sm:$0xff] %v4
  %s6 = scalar_lea.vmem %s1, 8
  %7 = vst [vmem:[%s6] sm:$0xff] %v4

// kernel: tile.14
$region0: #{tile.14}
  %s0 = inlined_call_operand.vmem [shape: f32[16,16], index: 0, kind: input, shape index: {}]
  %s1 = inlined_call_operand.vmem [shape: f32[1,256], index: 1, kind: output, shape index: {}]
  $region1: #{tile.14} parent=0
    #allocation0 [shape = 'u8[8192]{0}', space=vmem, size = 0x2000, scoped, tag = 'scoped mem for output reshape']
    %s2 = smov 3
    %v3 = vld [vmem:[%s0] ss:$8 sm:%s2]
    %vm4 = vcmask 130048
    %5 = vst.msk [vmem:[#allocation0] ss:$8 sm:$0x3] %vm4, %v3
    %s6 = scalar_lea.vmem %s0, 7
    %s7 = smov 3
    %v8 = vld [vmem:[%s6] ss:$8 sm:%s7]
    %9 = vrot.lane.b32.xlu0 %v8, 112
    %v10 = vpop.permute.xlu0 %9
    %vm11 = vcmask 1048448
    %12 = vst.msk [vmem:[#allocation0] ss:$8 sm:$0x3] %vm11, %v10
    %s13 = scalar_lea.vmem %s0, 6
    %s14 = smov 3
    %v15 = vld [vmem:[%s13] ss:$8 sm:%s14]
    %16 = vrot.lane.b32.xlu0 %v15, 96
    %v17 = vpop.permute.xlu0 %16
    %vm18 = vcmask 917248
    %19 = vst.msk [vmem:[#allocation0] ss:$8 sm:$0x3] %vm18, %v17
    %s20 = scalar_lea.vmem %s0, 5
    %s21 = smov 3
    %v22 = vld [vmem:[%s20] ss:$8 sm:%s21]
    %23 = vrot.lane.b32.xlu0 %v22, 80
    %v24 = vpop.permute.xlu0 %23
    %vm25 = vcmask 786048
    %26 = vst.msk [vmem:[#allocation0] ss:$8 sm:$0x3] %vm25, %v24
    %s27 = scalar_lea.vmem %s0, 4
    %s28 = smov 3
    %v29 = vld [vmem:[%s27] ss:$8 sm:%s28]
    %30 = vrot.lane.b32.xlu0 %v29, 64
    %v31 = vpop.permute.xlu0 %30
    %vm32 = vcmask 654848
    %33 = vst.msk [vmem:[#allocation0] ss:$8 sm:$0x3] %vm32, %v31
    %s34 = scalar_lea.vmem %s0, 3
    %s35 = smov 3
    %v36 = vld [vmem:[%s34] ss:$8 sm:%s35]
    %37 = vrot.lane.b32.xlu0 %v36, 48
    %v38 = vpop.permute.xlu0 %37
    %vm39 = vcmask 523648
    %40 = vst.msk [vmem:[#allocation0] ss:$8 sm:$0x3] %vm39, %v38
    %s41 = scalar_lea.vmem %s0, 2
    %s42 = smov 3
    %v43 = vld [vmem:[%s41] ss:$8 sm:%s42]
    %44 = vrot.lane.b32.xlu0 %v43, 32
    %v45 = vpop.permute.xlu0 %44
    %vm46 = vcmask 392448
    %47 = vst.msk [vmem:[#allocation0] ss:$8 sm:$0x3] %vm46, %v45
    %s48 = scalar_lea.vmem %s0, 1
    %s49 = smov 3
    %v50 = vld [vmem:[%s48] ss:$8 sm:%s49]
    %51 = vrot.lane.b32.xlu0 %v50, 16
    %v52 = vpop.permute.xlu0 %51
    %vm53 = vcmask 261248
    %54 = vst.msk [vmem:[#allocation0] ss:$8 sm:$0x3] %vm53, %v52
    %s56 = ssub.s32 2, 1
    %v57 = vld [vmem:[#allocation0] sm:%s56]
    %s59 = ssub.s32 2, 1
    %60 = vst [vmem:[%s1] sm:%s59] %v57
    %s61 = scalar_lea.vmem [#allocation0], 8
    %v62 = vld [vmem:[%s61] sm:%s56]
    %s64 = ssub.s32 2, 1
    %s65 = scalar_lea.vmem %s1, 1
    %66 = vst [vmem:[%s65] sm:%s64] %v62

// kernel: tile.18
$region0: #{tile.18}
  #allocation0 [shape = 's32[1]{0}', space=sflag, size = 0x4, scoped, tag = 'scoped memory for tile.18']
  %s0 = inlined_call_operand.vmem [shape: f32[32], index: 0, kind: input, shape index: {}]
  %s1 = inlined_call_operand.vmem [shape: f32[8,32], index: 1, kind: output, shape index: {}]
  // Predicated region
  $region2: #{tile.18} parent=0 // pred_check
    _
  $region3: #{tile.18} parent=0 // pred_check_branch
    %3 = sbr.rel (0) target = $region5
  $region4: #{tile.18} parent=0 // pred_region
    _
  $region5: #{tile.18} parent=0 // pred_fallthru
    _
  %v4 = vld [vmem:[%s0] ss:$0 sm:$0xff]
  %5 = vst [vmem:[%s1] sm:$0xff] %v4

// kernel: tile.19
$region0: #{tile.19}
  %s0 = inlined_call_operand.vmem [shape: f32[8,32], index: 0, kind: input, shape index: {}]
  %s1 = inlined_call_operand.vmem [shape: f32[1,256], index: 1, kind: output, shape index: {}]
  $region1: #{tile.19} parent=0
    #allocation0 [shape = 'u8[8192]{0}', space=vmem, size = 0x2000, scoped, tag = 'scoped mem for output reshape']
    %s2 = smov 3
    %v3 = vld [vmem:[%s0] ss:$4 sm:%s2]
    %vm4 = vcmask 261120
    %5 = vst.msk [vmem:[#allocation0] ss:$8 sm:$0x3] %vm4, %v3
    %s6 = scalar_lea.vmem %s0, 3
    %s7 = smov 3
    %v8 = vld [vmem:[%s6] ss:$4 sm:%s7]
    %9 = vrot.lane.b32.xlu0 %v8, 96
    %v10 = vpop.permute.xlu0 %9
    %vm11 = vcmask 1048320
    %12 = vst.msk [vmem:[#allocation0] ss:$8 sm:$0x3] %vm11, %v10
    %s13 = scalar_lea.vmem %s0, 2
    %s14 = smov 3
    %v15 = vld [vmem:[%s13] ss:$4 sm:%s14]
    %16 = vrot.lane.b32.xlu0 %v15, 64
    %v17 = vpop.permute.xlu0 %16
    %vm18 = vcmask 785920
    %19 = vst.msk [vmem:[#allocation0] ss:$8 sm:$0x3] %vm18, %v17
    %s20 = scalar_lea.vmem %s0, 1
    %s21 = smov 3
    %v22 = vld [vmem:[%s20] ss:$4 sm:%s21]
    %23 = vrot.lane.b32.xlu0 %v22, 32
    %v24 = vpop.permute.xlu0 %23
    %vm25 = vcmask 523520
    %26 = vst.msk [vmem:[#allocation0] ss:$8 sm:$0x3] %vm25, %v24
    %s28 = ssub.s32 2, 1
    %v29 = vld [vmem:[#allocation0] sm:%s28]
    %s31 = ssub.s32 2, 1
    %32 = vst [vmem:[%s1] sm:%s31] %v29
    %s33 = scalar_lea.vmem [#allocation0], 8
    %v34 = vld [vmem:[%s33] sm:%s28]
    %s36 = ssub.s32 2, 1
    %s37 = scalar_lea.vmem %s1, 1
    %38 = vst [vmem:[%s37] sm:%s36] %v34

// kernel: cnn_forward.1
$region0: #{cnn_forward.1}
  #allocation0 [shape = 'u32[]', space=smem, size = 0x4, offset = 0x4, fixed_abs, tag = 'smem constant byte address 0x4 - core index']
  #allocation1 [shape = 'u32[72,128]{1,0:T(1,128)}', space=vmem, size = 0x9000, scoped, tag = 'internal scratch']
  %s0 = inlined_call_operand.vmem [shape: f32[512,16], index: 0, kind: input, shape index: {}]
  %s1 = inlined_call_operand.vmem [shape: bf16[48,256], index: 1, kind: input, shape index: {}]
  %s2 = inlined_call_operand.vmem [shape: f32[1,256], index: 2, kind: input, shape index: {}]
  %s3 = inlined_call_operand.vmem [shape: bf16[768,256], index: 3, kind: input, shape index: {}]
  %s4 = inlined_call_operand.vmem [shape: f32[1,256], index: 4, kind: input, shape index: {}]
  %s5 = inlined_call_operand.vmem [shape: bf16[256,512], index: 5, kind: input, shape index: {}]
  %s6 = inlined_call_operand.vmem [shape: bf16[16,256], index: 6, kind: input, shape index: {}]
  %s7 = inlined_call_operand.vmem [shape: f32[1,128], index: 7, kind: input, shape index: {}]
  %s8 = inlined_call_operand.vmem [shape: bf16[128,128], index: 8, kind: input, shape index: {}]
  %s9 = inlined_call_operand.vmem [shape: f32[1,128], index: 9, kind: input, shape index: {}]
  %s10 = inlined_call_operand.vmem [shape: f32[32,128], index: 10, kind: output, shape index: {}]
  %s11 = sld [smem:[#allocation0]]
  $region73: #{cnn_forward.1} parent=0
    _
  %s13 = ssub.s32 1, %s11
  %s14 = scalar_select 0, %s13, %s11
  loop: start=0, step=1, limit=4
  $region2: #{cnn_forward.1} parent=0 // loop_pre_header
    _
  $region3: #{cnn_forward.1} parent=0 // loop_header
    %s16 = sphi 0, %s20
    %p17 = scmp.ge.s32.totalorder %s16, 4
    %s26 = sphi 0, %s28
    %s29 = sphi 0, %s26
    %s30 = sphi 0, %s29
    %s46 = sphi 0, %s30
    %s50 = sphi 0, %s50
    %s52 = sphi 0, %s50
    %s53 = sphi 0, %s52
    %s67 = sphi 0, %s53
    %s71 = sphi 0, %s71
    %s73 = sphi 0, %s71
    %s74 = sphi 0, %s73
    %s88 = sphi 0, %s74
    %s92 = sphi 0, %s92
    %s94 = sphi 0, %s92
    %s95 = sphi 0, %s94
    %s109 = sphi 0, %s95
    %s113 = sphi 0, %s113
    %s115 = sphi 0, %s113
    %s116 = sphi 0, %s115
    %s130 = sphi 0, %s116
    %s134 = sphi 0, %s134
    %s136 = sphi 0, %s134
    %s137 = sphi 0, %s136
    %s151 = sphi 0, %s137
    %s155 = sphi 0, %s155
    %s157 = sphi 0, %s155
    %s158 = sphi 0, %s157
    %s172 = sphi 0, %s158
    %s176 = sphi 0, %s176
    %s178 = sphi 0, %s176
    %s179 = sphi 0, %s178
    %s193 = sphi 0, %s179
    %s197 = sphi 0, %s197
    %s199 = sphi 0, %s197
    %s200 = sphi 0, %s199
    %s214 = sphi 0, %s200
    %s218 = sphi 0, %s218
    %s220 = sphi 0, %s218
    %s221 = sphi 0, %s220
    %s235 = sphi 0, %s221
    %s241 = sphi 0, %s243
    %s244 = sphi 0, %s241
    %s245 = sphi 0, %s244
    %s261 = sphi 0, %s245
  $region4: #{cnn_forward.1} parent=0 // loop_header_branch
    %19 = sbr.rel (%p17) target = $region8
  $region5: #{cnn_forward.1} parent=0 // loop_body
    %s21 = ssub.s32 %s16, 1
    %s22 = ssub.s32 %s16, 2
    %s23 = sadd.s32 %s16, 1
    %s24 = ssub.s32 %s16, %s23
    %p25 = scmp.eq.s32.totalorder %s24, 0
    %s27 = sadd.s32 %s26, 1
    %s28 = scalar_select %p25, %s26, %s27
    %p31 = pneg %p25
    %p32 = scmp.eq.s32.totalorder %s16, 1
    %p33 = por %p31, %p32
    %p34 = scmp.ne.s32.totalorder %s26, %s29
    %p35 = scmp.eq.s32.totalorder %s16, 0
    %p36 = por %p34, %p35
    %p37 = scmp.ne.s32.totalorder %s26, %s29
    %p38 = scmp.eq.s32.totalorder %s21, 1
    %p39 = por %p37, %p38
    %p40 = scmp.ne.s32.totalorder %s29, %s30
    %p41 = scmp.eq.s32.totalorder %s21, 0
    %p42 = por %p40, %p41
    %p43 = scmp.ne.s32.totalorder %s29, %s30
    %p44 = scmp.eq.s32.totalorder %s22, 1
    %p45 = por %p43, %p44
    %p47 = scmp.ne.s32.totalorder %s30, %s46
    %p48 = scmp.eq.s32.totalorder %s22, 0
    %p49 = por %p47, %p48
    %s51 = sadd.s32 %s50, 1
    %p54 = scmp.eq.s32.totalorder %s16, 1
    %p55 = scmp.ne.s32.totalorder %s50, %s52
    %p56 = scmp.eq.s32.totalorder %s16, 0
    %p57 = por %p55, %p56
    %p58 = scmp.ne.s32.totalorder %s50, %s52
    %p59 = scmp.eq.s32.totalorder %s21, 1
    %p60 = por %p58, %p59
    %p61 = scmp.ne.s32.totalorder %s52, %s53
    %p62 = scmp.eq.s32.totalorder %s21, 0
    %p63 = por %p61, %p62
    %p64 = scmp.ne.s32.totalorder %s52, %s53
    %p65 = scmp.eq.s32.totalorder %s22, 1
    %p66 = por %p64, %p65
    %p68 = scmp.ne.s32.totalorder %s53, %s67
    %p69 = scmp.eq.s32.totalorder %s22, 0
    %p70 = por %p68, %p69
    %s72 = sadd.s32 %s71, 1
    %p75 = scmp.eq.s32.totalorder %s16, 1
    %p76 = scmp.ne.s32.totalorder %s71, %s73
    %p77 = scmp.eq.s32.totalorder %s16, 0
    %p78 = por %p76, %p77
    %p79 = scmp.ne.s32.totalorder %s71, %s73
    %p80 = scmp.eq.s32.totalorder %s21, 1
    %p81 = por %p79, %p80
    %p82 = scmp.ne.s32.totalorder %s73, %s74
    %p83 = scmp.eq.s32.totalorder %s21, 0
    %p84 = por %p82, %p83
    %p85 = scmp.ne.s32.totalorder %s73, %s74
    %p86 = scmp.eq.s32.totalorder %s22, 1
    %p87 = por %p85, %p86
    %p89 = scmp.ne.s32.totalorder %s74, %s88
    %p90 = scmp.eq.s32.totalorder %s22, 0
    %p91 = por %p89, %p90
    %s93 = sadd.s32 %s92, 1
    %p96 = scmp.eq.s32.totalorder %s16, 1
    %p97 = scmp.ne.s32.totalorder %s92, %s94
    %p98 = scmp.eq.s32.totalorder %s16, 0
    %p99 = por %p97, %p98
    %p100 = scmp.ne.s32.totalorder %s92, %s94
    %p101 = scmp.eq.s32.totalorder %s21, 1
    %p102 = por %p100, %p101
    %p103 = scmp.ne.s32.totalorder %s94, %s95
    %p104 = scmp.eq.s32.totalorder %s21, 0
    %p105 = por %p103, %p104
    %p106 = scmp.ne.s32.totalorder %s94, %s95
    %p107 = scmp.eq.s32.totalorder %s22, 1
    %p108 = por %p106, %p107
    %p110 = scmp.ne.s32.totalorder %s95, %s109
    %p111 = scmp.eq.s32.totalorder %s22, 0
    %p112 = por %p110, %p111
    %s114 = sadd.s32 %s113, 1
    %p117 = scmp.eq.s32.totalorder %s16, 1
    %p118 = scmp.ne.s32.totalorder %s113, %s115
    %p119 = scmp.eq.s32.totalorder %s16, 0
    %p120 = por %p118, %p119
    %p121 = scmp.ne.s32.totalorder %s113, %s115
    %p122 = scmp.eq.s32.totalorder %s21, 1
    %p123 = por %p121, %p122
    %p124 = scmp.ne.s32.totalorder %s115, %s116
    %p125 = scmp.eq.s32.totalorder %s21, 0
    %p126 = por %p124, %p125
    %p127 = scmp.ne.s32.totalorder %s115, %s116
    %p128 = scmp.eq.s32.totalorder %s22, 1
    %p129 = por %p127, %p128
    %p131 = scmp.ne.s32.totalorder %s116, %s130
    %p132 = scmp.eq.s32.totalorder %s22, 0
    %p133 = por %p131, %p132
    %s135 = sadd.s32 %s134, 1
    %p138 = scmp.eq.s32.totalorder %s16, 1
    %p139 = scmp.ne.s32.totalorder %s134, %s136
    %p140 = scmp.eq.s32.totalorder %s16, 0
    %p141 = por %p139, %p140
    %p142 = scmp.ne.s32.totalorder %s134, %s136
    %p143 = scmp.eq.s32.totalorder %s21, 1
    %p144 = por %p142, %p143
    %p145 = scmp.ne.s32.totalorder %s136, %s137
    %p146 = scmp.eq.s32.totalorder %s21, 0
    %p147 = por %p145, %p146
    %p148 = scmp.ne.s32.totalorder %s136, %s137
    %p149 = scmp.eq.s32.totalorder %s22, 1
    %p150 = por %p148, %p149
    %p152 = scmp.ne.s32.totalorder %s137, %s151
    %p153 = scmp.eq.s32.totalorder %s22, 0
    %p154 = por %p152, %p153
    %s156 = sadd.s32 %s155, 1
    %p159 = scmp.eq.s32.totalorder %s16, 1
    %p160 = scmp.ne.s32.totalorder %s155, %s157
    %p161 = scmp.eq.s32.totalorder %s16, 0
    %p162 = por %p160, %p161
    %p163 = scmp.ne.s32.totalorder %s155, %s157
    %p164 = scmp.eq.s32.totalorder %s21, 1
    %p165 = por %p163, %p164
    %p166 = scmp.ne.s32.totalorder %s157, %s158
    %p167 = scmp.eq.s32.totalorder %s21, 0
    %p168 = por %p166, %p167
    %p169 = scmp.ne.s32.totalorder %s157, %s158
    %p170 = scmp.eq.s32.totalorder %s22, 1
    %p171 = por %p169, %p170
    %p173 = scmp.ne.s32.totalorder %s158, %s172
    %p174 = scmp.eq.s32.totalorder %s22, 0
    %p175 = por %p173, %p174
    %s177 = sadd.s32 %s176, 1
    %p180 = scmp.eq.s32.totalorder %s16, 1
    %p181 = scmp.ne.s32.totalorder %s176, %s178
    %p182 = scmp.eq.s32.totalorder %s16, 0
    %p183 = por %p181, %p182
    %p184 = scmp.ne.s32.totalorder %s176, %s178
    %p185 = scmp.eq.s32.totalorder %s21, 1
    %p186 = por %p184, %p185
    %p187 = scmp.ne.s32.totalorder %s178, %s179
    %p188 = scmp.eq.s32.totalorder %s21, 0
    %p189 = por %p187, %p188
    %p190 = scmp.ne.s32.totalorder %s178, %s179
    %p191 = scmp.eq.s32.totalorder %s22, 1
    %p192 = por %p190, %p191
    %p194 = scmp.ne.s32.totalorder %s179, %s193
    %p195 = scmp.eq.s32.totalorder %s22, 0
    %p196 = por %p194, %p195
    %s198 = sadd.s32 %s197, 1
    %p201 = scmp.eq.s32.totalorder %s16, 1
    %p202 = scmp.ne.s32.totalorder %s197, %s199
    %p203 = scmp.eq.s32.totalorder %s16, 0
    %p204 = por %p202, %p203
    %p205 = scmp.ne.s32.totalorder %s197, %s199
    %p206 = scmp.eq.s32.totalorder %s21, 1
    %p207 = por %p205, %p206
    %p208 = scmp.ne.s32.totalorder %s199, %s200
    %p209 = scmp.eq.s32.totalorder %s21, 0
    %p210 = por %p208, %p209
    %p211 = scmp.ne.s32.totalorder %s199, %s200
    %p212 = scmp.eq.s32.totalorder %s22, 1
    %p213 = por %p211, %p212
    %p215 = scmp.ne.s32.totalorder %s200, %s214
    %p216 = scmp.eq.s32.totalorder %s22, 0
    %p217 = por %p215, %p216
    %s219 = sadd.s32 %s218, 1
    %p222 = scmp.eq.s32.totalorder %s16, 1
    %p223 = scmp.ne.s32.totalorder %s218, %s220
    %p224 = scmp.eq.s32.totalorder %s16, 0
    %p225 = por %p223, %p224
    %p226 = scmp.ne.s32.totalorder %s218, %s220
    %p227 = scmp.eq.s32.totalorder %s21, 1
    %p228 = por %p226, %p227
    %p229 = scmp.ne.s32.totalorder %s220, %s221
    %p230 = scmp.eq.s32.totalorder %s21, 0
    %p231 = por %p229, %p230
    %p232 = scmp.ne.s32.totalorder %s220, %s221
    %p233 = scmp.eq.s32.totalorder %s22, 1
    %p234 = por %p232, %p233
    %p236 = scmp.ne.s32.totalorder %s221, %s235
    %p237 = scmp.eq.s32.totalorder %s22, 0
    %p238 = por %p236, %p237
    %s239 = ssub.s32 %s16, %s23
    %p240 = scmp.eq.s32.totalorder %s239, 0
    %s242 = sadd.s32 %s241, 1
    %s243 = scalar_select %p240, %s241, %s242
    %p246 = pneg %p240
    %p247 = scmp.eq.s32.totalorder %s16, 1
    %p248 = por %p246, %p247
    %p249 = scmp.ne.s32.totalorder %s241, %s244
    %p250 = scmp.eq.s32.totalorder %s16, 0
    %p251 = por %p249, %p250
    %p252 = scmp.ne.s32.totalorder %s241, %s244
    %p253 = scmp.eq.s32.totalorder %s21, 1
    %p254 = por %p252, %p253
    %p255 = scmp.ne.s32.totalorder %s244, %s245
    %p256 = scmp.eq.s32.totalorder %s21, 0
    %p257 = por %p255, %p256
    %p258 = scmp.ne.s32.totalorder %s244, %s245
    %p259 = scmp.eq.s32.totalorder %s22, 1
    %p260 = por %p258, %p259
    %p262 = scmp.ne.s32.totalorder %s245, %s261
    %p263 = scmp.eq.s32.totalorder %s22, 0
    %p264 = por %p262, %p263
    %p265 = scmp.le.s32.totalorder 1, %s16
    %p266 = scmp.lt.s32.totalorder %s16, 3
    %p267 = pnand %p265, %p266
    %p268 = pneg %p267
    // Predicated region
    $region9: #{cnn_forward.1} parent=5 // pred_check
      _
    $region10: #{cnn_forward.1} parent=5 // pred_check_branch
      %270 = sbr.rel (%p267) target = $region12
    $region11: #{cnn_forward.1} parent=5 // pred_region
      %s271 = ssub.s32 %s16, 1
      // Predicated region
      $region13: #{cnn_forward.1} parent=11 // pred_check
        %p272 = pneg %p63
      $region14: #{cnn_forward.1} parent=11 // pred_check_branch
        %274 = sbr.rel (%p272) target = $region16
      $region15: #{cnn_forward.1} parent=11 // pred_region
        _
      $region16: #{cnn_forward.1} parent=11 // pred_fallthru
        _
      // Predicated region
      $region17: #{cnn_forward.1} parent=11 // pred_check
        %p275 = pneg %p84
      $region18: #{cnn_forward.1} parent=11 // pred_check_branch
        %277 = sbr.rel (%p275) target = $region20
      $region19: #{cnn_forward.1} parent=11 // pred_region
        _
      $region20: #{cnn_forward.1} parent=11 // pred_fallthru
        _
      // Predicated region
      $region21: #{cnn_forward.1} parent=11 // pred_check
        %p278 = pneg %p105
      $region22: #{cnn_forward.1} parent=11 // pred_check_branch
        %280 = sbr.rel (%p278) target = $region24
      $region23: #{cnn_forward.1} parent=11 // pred_region
        _
      $region24: #{cnn_forward.1} parent=11 // pred_fallthru
        _
      // Predicated region
      $region25: #{cnn_forward.1} parent=11 // pred_check
        %p281 = pneg %p126
      $region26: #{cnn_forward.1} parent=11 // pred_check_branch
        %283 = sbr.rel (%p281) target = $region28
      $region27: #{cnn_forward.1} parent=11 // pred_region
        _
      $region28: #{cnn_forward.1} parent=11 // pred_fallthru
        _
      // Predicated region
      $region29: #{cnn_forward.1} parent=11 // pred_check
        %p284 = pneg %p147
      $region30: #{cnn_forward.1} parent=11 // pred_check_branch
        %286 = sbr.rel (%p284) target = $region32
      $region31: #{cnn_forward.1} parent=11 // pred_region
        _
      $region32: #{cnn_forward.1} parent=11 // pred_fallthru
        _
      // Predicated region
      $region33: #{cnn_forward.1} parent=11 // pred_check
        %p287 = pneg %p168
      $region34: #{cnn_forward.1} parent=11 // pred_check_branch
        %289 = sbr.rel (%p287) target = $region36
      $region35: #{cnn_forward.1} parent=11 // pred_region
        _
      $region36: #{cnn_forward.1} parent=11 // pred_fallthru
        _
      // Predicated region
      $region37: #{cnn_forward.1} parent=11 // pred_check
        %p290 = pneg %p189
      $region38: #{cnn_forward.1} parent=11 // pred_check_branch
        %292 = sbr.rel (%p290) target = $region40
      $region39: #{cnn_forward.1} parent=11 // pred_region
        _
      $region40: #{cnn_forward.1} parent=11 // pred_fallthru
        _
      // Predicated region
      $region41: #{cnn_forward.1} parent=11 // pred_check
        %p293 = pneg %p210
      $region42: #{cnn_forward.1} parent=11 // pred_check_branch
        %295 = sbr.rel (%p293) target = $region44
      $region43: #{cnn_forward.1} parent=11 // pred_region
        _
      $region44: #{cnn_forward.1} parent=11 // pred_fallthru
        _
      // Predicated region
      $region45: #{cnn_forward.1} parent=11 // pred_check
        %p296 = pneg %p231
      $region46: #{cnn_forward.1} parent=11 // pred_check_branch
        %298 = sbr.rel (%p296) target = $region48
      $region47: #{cnn_forward.1} parent=11 // pred_region
        _
      $region48: #{cnn_forward.1} parent=11 // pred_fallthru
        _
    $region12: #{cnn_forward.1} parent=5 // pred_fallthru
      _
    %p299 = scmp.lt.s32.totalorder %s16, 2
    // Predicated region
    $region49: #{cnn_forward.1} parent=5 // pred_check
      %p300 = pneg %p299
    $region50: #{cnn_forward.1} parent=5 // pred_check_branch
      %302 = sbr.rel (%p300) target = $region52
    $region51: #{cnn_forward.1} parent=5 // pred_region
      // Predicated region
      $region53: #{cnn_forward.1} parent=51 // pred_check
        %p303 = pneg %p36
      $region54: #{cnn_forward.1} parent=51 // pred_check_branch
        %305 = sbr.rel (%p303) target = $region56
      $region55: #{cnn_forward.1} parent=51 // pred_region
        %s306 = smul.u32 32, %s16
        %p307 = scmp.lt.s32.totalorder %s306, 63
        %s308 = scalar_select %p307, %s306, 63
        %s309 = smul.addr %s308, 8
        %s310 = scalar_lea.vmem %s0, %s309
        %s311 = smul.u32 32, %s16
      $region56: #{cnn_forward.1} parent=51 // pred_fallthru
        _
    $region52: #{cnn_forward.1} parent=5 // pred_fallthru
      _
    %p312 = scmp.le.s32.totalorder 1, %s16
    %p313 = scmp.lt.s32.totalorder %s16, 3
    %p314 = pnand %p312, %p313
    %p315 = pneg %p314
    // Predicated region
    $region57: #{cnn_forward.1} parent=5 // pred_check
      _
    $region58: #{cnn_forward.1} parent=5 // pred_check_branch
      %317 = sbr.rel (%p314) target = $region60
    $region59: #{cnn_forward.1} parent=5 // pred_region
      %s318 = ssub.s32 %s16, 1
      %s319 = smul.u32 32, %s21
      %p320 = scmp.lt.s32.totalorder %s319, 63
      %s321 = scalar_select %p320, %s319, 63
      %s322 = smul.addr %s321, 8
      %s323 = scalar_lea.vmem %s0, %s322
      %p324 = pneg %p42
      %p325 = pneg %p39
      %p326 = pneg %p63
      %p327 = pneg %p60
      %p328 = pneg %p84
      %p329 = pneg %p81
      %p330 = pneg %p105
      %p331 = pneg %p102
      %p332 = pneg %p126
      %p333 = pneg %p123
      %p334 = pneg %p147
      %p335 = pneg %p144
      %p336 = pneg %p168
      %p337 = pneg %p165
      %p338 = pneg %p189
      %p339 = pneg %p186
      %p340 = pneg %p210
      %p341 = pneg %p207
      %p342 = pneg %p231
      %p343 = pneg %p228
      %p344 = pneg %p257
      %p345 = pneg %p254
      %s346 = smul.u32 2, %s21
      %p347 = scmp.lt.s32.totalorder %s346, 3
      %s348 = scalar_select %p347, %s346, 3
      %s349 = smul.addr %s348, 8
      %s350 = scalar_lea.vmem %s10, %s349
      %s351 = smul.u32 32, %s21
      %p352 = scmp.lt.s32.totalorder %s351, 63
      %s353 = scalar_select %p352, %s351, 63
      %s354 = smul.addr %s353, 8
      %s355 = scalar_lea.vmem %s0, %s354
      %s356 = smul.u32 32, %s21
      %s357 = smul.u32 2, %s21
      %p358 = scmp.lt.s32.totalorder %s357, 3
      %s359 = scalar_select %p358, %s357, 3
      %s360 = smul.addr %s359, 8
      %s361 = scalar_lea.vmem %s10, %s360
      %s362 = smul.u32 2, %s21
      %v364 = vld [vmem:[%s355] sm:$0xff]
      %v365 = vld [vmem:[%s355 + $0x8] sm:$0xff]
      %v366 = vld [vmem:[%s355 + $0x10] sm:$0xff]
      %v367 = vld [vmem:[%s355 + $0x18] sm:$0xff]
      %v368 = vld [vmem:[%s355 + $0x20] sm:$0xff]
      %v369 = vld [vmem:[%s355 + $0x28] sm:$0xff]
      %v370 = vld [vmem:[%s355 + $0x30] sm:$0xff]
      %v371 = vld [vmem:[%s355 + $0x38] sm:$0xff]
      %v372 = vld [vmem:[%s355 + $0x40] sm:$0xff]
      %v373 = vld [vmem:[%s355 + $0x48] sm:$0xff]
      %v374 = vld [vmem:[%s355 + $0x50] sm:$0xff]
      %v375 = vld [vmem:[%s355 + $0x58] sm:$0xff]
      %v376 = vld [vmem:[%s355 + $0x60] sm:$0xff]
      %v377 = vld [vmem:[%s355 + $0x68] sm:$0xff]
      %v378 = vld [vmem:[%s355 + $0x70] sm:$0xff]
      %v379 = vld [vmem:[%s355 + $0x78] sm:$0xff]
      %v380 = vld [vmem:[%s355 + $0x80] sm:$0xff]
      %v381 = vld [vmem:[%s355 + $0x88] sm:$0xff]
      %v382 = vld [vmem:[%s355 + $0x90] sm:$0xff]
      %v383 = vld [vmem:[%s355 + $0x98] sm:$0xff]
      %v384 = vld [vmem:[%s355 + $0xa0] sm:$0xff]
      %v385 = vld [vmem:[%s355 + $0xa8] sm:$0xff]
      %v386 = vld [vmem:[%s355 + $0xb0] sm:$0xff]
      %v387 = vld [vmem:[%s355 + $0xb8] sm:$0xff]
      %v388 = vld [vmem:[%s355 + $0xc0] sm:$0xff]
      %v389 = vld [vmem:[%s355 + $0xc8] sm:$0xff]
      %v390 = vld [vmem:[%s355 + $0xd0] sm:$0xff]
      %v391 = vld [vmem:[%s355 + $0xd8] sm:$0xff]
      %v392 = vld [vmem:[%s355 + $0xe0] sm:$0xff]
      %v393 = vld [vmem:[%s355 + $0xe8] sm:$0xff]
      %v394 = vld [vmem:[%s355 + $0xf0] sm:$0xff]
      %v395 = vld [vmem:[%s355 + $0xf8] sm:$0xff]
      %v396 = vlaneseq
      %v397 = vshrl.u32 %v396, 7
      %v398 = vadd.s32 %v397, 8
      %v399 = vadd.s32 %v397, 16
      %v400 = vadd.s32 %v397, 24
      %v401 = vadd.s32 %v397, 32
      %v402 = vadd.s32 %v397, 40
      %v403 = vadd.s32 %v397, 48
      %v404 = vadd.s32 %v397, 56
      %v405 = vadd.s32 %v397, 64
      %v406 = vadd.s32 %v397, 72
      %v407 = vadd.s32 %v397, 80
      %v408 = vadd.s32 %v397, 88
      %v409 = vadd.s32 %v397, 96
      %v410 = vadd.s32 %v397, 104
      %v411 = vadd.s32 %v397, 112
      %v412 = vadd.s32 %v397, 120
      %v413 = vadd.s32 %v397, 128
      %v414 = vadd.s32 %v397, 136
      %v415 = vadd.s32 %v397, 144
      %v416 = vadd.s32 %v397, 152
      %v417 = vadd.s32 %v397, 160
      %v418 = vadd.s32 %v397, 168
      %v419 = vadd.s32 %v397, 176
      %v420 = vadd.s32 %v397, 184
      %v421 = vadd.s32 %v397, 192
      %v422 = vadd.s32 %v397, 200
      %v423 = vadd.s32 %v397, 208
      %v424 = vadd.s32 %v397, 216
      %v425 = vadd.s32 %v397, 224
      %v426 = vadd.s32 %v397, 232
      %v427 = vadd.s32 %v397, 240
      %v428 = vadd.s32 %v397, 248
      %vm429 = vcmp.lt.s32.totalorder %v397, 0
      %v430 = vsub.s32 0, %v397
      %v431 = vsel %vm429, %v430, %v397
      %v432 = vshrl.u32 %v431, 4
      %v433 = vand.u32 %v431, 15
      %v434 = vsub.s32 0, %v433
      %v435 = vsel %vm429, %v434, %v433
      %vm436 = vcmp.lt.s32.totalorder %v398, 0
      %v437 = vsub.s32 0, %v398
      %v438 = vsel %vm436, %v437, %v398
      %v439 = vshrl.u32 %v438, 4
      %v440 = vand.u32 %v438, 15
      %v441 = vsub.s32 0, %v440
      %v442 = vsel %vm436, %v441, %v440
      %vm443 = vcmp.lt.s32.totalorder %v399, 0
      %v444 = vsub.s32 0, %v399
      %v445 = vsel %vm443, %v444, %v399
      %v446 = vshrl.u32 %v445, 4
      %v447 = vand.u32 %v445, 15
      %v448 = vsub.s32 0, %v447
      %v449 = vsel %vm443, %v448, %v447
      %vm450 = vcmp.lt.s32.totalorder %v400, 0
      %v451 = vsub.s32 0, %v400
      %v452 = vsel %vm450, %v451, %v400
      %v453 = vshrl.u32 %v452, 4
      %v454 = vand.u32 %v452, 15
      %v455 = vsub.s32 0, %v454
      %v456 = vsel %vm450, %v455, %v454
      %vm457 = vcmp.lt.s32.totalorder %v401, 0
      %v458 = vsub.s32 0, %v401
      %v459 = vsel %vm457, %v458, %v401
      %v460 = vshrl.u32 %v459, 4
      %v461 = vand.u32 %v459, 15
      %v462 = vsub.s32 0, %v461
      %v463 = vsel %vm457, %v462, %v461
      %vm464 = vcmp.lt.s32.totalorder %v402, 0
      %v465 = vsub.s32 0, %v402
      %v466 = vsel %vm464, %v465, %v402
      %v467 = vshrl.u32 %v466, 4
      %v468 = vand.u32 %v466, 15
      %v469 = vsub.s32 0, %v468
      %v470 = vsel %vm464, %v469, %v468
      %vm471 = vcmp.lt.s32.totalorder %v403, 0
      %v472 = vsub.s32 0, %v403
      %v473 = vsel %vm471, %v472, %v403
      %v474 = vshrl.u32 %v473, 4
      %v475 = vand.u32 %v473, 15
      %v476 = vsub.s32 0, %v475
      %v477 = vsel %vm471, %v476, %v475
      %vm478 = vcmp.lt.s32.totalorder %v404, 0
      %v479 = vsub.s32 0, %v404
      %v480 = vsel %vm478, %v479, %v404
      %v481 = vshrl.u32 %v480, 4
      %v482 = vand.u32 %v480, 15
      %v483 = vsub.s32 0, %v482
      %v484 = vsel %vm478, %v483, %v482
      %vm485 = vcmp.lt.s32.totalorder %v405, 0
      %v486 = vsub.s32 0, %v405
      %v487 = vsel %vm485, %v486, %v405
      %v488 = vshrl.u32 %v487, 4
      %v489 = vand.u32 %v487, 15
      %v490 = vsub.s32 0, %v489
      %v491 = vsel %vm485, %v490, %v489
      %vm492 = vcmp.lt.s32.totalorder %v406, 0
      %v493 = vsub.s32 0, %v406
      %v494 = vsel %vm492, %v493, %v406
      %v495 = vshrl.u32 %v494, 4
      %v496 = vand.u32 %v494, 15
      %v497 = vsub.s32 0, %v496
      %v498 = vsel %vm492, %v497, %v496
      %vm499 = vcmp.lt.s32.totalorder %v407, 0
      %v500 = vsub.s32 0, %v407
      %v501 = vsel %vm499, %v500, %v407
      %v502 = vshrl.u32 %v501, 4
      %v503 = vand.u32 %v501, 15
      %v504 = vsub.s32 0, %v503
      %v505 = vsel %vm499, %v504, %v503
      %vm506 = vcmp.lt.s32.totalorder %v408, 0
      %v507 = vsub.s32 0, %v408
      %v508 = vsel %vm506, %v507, %v408
      %v509 = vshrl.u32 %v508, 4
      %v510 = vand.u32 %v508, 15
      %v511 = vsub.s32 0, %v510
      %v512 = vsel %vm506, %v511, %v510
      %vm513 = vcmp.lt.s32.totalorder %v409, 0
      %v514 = vsub.s32 0, %v409
      %v515 = vsel %vm513, %v514, %v409
      %v516 = vshrl.u32 %v515, 4
      %v517 = vand.u32 %v515, 15
      %v518 = vsub.s32 0, %v517
      %v519 = vsel %vm513, %v518, %v517
      %vm520 = vcmp.lt.s32.totalorder %v410, 0
      %v521 = vsub.s32 0, %v410
      %v522 = vsel %vm520, %v521, %v410
      %v523 = vshrl.u32 %v522, 4
      %v524 = vand.u32 %v522, 15
      %v525 = vsub.s32 0, %v524
      %v526 = vsel %vm520, %v525, %v524
      %vm527 = vcmp.lt.s32.totalorder %v411, 0
      %v528 = vsub.s32 0, %v411
      %v529 = vsel %vm527, %v528, %v411
      %v530 = vshrl.u32 %v529, 4
      %v531 = vand.u32 %v529, 15
      %v532 = vsub.s32 0, %v531
      %v533 = vsel %vm527, %v532, %v531
      %vm534 = vcmp.lt.s32.totalorder %v412, 0
      %v535 = vsub.s32 0, %v412
      %v536 = vsel %vm534, %v535, %v412
      %v537 = vshrl.u32 %v536, 4
      %v538 = vand.u32 %v536, 15
      %v539 = vsub.s32 0, %v538
      %v540 = vsel %vm534, %v539, %v538
      %vm541 = vcmp.lt.s32.totalorder %v413, 0
      %v542 = vsub.s32 0, %v413
      %v543 = vsel %vm541, %v542, %v413
      %v544 = vshrl.u32 %v543, 4
      %v545 = vand.u32 %v543, 15
      %v546 = vsub.s32 0, %v545
      %v547 = vsel %vm541, %v546, %v545
      %vm548 = vcmp.lt.s32.totalorder %v414, 0
      %v549 = vsub.s32 0, %v414
      %v550 = vsel %vm548, %v549, %v414
      %v551 = vshrl.u32 %v550, 4
      %v552 = vand.u32 %v550, 15
      %v553 = vsub.s32 0, %v552
      %v554 = vsel %vm548, %v553, %v552
      %vm555 = vcmp.lt.s32.totalorder %v415, 0
      %v556 = vsub.s32 0, %v415
      %v557 = vsel %vm555, %v556, %v415
      %v558 = vshrl.u32 %v557, 4
      %v559 = vand.u32 %v557, 15
      %v560 = vsub.s32 0, %v559
      %v561 = vsel %vm555, %v560, %v559
      %vm562 = vcmp.lt.s32.totalorder %v416, 0
      %v563 = vsub.s32 0, %v416
      %v564 = vsel %vm562, %v563, %v416
      %v565 = vshrl.u32 %v564, 4
      %v566 = vand.u32 %v564, 15
      %v567 = vsub.s32 0, %v566
      %v568 = vsel %vm562, %v567, %v566
      %vm569 = vcmp.lt.s32.totalorder %v417, 0
      %v570 = vsub.s32 0, %v417
      %v571 = vsel %vm569, %v570, %v417
      %v572 = vshrl.u32 %v571, 4
      %v573 = vand.u32 %v571, 15
      %v574 = vsub.s32 0, %v573
      %v575 = vsel %vm569, %v574, %v573
      %vm576 = vcmp.lt.s32.totalorder %v418, 0
      %v577 = vsub.s32 0, %v418
      %v578 = vsel %vm576, %v577, %v418
      %v579 = vshrl.u32 %v578, 4
      %v580 = vand.u32 %v578, 15
      %v581 = vsub.s32 0, %v580
      %v582 = vsel %vm576, %v581, %v580
      %vm583 = vcmp.lt.s32.totalorder %v419, 0
      %v584 = vsub.s32 0, %v419
      %v585 = vsel %vm583, %v584, %v419
      %v586 = vshrl.u32 %v585, 4
      %v587 = vand.u32 %v585, 15
      %v588 = vsub.s32 0, %v587
      %v589 = vsel %vm583, %v588, %v587
      %vm590 = vcmp.lt.s32.totalorder %v420, 0
      %v591 = vsub.s32 0, %v420
      %v592 = vsel %vm590, %v591, %v420
      %v593 = vshrl.u32 %v592, 4
      %v594 = vand.u32 %v592, 15
      %v595 = vsub.s32 0, %v594
      %v596 = vsel %vm590, %v595, %v594
      %vm597 = vcmp.lt.s32.totalorder %v421, 0
      %v598 = vsub.s32 0, %v421
      %v599 = vsel %vm597, %v598, %v421
      %v600 = vshrl.u32 %v599, 4
      %v601 = vand.u32 %v599, 15
      %v602 = vsub.s32 0, %v601
      %v603 = vsel %vm597, %v602, %v601
      %vm604 = vcmp.lt.s32.totalorder %v422, 0
      %v605 = vsub.s32 0, %v422
      %v606 = vsel %vm604, %v605, %v422
      %v607 = vshrl.u32 %v606, 4
      %v608 = vand.u32 %v606, 15
      %v609 = vsub.s32 0, %v608
      %v610 = vsel %vm604, %v609, %v608
      %vm611 = vcmp.lt.s32.totalorder %v423, 0
      %v612 = vsub.s32 0, %v423
      %v613 = vsel %vm611, %v612, %v423
      %v614 = vshrl.u32 %v613, 4
      %v615 = vand.u32 %v613, 15
      %v616 = vsub.s32 0, %v615
      %v617 = vsel %vm611, %v616, %v615
      %vm618 = vcmp.lt.s32.totalorder %v424, 0
      %v619 = vsub.s32 0, %v424
      %v620 = vsel %vm618, %v619, %v424
      %v621 = vshrl.u32 %v620, 4
      %v622 = vand.u32 %v620, 15
      %v623 = vsub.s32 0, %v622
      %v624 = vsel %vm618, %v623, %v622
      %vm625 = vcmp.lt.s32.totalorder %v425, 0
      %v626 = vsub.s32 0, %v425
      %v627 = vsel %vm625, %v626, %v425
      %v628 = vshrl.u32 %v627, 4
      %v629 = vand.u32 %v627, 15
      %v630 = vsub.s32 0, %v629
      %v631 = vsel %vm625, %v630, %v629
      %vm632 = vcmp.lt.s32.totalorder %v426, 0
      %v633 = vsub.s32 0, %v426
      %v634 = vsel %vm632, %v633, %v426
      %v635 = vshrl.u32 %v634, 4
      %v636 = vand.u32 %v634, 15
      %v637 = vsub.s32 0, %v636
      %v638 = vsel %vm632, %v637, %v636
      %vm639 = vcmp.lt.s32.totalorder %v427, 0
      %v640 = vsub.s32 0, %v427
      %v641 = vsel %vm639, %v640, %v427
      %v642 = vshrl.u32 %v641, 4
      %v643 = vand.u32 %v641, 15
      %v644 = vsub.s32 0, %v643
      %v645 = vsel %vm639, %v644, %v643
      %vm646 = vcmp.lt.s32.totalorder %v428, 0
      %v647 = vsub.s32 0, %v428
      %v648 = vsel %vm646, %v647, %v428
      %v649 = vshrl.u32 %v648, 4
      %v650 = vand.u32 %v648, 15
      %v651 = vsub.s32 0, %v650
      %v652 = vsel %vm646, %v651, %v650
      %vm653 = vcmp.ne.s32.totalorder %v435, 0
      %vm654 = vcmp.ne.s32.totalorder %v442, 0
      %vm655 = vcmp.ne.s32.totalorder %v449, 0
      %vm656 = vcmp.ne.s32.totalorder %v456, 0
      %vm657 = vcmp.ne.s32.totalorder %v463, 0
      %vm658 = vcmp.ne.s32.totalorder %v470, 0
      %vm659 = vcmp.ne.s32.totalorder %v477, 0
      %vm660 = vcmp.ne.s32.totalorder %v484, 0
      %vm661 = vcmp.ne.s32.totalorder %v491, 0
      %vm662 = vcmp.ne.s32.totalorder %v498, 0
      %vm663 = vcmp.ne.s32.totalorder %v505, 0
      %vm664 = vcmp.ne.s32.totalorder %v512, 0
      %vm665 = vcmp.ne.s32.totalorder %v519, 0
      %vm666 = vcmp.ne.s32.totalorder %v526, 0
      %vm667 = vcmp.ne.s32.totalorder %v533, 0
      %vm668 = vcmp.ne.s32.totalorder %v540, 0
      %vm669 = vcmp.ne.s32.totalorder %v547, 0
      %vm670 = vcmp.ne.s32.totalorder %v554, 0
      %vm671 = vcmp.ne.s32.totalorder %v561, 0
      %vm672 = vcmp.ne.s32.totalorder %v568, 0
      %vm673 = vcmp.ne.s32.totalorder %v575, 0
      %vm674 = vcmp.ne.s32.totalorder %v582, 0
      %vm675 = vcmp.ne.s32.totalorder %v589, 0
      %vm676 = vcmp.ne.s32.totalorder %v596, 0
      %vm677 = vcmp.ne.s32.totalorder %v603, 0
      %vm678 = vcmp.ne.s32.totalorder %v610, 0
      %vm679 = vcmp.ne.s32.totalorder %v617, 0
      %vm680 = vcmp.ne.s32.totalorder %v624, 0
      %vm681 = vcmp.ne.s32.totalorder %v631, 0
      %vm682 = vcmp.ne.s32.totalorder %v638, 0
      %vm683 = vcmp.ne.s32.totalorder %v645, 0
      %vm684 = vcmp.ne.s32.totalorder %v652, 0
      %vm685 = vcmp.lt.s32.totalorder %v435, 0
      %vm686 = vcmp.lt.s32.totalorder %v442, 0
      %vm687 = vcmp.lt.s32.totalorder %v449, 0
      %vm688 = vcmp.lt.s32.totalorder %v456, 0
      %vm689 = vcmp.lt.s32.totalorder %v463, 0
      %vm690 = vcmp.lt.s32.totalorder %v470, 0
      %vm691 = vcmp.lt.s32.totalorder %v477, 0
      %vm692 = vcmp.lt.s32.totalorder %v484, 0
      %vm693 = vcmp.lt.s32.totalorder %v491, 0
      %vm694 = vcmp.lt.s32.totalorder %v498, 0
      %vm695 = vcmp.lt.s32.totalorder %v505, 0
      %vm696 = vcmp.lt.s32.totalorder %v512, 0
      %vm697 = vcmp.lt.s32.totalorder %v519, 0
      %vm698 = vcmp.lt.s32.totalorder %v526, 0
      %vm699 = vcmp.lt.s32.totalorder %v533, 0
      %vm700 = vcmp.lt.s32.totalorder %v540, 0
      %vm701 = vcmp.lt.s32.totalorder %v547, 0
      %vm702 = vcmp.lt.s32.totalorder %v554, 0
      %vm703 = vcmp.lt.s32.totalorder %v561, 0
      %vm704 = vcmp.lt.s32.totalorder %v568, 0
      %vm705 = vcmp.lt.s32.totalorder %v575, 0
      %vm706 = vcmp.lt.s32.totalorder %v582, 0
      %vm707 = vcmp.lt.s32.totalorder %v589, 0
      %vm708 = vcmp.lt.s32.totalorder %v596, 0
      %vm709 = vcmp.lt.s32.totalorder %v603, 0
      %vm710 = vcmp.lt.s32.totalorder %v610, 0
      %vm711 = vcmp.lt.s32.totalorder %v617, 0
      %vm712 = vcmp.lt.s32.totalorder %v624, 0
      %vm713 = vcmp.lt.s32.totalorder %v631, 0
      %vm714 = vcmp.lt.s32.totalorder %v638, 0
      %vm715 = vcmp.lt.s32.totalorder %v645, 0
      %vm716 = vcmp.lt.s32.totalorder %v652, 0
      %vm717 = vmand %vm685, %vm653
      %vm718 = vmand %vm686, %vm654
      %vm719 = vmand %vm687, %vm655
      %vm720 = vmand %vm688, %vm656
      %vm721 = vmand %vm689, %vm657
      %vm722 = vmand %vm690, %vm658
      %vm723 = vmand %vm691, %vm659
      %vm724 = vmand %vm692, %vm660
      %vm725 = vmand %vm693, %vm661
      %vm726 = vmand %vm694, %vm662
      %vm727 = vmand %vm695, %vm663
      %vm728 = vmand %vm696, %vm664
      %vm729 = vmand %vm697, %vm665
      %vm730 = vmand %vm698, %vm666
      %vm731 = vmand %vm699, %vm667
      %vm732 = vmand %vm700, %vm668
      %vm733 = vmand %vm701, %vm669
      %vm734 = vmand %vm702, %vm670
      %vm735 = vmand %vm703, %vm671
      %vm736 = vmand %vm704, %vm672
      %vm737 = vmand %vm705, %vm673
      %vm738 = vmand %vm706, %vm674
      %vm739 = vmand %vm707, %vm675
      %vm740 = vmand %vm708, %vm676
      %vm741 = vmand %vm709, %vm677
      %vm742 = vmand %vm710, %vm678
      %vm743 = vmand %vm711, %vm679
      %vm744 = vmand %vm712, %vm680
      %vm745 = vmand %vm713, %vm681
      %vm746 = vmand %vm714, %vm682
      %vm747 = vmand %vm715, %vm683
      %vm748 = vmand %vm716, %vm684
      %v749 = vadd.s32 %v435, 16
      %v750 = vadd.s32 %v442, 16
      %v751 = vadd.s32 %v449, 16
      %v752 = vadd.s32 %v456, 16
      %v753 = vadd.s32 %v463, 16
      %v754 = vadd.s32 %v470, 16
      %v755 = vadd.s32 %v477, 16
      %v756 = vadd.s32 %v484, 16
      %v757 = vadd.s32 %v491, 16
      %v758 = vadd.s32 %v498, 16
      %v759 = vadd.s32 %v505, 16
      %v760 = vadd.s32 %v512, 16
      %v761 = vadd.s32 %v519, 16
      %v762 = vadd.s32 %v526, 16
      %v763 = vadd.s32 %v533, 16
      %v764 = vadd.s32 %v540, 16
      %v765 = vadd.s32 %v547, 16
      %v766 = vadd.s32 %v554, 16
      %v767 = vadd.s32 %v561, 16
      %v768 = vadd.s32 %v568, 16
      %v769 = vadd.s32 %v575, 16
      %v770 = vadd.s32 %v582, 16
      %v771 = vadd.s32 %v589, 16
      %v772 = vadd.s32 %v596, 16
      %v773 = vadd.s32 %v603, 16
      %v774 = vadd.s32 %v610, 16
      %v775 = vadd.s32 %v617, 16
      %v776 = vadd.s32 %v624, 16
      %v777 = vadd.s32 %v631, 16
      %v778 = vadd.s32 %v638, 16
      %v779 = vadd.s32 %v645, 16
      %v780 = vadd.s32 %v652, 16
      %v781 = vsel %vm717, %v749, %v435
      %v782 = vsel %vm718, %v750, %v442
      %v783 = vsel %vm719, %v751, %v449
      %v784 = vsel %vm720, %v752, %v456
      %v785 = vsel %vm721, %v753, %v463
      %v786 = vsel %vm722, %v754, %v470
      %v787 = vsel %vm723, %v755, %v477
      %v788 = vsel %vm724, %v756, %v484
      %v789 = vsel %vm725, %v757, %v491
      %v790 = vsel %vm726, %v758, %v498
      %v791 = vsel %vm727, %v759, %v505
      %v792 = vsel %vm728, %v760, %v512
      %v793 = vsel %vm729, %v761, %v519
      %v794 = vsel %vm730, %v762, %v526
      %v795 = vsel %vm731, %v763, %v533
      %v796 = vsel %vm732, %v764, %v540
      %v797 = vsel %vm733, %v765, %v547
      %v798 = vsel %vm734, %v766, %v554
      %v799 = vsel %vm735, %v767, %v561
      %v800 = vsel %vm736, %v768, %v568
      %v801 = vsel %vm737, %v769, %v575
      %v802 = vsel %vm738, %v770, %v582
      %v803 = vsel %vm739, %v771, %v589
      %v804 = vsel %vm740, %v772, %v596
      %v805 = vsel %vm741, %v773, %v603
      %v806 = vsel %vm742, %v774, %v610
      %v807 = vsel %vm743, %v775, %v617
      %v808 = vsel %vm744, %v776, %v624
      %v809 = vsel %vm745, %v777, %v631
      %v810 = vsel %vm746, %v778, %v638
      %v811 = vsel %vm747, %v779, %v645
      %v812 = vsel %vm748, %v780, %v652
      %vm813 = vcmp.eq.s32.totalorder %v781, 0
      %vm814 = vcmp.eq.s32.totalorder %v782, 0
      %vm815 = vcmp.eq.s32.totalorder %v783, 0
      %vm816 = vcmp.eq.s32.totalorder %v784, 0
      %vm817 = vcmp.eq.s32.totalorder %v785, 0
      %vm818 = vcmp.eq.s32.totalorder %v786, 0
      %vm819 = vcmp.eq.s32.totalorder %v787, 0
      %vm820 = vcmp.eq.s32.totalorder %v788, 0
      %vm821 = vcmp.eq.s32.totalorder %v789, 0
      %vm822 = vcmp.eq.s32.totalorder %v790, 0
      %vm823 = vcmp.eq.s32.totalorder %v791, 0
      %vm824 = vcmp.eq.s32.totalorder %v792, 0
      %vm825 = vcmp.eq.s32.totalorder %v793, 0
      %vm826 = vcmp.eq.s32.totalorder %v794, 0
      %vm827 = vcmp.eq.s32.totalorder %v795, 0
      %vm828 = vcmp.eq.s32.totalorder %v796, 0
      %vm829 = vcmp.eq.s32.totalorder %v797, 0
      %vm830 = vcmp.eq.s32.totalorder %v798, 0
      %vm831 = vcmp.eq.s32.totalorder %v799, 0
      %vm832 = vcmp.eq.s32.totalorder %v800, 0
      %vm833 = vcmp.eq.s32.totalorder %v801, 0
      %vm834 = vcmp.eq.s32.totalorder %v802, 0
      %vm835 = vcmp.eq.s32.totalorder %v803, 0
      %vm836 = vcmp.eq.s32.totalorder %v804, 0
      %vm837 = vcmp.eq.s32.totalorder %v805, 0
      %vm838 = vcmp.eq.s32.totalorder %v806, 0
      %vm839 = vcmp.eq.s32.totalorder %v807, 0
      %vm840 = vcmp.eq.s32.totalorder %v808, 0
      %vm841 = vcmp.eq.s32.totalorder %v809, 0
      %vm842 = vcmp.eq.s32.totalorder %v810, 0
      %vm843 = vcmp.eq.s32.totalorder %v811, 0
      %vm844 = vcmp.eq.s32.totalorder %v812, 0
      %vm877 = vcmask 1040384
      %v878 = vrot.slane %v364, 7
      %v879 = vrot.slane %v365, 7
      %v880 = vsel %vm877, %v878, %v879
      %v881 = vrot.slane %v366, 7
      %v882 = vsel %vm877, %v879, %v881
      %v883 = vrot.slane %v367, 7
      %v884 = vsel %vm877, %v881, %v883
      %v885 = vrot.slane %v368, 7
      %v886 = vsel %vm877, %v883, %v885
      %v887 = vrot.slane %v369, 7
      %v888 = vsel %vm877, %v885, %v887
      %v889 = vrot.slane %v370, 7
      %v890 = vsel %vm877, %v887, %v889
      %v891 = vrot.slane %v371, 7
      %v892 = vsel %vm877, %v889, %v891
      %v893 = vrot.slane %v372, 7
      %v894 = vsel %vm877, %v891, %v893
      %v895 = vrot.slane %v373, 7
      %v896 = vsel %vm877, %v893, %v895
      %v897 = vrot.slane %v374, 7
      %v898 = vsel %vm877, %v895, %v897
      %v899 = vrot.slane %v375, 7
      %v900 = vsel %vm877, %v897, %v899
      %v901 = vrot.slane %v376, 7
      %v902 = vsel %vm877, %v899, %v901
      %v903 = vrot.slane %v377, 7
      %v904 = vsel %vm877, %v901, %v903
      %v905 = vrot.slane %v378, 7
      %v906 = vsel %vm877, %v903, %v905
      %v907 = vrot.slane %v379, 7
      %v908 = vsel %vm877, %v905, %v907
      %v909 = vrot.slane %v380, 7
      %v910 = vsel %vm877, %v907, %v909
      %v911 = vrot.slane %v381, 7
      %v912 = vsel %vm877, %v909, %v911
      %v913 = vrot.slane %v382, 7
      %v914 = vsel %vm877, %v911, %v913
      %v915 = vrot.slane %v383, 7
      %v916 = vsel %vm877, %v913, %v915
      %v917 = vrot.slane %v384, 7
      %v918 = vsel %vm877, %v915, %v917
      %v919 = vrot.slane %v385, 7
      %v920 = vsel %vm877, %v917, %v919
      %v921 = vrot.slane %v386, 7
      %v922 = vsel %vm877, %v919, %v921
      %v923 = vrot.slane %v387, 7
      %v924 = vsel %vm877, %v921, %v923
      %v925 = vrot.slane %v388, 7
      %v926 = vsel %vm877, %v923, %v925
      %v927 = vrot.slane %v389, 7
      %v928 = vsel %vm877, %v925, %v927
      %v929 = vrot.slane %v390, 7
      %v930 = vsel %vm877, %v927, %v929
      %v931 = vrot.slane %v391, 7
      %v932 = vsel %vm877, %v929, %v931
      %v933 = vrot.slane %v392, 7
      %v934 = vsel %vm877, %v931, %v933
      %v935 = vrot.slane %v393, 7
      %v936 = vsel %vm877, %v933, %v935
      %v937 = vrot.slane %v394, 7
      %v938 = vsel %vm877, %v935, %v937
      %v939 = vrot.slane %v395, 7
      %v940 = vsel %vm877, %v937, %v939
      %v973 = vsel %vm877, 0.0, %v878
      %v974 = vsel %vm813, 1, 0
      %v975 = vsel %vm814, 1, 0
      %v976 = vsel %vm815, 1, 0
      %v977 = vsel %vm816, 1, 0
      %v978 = vsel %vm817, 1, 0
      %v979 = vsel %vm818, 1, 0
      %v980 = vsel %vm819, 1, 0
      %v981 = vsel %vm820, 1, 0
      %v982 = vsel %vm821, 1, 0
      %v983 = vsel %vm822, 1, 0
      %v984 = vsel %vm823, 1, 0
      %v985 = vsel %vm824, 1, 0
      %v986 = vsel %vm825, 1, 0
      %v987 = vsel %vm826, 1, 0
      %v988 = vsel %vm827, 1, 0
      %v989 = vsel %vm828, 1, 0
      %v990 = vsel %vm829, 1, 0
      %v991 = vsel %vm830, 1, 0
      %v992 = vsel %vm831, 1, 0
      %v993 = vsel %vm832, 1, 0
      %v994 = vsel %vm833, 1, 0
      %v995 = vsel %vm834, 1, 0
      %v996 = vsel %vm835, 1, 0
      %v997 = vsel %vm836, 1, 0
      %v998 = vsel %vm837, 1, 0
      %v999 = vsel %vm838, 1, 0
      %v1000 = vsel %vm839, 1, 0
      %v1001 = vsel %vm840, 1, 0
      %v1002 = vsel %vm841, 1, 0
      %v1003 = vsel %vm842, 1, 0
      %v1004 = vsel %vm843, 1, 0
      %v1005 = vsel %vm844, 1, 0
      %vm1006 = vcmp.eq.s32.totalorder %v974, 1
      %vm1007 = vcmp.eq.s32.totalorder %v975, 1
      %vm1008 = vcmp.eq.s32.totalorder %v976, 1
      %vm1009 = vcmp.eq.s32.totalorder %v977, 1
      %vm1010 = vcmp.eq.s32.totalorder %v978, 1
      %vm1011 = vcmp.eq.s32.totalorder %v979, 1
      %vm1012 = vcmp.eq.s32.totalorder %v980, 1
      %vm1013 = vcmp.eq.s32.totalorder %v981, 1
      %vm1014 = vcmp.eq.s32.totalorder %v982, 1
      %vm1015 = vcmp.eq.s32.totalorder %v983, 1
      %vm1016 = vcmp.eq.s32.totalorder %v984, 1
      %vm1017 = vcmp.eq.s32.totalorder %v985, 1
      %vm1018 = vcmp.eq.s32.totalorder %v986, 1
      %vm1019 = vcmp.eq.s32.totalorder %v987, 1
      %vm1020 = vcmp.eq.s32.totalorder %v988, 1
      %vm1021 = vcmp.eq.s32.totalorder %v989, 1
      %vm1022 = vcmp.eq.s32.totalorder %v990, 1
      %vm1023 = vcmp.eq.s32.totalorder %v991, 1
      %vm1024 = vcmp.eq.s32.totalorder %v992, 1
      %vm1025 = vcmp.eq.s32.totalorder %v993, 1
      %vm1026 = vcmp.eq.s32.totalorder %v994, 1
      %vm1027 = vcmp.eq.s32.totalorder %v995, 1
      %vm1028 = vcmp.eq.s32.totalorder %v996, 1
      %vm1029 = vcmp.eq.s32.totalorder %v997, 1
      %vm1030 = vcmp.eq.s32.totalorder %v998, 1
      %vm1031 = vcmp.eq.s32.totalorder %v999, 1
      %vm1032 = vcmp.eq.s32.totalorder %v1000, 1
      %vm1033 = vcmp.eq.s32.totalorder %v1001, 1
      %vm1034 = vcmp.eq.s32.totalorder %v1002, 1
      %vm1035 = vcmp.eq.s32.totalorder %v1003, 1
      %vm1036 = vcmp.eq.s32.totalorder %v1004, 1
      %vm1037 = vcmp.eq.s32.totalorder %v1005, 1
      %v1038 = vsel %vm1006, 0.0, %v973
      %v1039 = vsel %vm1007, 0.0, %v880
      %v1040 = vsel %vm1008, 0.0, %v882
      %v1041 = vsel %vm1009, 0.0, %v884
      %v1042 = vsel %vm1010, 0.0, %v886
      %v1043 = vsel %vm1011, 0.0, %v888
      %v1044 = vsel %vm1012, 0.0, %v890
      %v1045 = vsel %vm1013, 0.0, %v892
      %v1046 = vsel %vm1014, 0.0, %v894
      %v1047 = vsel %vm1015, 0.0, %v896
      %v1048 = vsel %vm1016, 0.0, %v898
      %v1049 = vsel %vm1017, 0.0, %v900
      %v1050 = vsel %vm1018, 0.0, %v902
      %v1051 = vsel %vm1019, 0.0, %v904
      %v1052 = vsel %vm1020, 0.0, %v906
      %v1053 = vsel %vm1021, 0.0, %v908
      %v1054 = vsel %vm1022, 0.0, %v910
      %v1055 = vsel %vm1023, 0.0, %v912
      %v1056 = vsel %vm1024, 0.0, %v914
      %v1057 = vsel %vm1025, 0.0, %v916
      %v1058 = vsel %vm1026, 0.0, %v918
      %v1059 = vsel %vm1027, 0.0, %v920
      %v1060 = vsel %vm1028, 0.0, %v922
      %v1061 = vsel %vm1029, 0.0, %v924
      %v1062 = vsel %vm1030, 0.0, %v926
      %v1063 = vsel %vm1031, 0.0, %v928
      %v1064 = vsel %vm1032, 0.0, %v930
      %v1065 = vsel %vm1033, 0.0, %v932
      %v1066 = vsel %vm1034, 0.0, %v934
      %v1067 = vsel %vm1035, 0.0, %v936
      %v1068 = vsel %vm1036, 0.0, %v938
      %v1069 = vsel %vm1037, 0.0, %v940
      %vm1070 = vcmp.eq.s32.totalorder %v781, 15
      %vm1071 = vcmp.eq.s32.totalorder %v782, 15
      %vm1072 = vcmp.eq.s32.totalorder %v783, 15
      %vm1073 = vcmp.eq.s32.totalorder %v784, 15
      %vm1074 = vcmp.eq.s32.totalorder %v785, 15
      %vm1075 = vcmp.eq.s32.totalorder %v786, 15
      %vm1076 = vcmp.eq.s32.totalorder %v787, 15
      %vm1077 = vcmp.eq.s32.totalorder %v788, 15
      %vm1078 = vcmp.eq.s32.totalorder %v789, 15
      %vm1079 = vcmp.eq.s32.totalorder %v790, 15
      %vm1080 = vcmp.eq.s32.totalorder %v791, 15
      %vm1081 = vcmp.eq.s32.totalorder %v792, 15
      %vm1082 = vcmp.eq.s32.totalorder %v793, 15
      %vm1083 = vcmp.eq.s32.totalorder %v794, 15
      %vm1084 = vcmp.eq.s32.totalorder %v795, 15
      %vm1085 = vcmp.eq.s32.totalorder %v796, 15
      %vm1086 = vcmp.eq.s32.totalorder %v797, 15
      %vm1087 = vcmp.eq.s32.totalorder %v798, 15
      %vm1088 = vcmp.eq.s32.totalorder %v799, 15
      %vm1089 = vcmp.eq.s32.totalorder %v800, 15
      %vm1090 = vcmp.eq.s32.totalorder %v801, 15
      %vm1091 = vcmp.eq.s32.totalorder %v802, 15
      %vm1092 = vcmp.eq.s32.totalorder %v803, 15
      %vm1093 = vcmp.eq.s32.totalorder %v804, 15
      %vm1094 = vcmp.eq.s32.totalorder %v805, 15
      %vm1095 = vcmp.eq.s32.totalorder %v806, 15
      %vm1096 = vcmp.eq.s32.totalorder %v807, 15
      %vm1097 = vcmp.eq.s32.totalorder %v808, 15
      %vm1098 = vcmp.eq.s32.totalorder %v809, 15
      %vm1099 = vcmp.eq.s32.totalorder %v810, 15
      %vm1100 = vcmp.eq.s32.totalorder %v811, 15
      %vm1101 = vcmp.eq.s32.totalorder %v812, 15
      %vm1102 = vcmask 1046528
      %v1103 = vrot.slane %v364, 1
      %v1104 = vrot.slane %v365, 1
      %v1105 = vsel %vm1102, %v1103, %v1104
      %v1106 = vrot.slane %v366, 1
      %v1107 = vsel %vm1102, %v1104, %v1106
      %v1108 = vrot.slane %v367, 1
      %v1109 = vsel %vm1102, %v1106, %v1108
      %v1110 = vrot.slane %v368, 1
      %v1111 = vsel %vm1102, %v1108, %v1110
      %v1112 = vrot.slane %v369, 1
      %v1113 = vsel %vm1102, %v1110, %v1112
      %v1114 = vrot.slane %v370, 1
      %v1115 = vsel %vm1102, %v1112, %v1114
      %v1116 = vrot.slane %v371, 1
      %v1117 = vsel %vm1102, %v1114, %v1116
      %v1118 = vrot.slane %v372, 1
      %v1119 = vsel %vm1102, %v1116, %v1118
      %v1120 = vrot.slane %v373, 1
      %v1121 = vsel %vm1102, %v1118, %v1120
      %v1122 = vrot.slane %v374, 1
      %v1123 = vsel %vm1102, %v1120, %v1122
      %v1124 = vrot.slane %v375, 1
      %v1125 = vsel %vm1102, %v1122, %v1124
      %v1126 = vrot.slane %v376, 1
      %v1127 = vsel %vm1102, %v1124, %v1126
      %v1128 = vrot.slane %v377, 1
      %v1129 = vsel %vm1102, %v1126, %v1128
      %v1130 = vrot.slane %v378, 1
      %v1131 = vsel %vm1102, %v1128, %v1130
      %v1132 = vrot.slane %v379, 1
      %v1133 = vsel %vm1102, %v1130, %v1132
      %v1134 = vrot.slane %v380, 1
      %v1135 = vsel %vm1102, %v1132, %v1134
      %v1136 = vrot.slane %v381, 1
      %v1137 = vsel %vm1102, %v1134, %v1136
      %v1138 = vrot.slane %v382, 1
      %v1139 = vsel %vm1102, %v1136, %v1138
      %v1140 = vrot.slane %v383, 1
      %v1141 = vsel %vm1102, %v1138, %v1140
      %v1142 = vrot.slane %v384, 1
      %v1143 = vsel %vm1102, %v1140, %v1142
      %v1144 = vrot.slane %v385, 1
      %v1145 = vsel %vm1102, %v1142, %v1144
      %v1146 = vrot.slane %v386, 1
      %v1147 = vsel %vm1102, %v1144, %v1146
      %v1148 = vrot.slane %v387, 1
      %v1149 = vsel %vm1102, %v1146, %v1148
      %v1150 = vrot.slane %v388, 1
      %v1151 = vsel %vm1102, %v1148, %v1150
      %v1152 = vrot.slane %v389, 1
      %v1153 = vsel %vm1102, %v1150, %v1152
      %v1154 = vrot.slane %v390, 1
      %v1155 = vsel %vm1102, %v1152, %v1154
      %v1156 = vrot.slane %v391, 1
      %v1157 = vsel %vm1102, %v1154, %v1156
      %v1158 = vrot.slane %v392, 1
      %v1159 = vsel %vm1102, %v1156, %v1158
      %v1160 = vrot.slane %v393, 1
      %v1161 = vsel %vm1102, %v1158, %v1160
      %v1162 = vrot.slane %v394, 1
      %v1163 = vsel %vm1102, %v1160, %v1162
      %v1164 = vrot.slane %v395, 1
      %v1165 = vsel %vm1102, %v1162, %v1164
      %v1198 = vsel %vm1102, %v1164, 0.0
      %v1199 = vsel %vm1070, 1, 0
      %v1200 = vsel %vm1071, 1, 0
      %v1201 = vsel %vm1072, 1, 0
      %v1202 = vsel %vm1073, 1, 0
      %v1203 = vsel %vm1074, 1, 0
      %v1204 = vsel %vm1075, 1, 0
      %v1205 = vsel %vm1076, 1, 0
      %v1206 = vsel %vm1077, 1, 0
      %v1207 = vsel %vm1078, 1, 0
      %v1208 = vsel %vm1079, 1, 0
      %v1209 = vsel %vm1080, 1, 0
      %v1210 = vsel %vm1081, 1, 0
      %v1211 = vsel %vm1082, 1, 0
      %v1212 = vsel %vm1083, 1, 0
      %v1213 = vsel %vm1084, 1, 0
      %v1214 = vsel %vm1085, 1, 0
      %v1215 = vsel %vm1086, 1, 0
      %v1216 = vsel %vm1087, 1, 0
      %v1217 = vsel %vm1088, 1, 0
      %v1218 = vsel %vm1089, 1, 0
      %v1219 = vsel %vm1090, 1, 0
      %v1220 = vsel %vm1091, 1, 0
      %v1221 = vsel %vm1092, 1, 0
      %v1222 = vsel %vm1093, 1, 0
      %v1223 = vsel %vm1094, 1, 0
      %v1224 = vsel %vm1095, 1, 0
      %v1225 = vsel %vm1096, 1, 0
      %v1226 = vsel %vm1097, 1, 0
      %v1227 = vsel %vm1098, 1, 0
      %v1228 = vsel %vm1099, 1, 0
      %v1229 = vsel %vm1100, 1, 0
      %v1230 = vsel %vm1101, 1, 0
      %vm1231 = vcmp.eq.s32.totalorder %v1199, 1
      %vm1232 = vcmp.eq.s32.totalorder %v1200, 1
      %vm1233 = vcmp.eq.s32.totalorder %v1201, 1
      %vm1234 = vcmp.eq.s32.totalorder %v1202, 1
      %vm1235 = vcmp.eq.s32.totalorder %v1203, 1
      %vm1236 = vcmp.eq.s32.totalorder %v1204, 1
      %vm1237 = vcmp.eq.s32.totalorder %v1205, 1
      %vm1238 = vcmp.eq.s32.totalorder %v1206, 1
      %vm1239 = vcmp.eq.s32.totalorder %v1207, 1
      %vm1240 = vcmp.eq.s32.totalorder %v1208, 1
      %vm1241 = vcmp.eq.s32.totalorder %v1209, 1
      %vm1242 = vcmp.eq.s32.totalorder %v1210, 1
      %vm1243 = vcmp.eq.s32.totalorder %v1211, 1
      %vm1244 = vcmp.eq.s32.totalorder %v1212, 1
      %vm1245 = vcmp.eq.s32.totalorder %v1213, 1
      %vm1246 = vcmp.eq.s32.totalorder %v1214, 1
      %vm1247 = vcmp.eq.s32.totalorder %v1215, 1
      %vm1248 = vcmp.eq.s32.totalorder %v1216, 1
      %vm1249 = vcmp.eq.s32.totalorder %v1217, 1
      %vm1250 = vcmp.eq.s32.totalorder %v1218, 1
      %vm1251 = vcmp.eq.s32.totalorder %v1219, 1
      %vm1252 = vcmp.eq.s32.totalorder %v1220, 1
      %vm1253 = vcmp.eq.s32.totalorder %v1221, 1
      %vm1254 = vcmp.eq.s32.totalorder %v1222, 1
      %vm1255 = vcmp.eq.s32.totalorder %v1223, 1
      %vm1256 = vcmp.eq.s32.totalorder %v1224, 1
      %vm1257 = vcmp.eq.s32.totalorder %v1225, 1
      %vm1258 = vcmp.eq.s32.totalorder %v1226, 1
      %vm1259 = vcmp.eq.s32.totalorder %v1227, 1
      %vm1260 = vcmp.eq.s32.totalorder %v1228, 1
      %vm1261 = vcmp.eq.s32.totalorder %v1229, 1
      %vm1262 = vcmp.eq.s32.totalorder %v1230, 1
      %v1263 = vsel %vm1231, 0.0, %v1105
      %v1264 = vsel %vm1232, 0.0, %v1107
      %v1265 = vsel %vm1233, 0.0, %v1109
      %v1266 = vsel %vm1234, 0.0, %v1111
      %v1267 = vsel %vm1235, 0.0, %v1113
      %v1268 = vsel %vm1236, 0.0, %v1115
      %v1269 = vsel %vm1237, 0.0, %v1117
      %v1270 = vsel %vm1238, 0.0, %v1119
      %v1271 = vsel %vm1239, 0.0, %v1121
      %v1272 = vsel %vm1240, 0.0, %v1123
      %v1273 = vsel %vm1241, 0.0, %v1125
      %v1274 = vsel %vm1242, 0.0, %v1127
      %v1275 = vsel %vm1243, 0.0, %v1129
      %v1276 = vsel %vm1244, 0.0, %v1131
      %v1277 = vsel %vm1245, 0.0, %v1133
      %v1278 = vsel %vm1246, 0.0, %v1135
      %v1279 = vsel %vm1247, 0.0, %v1137
      %v1280 = vsel %vm1248, 0.0, %v1139
      %v1281 = vsel %vm1249, 0.0, %v1141
      %v1282 = vsel %vm1250, 0.0, %v1143
      %v1283 = vsel %vm1251, 0.0, %v1145
      %v1284 = vsel %vm1252, 0.0, %v1147
      %v1285 = vsel %vm1253, 0.0, %v1149
      %v1286 = vsel %vm1254, 0.0, %v1151
      %v1287 = vsel %vm1255, 0.0, %v1153
      %v1288 = vsel %vm1256, 0.0, %v1155
      %v1289 = vsel %vm1257, 0.0, %v1157
      %v1290 = vsel %vm1258, 0.0, %v1159
      %v1291 = vsel %vm1259, 0.0, %v1161
      %v1292 = vsel %vm1260, 0.0, %v1163
      %v1293 = vsel %vm1261, 0.0, %v1165
      %v1294 = vsel %vm1262, 0.0, %v1198
      %1295 = vrot.lane.b32.xlu0 %v364, 16
      %v1296 = vpop.permute.xlu0 %1295
      %1297 = vrot.lane.b32.xlu0 %v365, 16
      %v1298 = vpop.permute.xlu0 %1297
      %1299 = vrot.lane.b32.xlu0 %v366, 16
      %v1300 = vpop.permute.xlu0 %1299
      %1301 = vrot.lane.b32.xlu0 %v367, 16
      %v1302 = vpop.permute.xlu0 %1301
      %1303 = vrot.lane.b32.xlu0 %v368, 16
      %v1304 = vpop.permute.xlu0 %1303
      %1305 = vrot.lane.b32.xlu0 %v369, 16
      %v1306 = vpop.permute.xlu0 %1305
      %1307 = vrot.lane.b32.xlu0 %v370, 16
      %v1308 = vpop.permute.xlu0 %1307
      %1309 = vrot.lane.b32.xlu0 %v371, 16
      %v1310 = vpop.permute.xlu0 %1309
      %1311 = vrot.lane.b32.xlu0 %v372, 16
      %v1312 = vpop.permute.xlu0 %1311
      %1313 = vrot.lane.b32.xlu0 %v373, 16
      %v1314 = vpop.permute.xlu0 %1313
      %1315 = vrot.lane.b32.xlu0 %v374, 16
      %v1316 = vpop.permute.xlu0 %1315
      %1317 = vrot.lane.b32.xlu0 %v375, 16
      %v1318 = vpop.permute.xlu0 %1317
      %1319 = vrot.lane.b32.xlu0 %v376, 16
      %v1320 = vpop.permute.xlu0 %1319
      %1321 = vrot.lane.b32.xlu0 %v377, 16
      %v1322 = vpop.permute.xlu0 %1321
      %1323 = vrot.lane.b32.xlu0 %v378, 16
      %v1324 = vpop.permute.xlu0 %1323
      %1325 = vrot.lane.b32.xlu0 %v379, 16
      %v1326 = vpop.permute.xlu0 %1325
      %1327 = vrot.lane.b32.xlu0 %v380, 16
      %v1328 = vpop.permute.xlu0 %1327
      %1329 = vrot.lane.b32.xlu0 %v381, 16
      %v1330 = vpop.permute.xlu0 %1329
      %1331 = vrot.lane.b32.xlu0 %v382, 16
      %v1332 = vpop.permute.xlu0 %1331
      %1333 = vrot.lane.b32.xlu0 %v383, 16
      %v1334 = vpop.permute.xlu0 %1333
      %1335 = vrot.lane.b32.xlu0 %v384, 16
      %v1336 = vpop.permute.xlu0 %1335
      %1337 = vrot.lane.b32.xlu0 %v385, 16
      %v1338 = vpop.permute.xlu0 %1337
      %1339 = vrot.lane.b32.xlu0 %v386, 16
      %v1340 = vpop.permute.xlu0 %1339
      %1341 = vrot.lane.b32.xlu0 %v387, 16
      %v1342 = vpop.permute.xlu0 %1341
      %1343 = vrot.lane.b32.xlu0 %v388, 16
      %v1344 = vpop.permute.xlu0 %1343
      %1345 = vrot.lane.b32.xlu0 %v389, 16
      %v1346 = vpop.permute.xlu0 %1345
      %1347 = vrot.lane.b32.xlu0 %v390, 16
      %v1348 = vpop.permute.xlu0 %1347
      %1349 = vrot.lane.b32.xlu0 %v391, 16
      %v1350 = vpop.permute.xlu0 %1349
      %1351 = vrot.lane.b32.xlu0 %v392, 16
      %v1352 = vpop.permute.xlu0 %1351
      %1353 = vrot.lane.b32.xlu0 %v393, 16
      %v1354 = vpop.permute.xlu0 %1353
      %1355 = vrot.lane.b32.xlu0 %v394, 16
      %v1356 = vpop.permute.xlu0 %1355
      %1357 = vrot.lane.b32.xlu0 %v395, 16
      %v1358 = vpop.permute.xlu0 %1357
      %1423 = vrot.lane.b32.xlu0 %v1263, 32
      %v1424 = vpop.permute.xlu0 %1423
      %1425 = vrot.lane.b32.xlu0 %v1264, 32
      %v1426 = vpop.permute.xlu0 %1425
      %1427 = vrot.lane.b32.xlu0 %v1265, 32
      %v1428 = vpop.permute.xlu0 %1427
      %1429 = vrot.lane.b32.xlu0 %v1266, 32
      %v1430 = vpop.permute.xlu0 %1429
      %1431 = vrot.lane.b32.xlu0 %v1267, 32
      %v1432 = vpop.permute.xlu0 %1431
      %1433 = vrot.lane.b32.xlu0 %v1268, 32
      %v1434 = vpop.permute.xlu0 %1433
      %1435 = vrot.lane.b32.xlu0 %v1269, 32
      %v1436 = vpop.permute.xlu0 %1435
      %1437 = vrot.lane.b32.xlu0 %v1270, 32
      %v1438 = vpop.permute.xlu0 %1437
      %1439 = vrot.lane.b32.xlu0 %v1271, 32
      %v1440 = vpop.permute.xlu0 %1439
      %1441 = vrot.lane.b32.xlu0 %v1272, 32
      %v1442 = vpop.permute.xlu0 %1441
      %1443 = vrot.lane.b32.xlu0 %v1273, 32
      %v1444 = vpop.permute.xlu0 %1443
      %1445 = vrot.lane.b32.xlu0 %v1274, 32
      %v1446 = vpop.permute.xlu0 %1445
      %1447 = vrot.lane.b32.xlu0 %v1275, 32
      %v1448 = vpop.permute.xlu0 %1447
      %1449 = vrot.lane.b32.xlu0 %v1276, 32
      %v1450 = vpop.permute.xlu0 %1449
      %1451 = vrot.lane.b32.xlu0 %v1277, 32
      %v1452 = vpop.permute.xlu0 %1451
      %1453 = vrot.lane.b32.xlu0 %v1278, 32
      %v1454 = vpop.permute.xlu0 %1453
      %1455 = vrot.lane.b32.xlu0 %v1279, 32
      %v1456 = vpop.permute.xlu0 %1455
      %1457 = vrot.lane.b32.xlu0 %v1280, 32
      %v1458 = vpop.permute.xlu0 %1457
      %1459 = vrot.lane.b32.xlu0 %v1281, 32
      %v1460 = vpop.permute.xlu0 %1459
      %1461 = vrot.lane.b32.xlu0 %v1282, 32
      %v1462 = vpop.permute.xlu0 %1461
      %1463 = vrot.lane.b32.xlu0 %v1283, 32
      %v1464 = vpop.permute.xlu0 %1463
      %1465 = vrot.lane.b32.xlu0 %v1284, 32
      %v1466 = vpop.permute.xlu0 %1465
      %1467 = vrot.lane.b32.xlu0 %v1285, 32
      %v1468 = vpop.permute.xlu0 %1467
      %1469 = vrot.lane.b32.xlu0 %v1286, 32
      %v1470 = vpop.permute.xlu0 %1469
      %1471 = vrot.lane.b32.xlu0 %v1287, 32
      %v1472 = vpop.permute.xlu0 %1471
      %1473 = vrot.lane.b32.xlu0 %v1288, 32
      %v1474 = vpop.permute.xlu0 %1473
      %1475 = vrot.lane.b32.xlu0 %v1289, 32
      %v1476 = vpop.permute.xlu0 %1475
      %1477 = vrot.lane.b32.xlu0 %v1290, 32
      %v1478 = vpop.permute.xlu0 %1477
      %1479 = vrot.lane.b32.xlu0 %v1291, 32
      %v1480 = vpop.permute.xlu0 %1479
      %1481 = vrot.lane.b32.xlu0 %v1292, 32
      %v1482 = vpop.permute.xlu0 %1481
      %1483 = vrot.lane.b32.xlu0 %v1293, 32
      %v1484 = vpop.permute.xlu0 %1483
      %1485 = vrot.lane.b32.xlu0 %v1294, 32
      %v1486 = vpop.permute.xlu0 %1485
      %vm1519 = vcmask 130048
      %v1520 = vsel %vm1519, %v1038, %v1296
      %v1521 = vsel %vm1519, %v1039, %v1298
      %v1522 = vsel %vm1519, %v1040, %v1300
      %v1523 = vsel %vm1519, %v1041, %v1302
      %v1524 = vsel %vm1519, %v1042, %v1304
      %v1525 = vsel %vm1519, %v1043, %v1306
      %v1526 = vsel %vm1519, %v1044, %v1308
      %v1527 = vsel %vm1519, %v1045, %v1310
      %v1528 = vsel %vm1519, %v1046, %v1312
      %v1529 = vsel %vm1519, %v1047, %v1314
      %v1530 = vsel %vm1519, %v1048, %v1316
      %v1531 = vsel %vm1519, %v1049, %v1318
      %v1532 = vsel %vm1519, %v1050, %v1320
      %v1533 = vsel %vm1519, %v1051, %v1322
      %v1534 = vsel %vm1519, %v1052, %v1324
      %v1535 = vsel %vm1519, %v1053, %v1326
      %v1536 = vsel %vm1519, %v1054, %v1328
      %v1537 = vsel %vm1519, %v1055, %v1330
      %v1538 = vsel %vm1519, %v1056, %v1332
      %v1539 = vsel %vm1519, %v1057, %v1334
      %v1540 = vsel %vm1519, %v1058, %v1336
      %v1541 = vsel %vm1519, %v1059, %v1338
      %v1542 = vsel %vm1519, %v1060, %v1340
      %v1543 = vsel %vm1519, %v1061, %v1342
      %v1544 = vsel %vm1519, %v1062, %v1344
      %v1545 = vsel %vm1519, %v1063, %v1346
      %v1546 = vsel %vm1519, %v1064, %v1348
      %v1547 = vsel %vm1519, %v1065, %v1350
      %v1548 = vsel %vm1519, %v1066, %v1352
      %v1549 = vsel %vm1519, %v1067, %v1354
      %v1550 = vsel %vm1519, %v1068, %v1356
      %v1551 = vsel %vm1519, %v1069, %v1358
      %vm1552 = vcmask 261120
      %v1553 = vsel %vm1552, %v1520, %v1424
      %v1554 = vsel %vm1552, %v1521, %v1426
      %v1555 = vsel %vm1552, %v1522, %v1428
      %v1556 = vsel %vm1552, %v1523, %v1430
      %v1557 = vsel %vm1552, %v1524, %v1432
      %v1558 = vsel %vm1552, %v1525, %v1434
      %v1559 = vsel %vm1552, %v1526, %v1436
      %v1560 = vsel %vm1552, %v1527, %v1438
      %v1561 = vsel %vm1552, %v1528, %v1440
      %v1562 = vsel %vm1552, %v1529, %v1442
      %v1563 = vsel %vm1552, %v1530, %v1444
      %v1564 = vsel %vm1552, %v1531, %v1446
      %v1565 = vsel %vm1552, %v1532, %v1448
      %v1566 = vsel %vm1552, %v1533, %v1450
      %v1567 = vsel %vm1552, %v1534, %v1452
      %v1568 = vsel %vm1552, %v1535, %v1454
      %v1569 = vsel %vm1552, %v1536, %v1456
      %v1570 = vsel %vm1552, %v1537, %v1458
      %v1571 = vsel %vm1552, %v1538, %v1460
      %v1572 = vsel %vm1552, %v1539, %v1462
      %v1573 = vsel %vm1552, %v1540, %v1464
      %v1574 = vsel %vm1552, %v1541, %v1466
      %v1575 = vsel %vm1552, %v1542, %v1468
      %v1576 = vsel %vm1552, %v1543, %v1470
      %v1577 = vsel %vm1552, %v1544, %v1472
      %v1578 = vsel %vm1552, %v1545, %v1474
      %v1579 = vsel %vm1552, %v1546, %v1476
      %v1580 = vsel %vm1552, %v1547, %v1478
      %v1581 = vsel %vm1552, %v1548, %v1480
      %v1582 = vsel %vm1552, %v1549, %v1482
      %v1583 = vsel %vm1552, %v1550, %v1484
      %v1584 = vsel %vm1552, %v1551, %v1486
      %v1585 = vpack.c.bf16 %v1554, %v1553
      %v1586 = vpack.c.bf16 %v1556, %v1555
      %v1587 = vpack.c.bf16 %v1558, %v1557
      %v1588 = vpack.c.bf16 %v1560, %v1559
      %v1589 = vpack.c.bf16 %v1562, %v1561
      %v1590 = vpack.c.bf16 %v1564, %v1563
      %v1591 = vpack.c.bf16 %v1566, %v1565
      %v1592 = vpack.c.bf16 %v1568, %v1567
      %v1593 = vpack.c.bf16 %v1570, %v1569
      %v1594 = vpack.c.bf16 %v1572, %v1571
      %v1595 = vpack.c.bf16 %v1574, %v1573
      %v1596 = vpack.c.bf16 %v1576, %v1575
      %v1597 = vpack.c.bf16 %v1578, %v1577
      %v1598 = vpack.c.bf16 %v1580, %v1579
      %v1599 = vpack.c.bf16 %v1582, %v1581
      %v1600 = vpack.c.bf16 %v1584, %v1583
      %v1601 = vld [vmem:[%s1] sm:$0xff]
      %v1602 = vld [vmem:[%s1 + $0x8] sm:$0xff]
      %v1603 = vld [vmem:[%s1 + $0x10] sm:$0xff]
      %v1604 = vld [vmem:[%s1 + $0x18] sm:$0xff]
      %v1605 = vld [vmem:[%s1 + $0x20] sm:$0xff]
      %v1606 = vld [vmem:[%s1 + $0x28] sm:$0xff]
      %v1607 = vld [vmem:[%s2] sm:$0x3]
      %v1609 = vperm.slane %v1607, 0
      %v1610 = vperm.slane %v1607, 1
      %v1619 = vunpack.c.l.b16 %v1601
      %v1620 = vunpack.c.h.b16 %v1601
      %v1621 = vunpack.c.l.b16 %v1602
      %v1622 = vunpack.c.h.b16 %v1602
      %v1623 = vunpack.c.l.b16 %v1603
      %v1624 = vunpack.c.h.b16 %v1603
      %v1625 = vunpack.c.l.b16 %v1604
      %v1626 = vunpack.c.h.b16 %v1604
      %v1627 = vunpack.c.l.b16 %v1605
      %v1628 = vunpack.c.h.b16 %v1605
      %v1629 = vunpack.c.l.b16 %v1606
      %v1630 = vunpack.c.h.b16 %v1606
      %v1631 = vpack.c.b16 %v1621, %v1619
      %v1632 = vpack.c.b16 %v1622, %v1620
      %v1633 = vpack.c.b16 %v1625, %v1623
      %v1634 = vpack.c.b16 %v1626, %v1624
      %v1635 = vpack.c.b16 %v1629, %v1627
      %v1636 = vpack.c.b16 %v1630, %v1628
      %vm1643 = vcmask 392192
      %v1645 = vsel %vm1643, %v1585, 0
      %v1648 = vsel %vm1643, %v1586, 0
      %v1651 = vsel %vm1643, %v1587, 0
      %v1654 = vsel %vm1643, %v1588, 0
      %v1657 = vsel %vm1643, %v1589, 0
      %v1660 = vsel %vm1643, %v1590, 0
      %v1663 = vsel %vm1643, %v1591, 0
      %v1666 = vsel %vm1643, %v1592, 0
      %v1669 = vsel %vm1643, %v1593, 0
      %v1672 = vsel %vm1643, %v1594, 0
      %v1675 = vsel %vm1643, %v1595, 0
      %v1678 = vsel %vm1643, %v1596, 0
      %v1681 = vsel %vm1643, %v1597, 0
      %v1684 = vsel %vm1643, %v1598, 0
      %v1687 = vsel %vm1643, %v1599, 0
      %v1690 = vsel %vm1643, %v1600, 0
      %1692 = vmatpush.bf16.msra.mxu0 0
      %1693 = vmatpush.bf16.msra.mxu0 0
      %1694 = vmatpush.bf16.msra.mxu0 0
      %1695 = vmatpush.bf16.msra.mxu0 0
      %1696 = vmatpush.bf16.msra.mxu0 0
      %1697 = vmatpush.bf16.msra.mxu0 %v1635
      %1698 = vmatpush.bf16.msra.mxu0 %v1633
      %1699 = vmatpush.bf16.msra.mxu0 %v1631
      %1700 = vmatmul.bf16.gmra.mxu0 %v1645
      %v1701 = vpop.f32.mrf.mxu0
      %v1702 = vadd.f32 %v1609, %v1701
      %v1703 = vpop.f32.mrf.mxu0
      %v1704 = vadd.f32 %v1609, %v1703
      %1705 = vmatmul.bf16.gmra.mxu0 %v1648
      %v1706 = vpop.f32.mrf.mxu0
      %v1707 = vadd.f32 %v1609, %v1706
      %v1708 = vpop.f32.mrf.mxu0
      %v1709 = vadd.f32 %v1609, %v1708
      %1710 = vmatmul.bf16.gmra.mxu0 %v1651
      %v1711 = vpop.f32.mrf.mxu0
      %v1712 = vadd.f32 %v1609, %v1711
      %v1713 = vpop.f32.mrf.mxu0
      %v1714 = vadd.f32 %v1609, %v1713
      %1715 = vmatmul.bf16.gmra.mxu0 %v1654
      %v1716 = vpop.f32.mrf.mxu0
      %v1717 = vadd.f32 %v1609, %v1716
      %v1718 = vpop.f32.mrf.mxu0
      %v1719 = vadd.f32 %v1609, %v1718
      %1720 = vmatmul.bf16.gmra.mxu0 %v1657
      %v1721 = vpop.f32.mrf.mxu0
      %v1722 = vadd.f32 %v1609, %v1721
      %v1723 = vpop.f32.mrf.mxu0
      %v1724 = vadd.f32 %v1609, %v1723
      %1725 = vmatmul.bf16.gmra.mxu0 %v1660
      %v1726 = vpop.f32.mrf.mxu0
      %v1727 = vadd.f32 %v1609, %v1726
      %v1728 = vpop.f32.mrf.mxu0
      %v1729 = vadd.f32 %v1609, %v1728
      %1730 = vmatmul.bf16.gmra.mxu0 %v1663
      %v1731 = vpop.f32.mrf.mxu0
      %v1732 = vadd.f32 %v1609, %v1731
      %v1733 = vpop.f32.mrf.mxu0
      %v1734 = vadd.f32 %v1609, %v1733
      %1735 = vmatmul.bf16.gmra.mxu0 %v1666
      %v1736 = vpop.f32.mrf.mxu0
      %v1737 = vadd.f32 %v1609, %v1736
      %v1738 = vpop.f32.mrf.mxu0
      %v1739 = vadd.f32 %v1609, %v1738
      %1740 = vmatmul.bf16.gmra.mxu0 %v1669
      %v1741 = vpop.f32.mrf.mxu0
      %v1742 = vadd.f32 %v1609, %v1741
      %v1743 = vpop.f32.mrf.mxu0
      %v1744 = vadd.f32 %v1609, %v1743
      %1745 = vmatmul.bf16.gmra.mxu0 %v1672
      %v1746 = vpop.f32.mrf.mxu0
      %v1747 = vadd.f32 %v1609, %v1746
      %v1748 = vpop.f32.mrf.mxu0
      %v1749 = vadd.f32 %v1609, %v1748
      %1750 = vmatmul.bf16.gmra.mxu0 %v1675
      %v1751 = vpop.f32.mrf.mxu0
      %v1752 = vadd.f32 %v1609, %v1751
      %v1753 = vpop.f32.mrf.mxu0
      %v1754 = vadd.f32 %v1609, %v1753
      %1755 = vmatmul.bf16.gmra.mxu0 %v1678
      %v1756 = vpop.f32.mrf.mxu0
      %v1757 = vadd.f32 %v1609, %v1756
      %v1758 = vpop.f32.mrf.mxu0
      %v1759 = vadd.f32 %v1609, %v1758
      %1760 = vmatmul.bf16.gmra.mxu0 %v1681
      %v1761 = vpop.f32.mrf.mxu0
      %v1762 = vadd.f32 %v1609, %v1761
      %v1763 = vpop.f32.mrf.mxu0
      %v1764 = vadd.f32 %v1609, %v1763
      %1765 = vmatmul.bf16.gmra.mxu0 %v1684
      %v1766 = vpop.f32.mrf.mxu0
      %v1767 = vadd.f32 %v1609, %v1766
      %v1768 = vpop.f32.mrf.mxu0
      %v1769 = vadd.f32 %v1609, %v1768
      %1770 = vmatmul.bf16.gmra.mxu0 %v1687
      %v1771 = vpop.f32.mrf.mxu0
      %v1772 = vadd.f32 %v1609, %v1771
      %v1773 = vpop.f32.mrf.mxu0
      %v1774 = vadd.f32 %v1609, %v1773
      %1775 = vmatmul.bf16.gmra.mxu0 %v1690
      %v1776 = vpop.f32.mrf.mxu0
      %v1777 = vadd.f32 %v1609, %v1776
      %v1778 = vpop.f32.mrf.mxu0
      %v1779 = vadd.f32 %v1609, %v1778
      %1780 = vdwg.mxu0
      %1781 = vmatpush.bf16.msra.mxu0 0
      %1782 = vmatpush.bf16.msra.mxu0 0
      %1783 = vmatpush.bf16.msra.mxu0 0
      %1784 = vmatpush.bf16.msra.mxu0 0
      %1785 = vmatpush.bf16.msra.mxu0 0
      %1786 = vmatpush.bf16.msra.mxu0 %v1636
      %1787 = vmatpush.bf16.msra.mxu0 %v1634
      %1788 = vmatpush.bf16.msra.mxu0 %v1632
      %1789 = vmatmul.bf16.gmra.mxu0 %v1645
      %v1790 = vpop.f32.mrf.mxu0
      %v1791 = vadd.f32 %v1610, %v1790
      %v1792 = vpop.f32.mrf.mxu0
      %v1793 = vadd.f32 %v1610, %v1792
      %1794 = vmatmul.bf16.gmra.mxu0 %v1648
      %v1795 = vpop.f32.mrf.mxu0
      %v1796 = vadd.f32 %v1610, %v1795
      %v1797 = vpop.f32.mrf.mxu0
      %v1798 = vadd.f32 %v1610, %v1797
      %1799 = vmatmul.bf16.gmra.mxu0 %v1651
      %v1800 = vpop.f32.mrf.mxu0
      %v1801 = vadd.f32 %v1610, %v1800
      %v1802 = vpop.f32.mrf.mxu0
      %v1803 = vadd.f32 %v1610, %v1802
      %1804 = vmatmul.bf16.gmra.mxu0 %v1654
      %v1805 = vpop.f32.mrf.mxu0
      %v1806 = vadd.f32 %v1610, %v1805
      %v1807 = vpop.f32.mrf.mxu0
      %v1808 = vadd.f32 %v1610, %v1807
      %1809 = vmatmul.bf16.gmra.mxu0 %v1657
      %v1810 = vpop.f32.mrf.mxu0
      %v1811 = vadd.f32 %v1610, %v1810
      %v1812 = vpop.f32.mrf.mxu0
      %v1813 = vadd.f32 %v1610, %v1812
      %1814 = vmatmul.bf16.gmra.mxu0 %v1660
      %v1815 = vpop.f32.mrf.mxu0
      %v1816 = vadd.f32 %v1610, %v1815
      %v1817 = vpop.f32.mrf.mxu0
      %v1818 = vadd.f32 %v1610, %v1817
      %1819 = vmatmul.bf16.gmra.mxu0 %v1663
      %v1820 = vpop.f32.mrf.mxu0
      %v1821 = vadd.f32 %v1610, %v1820
      %v1822 = vpop.f32.mrf.mxu0
      %v1823 = vadd.f32 %v1610, %v1822
      %1824 = vmatmul.bf16.gmra.mxu0 %v1666
      %v1825 = vpop.f32.mrf.mxu0
      %v1826 = vadd.f32 %v1610, %v1825
      %v1827 = vpop.f32.mrf.mxu0
      %v1828 = vadd.f32 %v1610, %v1827
      %1829 = vmatmul.bf16.gmra.mxu0 %v1669
      %v1830 = vpop.f32.mrf.mxu0
      %v1831 = vadd.f32 %v1610, %v1830
      %v1832 = vpop.f32.mrf.mxu0
      %v1833 = vadd.f32 %v1610, %v1832
      %1834 = vmatmul.bf16.gmra.mxu0 %v1672
      %v1835 = vpop.f32.mrf.mxu0
      %v1836 = vadd.f32 %v1610, %v1835
      %v1837 = vpop.f32.mrf.mxu0
      %v1838 = vadd.f32 %v1610, %v1837
      %1839 = vmatmul.bf16.gmra.mxu0 %v1675
      %v1840 = vpop.f32.mrf.mxu0
      %v1841 = vadd.f32 %v1610, %v1840
      %v1842 = vpop.f32.mrf.mxu0
      %v1843 = vadd.f32 %v1610, %v1842
      %1844 = vmatmul.bf16.gmra.mxu0 %v1678
      %v1845 = vpop.f32.mrf.mxu0
      %v1846 = vadd.f32 %v1610, %v1845
      %v1847 = vpop.f32.mrf.mxu0
      %v1848 = vadd.f32 %v1610, %v1847
      %1849 = vmatmul.bf16.gmra.mxu0 %v1681
      %v1850 = vpop.f32.mrf.mxu0
      %v1851 = vadd.f32 %v1610, %v1850
      %v1852 = vpop.f32.mrf.mxu0
      %v1853 = vadd.f32 %v1610, %v1852
      %1854 = vmatmul.bf16.gmra.mxu0 %v1684
      %v1855 = vpop.f32.mrf.mxu0
      %v1856 = vadd.f32 %v1610, %v1855
      %v1857 = vpop.f32.mrf.mxu0
      %v1858 = vadd.f32 %v1610, %v1857
      %1859 = vmatmul.bf16.gmra.mxu0 %v1687
      %v1860 = vpop.f32.mrf.mxu0
      %v1861 = vadd.f32 %v1610, %v1860
      %v1862 = vpop.f32.mrf.mxu0
      %v1863 = vadd.f32 %v1610, %v1862
      %1864 = vmatmul.bf16.gmra.mxu0 %v1690
      %v1865 = vpop.f32.mrf.mxu0
      %v1866 = vadd.f32 %v1610, %v1865
      %v1867 = vpop.f32.mrf.mxu0
      %v1868 = vadd.f32 %v1610, %v1867
      %1869 = vdwg.mxu0
      %v1870 = vmax.f32 %v1702, 0.0
      %v1871 = vmax.f32 %v1791, 0.0
      %v1872 = vmax.f32 %v1704, 0.0
      %v1873 = vmax.f32 %v1793, 0.0
      %v1874 = vmax.f32 %v1707, 0.0
      %v1875 = vmax.f32 %v1796, 0.0
      %v1876 = vmax.f32 %v1709, 0.0
      %v1877 = vmax.f32 %v1798, 0.0
      %v1878 = vmax.f32 %v1712, 0.0
      %v1879 = vmax.f32 %v1801, 0.0
      %v1880 = vmax.f32 %v1714, 0.0
      %v1881 = vmax.f32 %v1803, 0.0
      %v1882 = vmax.f32 %v1717, 0.0
      %v1883 = vmax.f32 %v1806, 0.0
      %v1884 = vmax.f32 %v1719, 0.0
      %v1885 = vmax.f32 %v1808, 0.0
      %v1886 = vmax.f32 %v1722, 0.0
      %v1887 = vmax.f32 %v1811, 0.0
      %v1888 = vmax.f32 %v1724, 0.0
      %v1889 = vmax.f32 %v1813, 0.0
      %v1890 = vmax.f32 %v1727, 0.0
      %v1891 = vmax.f32 %v1816, 0.0
      %v1892 = vmax.f32 %v1729, 0.0
      %v1893 = vmax.f32 %v1818, 0.0
      %v1894 = vmax.f32 %v1732, 0.0
      %v1895 = vmax.f32 %v1821, 0.0
      %v1896 = vmax.f32 %v1734, 0.0
      %v1897 = vmax.f32 %v1823, 0.0
      %v1898 = vmax.f32 %v1737, 0.0
      %v1899 = vmax.f32 %v1826, 0.0
      %v1900 = vmax.f32 %v1739, 0.0
      %v1901 = vmax.f32 %v1828, 0.0
      %v1902 = vmax.f32 %v1742, 0.0
      %v1903 = vmax.f32 %v1831, 0.0
      %v1904 = vmax.f32 %v1744, 0.0
      %v1905 = vmax.f32 %v1833, 0.0
      %v1906 = vmax.f32 %v1747, 0.0
      %v1907 = vmax.f32 %v1836, 0.0
      %v1908 = vmax.f32 %v1749, 0.0
      %v1909 = vmax.f32 %v1838, 0.0
      %v1910 = vmax.f32 %v1752, 0.0
      %v1911 = vmax.f32 %v1841, 0.0
      %v1912 = vmax.f32 %v1754, 0.0
      %v1913 = vmax.f32 %v1843, 0.0
      %v1914 = vmax.f32 %v1757, 0.0
      %v1915 = vmax.f32 %v1846, 0.0
      %v1916 = vmax.f32 %v1759, 0.0
      %v1917 = vmax.f32 %v1848, 0.0
      %v1918 = vmax.f32 %v1762, 0.0
      %v1919 = vmax.f32 %v1851, 0.0
      %v1920 = vmax.f32 %v1764, 0.0
      %v1921 = vmax.f32 %v1853, 0.0
      %v1922 = vmax.f32 %v1767, 0.0
      %v1923 = vmax.f32 %v1856, 0.0
      %v1924 = vmax.f32 %v1769, 0.0
      %v1925 = vmax.f32 %v1858, 0.0
      %v1926 = vmax.f32 %v1772, 0.0
      %v1927 = vmax.f32 %v1861, 0.0
      %v1928 = vmax.f32 %v1774, 0.0
      %v1929 = vmax.f32 %v1863, 0.0
      %v1930 = vmax.f32 %v1777, 0.0
      %v1931 = vmax.f32 %v1866, 0.0
      %v1932 = vmax.f32 %v1779, 0.0
      %v1933 = vmax.f32 %v1868, 0.0
      %1998 = vrot.lane.b32.xlu0 %v1870, 112
      %v1999 = vpop.permute.xlu0 %1998
      %2000 = vrot.lane.b32.xlu0 %v1871, 112
      %v2001 = vpop.permute.xlu0 %2000
      %2002 = vrot.lane.b32.xlu0 %v1872, 112
      %v2003 = vpop.permute.xlu0 %2002
      %2004 = vrot.lane.b32.xlu0 %v1873, 112
      %v2005 = vpop.permute.xlu0 %2004
      %2006 = vrot.lane.b32.xlu0 %v1874, 112
      %v2007 = vpop.permute.xlu0 %2006
      %2008 = vrot.lane.b32.xlu0 %v1875, 112
      %v2009 = vpop.permute.xlu0 %2008
      %2010 = vrot.lane.b32.xlu0 %v1876, 112
      %v2011 = vpop.permute.xlu0 %2010
      %2012 = vrot.lane.b32.xlu0 %v1877, 112
      %v2013 = vpop.permute.xlu0 %2012
      %2014 = vrot.lane.b32.xlu0 %v1878, 112
      %v2015 = vpop.permute.xlu0 %2014
      %2016 = vrot.lane.b32.xlu0 %v1879, 112
      %v2017 = vpop.permute.xlu0 %2016
      %2018 = vrot.lane.b32.xlu0 %v1880, 112
      %v2019 = vpop.permute.xlu0 %2018
      %2020 = vrot.lane.b32.xlu0 %v1881, 112
      %v2021 = vpop.permute.xlu0 %2020
      %2022 = vrot.lane.b32.xlu0 %v1882, 112
      %v2023 = vpop.permute.xlu0 %2022
      %2024 = vrot.lane.b32.xlu0 %v1883, 112
      %v2025 = vpop.permute.xlu0 %2024
      %2026 = vrot.lane.b32.xlu0 %v1884, 112
      %v2027 = vpop.permute.xlu0 %2026
      %2028 = vrot.lane.b32.xlu0 %v1885, 112
      %v2029 = vpop.permute.xlu0 %2028
      %2030 = vrot.lane.b32.xlu0 %v1886, 112
      %v2031 = vpop.permute.xlu0 %2030
      %2032 = vrot.lane.b32.xlu0 %v1887, 112
      %v2033 = vpop.permute.xlu0 %2032
      %2034 = vrot.lane.b32.xlu0 %v1888, 112
      %v2035 = vpop.permute.xlu0 %2034
      %2036 = vrot.lane.b32.xlu0 %v1889, 112
      %v2037 = vpop.permute.xlu0 %2036
      %2038 = vrot.lane.b32.xlu0 %v1890, 112
      %v2039 = vpop.permute.xlu0 %2038
      %2040 = vrot.lane.b32.xlu0 %v1891, 112
      %v2041 = vpop.permute.xlu0 %2040
      %2042 = vrot.lane.b32.xlu0 %v1892, 112
      %v2043 = vpop.permute.xlu0 %2042
      %2044 = vrot.lane.b32.xlu0 %v1893, 112
      %v2045 = vpop.permute.xlu0 %2044
      %2046 = vrot.lane.b32.xlu0 %v1894, 112
      %v2047 = vpop.permute.xlu0 %2046
      %2048 = vrot.lane.b32.xlu0 %v1895, 112
      %v2049 = vpop.permute.xlu0 %2048
      %2050 = vrot.lane.b32.xlu0 %v1896, 112
      %v2051 = vpop.permute.xlu0 %2050
      %2052 = vrot.lane.b32.xlu0 %v1897, 112
      %v2053 = vpop.permute.xlu0 %2052
      %2054 = vrot.lane.b32.xlu0 %v1898, 112
      %v2055 = vpop.permute.xlu0 %2054
      %2056 = vrot.lane.b32.xlu0 %v1899, 112
      %v2057 = vpop.permute.xlu0 %2056
      %2058 = vrot.lane.b32.xlu0 %v1900, 112
      %v2059 = vpop.permute.xlu0 %2058
      %2060 = vrot.lane.b32.xlu0 %v1901, 112
      %v2061 = vpop.permute.xlu0 %2060
      %2062 = vrot.lane.b32.xlu0 %v1902, 112
      %v2063 = vpop.permute.xlu0 %2062
      %2064 = vrot.lane.b32.xlu0 %v1903, 112
      %v2065 = vpop.permute.xlu0 %2064
      %2066 = vrot.lane.b32.xlu0 %v1904, 112
      %v2067 = vpop.permute.xlu0 %2066
      %2068 = vrot.lane.b32.xlu0 %v1905, 112
      %v2069 = vpop.permute.xlu0 %2068
      %2070 = vrot.lane.b32.xlu0 %v1906, 112
      %v2071 = vpop.permute.xlu0 %2070
      %2072 = vrot.lane.b32.xlu0 %v1907, 112
      %v2073 = vpop.permute.xlu0 %2072
      %2074 = vrot.lane.b32.xlu0 %v1908, 112
      %v2075 = vpop.permute.xlu0 %2074
      %2076 = vrot.lane.b32.xlu0 %v1909, 112
      %v2077 = vpop.permute.xlu0 %2076
      %2078 = vrot.lane.b32.xlu0 %v1910, 112
      %v2079 = vpop.permute.xlu0 %2078
      %2080 = vrot.lane.b32.xlu0 %v1911, 112
      %v2081 = vpop.permute.xlu0 %2080
      %2082 = vrot.lane.b32.xlu0 %v1912, 112
      %v2083 = vpop.permute.xlu0 %2082
      %2084 = vrot.lane.b32.xlu0 %v1913, 112
      %v2085 = vpop.permute.xlu0 %2084
      %2086 = vrot.lane.b32.xlu0 %v1914, 112
      %v2087 = vpop.permute.xlu0 %2086
      %2088 = vrot.lane.b32.xlu0 %v1915, 112
      %v2089 = vpop.permute.xlu0 %2088
      %2090 = vrot.lane.b32.xlu0 %v1916, 112
      %v2091 = vpop.permute.xlu0 %2090
      %2092 = vrot.lane.b32.xlu0 %v1917, 112
      %v2093 = vpop.permute.xlu0 %2092
      %2094 = vrot.lane.b32.xlu0 %v1918, 112
      %v2095 = vpop.permute.xlu0 %2094
      %2096 = vrot.lane.b32.xlu0 %v1919, 112
      %v2097 = vpop.permute.xlu0 %2096
      %2098 = vrot.lane.b32.xlu0 %v1920, 112
      %v2099 = vpop.permute.xlu0 %2098
      %2100 = vrot.lane.b32.xlu0 %v1921, 112
      %v2101 = vpop.permute.xlu0 %2100
      %2102 = vrot.lane.b32.xlu0 %v1922, 112
      %v2103 = vpop.permute.xlu0 %2102
      %2104 = vrot.lane.b32.xlu0 %v1923, 112
      %v2105 = vpop.permute.xlu0 %2104
      %2106 = vrot.lane.b32.xlu0 %v1924, 112
      %v2107 = vpop.permute.xlu0 %2106
      %2108 = vrot.lane.b32.xlu0 %v1925, 112
      %v2109 = vpop.permute.xlu0 %2108
      %2110 = vrot.lane.b32.xlu0 %v1926, 112
      %v2111 = vpop.permute.xlu0 %2110
      %2112 = vrot.lane.b32.xlu0 %v1927, 112
      %v2113 = vpop.permute.xlu0 %2112
      %2114 = vrot.lane.b32.xlu0 %v1928, 112
      %v2115 = vpop.permute.xlu0 %2114
      %2116 = vrot.lane.b32.xlu0 %v1929, 112
      %v2117 = vpop.permute.xlu0 %2116
      %2118 = vrot.lane.b32.xlu0 %v1930, 112
      %v2119 = vpop.permute.xlu0 %2118
      %2120 = vrot.lane.b32.xlu0 %v1931, 112
      %v2121 = vpop.permute.xlu0 %2120
      %2122 = vrot.lane.b32.xlu0 %v1932, 112
      %v2123 = vpop.permute.xlu0 %2122
      %2124 = vrot.lane.b32.xlu0 %v1933, 112
      %v2125 = vpop.permute.xlu0 %2124
      %vm2126 = vcmask 916480
      %v2127 = vsel %vm2126, %v1999, %v2001
      %v2128 = vsel %vm2126, %v2003, %v2005
      %v2129 = vsel %vm2126, %v2007, %v2009
      %v2130 = vsel %vm2126, %v2011, %v2013
      %v2131 = vsel %vm2126, %v2015, %v2017
      %v2132 = vsel %vm2126, %v2019, %v2021
      %v2133 = vsel %vm2126, %v2023, %v2025
      %v2134 = vsel %vm2126, %v2027, %v2029
      %v2135 = vsel %vm2126, %v2031, %v2033
      %v2136 = vsel %vm2126, %v2035, %v2037
      %v2137 = vsel %vm2126, %v2039, %v2041
      %v2138 = vsel %vm2126, %v2043, %v2045
      %v2139 = vsel %vm2126, %v2047, %v2049
      %v2140 = vsel %vm2126, %v2051, %v2053
      %v2141 = vsel %vm2126, %v2055, %v2057
      %v2142 = vsel %vm2126, %v2059, %v2061
      %v2143 = vsel %vm2126, %v2063, %v2065
      %v2144 = vsel %vm2126, %v2067, %v2069
      %v2145 = vsel %vm2126, %v2071, %v2073
      %v2146 = vsel %vm2126, %v2075, %v2077
      %v2147 = vsel %vm2126, %v2079, %v2081
      %v2148 = vsel %vm2126, %v2083, %v2085
      %v2149 = vsel %vm2126, %v2087, %v2089
      %v2150 = vsel %vm2126, %v2091, %v2093
      %v2151 = vsel %vm2126, %v2095, %v2097
      %v2152 = vsel %vm2126, %v2099, %v2101
      %v2153 = vsel %vm2126, %v2103, %v2105
      %v2154 = vsel %vm2126, %v2107, %v2109
      %v2155 = vsel %vm2126, %v2111, %v2113
      %v2156 = vsel %vm2126, %v2115, %v2117
      %v2157 = vsel %vm2126, %v2119, %v2121
      %v2158 = vsel %vm2126, %v2123, %v2125
      %v2223 = vsel %vm2126, %v2001, 0.0
      %v2224 = vsel %vm2126, %v2005, 0.0
      %v2225 = vsel %vm2126, %v2009, 0.0
      %v2226 = vsel %vm2126, %v2013, 0.0
      %v2227 = vsel %vm2126, %v2017, 0.0
      %v2228 = vsel %vm2126, %v2021, 0.0
      %v2229 = vsel %vm2126, %v2025, 0.0
      %v2230 = vsel %vm2126, %v2029, 0.0
      %v2231 = vsel %vm2126, %v2033, 0.0
      %v2232 = vsel %vm2126, %v2037, 0.0
      %v2233 = vsel %vm2126, %v2041, 0.0
      %v2234 = vsel %vm2126, %v2045, 0.0
      %v2235 = vsel %vm2126, %v2049, 0.0
      %v2236 = vsel %vm2126, %v2053, 0.0
      %v2237 = vsel %vm2126, %v2057, 0.0
      %v2238 = vsel %vm2126, %v2061, 0.0
      %v2239 = vsel %vm2126, %v2065, 0.0
      %v2240 = vsel %vm2126, %v2069, 0.0
      %v2241 = vsel %vm2126, %v2073, 0.0
      %v2242 = vsel %vm2126, %v2077, 0.0
      %v2243 = vsel %vm2126, %v2081, 0.0
      %v2244 = vsel %vm2126, %v2085, 0.0
      %v2245 = vsel %vm2126, %v2089, 0.0
      %v2246 = vsel %vm2126, %v2093, 0.0
      %v2247 = vsel %vm2126, %v2097, 0.0
      %v2248 = vsel %vm2126, %v2101, 0.0
      %v2249 = vsel %vm2126, %v2105, 0.0
      %v2250 = vsel %vm2126, %v2109, 0.0
      %v2251 = vsel %vm2126, %v2113, 0.0
      %v2252 = vsel %vm2126, %v2117, 0.0
      %v2253 = vsel %vm2126, %v2121, 0.0
      %v2254 = vsel %vm2126, %v2125, 0.0
      %v2255 = vmax.f32 %v1870, %v2127
      %v2256 = vmax.f32 %v1871, %v2223
      %v2257 = vmax.f32 %v1872, %v2128
      %v2258 = vmax.f32 %v1873, %v2224
      %v2259 = vmax.f32 %v1874, %v2129
      %v2260 = vmax.f32 %v1875, %v2225
      %v2261 = vmax.f32 %v1876, %v2130
      %v2262 = vmax.f32 %v1877, %v2226
      %v2263 = vmax.f32 %v1878, %v2131
      %v2264 = vmax.f32 %v1879, %v2227
      %v2265 = vmax.f32 %v1880, %v2132
      %v2266 = vmax.f32 %v1881, %v2228
      %v2267 = vmax.f32 %v1882, %v2133
      %v2268 = vmax.f32 %v1883, %v2229
      %v2269 = vmax.f32 %v1884, %v2134
      %v2270 = vmax.f32 %v1885, %v2230
      %v2271 = vmax.f32 %v1886, %v2135
      %v2272 = vmax.f32 %v1887, %v2231
      %v2273 = vmax.f32 %v1888, %v2136
      %v2274 = vmax.f32 %v1889, %v2232
      %v2275 = vmax.f32 %v1890, %v2137
      %v2276 = vmax.f32 %v1891, %v2233
      %v2277 = vmax.f32 %v1892, %v2138
      %v2278 = vmax.f32 %v1893, %v2234
      %v2279 = vmax.f32 %v1894, %v2139
      %v2280 = vmax.f32 %v1895, %v2235
      %v2281 = vmax.f32 %v1896, %v2140
      %v2282 = vmax.f32 %v1897, %v2236
      %v2283 = vmax.f32 %v1898, %v2141
      %v2284 = vmax.f32 %v1899, %v2237
      %v2285 = vmax.f32 %v1900, %v2142
      %v2286 = vmax.f32 %v1901, %v2238
      %v2287 = vmax.f32 %v1902, %v2143
      %v2288 = vmax.f32 %v1903, %v2239
      %v2289 = vmax.f32 %v1904, %v2144
      %v2290 = vmax.f32 %v1905, %v2240
      %v2291 = vmax.f32 %v1906, %v2145
      %v2292 = vmax.f32 %v1907, %v2241
      %v2293 = vmax.f32 %v1908, %v2146
      %v2294 = vmax.f32 %v1909, %v2242
      %v2295 = vmax.f32 %v1910, %v2147
      %v2296 = vmax.f32 %v1911, %v2243
      %v2297 = vmax.f32 %v1912, %v2148
      %v2298 = vmax.f32 %v1913, %v2244
      %v2299 = vmax.f32 %v1914, %v2149
      %v2300 = vmax.f32 %v1915, %v2245
      %v2301 = vmax.f32 %v1916, %v2150
      %v2302 = vmax.f32 %v1917, %v2246
      %v2303 = vmax.f32 %v1918, %v2151
      %v2304 = vmax.f32 %v1919, %v2247
      %v2305 = vmax.f32 %v1920, %v2152
      %v2306 = vmax.f32 %v1921, %v2248
      %v2307 = vmax.f32 %v1922, %v2153
      %v2308 = vmax.f32 %v1923, %v2249
      %v2309 = vmax.f32 %v1924, %v2154
      %v2310 = vmax.f32 %v1925, %v2250
      %v2311 = vmax.f32 %v1926, %v2155
      %v2312 = vmax.f32 %v1927, %v2251
      %v2313 = vmax.f32 %v1928, %v2156
      %v2314 = vmax.f32 %v1929, %v2252
      %v2315 = vmax.f32 %v1930, %v2157
      %v2316 = vmax.f32 %v1931, %v2253
      %v2317 = vmax.f32 %v1932, %v2158
      %v2318 = vmax.f32 %v1933, %v2254
      %v2383 = vrot.slane %v2255, 1
      %v2384 = vrot.slane %v2257, 1
      %v2385 = vsel %vm1102, %v2383, %v2384
      %v2386 = vrot.slane %v2256, 1
      %v2387 = vrot.slane %v2258, 1
      %v2388 = vsel %vm1102, %v2386, %v2387
      %v2389 = vrot.slane %v2259, 1
      %v2390 = vsel %vm1102, %v2384, %v2389
      %v2391 = vrot.slane %v2260, 1
      %v2392 = vsel %vm1102, %v2387, %v2391
      %v2393 = vrot.slane %v2261, 1
      %v2394 = vsel %vm1102, %v2389, %v2393
      %v2395 = vrot.slane %v2262, 1
      %v2396 = vsel %vm1102, %v2391, %v2395
      %v2397 = vrot.slane %v2263, 1
      %v2398 = vsel %vm1102, %v2393, %v2397
      %v2399 = vrot.slane %v2264, 1
      %v2400 = vsel %vm1102, %v2395, %v2399
      %v2401 = vrot.slane %v2265, 1
      %v2402 = vsel %vm1102, %v2397, %v2401
      %v2403 = vrot.slane %v2266, 1
      %v2404 = vsel %vm1102, %v2399, %v2403
      %v2405 = vrot.slane %v2267, 1
      %v2406 = vsel %vm1102, %v2401, %v2405
      %v2407 = vrot.slane %v2268, 1
      %v2408 = vsel %vm1102, %v2403, %v2407
      %v2409 = vrot.slane %v2269, 1
      %v2410 = vsel %vm1102, %v2405, %v2409
      %v2411 = vrot.slane %v2270, 1
      %v2412 = vsel %vm1102, %v2407, %v2411
      %v2413 = vrot.slane %v2271, 1
      %v2414 = vsel %vm1102, %v2409, %v2413
      %v2415 = vrot.slane %v2272, 1
      %v2416 = vsel %vm1102, %v2411, %v2415
      %v2417 = vrot.slane %v2273, 1
      %v2418 = vsel %vm1102, %v2413, %v2417
      %v2419 = vrot.slane %v2274, 1
      %v2420 = vsel %vm1102, %v2415, %v2419
      %v2421 = vrot.slane %v2275, 1
      %v2422 = vsel %vm1102, %v2417, %v2421
      %v2423 = vrot.slane %v2276, 1
      %v2424 = vsel %vm1102, %v2419, %v2423
      %v2425 = vrot.slane %v2277, 1
      %v2426 = vsel %vm1102, %v2421, %v2425
      %v2427 = vrot.slane %v2278, 1
      %v2428 = vsel %vm1102, %v2423, %v2427
      %v2429 = vrot.slane %v2279, 1
      %v2430 = vsel %vm1102, %v2425, %v2429
      %v2431 = vrot.slane %v2280, 1
      %v2432 = vsel %vm1102, %v2427, %v2431
      %v2433 = vrot.slane %v2281, 1
      %v2434 = vsel %vm1102, %v2429, %v2433
      %v2435 = vrot.slane %v2282, 1
      %v2436 = vsel %vm1102, %v2431, %v2435
      %v2437 = vrot.slane %v2283, 1
      %v2438 = vsel %vm1102, %v2433, %v2437
      %v2439 = vrot.slane %v2284, 1
      %v2440 = vsel %vm1102, %v2435, %v2439
      %v2441 = vrot.slane %v2285, 1
      %v2442 = vsel %vm1102, %v2437, %v2441
      %v2443 = vrot.slane %v2286, 1
      %v2444 = vsel %vm1102, %v2439, %v2443
      %v2445 = vrot.slane %v2287, 1
      %v2446 = vsel %vm1102, %v2441, %v2445
      %v2447 = vrot.slane %v2288, 1
      %v2448 = vsel %vm1102, %v2443, %v2447
      %v2449 = vrot.slane %v2289, 1
      %v2450 = vsel %vm1102, %v2445, %v2449
      %v2451 = vrot.slane %v2290, 1
      %v2452 = vsel %vm1102, %v2447, %v2451
      %v2453 = vrot.slane %v2291, 1
      %v2454 = vsel %vm1102, %v2449, %v2453
      %v2455 = vrot.slane %v2292, 1
      %v2456 = vsel %vm1102, %v2451, %v2455
      %v2457 = vrot.slane %v2293, 1
      %v2458 = vsel %vm1102, %v2453, %v2457
      %v2459 = vrot.slane %v2294, 1
      %v2460 = vsel %vm1102, %v2455, %v2459
      %v2461 = vrot.slane %v2295, 1
      %v2462 = vsel %vm1102, %v2457, %v2461
      %v2463 = vrot.slane %v2296, 1
      %v2464 = vsel %vm1102, %v2459, %v2463
      %v2465 = vrot.slane %v2297, 1
      %v2466 = vsel %vm1102, %v2461, %v2465
      %v2467 = vrot.slane %v2298, 1
      %v2468 = vsel %vm1102, %v2463, %v2467
      %v2469 = vrot.slane %v2299, 1
      %v2470 = vsel %vm1102, %v2465, %v2469
      %v2471 = vrot.slane %v2300, 1
      %v2472 = vsel %vm1102, %v2467, %v2471
      %v2473 = vrot.slane %v2301, 1
      %v2474 = vsel %vm1102, %v2469, %v2473
      %v2475 = vrot.slane %v2302, 1
      %v2476 = vsel %vm1102, %v2471, %v2475
      %v2477 = vrot.slane %v2303, 1
      %v2478 = vsel %vm1102, %v2473, %v2477
      %v2479 = vrot.slane %v2304, 1
      %v2480 = vsel %vm1102, %v2475, %v2479
      %v2481 = vrot.slane %v2305, 1
      %v2482 = vsel %vm1102, %v2477, %v2481
      %v2483 = vrot.slane %v2306, 1
      %v2484 = vsel %vm1102, %v2479, %v2483
      %v2485 = vrot.slane %v2307, 1
      %v2486 = vsel %vm1102, %v2481, %v2485
      %v2487 = vrot.slane %v2308, 1
      %v2488 = vsel %vm1102, %v2483, %v2487
      %v2489 = vrot.slane %v2309, 1
      %v2490 = vsel %vm1102, %v2485, %v2489
      %v2491 = vrot.slane %v2310, 1
      %v2492 = vsel %vm1102, %v2487, %v2491
      %v2493 = vrot.slane %v2311, 1
      %v2494 = vsel %vm1102, %v2489, %v2493
      %v2495 = vrot.slane %v2312, 1
      %v2496 = vsel %vm1102, %v2491, %v2495
      %v2497 = vrot.slane %v2313, 1
      %v2498 = vsel %vm1102, %v2493, %v2497
      %v2499 = vrot.slane %v2314, 1
      %v2500 = vsel %vm1102, %v2495, %v2499
      %v2501 = vrot.slane %v2315, 1
      %v2502 = vsel %vm1102, %v2497, %v2501
      %v2503 = vrot.slane %v2316, 1
      %v2504 = vsel %vm1102, %v2499, %v2503
      %v2505 = vrot.slane %v2317, 1
      %v2506 = vsel %vm1102, %v2501, %v2505
      %v2507 = vrot.slane %v2318, 1
      %v2508 = vsel %vm1102, %v2503, %v2507
      %v2573 = vsel %vm1102, %v2505, 0.0
      %v2574 = vsel %vm1102, %v2507, 0.0
      %v2575 = vmax.f32 %v2255, %v2385
      %v2576 = vmax.f32 %v2256, %v2388
      %v2577 = vmax.f32 %v2257, %v2390
      %v2578 = vmax.f32 %v2258, %v2392
      %v2579 = vmax.f32 %v2259, %v2394
      %v2580 = vmax.f32 %v2260, %v2396
      %v2581 = vmax.f32 %v2261, %v2398
      %v2582 = vmax.f32 %v2262, %v2400
      %v2583 = vmax.f32 %v2263, %v2402
      %v2584 = vmax.f32 %v2264, %v2404
      %v2585 = vmax.f32 %v2265, %v2406
      %v2586 = vmax.f32 %v2266, %v2408
      %v2587 = vmax.f32 %v2267, %v2410
      %v2588 = vmax.f32 %v2268, %v2412
      %v2589 = vmax.f32 %v2269, %v2414
      %v2590 = vmax.f32 %v2270, %v2416
      %v2591 = vmax.f32 %v2271, %v2418
      %v2592 = vmax.f32 %v2272, %v2420
      %v2593 = vmax.f32 %v2273, %v2422
      %v2594 = vmax.f32 %v2274, %v2424
      %v2595 = vmax.f32 %v2275, %v2426
      %v2596 = vmax.f32 %v2276, %v2428
      %v2597 = vmax.f32 %v2277, %v2430
      %v2598 = vmax.f32 %v2278, %v2432
      %v2599 = vmax.f32 %v2279, %v2434
      %v2600 = vmax.f32 %v2280, %v2436
      %v2601 = vmax.f32 %v2281, %v2438
      %v2602 = vmax.f32 %v2282, %v2440
      %v2603 = vmax.f32 %v2283, %v2442
      %v2604 = vmax.f32 %v2284, %v2444
      %v2605 = vmax.f32 %v2285, %v2446
      %v2606 = vmax.f32 %v2286, %v2448
      %v2607 = vmax.f32 %v2287, %v2450
      %v2608 = vmax.f32 %v2288, %v2452
      %v2609 = vmax.f32 %v2289, %v2454
      %v2610 = vmax.f32 %v2290, %v2456
      %v2611 = vmax.f32 %v2291, %v2458
      %v2612 = vmax.f32 %v2292, %v2460
      %v2613 = vmax.f32 %v2293, %v2462
      %v2614 = vmax.f32 %v2294, %v2464
      %v2615 = vmax.f32 %v2295, %v2466
      %v2616 = vmax.f32 %v2296, %v2468
      %v2617 = vmax.f32 %v2297, %v2470
      %v2618 = vmax.f32 %v2298, %v2472
      %v2619 = vmax.f32 %v2299, %v2474
      %v2620 = vmax.f32 %v2300, %v2476
      %v2621 = vmax.f32 %v2301, %v2478
      %v2622 = vmax.f32 %v2302, %v2480
      %v2623 = vmax.f32 %v2303, %v2482
      %v2624 = vmax.f32 %v2304, %v2484
      %v2625 = vmax.f32 %v2305, %v2486
      %v2626 = vmax.f32 %v2306, %v2488
      %v2627 = vmax.f32 %v2307, %v2490
      %v2628 = vmax.f32 %v2308, %v2492
      %v2629 = vmax.f32 %v2309, %v2494
      %v2630 = vmax.f32 %v2310, %v2496
      %v2631 = vmax.f32 %v2311, %v2498
      %v2632 = vmax.f32 %v2312, %v2500
      %v2633 = vmax.f32 %v2313, %v2502
      %v2634 = vmax.f32 %v2314, %v2504
      %v2635 = vmax.f32 %v2315, %v2506
      %v2636 = vmax.f32 %v2316, %v2508
      %v2637 = vmax.f32 %v2317, %v2573
      %v2638 = vmax.f32 %v2318, %v2574
      %vm2639 = vcmp.lt.s32.totalorder %v781, 2
      %vm2640 = vcmp.lt.s32.totalorder %v782, 2
      %vm2641 = vcmp.lt.s32.totalorder %v783, 2
      %vm2642 = vcmp.lt.s32.totalorder %v784, 2
      %vm2643 = vcmp.lt.s32.totalorder %v785, 2
      %vm2644 = vcmp.lt.s32.totalorder %v786, 2
      %vm2645 = vcmp.lt.s32.totalorder %v787, 2
      %vm2646 = vcmp.lt.s32.totalorder %v788, 2
      %vm2647 = vcmp.lt.s32.totalorder %v789, 2
      %vm2648 = vcmp.lt.s32.totalorder %v790, 2
      %vm2649 = vcmp.lt.s32.totalorder %v791, 2
      %vm2650 = vcmp.lt.s32.totalorder %v792, 2
      %vm2651 = vcmp.lt.s32.totalorder %v793, 2
      %vm2652 = vcmp.lt.s32.totalorder %v794, 2
      %vm2653 = vcmp.lt.s32.totalorder %v795, 2
      %vm2654 = vcmp.lt.s32.totalorder %v796, 2
      %vm2655 = vcmp.lt.s32.totalorder %v797, 2
      %vm2656 = vcmp.lt.s32.totalorder %v798, 2
      %vm2657 = vcmp.lt.s32.totalorder %v799, 2
      %vm2658 = vcmp.lt.s32.totalorder %v800, 2
      %vm2659 = vcmp.lt.s32.totalorder %v801, 2
      %vm2660 = vcmp.lt.s32.totalorder %v802, 2
      %vm2661 = vcmp.lt.s32.totalorder %v803, 2
      %vm2662 = vcmp.lt.s32.totalorder %v804, 2
      %vm2663 = vcmp.lt.s32.totalorder %v805, 2
      %vm2664 = vcmp.lt.s32.totalorder %v806, 2
      %vm2665 = vcmp.lt.s32.totalorder %v807, 2
      %vm2666 = vcmp.lt.s32.totalorder %v808, 2
      %vm2667 = vcmp.lt.s32.totalorder %v809, 2
      %vm2668 = vcmp.lt.s32.totalorder %v810, 2
      %vm2669 = vcmp.lt.s32.totalorder %v811, 2
      %vm2670 = vcmp.lt.s32.totalorder %v812, 2
      %vm2735 = vcmask 1041408
      %v2736 = vrot.slane %v2575, 6
      %v2737 = vrot.slane %v2576, 6
      %v2738 = vrot.slane %v2577, 6
      %v2739 = vsel %vm2735, %v2736, %v2738
      %v2740 = vrot.slane %v2578, 6
      %v2741 = vsel %vm2735, %v2737, %v2740
      %v2742 = vrot.slane %v2579, 6
      %v2743 = vsel %vm2735, %v2738, %v2742
      %v2744 = vrot.slane %v2580, 6
      %v2745 = vsel %vm2735, %v2740, %v2744
      %v2746 = vrot.slane %v2581, 6
      %v2747 = vsel %vm2735, %v2742, %v2746
      %v2748 = vrot.slane %v2582, 6
      %v2749 = vsel %vm2735, %v2744, %v2748
      %v2750 = vrot.slane %v2583, 6
      %v2751 = vsel %vm2735, %v2746, %v2750
      %v2752 = vrot.slane %v2584, 6
      %v2753 = vsel %vm2735, %v2748, %v2752
      %v2754 = vrot.slane %v2585, 6
      %v2755 = vsel %vm2735, %v2750, %v2754
      %v2756 = vrot.slane %v2586, 6
      %v2757 = vsel %vm2735, %v2752, %v2756
      %v2758 = vrot.slane %v2587, 6
      %v2759 = vsel %vm2735, %v2754, %v2758
      %v2760 = vrot.slane %v2588, 6
      %v2761 = vsel %vm2735, %v2756, %v2760
      %v2762 = vrot.slane %v2589, 6
      %v2763 = vsel %vm2735, %v2758, %v2762
      %v2764 = vrot.slane %v2590, 6
      %v2765 = vsel %vm2735, %v2760, %v2764
      %v2766 = vrot.slane %v2591, 6
      %v2767 = vsel %vm2735, %v2762, %v2766
      %v2768 = vrot.slane %v2592, 6
      %v2769 = vsel %vm2735, %v2764, %v2768
      %v2770 = vrot.slane %v2593, 6
      %v2771 = vsel %vm2735, %v2766, %v2770
      %v2772 = vrot.slane %v2594, 6
      %v2773 = vsel %vm2735, %v2768, %v2772
      %v2774 = vrot.slane %v2595, 6
      %v2775 = vsel %vm2735, %v2770, %v2774
      %v2776 = vrot.slane %v2596, 6
      %v2777 = vsel %vm2735, %v2772, %v2776
      %v2778 = vrot.slane %v2597, 6
      %v2779 = vsel %vm2735, %v2774, %v2778
      %v2780 = vrot.slane %v2598, 6
      %v2781 = vsel %vm2735, %v2776, %v2780
      %v2782 = vrot.slane %v2599, 6
      %v2783 = vsel %vm2735, %v2778, %v2782
      %v2784 = vrot.slane %v2600, 6
      %v2785 = vsel %vm2735, %v2780, %v2784
      %v2786 = vrot.slane %v2601, 6
      %v2787 = vsel %vm2735, %v2782, %v2786
      %v2788 = vrot.slane %v2602, 6
      %v2789 = vsel %vm2735, %v2784, %v2788
      %v2790 = vrot.slane %v2603, 6
      %v2791 = vsel %vm2735, %v2786, %v2790
      %v2792 = vrot.slane %v2604, 6
      %v2793 = vsel %vm2735, %v2788, %v2792
      %v2794 = vrot.slane %v2605, 6
      %v2795 = vsel %vm2735, %v2790, %v2794
      %v2796 = vrot.slane %v2606, 6
      %v2797 = vsel %vm2735, %v2792, %v2796
      %v2798 = vrot.slane %v2607, 6
      %v2799 = vsel %vm2735, %v2794, %v2798
      %v2800 = vrot.slane %v2608, 6
      %v2801 = vsel %vm2735, %v2796, %v2800
      %v2802 = vrot.slane %v2609, 6
      %v2803 = vsel %vm2735, %v2798, %v2802
      %v2804 = vrot.slane %v2610, 6
      %v2805 = vsel %vm2735, %v2800, %v2804
      %v2806 = vrot.slane %v2611, 6
      %v2807 = vsel %vm2735, %v2802, %v2806
      %v2808 = vrot.slane %v2612, 6
      %v2809 = vsel %vm2735, %v2804, %v2808
      %v2810 = vrot.slane %v2613, 6
      %v2811 = vsel %vm2735, %v2806, %v2810
      %v2812 = vrot.slane %v2614, 6
      %v2813 = vsel %vm2735, %v2808, %v2812
      %v2814 = vrot.slane %v2615, 6
      %v2815 = vsel %vm2735, %v2810, %v2814
      %v2816 = vrot.slane %v2616, 6
      %v2817 = vsel %vm2735, %v2812, %v2816
      %v2818 = vrot.slane %v2617, 6
      %v2819 = vsel %vm2735, %v2814, %v2818
      %v2820 = vrot.slane %v2618, 6
      %v2821 = vsel %vm2735, %v2816, %v2820
      %v2822 = vrot.slane %v2619, 6
      %v2823 = vsel %vm2735, %v2818, %v2822
      %v2824 = vrot.slane %v2620, 6
      %v2825 = vsel %vm2735, %v2820, %v2824
      %v2826 = vrot.slane %v2621, 6
      %v2827 = vsel %vm2735, %v2822, %v2826
      %v2828 = vrot.slane %v2622, 6
      %v2829 = vsel %vm2735, %v2824, %v2828
      %v2830 = vrot.slane %v2623, 6
      %v2831 = vsel %vm2735, %v2826, %v2830
      %v2832 = vrot.slane %v2624, 6
      %v2833 = vsel %vm2735, %v2828, %v2832
      %v2834 = vrot.slane %v2625, 6
      %v2835 = vsel %vm2735, %v2830, %v2834
      %v2836 = vrot.slane %v2626, 6
      %v2837 = vsel %vm2735, %v2832, %v2836
      %v2838 = vrot.slane %v2627, 6
      %v2839 = vsel %vm2735, %v2834, %v2838
      %v2840 = vrot.slane %v2628, 6
      %v2841 = vsel %vm2735, %v2836, %v2840
      %v2842 = vrot.slane %v2629, 6
      %v2843 = vsel %vm2735, %v2838, %v2842
      %v2844 = vrot.slane %v2630, 6
      %v2845 = vsel %vm2735, %v2840, %v2844
      %v2846 = vrot.slane %v2631, 6
      %v2847 = vsel %vm2735, %v2842, %v2846
      %v2848 = vrot.slane %v2632, 6
      %v2849 = vsel %vm2735, %v2844, %v2848
      %v2850 = vrot.slane %v2633, 6
      %v2851 = vsel %vm2735, %v2846, %v2850
      %v2852 = vrot.slane %v2634, 6
      %v2853 = vsel %vm2735, %v2848, %v2852
      %v2854 = vrot.slane %v2635, 6
      %v2855 = vsel %vm2735, %v2850, %v2854
      %v2856 = vrot.slane %v2636, 6
      %v2857 = vsel %vm2735, %v2852, %v2856
      %v2858 = vrot.slane %v2637, 6
      %v2859 = vsel %vm2735, %v2854, %v2858
      %v2860 = vrot.slane %v2638, 6
      %v2861 = vsel %vm2735, %v2856, %v2860
      %v2926 = vsel %vm2735, 0.0, %v2736
      %v2927 = vsel %vm2735, 0.0, %v2737
      %v2928 = vsel %vm2639, 1, 0
      %v2929 = vsel %vm2640, 1, 0
      %v2930 = vsel %vm2641, 1, 0
      %v2931 = vsel %vm2642, 1, 0
      %v2932 = vsel %vm2643, 1, 0
      %v2933 = vsel %vm2644, 1, 0
      %v2934 = vsel %vm2645, 1, 0
      %v2935 = vsel %vm2646, 1, 0
      %v2936 = vsel %vm2647, 1, 0
      %v2937 = vsel %vm2648, 1, 0
      %v2938 = vsel %vm2649, 1, 0
      %v2939 = vsel %vm2650, 1, 0
      %v2940 = vsel %vm2651, 1, 0
      %v2941 = vsel %vm2652, 1, 0
      %v2942 = vsel %vm2653, 1, 0
      %v2943 = vsel %vm2654, 1, 0
      %v2944 = vsel %vm2655, 1, 0
      %v2945 = vsel %vm2656, 1, 0
      %v2946 = vsel %vm2657, 1, 0
      %v2947 = vsel %vm2658, 1, 0
      %v2948 = vsel %vm2659, 1, 0
      %v2949 = vsel %vm2660, 1, 0
      %v2950 = vsel %vm2661, 1, 0
      %v2951 = vsel %vm2662, 1, 0
      %v2952 = vsel %vm2663, 1, 0
      %v2953 = vsel %vm2664, 1, 0
      %v2954 = vsel %vm2665, 1, 0
      %v2955 = vsel %vm2666, 1, 0
      %v2956 = vsel %vm2667, 1, 0
      %v2957 = vsel %vm2668, 1, 0
      %v2958 = vsel %vm2669, 1, 0
      %v2959 = vsel %vm2670, 1, 0
      %vm2960 = vcmp.eq.s32.totalorder %v2928, 1
      %vm2961 = vcmp.eq.s32.totalorder %v2929, 1
      %vm2962 = vcmp.eq.s32.totalorder %v2930, 1
      %vm2963 = vcmp.eq.s32.totalorder %v2931, 1
      %vm2964 = vcmp.eq.s32.totalorder %v2932, 1
      %vm2965 = vcmp.eq.s32.totalorder %v2933, 1
      %vm2966 = vcmp.eq.s32.totalorder %v2934, 1
      %vm2967 = vcmp.eq.s32.totalorder %v2935, 1
      %vm2968 = vcmp.eq.s32.totalorder %v2936, 1
      %vm2969 = vcmp.eq.s32.totalorder %v2937, 1
      %vm2970 = vcmp.eq.s32.totalorder %v2938, 1
      %vm2971 = vcmp.eq.s32.totalorder %v2939, 1
      %vm2972 = vcmp.eq.s32.totalorder %v2940, 1
      %vm2973 = vcmp.eq.s32.totalorder %v2941, 1
      %vm2974 = vcmp.eq.s32.totalorder %v2942, 1
      %vm2975 = vcmp.eq.s32.totalorder %v2943, 1
      %vm2976 = vcmp.eq.s32.totalorder %v2944, 1
      %vm2977 = vcmp.eq.s32.totalorder %v2945, 1
      %vm2978 = vcmp.eq.s32.totalorder %v2946, 1
      %vm2979 = vcmp.eq.s32.totalorder %v2947, 1
      %vm2980 = vcmp.eq.s32.totalorder %v2948, 1
      %vm2981 = vcmp.eq.s32.totalorder %v2949, 1
      %vm2982 = vcmp.eq.s32.totalorder %v2950, 1
      %vm2983 = vcmp.eq.s32.totalorder %v2951, 1
      %vm2984 = vcmp.eq.s32.totalorder %v2952, 1
      %vm2985 = vcmp.eq.s32.totalorder %v2953, 1
      %vm2986 = vcmp.eq.s32.totalorder %v2954, 1
      %vm2987 = vcmp.eq.s32.totalorder %v2955, 1
      %vm2988 = vcmp.eq.s32.totalorder %v2956, 1
      %vm2989 = vcmp.eq.s32.totalorder %v2957, 1
      %vm2990 = vcmp.eq.s32.totalorder %v2958, 1
      %vm2991 = vcmp.eq.s32.totalorder %v2959, 1
      %v2992 = vsel %vm2960, 0.0, %v2926
      %v2993 = vsel %vm2960, 0.0, %v2927
      %v2994 = vsel %vm2961, 0.0, %v2739
      %v2995 = vsel %vm2961, 0.0, %v2741
      %v2996 = vsel %vm2962, 0.0, %v2743
      %v2997 = vsel %vm2962, 0.0, %v2745
      %v2998 = vsel %vm2963, 0.0, %v2747
      %v2999 = vsel %vm2963, 0.0, %v2749
      %v3000 = vsel %vm2964, 0.0, %v2751
      %v3001 = vsel %vm2964, 0.0, %v2753
      %v3002 = vsel %vm2965, 0.0, %v2755
      %v3003 = vsel %vm2965, 0.0, %v2757
      %v3004 = vsel %vm2966, 0.0, %v2759
      %v3005 = vsel %vm2966, 0.0, %v2761
      %v3006 = vsel %vm2967, 0.0, %v2763
      %v3007 = vsel %vm2967, 0.0, %v2765
      %v3008 = vsel %vm2968, 0.0, %v2767
      %v3009 = vsel %vm2968, 0.0, %v2769
      %v3010 = vsel %vm2969, 0.0, %v2771
      %v3011 = vsel %vm2969, 0.0, %v2773
      %v3012 = vsel %vm2970, 0.0, %v2775
      %v3013 = vsel %vm2970, 0.0, %v2777
      %v3014 = vsel %vm2971, 0.0, %v2779
      %v3015 = vsel %vm2971, 0.0, %v2781
      %v3016 = vsel %vm2972, 0.0, %v2783
      %v3017 = vsel %vm2972, 0.0, %v2785
      %v3018 = vsel %vm2973, 0.0, %v2787
      %v3019 = vsel %vm2973, 0.0, %v2789
      %v3020 = vsel %vm2974, 0.0, %v2791
      %v3021 = vsel %vm2974, 0.0, %v2793
      %v3022 = vsel %vm2975, 0.0, %v2795
      %v3023 = vsel %vm2975, 0.0, %v2797
      %v3024 = vsel %vm2976, 0.0, %v2799
      %v3025 = vsel %vm2976, 0.0, %v2801
      %v3026 = vsel %vm2977, 0.0, %v2803
      %v3027 = vsel %vm2977, 0.0, %v2805
      %v3028 = vsel %vm2978, 0.0, %v2807
      %v3029 = vsel %vm2978, 0.0, %v2809
      %v3030 = vsel %vm2979, 0.0, %v2811
      %v3031 = vsel %vm2979, 0.0, %v2813
      %v3032 = vsel %vm2980, 0.0, %v2815
      %v3033 = vsel %vm2980, 0.0, %v2817
      %v3034 = vsel %vm2981, 0.0, %v2819
      %v3035 = vsel %vm2981, 0.0, %v2821
      %v3036 = vsel %vm2982, 0.0, %v2823
      %v3037 = vsel %vm2982, 0.0, %v2825
      %v3038 = vsel %vm2983, 0.0, %v2827
      %v3039 = vsel %vm2983, 0.0, %v2829
      %v3040 = vsel %vm2984, 0.0, %v2831
      %v3041 = vsel %vm2984, 0.0, %v2833
      %v3042 = vsel %vm2985, 0.0, %v2835
      %v3043 = vsel %vm2985, 0.0, %v2837
      %v3044 = vsel %vm2986, 0.0, %v2839
      %v3045 = vsel %vm2986, 0.0, %v2841
      %v3046 = vsel %vm2987, 0.0, %v2843
      %v3047 = vsel %vm2987, 0.0, %v2845
      %v3048 = vsel %vm2988, 0.0, %v2847
      %v3049 = vsel %vm2988, 0.0, %v2849
      %v3050 = vsel %vm2989, 0.0, %v2851
      %v3051 = vsel %vm2989, 0.0, %v2853
      %v3052 = vsel %vm2990, 0.0, %v2855
      %v3053 = vsel %vm2990, 0.0, %v2857
      %v3054 = vsel %vm2991, 0.0, %v2859
      %v3055 = vsel %vm2991, 0.0, %v2861
      %vm3056 = vcmp.ge.s32.totalorder %v781, 14
      %vm3057 = vcmp.ge.s32.totalorder %v782, 14
      %vm3058 = vcmp.ge.s32.totalorder %v783, 14
      %vm3059 = vcmp.ge.s32.totalorder %v784, 14
      %vm3060 = vcmp.ge.s32.totalorder %v785, 14
      %vm3061 = vcmp.ge.s32.totalorder %v786, 14
      %vm3062 = vcmp.ge.s32.totalorder %v787, 14
      %vm3063 = vcmp.ge.s32.totalorder %v788, 14
      %vm3064 = vcmp.ge.s32.totalorder %v789, 14
      %vm3065 = vcmp.ge.s32.totalorder %v790, 14
      %vm3066 = vcmp.ge.s32.totalorder %v791, 14
      %vm3067 = vcmp.ge.s32.totalorder %v792, 14
      %vm3068 = vcmp.ge.s32.totalorder %v793, 14
      %vm3069 = vcmp.ge.s32.totalorder %v794, 14
      %vm3070 = vcmp.ge.s32.totalorder %v795, 14
      %vm3071 = vcmp.ge.s32.totalorder %v796, 14
      %vm3072 = vcmp.ge.s32.totalorder %v797, 14
      %vm3073 = vcmp.ge.s32.totalorder %v798, 14
      %vm3074 = vcmp.ge.s32.totalorder %v799, 14
      %vm3075 = vcmp.ge.s32.totalorder %v800, 14
      %vm3076 = vcmp.ge.s32.totalorder %v801, 14
      %vm3077 = vcmp.ge.s32.totalorder %v802, 14
      %vm3078 = vcmp.ge.s32.totalorder %v803, 14
      %vm3079 = vcmp.ge.s32.totalorder %v804, 14
      %vm3080 = vcmp.ge.s32.totalorder %v805, 14
      %vm3081 = vcmp.ge.s32.totalorder %v806, 14
      %vm3082 = vcmp.ge.s32.totalorder %v807, 14
      %vm3083 = vcmp.ge.s32.totalorder %v808, 14
      %vm3084 = vcmp.ge.s32.totalorder %v809, 14
      %vm3085 = vcmp.ge.s32.totalorder %v810, 14
      %vm3086 = vcmp.ge.s32.totalorder %v811, 14
      %vm3087 = vcmp.ge.s32.totalorder %v812, 14
      %vm3088 = vcmask 1045504
      %v3089 = vrot.slane %v2575, 2
      %v3090 = vrot.slane %v2577, 2
      %v3091 = vsel %vm3088, %v3089, %v3090
      %v3092 = vrot.slane %v2576, 2
      %v3093 = vrot.slane %v2578, 2
      %v3094 = vsel %vm3088, %v3092, %v3093
      %v3095 = vrot.slane %v2579, 2
      %v3096 = vsel %vm3088, %v3090, %v3095
      %v3097 = vrot.slane %v2580, 2
      %v3098 = vsel %vm3088, %v3093, %v3097
      %v3099 = vrot.slane %v2581, 2
      %v3100 = vsel %vm3088, %v3095, %v3099
      %v3101 = vrot.slane %v2582, 2
      %v3102 = vsel %vm3088, %v3097, %v3101
      %v3103 = vrot.slane %v2583, 2
      %v3104 = vsel %vm3088, %v3099, %v3103
      %v3105 = vrot.slane %v2584, 2
      %v3106 = vsel %vm3088, %v3101, %v3105
      %v3107 = vrot.slane %v2585, 2
      %v3108 = vsel %vm3088, %v3103, %v3107
      %v3109 = vrot.slane %v2586, 2
      %v3110 = vsel %vm3088, %v3105, %v3109
      %v3111 = vrot.slane %v2587, 2
      %v3112 = vsel %vm3088, %v3107, %v3111
      %v3113 = vrot.slane %v2588, 2
      %v3114 = vsel %vm3088, %v3109, %v3113
      %v3115 = vrot.slane %v2589, 2
      %v3116 = vsel %vm3088, %v3111, %v3115
      %v3117 = vrot.slane %v2590, 2
      %v3118 = vsel %vm3088, %v3113, %v3117
      %v3119 = vrot.slane %v2591, 2
      %v3120 = vsel %vm3088, %v3115, %v3119
      %v3121 = vrot.slane %v2592, 2
      %v3122 = vsel %vm3088, %v3117, %v3121
      %v3123 = vrot.slane %v2593, 2
      %v3124 = vsel %vm3088, %v3119, %v3123
      %v3125 = vrot.slane %v2594, 2
      %v3126 = vsel %vm3088, %v3121, %v3125
      %v3127 = vrot.slane %v2595, 2
      %v3128 = vsel %vm3088, %v3123, %v3127
      %v3129 = vrot.slane %v2596, 2
      %v3130 = vsel %vm3088, %v3125, %v3129
      %v3131 = vrot.slane %v2597, 2
      %v3132 = vsel %vm3088, %v3127, %v3131
      %v3133 = vrot.slane %v2598, 2
      %v3134 = vsel %vm3088, %v3129, %v3133
      %v3135 = vrot.slane %v2599, 2
      %v3136 = vsel %vm3088, %v3131, %v3135
      %v3137 = vrot.slane %v2600, 2
      %v3138 = vsel %vm3088, %v3133, %v3137
      %v3139 = vrot.slane %v2601, 2
      %v3140 = vsel %vm3088, %v3135, %v3139
      %v3141 = vrot.slane %v2602, 2
      %v3142 = vsel %vm3088, %v3137, %v3141
      %v3143 = vrot.slane %v2603, 2
      %v3144 = vsel %vm3088, %v3139, %v3143
      %v3145 = vrot.slane %v2604, 2
      %v3146 = vsel %vm3088, %v3141, %v3145
      %v3147 = vrot.slane %v2605, 2
      %v3148 = vsel %vm3088, %v3143, %v3147
      %v3149 = vrot.slane %v2606, 2
      %v3150 = vsel %vm3088, %v3145, %v3149
      %v3151 = vrot.slane %v2607, 2
      %v3152 = vsel %vm3088, %v3147, %v3151
      %v3153 = vrot.slane %v2608, 2
      %v3154 = vsel %vm3088, %v3149, %v3153
      %v3155 = vrot.slane %v2609, 2
      %v3156 = vsel %vm3088, %v3151, %v3155
      %v3157 = vrot.slane %v2610, 2
      %v3158 = vsel %vm3088, %v3153, %v3157
      %v3159 = vrot.slane %v2611, 2
      %v3160 = vsel %vm3088, %v3155, %v3159
      %v3161 = vrot.slane %v2612, 2
      %v3162 = vsel %vm3088, %v3157, %v3161
      %v3163 = vrot.slane %v2613, 2
      %v3164 = vsel %vm3088, %v3159, %v3163
      %v3165 = vrot.slane %v2614, 2
      %v3166 = vsel %vm3088, %v3161, %v3165
      %v3167 = vrot.slane %v2615, 2
      %v3168 = vsel %vm3088, %v3163, %v3167
      %v3169 = vrot.slane %v2616, 2
      %v3170 = vsel %vm3088, %v3165, %v3169
      %v3171 = vrot.slane %v2617, 2
      %v3172 = vsel %vm3088, %v3167, %v3171
      %v3173 = vrot.slane %v2618, 2
      %v3174 = vsel %vm3088, %v3169, %v3173
      %v3175 = vrot.slane %v2619, 2
      %v3176 = vsel %vm3088, %v3171, %v3175
      %v3177 = vrot.slane %v2620, 2
      %v3178 = vsel %vm3088, %v3173, %v3177
      %v3179 = vrot.slane %v2621, 2
      %v3180 = vsel %vm3088, %v3175, %v3179
      %v3181 = vrot.slane %v2622, 2
      %v3182 = vsel %vm3088, %v3177, %v3181
      %v3183 = vrot.slane %v2623, 2
      %v3184 = vsel %vm3088, %v3179, %v3183
      %v3185 = vrot.slane %v2624, 2
      %v3186 = vsel %vm3088, %v3181, %v3185
      %v3187 = vrot.slane %v2625, 2
      %v3188 = vsel %vm3088, %v3183, %v3187
      %v3189 = vrot.slane %v2626, 2
      %v3190 = vsel %vm3088, %v3185, %v3189
      %v3191 = vrot.slane %v2627, 2
      %v3192 = vsel %vm3088, %v3187, %v3191
      %v3193 = vrot.slane %v2628, 2
      %v3194 = vsel %vm3088, %v3189, %v3193
      %v3195 = vrot.slane %v2629, 2
      %v3196 = vsel %vm3088, %v3191, %v3195
      %v3197 = vrot.slane %v2630, 2
      %v3198 = vsel %vm3088, %v3193, %v3197
      %v3199 = vrot.slane %v2631, 2
      %v3200 = vsel %vm3088, %v3195, %v3199
      %v3201 = vrot.slane %v2632, 2
      %v3202 = vsel %vm3088, %v3197, %v3201
      %v3203 = vrot.slane %v2633, 2
      %v3204 = vsel %vm3088, %v3199, %v3203
      %v3205 = vrot.slane %v2634, 2
      %v3206 = vsel %vm3088, %v3201, %v3205
      %v3207 = vrot.slane %v2635, 2
      %v3208 = vsel %vm3088, %v3203, %v3207
      %v3209 = vrot.slane %v2636, 2
      %v3210 = vsel %vm3088, %v3205, %v3209
      %v3211 = vrot.slane %v2637, 2
      %v3212 = vsel %vm3088, %v3207, %v3211
      %v3213 = vrot.slane %v2638, 2
      %v3214 = vsel %vm3088, %v3209, %v3213
      %v3279 = vsel %vm3088, %v3211, 0.0
      %v3280 = vsel %vm3088, %v3213, 0.0
      %v3281 = vsel %vm3056, 1, 0
      %v3282 = vsel %vm3057, 1, 0
      %v3283 = vsel %vm3058, 1, 0
      %v3284 = vsel %vm3059, 1, 0
      %v3285 = vsel %vm3060, 1, 0
      %v3286 = vsel %vm3061, 1, 0
      %v3287 = vsel %vm3062, 1, 0
      %v3288 = vsel %vm3063, 1, 0
      %v3289 = vsel %vm3064, 1, 0
      %v3290 = vsel %vm3065, 1, 0
      %v3291 = vsel %vm3066, 1, 0
      %v3292 = vsel %vm3067, 1, 0
      %v3293 = vsel %vm3068, 1, 0
      %v3294 = vsel %vm3069, 1, 0
      %v3295 = vsel %vm3070, 1, 0
      %v3296 = vsel %vm3071, 1, 0
      %v3297 = vsel %vm3072, 1, 0
      %v3298 = vsel %vm3073, 1, 0
      %v3299 = vsel %vm3074, 1, 0
      %v3300 = vsel %vm3075, 1, 0
      %v3301 = vsel %vm3076, 1, 0
      %v3302 = vsel %vm3077, 1, 0
      %v3303 = vsel %vm3078, 1, 0
      %v3304 = vsel %vm3079, 1, 0
      %v3305 = vsel %vm3080, 1, 0
      %v3306 = vsel %vm3081, 1, 0
      %v3307 = vsel %vm3082, 1, 0
      %v3308 = vsel %vm3083, 1, 0
      %v3309 = vsel %vm3084, 1, 0
      %v3310 = vsel %vm3085, 1, 0
      %v3311 = vsel %vm3086, 1, 0
      %v3312 = vsel %vm3087, 1, 0
      %vm3313 = vcmp.eq.s32.totalorder %v3281, 1
      %vm3314 = vcmp.eq.s32.totalorder %v3282, 1
      %vm3315 = vcmp.eq.s32.totalorder %v3283, 1
      %vm3316 = vcmp.eq.s32.totalorder %v3284, 1
      %vm3317 = vcmp.eq.s32.totalorder %v3285, 1
      %vm3318 = vcmp.eq.s32.totalorder %v3286, 1
      %vm3319 = vcmp.eq.s32.totalorder %v3287, 1
      %vm3320 = vcmp.eq.s32.totalorder %v3288, 1
      %vm3321 = vcmp.eq.s32.totalorder %v3289, 1
      %vm3322 = vcmp.eq.s32.totalorder %v3290, 1
      %vm3323 = vcmp.eq.s32.totalorder %v3291, 1
      %vm3324 = vcmp.eq.s32.totalorder %v3292, 1
      %vm3325 = vcmp.eq.s32.totalorder %v3293, 1
      %vm3326 = vcmp.eq.s32.totalorder %v3294, 1
      %vm3327 = vcmp.eq.s32.totalorder %v3295, 1
      %vm3328 = vcmp.eq.s32.totalorder %v3296, 1
      %vm3329 = vcmp.eq.s32.totalorder %v3297, 1
      %vm3330 = vcmp.eq.s32.totalorder %v3298, 1
      %vm3331 = vcmp.eq.s32.totalorder %v3299, 1
      %vm3332 = vcmp.eq.s32.totalorder %v3300, 1
      %vm3333 = vcmp.eq.s32.totalorder %v3301, 1
      %vm3334 = vcmp.eq.s32.totalorder %v3302, 1
      %vm3335 = vcmp.eq.s32.totalorder %v3303, 1
      %vm3336 = vcmp.eq.s32.totalorder %v3304, 1
      %vm3337 = vcmp.eq.s32.totalorder %v3305, 1
      %vm3338 = vcmp.eq.s32.totalorder %v3306, 1
      %vm3339 = vcmp.eq.s32.totalorder %v3307, 1
      %vm3340 = vcmp.eq.s32.totalorder %v3308, 1
      %vm3341 = vcmp.eq.s32.totalorder %v3309, 1
      %vm3342 = vcmp.eq.s32.totalorder %v3310, 1
      %vm3343 = vcmp.eq.s32.totalorder %v3311, 1
      %vm3344 = vcmp.eq.s32.totalorder %v3312, 1
      %v3345 = vsel %vm3313, 0.0, %v3091
      %v3346 = vsel %vm3313, 0.0, %v3094
      %v3347 = vsel %vm3314, 0.0, %v3096
      %v3348 = vsel %vm3314, 0.0, %v3098
      %v3349 = vsel %vm3315, 0.0, %v3100
      %v3350 = vsel %vm3315, 0.0, %v3102
      %v3351 = vsel %vm3316, 0.0, %v3104
      %v3352 = vsel %vm3316, 0.0, %v3106
      %v3353 = vsel %vm3317, 0.0, %v3108
      %v3354 = vsel %vm3317, 0.0, %v3110
      %v3355 = vsel %vm3318, 0.0, %v3112
      %v3356 = vsel %vm3318, 0.0, %v3114
      %v3357 = vsel %vm3319, 0.0, %v3116
      %v3358 = vsel %vm3319, 0.0, %v3118
      %v3359 = vsel %vm3320, 0.0, %v3120
      %v3360 = vsel %vm3320, 0.0, %v3122
      %v3361 = vsel %vm3321, 0.0, %v3124
      %v3362 = vsel %vm3321, 0.0, %v3126
      %v3363 = vsel %vm3322, 0.0, %v3128
      %v3364 = vsel %vm3322, 0.0, %v3130
      %v3365 = vsel %vm3323, 0.0, %v3132
      %v3366 = vsel %vm3323, 0.0, %v3134
      %v3367 = vsel %vm3324, 0.0, %v3136
      %v3368 = vsel %vm3324, 0.0, %v3138
      %v3369 = vsel %vm3325, 0.0, %v3140
      %v3370 = vsel %vm3325, 0.0, %v3142
      %v3371 = vsel %vm3326, 0.0, %v3144
      %v3372 = vsel %vm3326, 0.0, %v3146
      %v3373 = vsel %vm3327, 0.0, %v3148
      %v3374 = vsel %vm3327, 0.0, %v3150
      %v3375 = vsel %vm3328, 0.0, %v3152
      %v3376 = vsel %vm3328, 0.0, %v3154
      %v3377 = vsel %vm3329, 0.0, %v3156
      %v3378 = vsel %vm3329, 0.0, %v3158
      %v3379 = vsel %vm3330, 0.0, %v3160
      %v3380 = vsel %vm3330, 0.0, %v3162
      %v3381 = vsel %vm3331, 0.0, %v3164
      %v3382 = vsel %vm3331, 0.0, %v3166
      %v3383 = vsel %vm3332, 0.0, %v3168
      %v3384 = vsel %vm3332, 0.0, %v3170
      %v3385 = vsel %vm3333, 0.0, %v3172
      %v3386 = vsel %vm3333, 0.0, %v3174
      %v3387 = vsel %vm3334, 0.0, %v3176
      %v3388 = vsel %vm3334, 0.0, %v3178
      %v3389 = vsel %vm3335, 0.0, %v3180
      %v3390 = vsel %vm3335, 0.0, %v3182
      %v3391 = vsel %vm3336, 0.0, %v3184
      %v3392 = vsel %vm3336, 0.0, %v3186
      %v3393 = vsel %vm3337, 0.0, %v3188
      %v3394 = vsel %vm3337, 0.0, %v3190
      %v3395 = vsel %vm3338, 0.0, %v3192
      %v3396 = vsel %vm3338, 0.0, %v3194
      %v3397 = vsel %vm3339, 0.0, %v3196
      %v3398 = vsel %vm3339, 0.0, %v3198
      %v3399 = vsel %vm3340, 0.0, %v3200
      %v3400 = vsel %vm3340, 0.0, %v3202
      %v3401 = vsel %vm3341, 0.0, %v3204
      %v3402 = vsel %vm3341, 0.0, %v3206
      %v3403 = vsel %vm3342, 0.0, %v3208
      %v3404 = vsel %vm3342, 0.0, %v3210
      %v3405 = vsel %vm3343, 0.0, %v3212
      %v3406 = vsel %vm3343, 0.0, %v3214
      %v3407 = vsel %vm3344, 0.0, %v3279
      %v3408 = vsel %vm3344, 0.0, %v3280
      %v3409 = vpack.c.bf16 %v2994, %v2992
      %v3410 = vpack.c.bf16 %v2995, %v2993
      %v3411 = vpack.c.bf16 %v2577, %v2575
      %v3412 = vpack.c.bf16 %v2578, %v2576
      %v3413 = vpack.c.bf16 %v3347, %v3345
      %v3414 = vpack.c.bf16 %v3348, %v3346
      %v3415 = vpack.c.bf16 %v2998, %v2996
      %v3416 = vpack.c.bf16 %v2999, %v2997
      %v3417 = vpack.c.bf16 %v2581, %v2579
      %v3418 = vpack.c.bf16 %v2582, %v2580
      %v3419 = vpack.c.bf16 %v3351, %v3349
      %v3420 = vpack.c.bf16 %v3352, %v3350
      %v3421 = vpack.c.bf16 %v3002, %v3000
      %v3422 = vpack.c.bf16 %v3003, %v3001
      %v3423 = vpack.c.bf16 %v2585, %v2583
      %v3424 = vpack.c.bf16 %v2586, %v2584
      %v3425 = vpack.c.bf16 %v3355, %v3353
      %v3426 = vpack.c.bf16 %v3356, %v3354
      %v3427 = vpack.c.bf16 %v3006, %v3004
      %v3428 = vpack.c.bf16 %v3007, %v3005
      %v3429 = vpack.c.bf16 %v2589, %v2587
      %v3430 = vpack.c.bf16 %v2590, %v2588
      %v3431 = vpack.c.bf16 %v3359, %v3357
      %v3432 = vpack.c.bf16 %v3360, %v3358
      %v3433 = vpack.c.bf16 %v3010, %v3008
      %v3434 = vpack.c.bf16 %v3011, %v3009
      %v3435 = vpack.c.bf16 %v2593, %v2591
      %v3436 = vpack.c.bf16 %v2594, %v2592
      %v3437 = vpack.c.bf16 %v3363, %v3361
      %v3438 = vpack.c.bf16 %v3364, %v3362
      %v3439 = vpack.c.bf16 %v3014, %v3012
      %v3440 = vpack.c.bf16 %v3015, %v3013
      %v3441 = vpack.c.bf16 %v2597, %v2595
      %v3442 = vpack.c.bf16 %v2598, %v2596
      %v3443 = vpack.c.bf16 %v3367, %v3365
      %v3444 = vpack.c.bf16 %v3368, %v3366
      %v3445 = vpack.c.bf16 %v3018, %v3016
      %v3446 = vpack.c.bf16 %v3019, %v3017
      %v3447 = vpack.c.bf16 %v2601, %v2599
      %v3448 = vpack.c.bf16 %v2602, %v2600
      %v3449 = vpack.c.bf16 %v3371, %v3369
      %v3450 = vpack.c.bf16 %v3372, %v3370
      %v3451 = vpack.c.bf16 %v3022, %v3020
      %v3452 = vpack.c.bf16 %v3023, %v3021
      %v3453 = vpack.c.bf16 %v2605, %v2603
      %v3454 = vpack.c.bf16 %v2606, %v2604
      %v3455 = vpack.c.bf16 %v3375, %v3373
      %v3456 = vpack.c.bf16 %v3376, %v3374
      %v3457 = vpack.c.bf16 %v3026, %v3024
      %v3458 = vpack.c.bf16 %v3027, %v3025
      %v3459 = vpack.c.bf16 %v2609, %v2607
      %v3460 = vpack.c.bf16 %v2610, %v2608
      %v3461 = vpack.c.bf16 %v3379, %v3377
      %v3462 = vpack.c.bf16 %v3380, %v3378
      %v3463 = vpack.c.bf16 %v3030, %v3028
      %v3464 = vpack.c.bf16 %v3031, %v3029
      %v3465 = vpack.c.bf16 %v2613, %v2611
      %v3466 = vpack.c.bf16 %v2614, %v2612
      %v3467 = vpack.c.bf16 %v3383, %v3381
      %v3468 = vpack.c.bf16 %v3384, %v3382
      %v3469 = vpack.c.bf16 %v3034, %v3032
      %v3470 = vpack.c.bf16 %v3035, %v3033
      %v3471 = vpack.c.bf16 %v2617, %v2615
      %v3472 = vpack.c.bf16 %v2618, %v2616
      %v3473 = vpack.c.bf16 %v3387, %v3385
      %v3474 = vpack.c.bf16 %v3388, %v3386
      %v3475 = vpack.c.bf16 %v3038, %v3036
      %v3476 = vpack.c.bf16 %v3039, %v3037
      %v3477 = vpack.c.bf16 %v2621, %v2619
      %v3478 = vpack.c.bf16 %v2622, %v2620
      %v3479 = vpack.c.bf16 %v3391, %v3389
      %v3480 = vpack.c.bf16 %v3392, %v3390
      %v3481 = vpack.c.bf16 %v3042, %v3040
      %v3482 = vpack.c.bf16 %v3043, %v3041
      %v3483 = vpack.c.bf16 %v2625, %v2623
      %v3484 = vpack.c.bf16 %v2626, %v2624
      %v3485 = vpack.c.bf16 %v3395, %v3393
      %v3486 = vpack.c.bf16 %v3396, %v3394
      %v3487 = vpack.c.bf16 %v3046, %v3044
      %v3488 = vpack.c.bf16 %v3047, %v3045
      %v3489 = vpack.c.bf16 %v2629, %v2627
      %v3490 = vpack.c.bf16 %v2630, %v2628
      %v3491 = vpack.c.bf16 %v3399, %v3397
      %v3492 = vpack.c.bf16 %v3400, %v3398
      %v3493 = vpack.c.bf16 %v3050, %v3048
      %v3494 = vpack.c.bf16 %v3051, %v3049
      %v3495 = vpack.c.bf16 %v2633, %v2631
      %v3496 = vpack.c.bf16 %v2634, %v2632
      %v3497 = vpack.c.bf16 %v3403, %v3401
      %v3498 = vpack.c.bf16 %v3404, %v3402
      %v3499 = vpack.c.bf16 %v3054, %v3052
      %v3500 = vpack.c.bf16 %v3055, %v3053
      %v3501 = vpack.c.bf16 %v2637, %v2635
      %v3502 = vpack.c.bf16 %v2638, %v2636
      %v3503 = vpack.c.bf16 %v3407, %v3405
      %v3504 = vpack.c.bf16 %v3408, %v3406
      %v3505 = vld [vmem:[%s3] sm:$0xff]
      %v3506 = vld [vmem:[%s3 + $0x8] sm:$0xff]
      %v3507 = vld [vmem:[%s3 + $0x10] sm:$0xff]
      %v3508 = vld [vmem:[%s3 + $0x18] sm:$0xff]
      %v3509 = vld [vmem:[%s3 + $0x20] sm:$0xff]
      %v3510 = vld [vmem:[%s3 + $0x28] sm:$0xff]
      %v3511 = vld [vmem:[%s3 + $0x30] sm:$0xff]
      %v3512 = vld [vmem:[%s3 + $0x38] sm:$0xff]
      %v3513 = vld [vmem:[%s3 + $0x40] sm:$0xff]
      %v3514 = vld [vmem:[%s3 + $0x48] sm:$0xff]
      %v3515 = vld [vmem:[%s3 + $0x50] sm:$0xff]
      %v3516 = vld [vmem:[%s3 + $0x58] sm:$0xff]
      %v3517 = vld [vmem:[%s3 + $0x60] sm:$0xff]
      %v3518 = vld [vmem:[%s3 + $0x68] sm:$0xff]
      %v3519 = vld [vmem:[%s3 + $0x70] sm:$0xff]
      %v3520 = vld [vmem:[%s3 + $0x78] sm:$0xff]
      %v3521 = vld [vmem:[%s3 + $0x80] sm:$0xff]
      %v3522 = vld [vmem:[%s3 + $0x88] sm:$0xff]
      %v3523 = vld [vmem:[%s3 + $0x90] sm:$0xff]
      %v3524 = vld [vmem:[%s3 + $0x98] sm:$0xff]
      %v3525 = vld [vmem:[%s3 + $0xa0] sm:$0xff]
      %v3526 = vld [vmem:[%s3 + $0xa8] sm:$0xff]
      %v3527 = vld [vmem:[%s3 + $0xb0] sm:$0xff]
      %v3528 = vld [vmem:[%s3 + $0xb8] sm:$0xff]
      %v3529 = vld [vmem:[%s3 + $0xc0] sm:$0xff]
      %v3530 = vld [vmem:[%s3 + $0xc8] sm:$0xff]
      %v3531 = vld [vmem:[%s3 + $0xd0] sm:$0xff]
      %v3532 = vld [vmem:[%s3 + $0xd8] sm:$0xff]
      %v3533 = vld [vmem:[%s3 + $0xe0] sm:$0xff]
      %v3534 = vld [vmem:[%s3 + $0xe8] sm:$0xff]
      %v3535 = vld [vmem:[%s3 + $0xf0] sm:$0xff]
      %v3536 = vld [vmem:[%s3 + $0xf8] sm:$0xff]
      %v3537 = vld [vmem:[%s3 + $0x100] sm:$0xff]
      %v3538 = vld [vmem:[%s3 + $0x108] sm:$0xff]
      %v3539 = vld [vmem:[%s3 + $0x110] sm:$0xff]
      %v3540 = vld [vmem:[%s3 + $0x118] sm:$0xff]
      %v3541 = vld [vmem:[%s3 + $0x120] sm:$0xff]
      %v3542 = vld [vmem:[%s3 + $0x128] sm:$0xff]
      %v3543 = vld [vmem:[%s3 + $0x130] sm:$0xff]
      %v3544 = vld [vmem:[%s3 + $0x138] sm:$0xff]
      %v3545 = vld [vmem:[%s3 + $0x140] sm:$0xff]
      %v3546 = vld [vmem:[%s3 + $0x148] sm:$0xff]
      %v3547 = vld [vmem:[%s3 + $0x150] sm:$0xff]
      %v3548 = vld [vmem:[%s3 + $0x158] sm:$0xff]
      %v3549 = vld [vmem:[%s3 + $0x160] sm:$0xff]
      %v3550 = vld [vmem:[%s3 + $0x168] sm:$0xff]
      %v3551 = vld [vmem:[%s3 + $0x170] sm:$0xff]
      %v3552 = vld [vmem:[%s3 + $0x178] sm:$0xff]
      %v3553 = vld [vmem:[%s3 + $0x180] sm:$0xff]
      %v3554 = vld [vmem:[%s3 + $0x188] sm:$0xff]
      %v3555 = vld [vmem:[%s3 + $0x190] sm:$0xff]
      %v3556 = vld [vmem:[%s3 + $0x198] sm:$0xff]
      %v3557 = vld [vmem:[%s3 + $0x1a0] sm:$0xff]
      %v3558 = vld [vmem:[%s3 + $0x1a8] sm:$0xff]
      %v3559 = vld [vmem:[%s3 + $0x1b0] sm:$0xff]
      %v3560 = vld [vmem:[%s3 + $0x1b8] sm:$0xff]
      %v3561 = vld [vmem:[%s3 + $0x1c0] sm:$0xff]
      %v3562 = vld [vmem:[%s3 + $0x1c8] sm:$0xff]
      %v3563 = vld [vmem:[%s3 + $0x1d0] sm:$0xff]
      %v3564 = vld [vmem:[%s3 + $0x1d8] sm:$0xff]
      %v3565 = vld [vmem:[%s3 + $0x1e0] sm:$0xff]
      %v3566 = vld [vmem:[%s3 + $0x1e8] sm:$0xff]
      %v3567 = vld [vmem:[%s3 + $0x1f0] sm:$0xff]
      %v3568 = vld [vmem:[%s3 + $0x1f8] sm:$0xff]
      %v3569 = vld [vmem:[%s3 + $0x200] sm:$0xff]
      %v3570 = vld [vmem:[%s3 + $0x208] sm:$0xff]
      %v3571 = vld [vmem:[%s3 + $0x210] sm:$0xff]
      %v3572 = vld [vmem:[%s3 + $0x218] sm:$0xff]
      %v3573 = vld [vmem:[%s3 + $0x220] sm:$0xff]
      %v3574 = vld [vmem:[%s3 + $0x228] sm:$0xff]
      %v3575 = vld [vmem:[%s3 + $0x230] sm:$0xff]
      %v3576 = vld [vmem:[%s3 + $0x238] sm:$0xff]
      %v3577 = vld [vmem:[%s3 + $0x240] sm:$0xff]
      %v3578 = vld [vmem:[%s3 + $0x248] sm:$0xff]
      %v3579 = vld [vmem:[%s3 + $0x250] sm:$0xff]
      %v3580 = vld [vmem:[%s3 + $0x258] sm:$0xff]
      %v3581 = vld [vmem:[%s3 + $0x260] sm:$0xff]
      %v3582 = vld [vmem:[%s3 + $0x268] sm:$0xff]
      %v3583 = vld [vmem:[%s3 + $0x270] sm:$0xff]
      %v3584 = vld [vmem:[%s3 + $0x278] sm:$0xff]
      %v3585 = vld [vmem:[%s3 + $0x280] sm:$0xff]
      %v3586 = vld [vmem:[%s3 + $0x288] sm:$0xff]
      %v3587 = vld [vmem:[%s3 + $0x290] sm:$0xff]
      %v3588 = vld [vmem:[%s3 + $0x298] sm:$0xff]
      %v3589 = vld [vmem:[%s3 + $0x2a0] sm:$0xff]
      %v3590 = vld [vmem:[%s3 + $0x2a8] sm:$0xff]
      %v3591 = vld [vmem:[%s3 + $0x2b0] sm:$0xff]
      %v3592 = vld [vmem:[%s3 + $0x2b8] sm:$0xff]
      %v3593 = vld [vmem:[%s3 + $0x2c0] sm:$0xff]
      %v3594 = vld [vmem:[%s3 + $0x2c8] sm:$0xff]
      %v3595 = vld [vmem:[%s3 + $0x2d0] sm:$0xff]
      %v3596 = vld [vmem:[%s3 + $0x2d8] sm:$0xff]
      %v3597 = vld [vmem:[%s3 + $0x2e0] sm:$0xff]
      %v3598 = vld [vmem:[%s3 + $0x2e8] sm:$0xff]
      %v3599 = vld [vmem:[%s3 + $0x2f0] sm:$0xff]
      %v3600 = vld [vmem:[%s3 + $0x2f8] sm:$0xff]
      %v3601 = vld [vmem:[%s4] sm:$0x3]
      %v3603 = vperm.slane %v3601, 0
      %v3604 = vperm.slane %v3601, 1
      %v3703 = vunpack.c.l.b16 %v3505
      %v3704 = vunpack.c.h.b16 %v3505
      %v3705 = vunpack.c.l.b16 %v3506
      %v3706 = vunpack.c.h.b16 %v3506
      %v3707 = vunpack.c.l.b16 %v3507
      %v3708 = vunpack.c.h.b16 %v3507
      %v3709 = vunpack.c.l.b16 %v3508
      %v3710 = vunpack.c.h.b16 %v3508
      %v3711 = vunpack.c.l.b16 %v3509
      %v3712 = vunpack.c.h.b16 %v3509
      %v3713 = vunpack.c.l.b16 %v3510
      %v3714 = vunpack.c.h.b16 %v3510
      %v3715 = vunpack.c.l.b16 %v3511
      %v3716 = vunpack.c.h.b16 %v3511
      %v3717 = vunpack.c.l.b16 %v3512
      %v3718 = vunpack.c.h.b16 %v3512
      %v3719 = vunpack.c.l.b16 %v3513
      %v3720 = vunpack.c.h.b16 %v3513
      %v3721 = vunpack.c.l.b16 %v3514
      %v3722 = vunpack.c.h.b16 %v3514
      %v3723 = vunpack.c.l.b16 %v3515
      %v3724 = vunpack.c.h.b16 %v3515
      %v3725 = vunpack.c.l.b16 %v3516
      %v3726 = vunpack.c.h.b16 %v3516
      %v3727 = vunpack.c.l.b16 %v3517
      %v3728 = vunpack.c.h.b16 %v3517
      %v3729 = vunpack.c.l.b16 %v3518
      %v3730 = vunpack.c.h.b16 %v3518
      %v3731 = vunpack.c.l.b16 %v3519
      %v3732 = vunpack.c.h.b16 %v3519
      %v3733 = vunpack.c.l.b16 %v3520
      %v3734 = vunpack.c.h.b16 %v3520
      %v3735 = vunpack.c.l.b16 %v3521
      %v3736 = vunpack.c.h.b16 %v3521
      %v3737 = vunpack.c.l.b16 %v3522
      %v3738 = vunpack.c.h.b16 %v3522
      %v3739 = vunpack.c.l.b16 %v3523
      %v3740 = vunpack.c.h.b16 %v3523
      %v3741 = vunpack.c.l.b16 %v3524
      %v3742 = vunpack.c.h.b16 %v3524
      %v3743 = vunpack.c.l.b16 %v3525
      %v3744 = vunpack.c.h.b16 %v3525
      %v3745 = vunpack.c.l.b16 %v3526
      %v3746 = vunpack.c.h.b16 %v3526
      %v3747 = vunpack.c.l.b16 %v3527
      %v3748 = vunpack.c.h.b16 %v3527
      %v3749 = vunpack.c.l.b16 %v3528
      %v3750 = vunpack.c.h.b16 %v3528
      %v3751 = vunpack.c.l.b16 %v3529
      %v3752 = vunpack.c.h.b16 %v3529
      %v3753 = vunpack.c.l.b16 %v3530
      %v3754 = vunpack.c.h.b16 %v3530
      %v3755 = vunpack.c.l.b16 %v3531
      %v3756 = vunpack.c.h.b16 %v3531
      %v3757 = vunpack.c.l.b16 %v3532
      %v3758 = vunpack.c.h.b16 %v3532
      %v3759 = vunpack.c.l.b16 %v3533
      %v3760 = vunpack.c.h.b16 %v3533
      %v3761 = vunpack.c.l.b16 %v3534
      %v3762 = vunpack.c.h.b16 %v3534
      %v3763 = vunpack.c.l.b16 %v3535
      %v3764 = vunpack.c.h.b16 %v3535
      %v3765 = vunpack.c.l.b16 %v3536
      %v3766 = vunpack.c.h.b16 %v3536
      %v3767 = vunpack.c.l.b16 %v3537
      %v3768 = vunpack.c.h.b16 %v3537
      %v3769 = vunpack.c.l.b16 %v3538
      %v3770 = vunpack.c.h.b16 %v3538
      %v3771 = vunpack.c.l.b16 %v3539
      %v3772 = vunpack.c.h.b16 %v3539
      %v3773 = vunpack.c.l.b16 %v3540
      %v3774 = vunpack.c.h.b16 %v3540
      %v3775 = vunpack.c.l.b16 %v3541
      %v3776 = vunpack.c.h.b16 %v3541
      %v3777 = vunpack.c.l.b16 %v3542
      %v3778 = vunpack.c.h.b16 %v3542
      %v3779 = vunpack.c.l.b16 %v3543
      %v3780 = vunpack.c.h.b16 %v3543
      %v3781 = vunpack.c.l.b16 %v3544
      %v3782 = vunpack.c.h.b16 %v3544
      %v3783 = vunpack.c.l.b16 %v3545
      %v3784 = vunpack.c.h.b16 %v3545
      %v3785 = vunpack.c.l.b16 %v3546
      %v3786 = vunpack.c.h.b16 %v3546
      %v3787 = vunpack.c.l.b16 %v3547
      %v3788 = vunpack.c.h.b16 %v3547
      %v3789 = vunpack.c.l.b16 %v3548
      %v3790 = vunpack.c.h.b16 %v3548
      %v3791 = vunpack.c.l.b16 %v3549
      %v3792 = vunpack.c.h.b16 %v3549
      %v3793 = vunpack.c.l.b16 %v3550
      %v3794 = vunpack.c.h.b16 %v3550
      %v3795 = vunpack.c.l.b16 %v3551
      %v3796 = vunpack.c.h.b16 %v3551
      %v3797 = vunpack.c.l.b16 %v3552
      %v3798 = vunpack.c.h.b16 %v3552
      %v3799 = vunpack.c.l.b16 %v3553
      %v3800 = vunpack.c.h.b16 %v3553
      %v3801 = vunpack.c.l.b16 %v3554
      %v3802 = vunpack.c.h.b16 %v3554
      %v3803 = vunpack.c.l.b16 %v3555
      %v3804 = vunpack.c.h.b16 %v3555
      %v3805 = vunpack.c.l.b16 %v3556
      %v3806 = vunpack.c.h.b16 %v3556
      %v3807 = vunpack.c.l.b16 %v3557
      %v3808 = vunpack.c.h.b16 %v3557
      %v3809 = vunpack.c.l.b16 %v3558
      %v3810 = vunpack.c.h.b16 %v3558
      %v3811 = vunpack.c.l.b16 %v3559
      %v3812 = vunpack.c.h.b16 %v3559
      %v3813 = vunpack.c.l.b16 %v3560
      %v3814 = vunpack.c.h.b16 %v3560
      %v3815 = vunpack.c.l.b16 %v3561
      %v3816 = vunpack.c.h.b16 %v3561
      %v3817 = vunpack.c.l.b16 %v3562
      %v3818 = vunpack.c.h.b16 %v3562
      %v3819 = vunpack.c.l.b16 %v3563
      %v3820 = vunpack.c.h.b16 %v3563
      %v3821 = vunpack.c.l.b16 %v3564
      %v3822 = vunpack.c.h.b16 %v3564
      %v3823 = vunpack.c.l.b16 %v3565
      %v3824 = vunpack.c.h.b16 %v3565
      %v3825 = vunpack.c.l.b16 %v3566
      %v3826 = vunpack.c.h.b16 %v3566
      %v3827 = vunpack.c.l.b16 %v3567
      %v3828 = vunpack.c.h.b16 %v3567
      %v3829 = vunpack.c.l.b16 %v3568
      %v3830 = vunpack.c.h.b16 %v3568
      %v3831 = vunpack.c.l.b16 %v3569
      %v3832 = vunpack.c.h.b16 %v3569
      %v3833 = vunpack.c.l.b16 %v3570
      %v3834 = vunpack.c.h.b16 %v3570
      %v3835 = vunpack.c.l.b16 %v3571
      %v3836 = vunpack.c.h.b16 %v3571
      %v3837 = vunpack.c.l.b16 %v3572
      %v3838 = vunpack.c.h.b16 %v3572
      %v3839 = vunpack.c.l.b16 %v3573
      %v3840 = vunpack.c.h.b16 %v3573
      %v3841 = vunpack.c.l.b16 %v3574
      %v3842 = vunpack.c.h.b16 %v3574
      %v3843 = vunpack.c.l.b16 %v3575
      %v3844 = vunpack.c.h.b16 %v3575
      %v3845 = vunpack.c.l.b16 %v3576
      %v3846 = vunpack.c.h.b16 %v3576
      %v3847 = vunpack.c.l.b16 %v3577
      %v3848 = vunpack.c.h.b16 %v3577
      %v3849 = vunpack.c.l.b16 %v3578
      %v3850 = vunpack.c.h.b16 %v3578
      %v3851 = vunpack.c.l.b16 %v3579
      %v3852 = vunpack.c.h.b16 %v3579
      %v3853 = vunpack.c.l.b16 %v3580
      %v3854 = vunpack.c.h.b16 %v3580
      %v3855 = vunpack.c.l.b16 %v3581
      %v3856 = vunpack.c.h.b16 %v3581
      %v3857 = vunpack.c.l.b16 %v3582
      %v3858 = vunpack.c.h.b16 %v3582
      %v3859 = vunpack.c.l.b16 %v3583
      %v3860 = vunpack.c.h.b16 %v3583
      %v3861 = vunpack.c.l.b16 %v3584
      %v3862 = vunpack.c.h.b16 %v3584
      %v3863 = vunpack.c.l.b16 %v3585
      %v3864 = vunpack.c.h.b16 %v3585
      %v3865 = vunpack.c.l.b16 %v3586
      %v3866 = vunpack.c.h.b16 %v3586
      %v3867 = vunpack.c.l.b16 %v3587
      %v3868 = vunpack.c.h.b16 %v3587
      %v3869 = vunpack.c.l.b16 %v3588
      %v3870 = vunpack.c.h.b16 %v3588
      %v3871 = vunpack.c.l.b16 %v3589
      %v3872 = vunpack.c.h.b16 %v3589
      %v3873 = vunpack.c.l.b16 %v3590
      %v3874 = vunpack.c.h.b16 %v3590
      %v3875 = vunpack.c.l.b16 %v3591
      %v3876 = vunpack.c.h.b16 %v3591
      %v3877 = vunpack.c.l.b16 %v3592
      %v3878 = vunpack.c.h.b16 %v3592
      %v3879 = vunpack.c.l.b16 %v3593
      %v3880 = vunpack.c.h.b16 %v3593
      %v3881 = vunpack.c.l.b16 %v3594
      %v3882 = vunpack.c.h.b16 %v3594
      %v3883 = vunpack.c.l.b16 %v3595
      %v3884 = vunpack.c.h.b16 %v3595
      %v3885 = vunpack.c.l.b16 %v3596
      %v3886 = vunpack.c.h.b16 %v3596
      %v3887 = vunpack.c.l.b16 %v3597
      %v3888 = vunpack.c.h.b16 %v3597
      %v3889 = vunpack.c.l.b16 %v3598
      %v3890 = vunpack.c.h.b16 %v3598
      %v3891 = vunpack.c.l.b16 %v3599
      %v3892 = vunpack.c.h.b16 %v3599
      %v3893 = vunpack.c.l.b16 %v3600
      %v3894 = vunpack.c.h.b16 %v3600
      %v3895 = vpack.c.b16 %v3705, %v3703
      %v3896 = vpack.c.b16 %v3706, %v3704
      %v3897 = vpack.c.b16 %v3709, %v3707
      %v3898 = vpack.c.b16 %v3710, %v3708
      %v3899 = vpack.c.b16 %v3713, %v3711
      %v3900 = vpack.c.b16 %v3714, %v3712
      %v3901 = vpack.c.b16 %v3717, %v3715
      %v3902 = vpack.c.b16 %v3718, %v3716
      %v3903 = vpack.c.b16 %v3721, %v3719
      %v3904 = vpack.c.b16 %v3722, %v3720
      %v3905 = vpack.c.b16 %v3725, %v3723
      %v3906 = vpack.c.b16 %v3726, %v3724
      %v3907 = vpack.c.b16 %v3729, %v3727
      %v3908 = vpack.c.b16 %v3730, %v3728
      %v3909 = vpack.c.b16 %v3733, %v3731
      %v3910 = vpack.c.b16 %v3734, %v3732
      %v3911 = vpack.c.b16 %v3737, %v3735
      %v3912 = vpack.c.b16 %v3738, %v3736
      %v3913 = vpack.c.b16 %v3741, %v3739
      %v3914 = vpack.c.b16 %v3742, %v3740
      %v3915 = vpack.c.b16 %v3745, %v3743
      %v3916 = vpack.c.b16 %v3746, %v3744
      %v3917 = vpack.c.b16 %v3749, %v3747
      %v3918 = vpack.c.b16 %v3750, %v3748
      %v3919 = vpack.c.b16 %v3753, %v3751
      %v3920 = vpack.c.b16 %v3754, %v3752
      %v3921 = vpack.c.b16 %v3757, %v3755
      %v3922 = vpack.c.b16 %v3758, %v3756
      %v3923 = vpack.c.b16 %v3761, %v3759
      %v3924 = vpack.c.b16 %v3762, %v3760
      %v3925 = vpack.c.b16 %v3765, %v3763
      %v3926 = vpack.c.b16 %v3766, %v3764
      %v3927 = vpack.c.b16 %v3769, %v3767
      %v3928 = vpack.c.b16 %v3770, %v3768
      %v3929 = vpack.c.b16 %v3773, %v3771
      %v3930 = vpack.c.b16 %v3774, %v3772
      %v3931 = vpack.c.b16 %v3777, %v3775
      %v3932 = vpack.c.b16 %v3778, %v3776
      %v3933 = vpack.c.b16 %v3781, %v3779
      %v3934 = vpack.c.b16 %v3782, %v3780
      %v3935 = vpack.c.b16 %v3785, %v3783
      %v3936 = vpack.c.b16 %v3786, %v3784
      %v3937 = vpack.c.b16 %v3789, %v3787
      %v3938 = vpack.c.b16 %v3790, %v3788
      %v3939 = vpack.c.b16 %v3793, %v3791
      %v3940 = vpack.c.b16 %v3794, %v3792
      %v3941 = vpack.c.b16 %v3797, %v3795
      %v3942 = vpack.c.b16 %v3798, %v3796
      %v3943 = vpack.c.b16 %v3801, %v3799
      %v3944 = vpack.c.b16 %v3802, %v3800
      %v3945 = vpack.c.b16 %v3805, %v3803
      %v3946 = vpack.c.b16 %v3806, %v3804
      %v3947 = vpack.c.b16 %v3809, %v3807
      %v3948 = vpack.c.b16 %v3810, %v3808
      %v3949 = vpack.c.b16 %v3813, %v3811
      %v3950 = vpack.c.b16 %v3814, %v3812
      %v3951 = vpack.c.b16 %v3817, %v3815
      %v3952 = vpack.c.b16 %v3818, %v3816
      %v3953 = vpack.c.b16 %v3821, %v3819
      %v3954 = vpack.c.b16 %v3822, %v3820
      %v3955 = vpack.c.b16 %v3825, %v3823
      %v3956 = vpack.c.b16 %v3826, %v3824
      %v3957 = vpack.c.b16 %v3829, %v3827
      %v3958 = vpack.c.b16 %v3830, %v3828
      %v3959 = vpack.c.b16 %v3833, %v3831
      %v3960 = vpack.c.b16 %v3834, %v3832
      %v3961 = vpack.c.b16 %v3837, %v3835
      %v3962 = vpack.c.b16 %v3838, %v3836
      %v3963 = vpack.c.b16 %v3841, %v3839
      %v3964 = vpack.c.b16 %v3842, %v3840
      %v3965 = vpack.c.b16 %v3845, %v3843
      %v3966 = vpack.c.b16 %v3846, %v3844
      %v3967 = vpack.c.b16 %v3849, %v3847
      %v3968 = vpack.c.b16 %v3850, %v3848
      %v3969 = vpack.c.b16 %v3853, %v3851
      %v3970 = vpack.c.b16 %v3854, %v3852
      %v3971 = vpack.c.b16 %v3857, %v3855
      %v3972 = vpack.c.b16 %v3858, %v3856
      %v3973 = vpack.c.b16 %v3861, %v3859
      %v3974 = vpack.c.b16 %v3862, %v3860
      %v3975 = vpack.c.b16 %v3865, %v3863
      %v3976 = vpack.c.b16 %v3866, %v3864
      %v3977 = vpack.c.b16 %v3869, %v3867
      %v3978 = vpack.c.b16 %v3870, %v3868
      %v3979 = vpack.c.b16 %v3873, %v3871
      %v3980 = vpack.c.b16 %v3874, %v3872
      %v3981 = vpack.c.b16 %v3877, %v3875
      %v3982 = vpack.c.b16 %v3878, %v3876
      %v3983 = vpack.c.b16 %v3881, %v3879
      %v3984 = vpack.c.b16 %v3882, %v3880
      %v3985 = vpack.c.b16 %v3885, %v3883
      %v3986 = vpack.c.b16 %v3886, %v3884
      %v3987 = vpack.c.b16 %v3889, %v3887
      %v3988 = vpack.c.b16 %v3890, %v3888
      %v3989 = vpack.c.b16 %v3893, %v3891
      %v3990 = vpack.c.b16 %v3894, %v3892
      %4087 = vmatpush.bf16.msra.mxu0 %v3909
      %4088 = vmatpush.bf16.msra.mxu0 %v3907
      %4089 = vmatpush.bf16.msra.mxu0 %v3905
      %4090 = vmatpush.bf16.msra.mxu0 %v3903
      %4091 = vmatpush.bf16.msra.mxu0 %v3901
      %4092 = vmatpush.bf16.msra.mxu0 %v3899
      %4093 = vmatpush.bf16.msra.mxu0 %v3897
      %4094 = vmatpush.bf16.msra.mxu0 %v3895
      %4095 = vmatmul.bf16.gmra.mxu0 %v3409
      %v4096 = vpop.f32.mrf.mxu0
      %v4097 = vadd.f32 %v3603, %v4096
      %v4098 = vpop.f32.mrf.mxu0
      %v4099 = vadd.f32 %v3603, %v4098
      %4100 = vmatmul.bf16.gmra.mxu0 %v3415
      %v4101 = vpop.f32.mrf.mxu0
      %v4102 = vadd.f32 %v3603, %v4101
      %v4103 = vpop.f32.mrf.mxu0
      %v4104 = vadd.f32 %v3603, %v4103
      %4105 = vmatmul.bf16.gmra.mxu0 %v3421
      %v4106 = vpop.f32.mrf.mxu0
      %v4107 = vadd.f32 %v3603, %v4106
      %v4108 = vpop.f32.mrf.mxu0
      %v4109 = vadd.f32 %v3603, %v4108
      %4110 = vmatmul.bf16.gmra.mxu0 %v3427
      %v4111 = vpop.f32.mrf.mxu0
      %v4112 = vadd.f32 %v3603, %v4111
      %v4113 = vpop.f32.mrf.mxu0
      %v4114 = vadd.f32 %v3603, %v4113
      %4115 = vmatmul.bf16.gmra.mxu0 %v3433
      %v4116 = vpop.f32.mrf.mxu0
      %v4117 = vadd.f32 %v3603, %v4116
      %v4118 = vpop.f32.mrf.mxu0
      %v4119 = vadd.f32 %v3603, %v4118
      %4120 = vmatmul.bf16.gmra.mxu0 %v3439
      %v4121 = vpop.f32.mrf.mxu0
      %v4122 = vadd.f32 %v3603, %v4121
      %v4123 = vpop.f32.mrf.mxu0
      %v4124 = vadd.f32 %v3603, %v4123
      %4125 = vmatmul.bf16.gmra.mxu0 %v3445
      %v4126 = vpop.f32.mrf.mxu0
      %v4127 = vadd.f32 %v3603, %v4126
      %v4128 = vpop.f32.mrf.mxu0
      %v4129 = vadd.f32 %v3603, %v4128
      %4130 = vmatmul.bf16.gmra.mxu0 %v3451
      %v4131 = vpop.f32.mrf.mxu0
      %v4132 = vadd.f32 %v3603, %v4131
      %v4133 = vpop.f32.mrf.mxu0
      %v4134 = vadd.f32 %v3603, %v4133
      %4135 = vmatmul.bf16.gmra.mxu0 %v3457
      %v4136 = vpop.f32.mrf.mxu0
      %v4137 = vadd.f32 %v3603, %v4136
      %v4138 = vpop.f32.mrf.mxu0
      %v4139 = vadd.f32 %v3603, %v4138
      %4140 = vmatmul.bf16.gmra.mxu0 %v3463
      %v4141 = vpop.f32.mrf.mxu0
      %v4142 = vadd.f32 %v3603, %v4141
      %v4143 = vpop.f32.mrf.mxu0
      %v4144 = vadd.f32 %v3603, %v4143
      %4145 = vmatmul.bf16.gmra.mxu0 %v3469
      %v4146 = vpop.f32.mrf.mxu0
      %v4147 = vadd.f32 %v3603, %v4146
      %v4148 = vpop.f32.mrf.mxu0
      %v4149 = vadd.f32 %v3603, %v4148
      %4150 = vmatmul.bf16.gmra.mxu0 %v3475
      %v4151 = vpop.f32.mrf.mxu0
      %v4152 = vadd.f32 %v3603, %v4151
      %v4153 = vpop.f32.mrf.mxu0
      %v4154 = vadd.f32 %v3603, %v4153
      %4155 = vmatmul.bf16.gmra.mxu0 %v3481
      %v4156 = vpop.f32.mrf.mxu0
      %v4157 = vadd.f32 %v3603, %v4156
      %v4158 = vpop.f32.mrf.mxu0
      %v4159 = vadd.f32 %v3603, %v4158
      %4160 = vmatmul.bf16.gmra.mxu0 %v3487
      %v4161 = vpop.f32.mrf.mxu0
      %v4162 = vadd.f32 %v3603, %v4161
      %v4163 = vpop.f32.mrf.mxu0
      %v4164 = vadd.f32 %v3603, %v4163
      %4165 = vmatmul.bf16.gmra.mxu0 %v3493
      %v4166 = vpop.f32.mrf.mxu0
      %v4167 = vadd.f32 %v3603, %v4166
      %v4168 = vpop.f32.mrf.mxu0
      %v4169 = vadd.f32 %v3603, %v4168
      %4170 = vmatmul.bf16.gmra.mxu0 %v3499
      %v4171 = vpop.f32.mrf.mxu0
      %v4172 = vadd.f32 %v3603, %v4171
      %v4173 = vpop.f32.mrf.mxu0
      %v4174 = vadd.f32 %v3603, %v4173
      %4175 = vdwg.mxu0
      %4176 = vmatpush.bf16.msra.mxu0 %v3925
      %4177 = vmatpush.bf16.msra.mxu0 %v3923
      %4178 = vmatpush.bf16.msra.mxu0 %v3921
      %4179 = vmatpush.bf16.msra.mxu0 %v3919
      %4180 = vmatpush.bf16.msra.mxu0 %v3917
      %4181 = vmatpush.bf16.msra.mxu0 %v3915
      %4182 = vmatpush.bf16.msra.mxu0 %v3913
      %4183 = vmatpush.bf16.msra.mxu0 %v3911
      %4184 = vmatmul.bf16.gmra.mxu0 %v3410
      %v4185 = vpop.f32.mrf.mxu0
      %v4186 = vadd.f32 %v4097, %v4185
      %v4187 = vpop.f32.mrf.mxu0
      %v4188 = vadd.f32 %v4099, %v4187
      %4189 = vmatmul.bf16.gmra.mxu0 %v3416
      %v4190 = vpop.f32.mrf.mxu0
      %v4191 = vadd.f32 %v4102, %v4190
      %v4192 = vpop.f32.mrf.mxu0
      %v4193 = vadd.f32 %v4104, %v4192
      %4194 = vmatmul.bf16.gmra.mxu0 %v3422
      %v4195 = vpop.f32.mrf.mxu0
      %v4196 = vadd.f32 %v4107, %v4195
      %v4197 = vpop.f32.mrf.mxu0
      %v4198 = vadd.f32 %v4109, %v4197
      %4199 = vmatmul.bf16.gmra.mxu0 %v3428
      %v4200 = vpop.f32.mrf.mxu0
      %v4201 = vadd.f32 %v4112, %v4200
      %v4202 = vpop.f32.mrf.mxu0
      %v4203 = vadd.f32 %v4114, %v4202
      %4204 = vmatmul.bf16.gmra.mxu0 %v3434
      %v4205 = vpop.f32.mrf.mxu0
      %v4206 = vadd.f32 %v4117, %v4205
      %v4207 = vpop.f32.mrf.mxu0
      %v4208 = vadd.f32 %v4119, %v4207
      %4209 = vmatmul.bf16.gmra.mxu0 %v3440
      %v4210 = vpop.f32.mrf.mxu0
      %v4211 = vadd.f32 %v4122, %v4210
      %v4212 = vpop.f32.mrf.mxu0
      %v4213 = vadd.f32 %v4124, %v4212
      %4214 = vmatmul.bf16.gmra.mxu0 %v3446
      %v4215 = vpop.f32.mrf.mxu0
      %v4216 = vadd.f32 %v4127, %v4215
      %v4217 = vpop.f32.mrf.mxu0
      %v4218 = vadd.f32 %v4129, %v4217
      %4219 = vmatmul.bf16.gmra.mxu0 %v3452
      %v4220 = vpop.f32.mrf.mxu0
      %v4221 = vadd.f32 %v4132, %v4220
      %v4222 = vpop.f32.mrf.mxu0
      %v4223 = vadd.f32 %v4134, %v4222
      %4224 = vmatmul.bf16.gmra.mxu0 %v3458
      %v4225 = vpop.f32.mrf.mxu0
      %v4226 = vadd.f32 %v4137, %v4225
      %v4227 = vpop.f32.mrf.mxu0
      %v4228 = vadd.f32 %v4139, %v4227
      %4229 = vmatmul.bf16.gmra.mxu0 %v3464
      %v4230 = vpop.f32.mrf.mxu0
      %v4231 = vadd.f32 %v4142, %v4230
      %v4232 = vpop.f32.mrf.mxu0
      %v4233 = vadd.f32 %v4144, %v4232
      %4234 = vmatmul.bf16.gmra.mxu0 %v3470
      %v4235 = vpop.f32.mrf.mxu0
      %v4236 = vadd.f32 %v4147, %v4235
      %v4237 = vpop.f32.mrf.mxu0
      %v4238 = vadd.f32 %v4149, %v4237
      %4239 = vmatmul.bf16.gmra.mxu0 %v3476
      %v4240 = vpop.f32.mrf.mxu0
      %v4241 = vadd.f32 %v4152, %v4240
      %v4242 = vpop.f32.mrf.mxu0
      %v4243 = vadd.f32 %v4154, %v4242
      %4244 = vmatmul.bf16.gmra.mxu0 %v3482
      %v4245 = vpop.f32.mrf.mxu0
      %v4246 = vadd.f32 %v4157, %v4245
      %v4247 = vpop.f32.mrf.mxu0
      %v4248 = vadd.f32 %v4159, %v4247
      %4249 = vmatmul.bf16.gmra.mxu0 %v3488
      %v4250 = vpop.f32.mrf.mxu0
      %v4251 = vadd.f32 %v4162, %v4250
      %v4252 = vpop.f32.mrf.mxu0
      %v4253 = vadd.f32 %v4164, %v4252
      %4254 = vmatmul.bf16.gmra.mxu0 %v3494
      %v4255 = vpop.f32.mrf.mxu0
      %v4256 = vadd.f32 %v4167, %v4255
      %v4257 = vpop.f32.mrf.mxu0
      %v4258 = vadd.f32 %v4169, %v4257
      %4259 = vmatmul.bf16.gmra.mxu0 %v3500
      %v4260 = vpop.f32.mrf.mxu0
      %v4261 = vadd.f32 %v4172, %v4260
      %v4262 = vpop.f32.mrf.mxu0
      %v4263 = vadd.f32 %v4174, %v4262
      %4264 = vdwg.mxu0
      %4265 = vmatpush.bf16.msra.mxu0 %v3941
      %4266 = vmatpush.bf16.msra.mxu0 %v3939
      %4267 = vmatpush.bf16.msra.mxu0 %v3937
      %4268 = vmatpush.bf16.msra.mxu0 %v3935
      %4269 = vmatpush.bf16.msra.mxu0 %v3933
      %4270 = vmatpush.bf16.msra.mxu0 %v3931
      %4271 = vmatpush.bf16.msra.mxu0 %v3929
      %4272 = vmatpush.bf16.msra.mxu0 %v3927
      %4273 = vmatmul.bf16.gmra.mxu0 %v3411
      %v4274 = vpop.f32.mrf.mxu0
      %v4275 = vadd.f32 %v4186, %v4274
      %v4276 = vpop.f32.mrf.mxu0
      %v4277 = vadd.f32 %v4188, %v4276
      %4278 = vmatmul.bf16.gmra.mxu0 %v3417
      %v4279 = vpop.f32.mrf.mxu0
      %v4280 = vadd.f32 %v4191, %v4279
      %v4281 = vpop.f32.mrf.mxu0
      %v4282 = vadd.f32 %v4193, %v4281
      %4283 = vmatmul.bf16.gmra.mxu0 %v3423
      %v4284 = vpop.f32.mrf.mxu0
      %v4285 = vadd.f32 %v4196, %v4284
      %v4286 = vpop.f32.mrf.mxu0
      %v4287 = vadd.f32 %v4198, %v4286
      %4288 = vmatmul.bf16.gmra.mxu0 %v3429
      %v4289 = vpop.f32.mrf.mxu0
      %v4290 = vadd.f32 %v4201, %v4289
      %v4291 = vpop.f32.mrf.mxu0
      %v4292 = vadd.f32 %v4203, %v4291
      %4293 = vmatmul.bf16.gmra.mxu0 %v3435
      %v4294 = vpop.f32.mrf.mxu0
      %v4295 = vadd.f32 %v4206, %v4294
      %v4296 = vpop.f32.mrf.mxu0
      %v4297 = vadd.f32 %v4208, %v4296
      %4298 = vmatmul.bf16.gmra.mxu0 %v3441
      %v4299 = vpop.f32.mrf.mxu0
      %v4300 = vadd.f32 %v4211, %v4299
      %v4301 = vpop.f32.mrf.mxu0
      %v4302 = vadd.f32 %v4213, %v4301
      %4303 = vmatmul.bf16.gmra.mxu0 %v3447
      %v4304 = vpop.f32.mrf.mxu0
      %v4305 = vadd.f32 %v4216, %v4304
      %v4306 = vpop.f32.mrf.mxu0
      %v4307 = vadd.f32 %v4218, %v4306
      %4308 = vmatmul.bf16.gmra.mxu0 %v3453
      %v4309 = vpop.f32.mrf.mxu0
      %v4310 = vadd.f32 %v4221, %v4309
      %v4311 = vpop.f32.mrf.mxu0
      %v4312 = vadd.f32 %v4223, %v4311
      %4313 = vmatmul.bf16.gmra.mxu0 %v3459
      %v4314 = vpop.f32.mrf.mxu0
      %v4315 = vadd.f32 %v4226, %v4314
      %v4316 = vpop.f32.mrf.mxu0
      %v4317 = vadd.f32 %v4228, %v4316
      %4318 = vmatmul.bf16.gmra.mxu0 %v3465
      %v4319 = vpop.f32.mrf.mxu0
      %v4320 = vadd.f32 %v4231, %v4319
      %v4321 = vpop.f32.mrf.mxu0
      %v4322 = vadd.f32 %v4233, %v4321
      %4323 = vmatmul.bf16.gmra.mxu0 %v3471
      %v4324 = vpop.f32.mrf.mxu0
      %v4325 = vadd.f32 %v4236, %v4324
      %v4326 = vpop.f32.mrf.mxu0
      %v4327 = vadd.f32 %v4238, %v4326
      %4328 = vmatmul.bf16.gmra.mxu0 %v3477
      %v4329 = vpop.f32.mrf.mxu0
      %v4330 = vadd.f32 %v4241, %v4329
      %v4331 = vpop.f32.mrf.mxu0
      %v4332 = vadd.f32 %v4243, %v4331
      %4333 = vmatmul.bf16.gmra.mxu0 %v3483
      %v4334 = vpop.f32.mrf.mxu0
      %v4335 = vadd.f32 %v4246, %v4334
      %v4336 = vpop.f32.mrf.mxu0
      %v4337 = vadd.f32 %v4248, %v4336
      %4338 = vmatmul.bf16.gmra.mxu0 %v3489
      %v4339 = vpop.f32.mrf.mxu0
      %v4340 = vadd.f32 %v4251, %v4339
      %v4341 = vpop.f32.mrf.mxu0
      %v4342 = vadd.f32 %v4253, %v4341
      %4343 = vmatmul.bf16.gmra.mxu0 %v3495
      %v4344 = vpop.f32.mrf.mxu0
      %v4345 = vadd.f32 %v4256, %v4344
      %v4346 = vpop.f32.mrf.mxu0
      %v4347 = vadd.f32 %v4258, %v4346
      %4348 = vmatmul.bf16.gmra.mxu0 %v3501
      %v4349 = vpop.f32.mrf.mxu0
      %v4350 = vadd.f32 %v4261, %v4349
      %v4351 = vpop.f32.mrf.mxu0
      %v4352 = vadd.f32 %v4263, %v4351
      %4353 = vdwg.mxu0
      %4354 = vmatpush.bf16.msra.mxu0 %v3957
      %4355 = vmatpush.bf16.msra.mxu0 %v3955
      %4356 = vmatpush.bf16.msra.mxu0 %v3953
      %4357 = vmatpush.bf16.msra.mxu0 %v3951
      %4358 = vmatpush.bf16.msra.mxu0 %v3949
      %4359 = vmatpush.bf16.msra.mxu0 %v3947
      %4360 = vmatpush.bf16.msra.mxu0 %v3945
      %4361 = vmatpush.bf16.msra.mxu0 %v3943
      %4362 = vmatmul.bf16.gmra.mxu0 %v3412
      %v4363 = vpop.f32.mrf.mxu0
      %v4364 = vadd.f32 %v4275, %v4363
      %v4365 = vpop.f32.mrf.mxu0
      %v4366 = vadd.f32 %v4277, %v4365
      %4367 = vmatmul.bf16.gmra.mxu0 %v3418
      %v4368 = vpop.f32.mrf.mxu0
      %v4369 = vadd.f32 %v4280, %v4368
      %v4370 = vpop.f32.mrf.mxu0
      %v4371 = vadd.f32 %v4282, %v4370
      %4372 = vmatmul.bf16.gmra.mxu0 %v3424
      %v4373 = vpop.f32.mrf.mxu0
      %v4374 = vadd.f32 %v4285, %v4373
      %v4375 = vpop.f32.mrf.mxu0
      %v4376 = vadd.f32 %v4287, %v4375
      %4377 = vmatmul.bf16.gmra.mxu0 %v3430
      %v4378 = vpop.f32.mrf.mxu0
      %v4379 = vadd.f32 %v4290, %v4378
      %v4380 = vpop.f32.mrf.mxu0
      %v4381 = vadd.f32 %v4292, %v4380
      %4382 = vmatmul.bf16.gmra.mxu0 %v3436
      %v4383 = vpop.f32.mrf.mxu0
      %v4384 = vadd.f32 %v4295, %v4383
      %v4385 = vpop.f32.mrf.mxu0
      %v4386 = vadd.f32 %v4297, %v4385
      %4387 = vmatmul.bf16.gmra.mxu0 %v3442
      %v4388 = vpop.f32.mrf.mxu0
      %v4389 = vadd.f32 %v4300, %v4388
      %v4390 = vpop.f32.mrf.mxu0
      %v4391 = vadd.f32 %v4302, %v4390
      %4392 = vmatmul.bf16.gmra.mxu0 %v3448
      %v4393 = vpop.f32.mrf.mxu0
      %v4394 = vadd.f32 %v4305, %v4393
      %v4395 = vpop.f32.mrf.mxu0
      %v4396 = vadd.f32 %v4307, %v4395
      %4397 = vmatmul.bf16.gmra.mxu0 %v3454
      %v4398 = vpop.f32.mrf.mxu0
      %v4399 = vadd.f32 %v4310, %v4398
      %v4400 = vpop.f32.mrf.mxu0
      %v4401 = vadd.f32 %v4312, %v4400
      %4402 = vmatmul.bf16.gmra.mxu0 %v3460
      %v4403 = vpop.f32.mrf.mxu0
      %v4404 = vadd.f32 %v4315, %v4403
      %v4405 = vpop.f32.mrf.mxu0
      %v4406 = vadd.f32 %v4317, %v4405
      %4407 = vmatmul.bf16.gmra.mxu0 %v3466
      %v4408 = vpop.f32.mrf.mxu0
      %v4409 = vadd.f32 %v4320, %v4408
      %v4410 = vpop.f32.mrf.mxu0
      %v4411 = vadd.f32 %v4322, %v4410
      %4412 = vmatmul.bf16.gmra.mxu0 %v3472
      %v4413 = vpop.f32.mrf.mxu0
      %v4414 = vadd.f32 %v4325, %v4413
      %v4415 = vpop.f32.mrf.mxu0
      %v4416 = vadd.f32 %v4327, %v4415
      %4417 = vmatmul.bf16.gmra.mxu0 %v3478
      %v4418 = vpop.f32.mrf.mxu0
      %v4419 = vadd.f32 %v4330, %v4418
      %v4420 = vpop.f32.mrf.mxu0
      %v4421 = vadd.f32 %v4332, %v4420
      %4422 = vmatmul.bf16.gmra.mxu0 %v3484
      %v4423 = vpop.f32.mrf.mxu0
      %v4424 = vadd.f32 %v4335, %v4423
      %v4425 = vpop.f32.mrf.mxu0
      %v4426 = vadd.f32 %v4337, %v4425
      %4427 = vmatmul.bf16.gmra.mxu0 %v3490
      %v4428 = vpop.f32.mrf.mxu0
      %v4429 = vadd.f32 %v4340, %v4428
      %v4430 = vpop.f32.mrf.mxu0
      %v4431 = vadd.f32 %v4342, %v4430
      %4432 = vmatmul.bf16.gmra.mxu0 %v3496
      %v4433 = vpop.f32.mrf.mxu0
      %v4434 = vadd.f32 %v4345, %v4433
      %v4435 = vpop.f32.mrf.mxu0
      %v4436 = vadd.f32 %v4347, %v4435
      %4437 = vmatmul.bf16.gmra.mxu0 %v3502
      %v4438 = vpop.f32.mrf.mxu0
      %v4439 = vadd.f32 %v4350, %v4438
      %v4440 = vpop.f32.mrf.mxu0
      %v4441 = vadd.f32 %v4352, %v4440
      %4442 = vdwg.mxu0
      %4443 = vmatpush.bf16.msra.mxu0 %v3973
      %4444 = vmatpush.bf16.msra.mxu0 %v3971
      %4445 = vmatpush.bf16.msra.mxu0 %v3969
      %4446 = vmatpush.bf16.msra.mxu0 %v3967
      %4447 = vmatpush.bf16.msra.mxu0 %v3965
      %4448 = vmatpush.bf16.msra.mxu0 %v3963
      %4449 = vmatpush.bf16.msra.mxu0 %v3961
      %4450 = vmatpush.bf16.msra.mxu0 %v3959
      %4451 = vmatmul.bf16.gmra.mxu0 %v3413
      %v4452 = vpop.f32.mrf.mxu0
      %v4453 = vadd.f32 %v4364, %v4452
      %v4454 = vpop.f32.mrf.mxu0
      %v4455 = vadd.f32 %v4366, %v4454
      %4456 = vmatmul.bf16.gmra.mxu0 %v3419
      %v4457 = vpop.f32.mrf.mxu0
      %v4458 = vadd.f32 %v4369, %v4457
      %v4459 = vpop.f32.mrf.mxu0
      %v4460 = vadd.f32 %v4371, %v4459
      %4461 = vmatmul.bf16.gmra.mxu0 %v3425
      %v4462 = vpop.f32.mrf.mxu0
      %v4463 = vadd.f32 %v4374, %v4462
      %v4464 = vpop.f32.mrf.mxu0
      %v4465 = vadd.f32 %v4376, %v4464
      %4466 = vmatmul.bf16.gmra.mxu0 %v3431
      %v4467 = vpop.f32.mrf.mxu0
      %v4468 = vadd.f32 %v4379, %v4467
      %v4469 = vpop.f32.mrf.mxu0
      %v4470 = vadd.f32 %v4381, %v4469
      %4471 = vmatmul.bf16.gmra.mxu0 %v3437
      %v4472 = vpop.f32.mrf.mxu0
      %v4473 = vadd.f32 %v4384, %v4472
      %v4474 = vpop.f32.mrf.mxu0
      %v4475 = vadd.f32 %v4386, %v4474
      %4476 = vmatmul.bf16.gmra.mxu0 %v3443
      %v4477 = vpop.f32.mrf.mxu0
      %v4478 = vadd.f32 %v4389, %v4477
      %v4479 = vpop.f32.mrf.mxu0
      %v4480 = vadd.f32 %v4391, %v4479
      %4481 = vmatmul.bf16.gmra.mxu0 %v3449
      %v4482 = vpop.f32.mrf.mxu0
      %v4483 = vadd.f32 %v4394, %v4482
      %v4484 = vpop.f32.mrf.mxu0
      %v4485 = vadd.f32 %v4396, %v4484
      %4486 = vmatmul.bf16.gmra.mxu0 %v3455
      %v4487 = vpop.f32.mrf.mxu0
      %v4488 = vadd.f32 %v4399, %v4487
      %v4489 = vpop.f32.mrf.mxu0
      %v4490 = vadd.f32 %v4401, %v4489
      %4491 = vmatmul.bf16.gmra.mxu0 %v3461
      %v4492 = vpop.f32.mrf.mxu0
      %v4493 = vadd.f32 %v4404, %v4492
      %v4494 = vpop.f32.mrf.mxu0
      %v4495 = vadd.f32 %v4406, %v4494
      %4496 = vmatmul.bf16.gmra.mxu0 %v3467
      %v4497 = vpop.f32.mrf.mxu0
      %v4498 = vadd.f32 %v4409, %v4497
      %v4499 = vpop.f32.mrf.mxu0
      %v4500 = vadd.f32 %v4411, %v4499
      %4501 = vmatmul.bf16.gmra.mxu0 %v3473
      %v4502 = vpop.f32.mrf.mxu0
      %v4503 = vadd.f32 %v4414, %v4502
      %v4504 = vpop.f32.mrf.mxu0
      %v4505 = vadd.f32 %v4416, %v4504
      %4506 = vmatmul.bf16.gmra.mxu0 %v3479
      %v4507 = vpop.f32.mrf.mxu0
      %v4508 = vadd.f32 %v4419, %v4507
      %v4509 = vpop.f32.mrf.mxu0
      %v4510 = vadd.f32 %v4421, %v4509
      %4511 = vmatmul.bf16.gmra.mxu0 %v3485
      %v4512 = vpop.f32.mrf.mxu0
      %v4513 = vadd.f32 %v4424, %v4512
      %v4514 = vpop.f32.mrf.mxu0
      %v4515 = vadd.f32 %v4426, %v4514
      %4516 = vmatmul.bf16.gmra.mxu0 %v3491
      %v4517 = vpop.f32.mrf.mxu0
      %v4518 = vadd.f32 %v4429, %v4517
      %v4519 = vpop.f32.mrf.mxu0
      %v4520 = vadd.f32 %v4431, %v4519
      %4521 = vmatmul.bf16.gmra.mxu0 %v3497
      %v4522 = vpop.f32.mrf.mxu0
      %v4523 = vadd.f32 %v4434, %v4522
      %v4524 = vpop.f32.mrf.mxu0
      %v4525 = vadd.f32 %v4436, %v4524
      %4526 = vmatmul.bf16.gmra.mxu0 %v3503
      %v4527 = vpop.f32.mrf.mxu0
      %v4528 = vadd.f32 %v4439, %v4527
      %v4529 = vpop.f32.mrf.mxu0
      %v4530 = vadd.f32 %v4441, %v4529
      %4531 = vdwg.mxu0
      %4532 = vmatpush.bf16.msra.mxu0 %v3989
      %4533 = vmatpush.bf16.msra.mxu0 %v3987
      %4534 = vmatpush.bf16.msra.mxu0 %v3985
      %4535 = vmatpush.bf16.msra.mxu0 %v3983
      %4536 = vmatpush.bf16.msra.mxu0 %v3981
      %4537 = vmatpush.bf16.msra.mxu0 %v3979
      %4538 = vmatpush.bf16.msra.mxu0 %v3977
      %4539 = vmatpush.bf16.msra.mxu0 %v3975
      %4540 = vmatmul.bf16.gmra.mxu0 %v3414
      %v4541 = vpop.f32.mrf.mxu0
      %v4542 = vadd.f32 %v4453, %v4541
      %v4543 = vpop.f32.mrf.mxu0
      %v4544 = vadd.f32 %v4455, %v4543
      %4545 = vmatmul.bf16.gmra.mxu0 %v3420
      %v4546 = vpop.f32.mrf.mxu0
      %v4547 = vadd.f32 %v4458, %v4546
      %v4548 = vpop.f32.mrf.mxu0
      %v4549 = vadd.f32 %v4460, %v4548
      %4550 = vmatmul.bf16.gmra.mxu0 %v3426
      %v4551 = vpop.f32.mrf.mxu0
      %v4552 = vadd.f32 %v4463, %v4551
      %v4553 = vpop.f32.mrf.mxu0
      %v4554 = vadd.f32 %v4465, %v4553
      %4555 = vmatmul.bf16.gmra.mxu0 %v3432
      %v4556 = vpop.f32.mrf.mxu0
      %v4557 = vadd.f32 %v4468, %v4556
      %v4558 = vpop.f32.mrf.mxu0
      %v4559 = vadd.f32 %v4470, %v4558
      %4560 = vmatmul.bf16.gmra.mxu0 %v3438
      %v4561 = vpop.f32.mrf.mxu0
      %v4562 = vadd.f32 %v4473, %v4561
      %v4563 = vpop.f32.mrf.mxu0
      %v4564 = vadd.f32 %v4475, %v4563
      %4565 = vmatmul.bf16.gmra.mxu0 %v3444
      %v4566 = vpop.f32.mrf.mxu0
      %v4567 = vadd.f32 %v4478, %v4566
      %v4568 = vpop.f32.mrf.mxu0
      %v4569 = vadd.f32 %v4480, %v4568
      %4570 = vmatmul.bf16.gmra.mxu0 %v3450
      %v4571 = vpop.f32.mrf.mxu0
      %v4572 = vadd.f32 %v4483, %v4571
      %v4573 = vpop.f32.mrf.mxu0
      %v4574 = vadd.f32 %v4485, %v4573
      %4575 = vmatmul.bf16.gmra.mxu0 %v3456
      %v4576 = vpop.f32.mrf.mxu0
      %v4577 = vadd.f32 %v4488, %v4576
      %v4578 = vpop.f32.mrf.mxu0
      %v4579 = vadd.f32 %v4490, %v4578
      %4580 = vmatmul.bf16.gmra.mxu0 %v3462
      %v4581 = vpop.f32.mrf.mxu0
      %v4582 = vadd.f32 %v4493, %v4581
      %v4583 = vpop.f32.mrf.mxu0
      %v4584 = vadd.f32 %v4495, %v4583
      %4585 = vmatmul.bf16.gmra.mxu0 %v3468
      %v4586 = vpop.f32.mrf.mxu0
      %v4587 = vadd.f32 %v4498, %v4586
      %v4588 = vpop.f32.mrf.mxu0
      %v4589 = vadd.f32 %v4500, %v4588
      %4590 = vmatmul.bf16.gmra.mxu0 %v3474
      %v4591 = vpop.f32.mrf.mxu0
      %v4592 = vadd.f32 %v4503, %v4591
      %v4593 = vpop.f32.mrf.mxu0
      %v4594 = vadd.f32 %v4505, %v4593
      %4595 = vmatmul.bf16.gmra.mxu0 %v3480
      %v4596 = vpop.f32.mrf.mxu0
      %v4597 = vadd.f32 %v4508, %v4596
      %v4598 = vpop.f32.mrf.mxu0
      %v4599 = vadd.f32 %v4510, %v4598
      %4600 = vmatmul.bf16.gmra.mxu0 %v3486
      %v4601 = vpop.f32.mrf.mxu0
      %v4602 = vadd.f32 %v4513, %v4601
      %v4603 = vpop.f32.mrf.mxu0
      %v4604 = vadd.f32 %v4515, %v4603
      %4605 = vmatmul.bf16.gmra.mxu0 %v3492
      %v4606 = vpop.f32.mrf.mxu0
      %v4607 = vadd.f32 %v4518, %v4606
      %v4608 = vpop.f32.mrf.mxu0
      %v4609 = vadd.f32 %v4520, %v4608
      %4610 = vmatmul.bf16.gmra.mxu0 %v3498
      %v4611 = vpop.f32.mrf.mxu0
      %v4612 = vadd.f32 %v4523, %v4611
      %v4613 = vpop.f32.mrf.mxu0
      %v4614 = vadd.f32 %v4525, %v4613
      %4615 = vmatmul.bf16.gmra.mxu0 %v3504
      %v4616 = vpop.f32.mrf.mxu0
      %v4617 = vadd.f32 %v4528, %v4616
      %v4618 = vpop.f32.mrf.mxu0
      %v4619 = vadd.f32 %v4530, %v4618
      %4620 = vdwg.mxu0
      %4621 = vmatpush.bf16.msra.mxu0 %v3910
      %4622 = vmatpush.bf16.msra.mxu0 %v3908
      %4623 = vmatpush.bf16.msra.mxu0 %v3906
      %4624 = vmatpush.bf16.msra.mxu0 %v3904
      %4625 = vmatpush.bf16.msra.mxu0 %v3902
      %4626 = vmatpush.bf16.msra.mxu0 %v3900
      %4627 = vmatpush.bf16.msra.mxu0 %v3898
      %4628 = vmatpush.bf16.msra.mxu0 %v3896
      %4629 = vmatmul.bf16.gmra.mxu0 %v3409
      %v4630 = vpop.f32.mrf.mxu0
      %v4631 = vadd.f32 %v3604, %v4630
      %v4632 = vpop.f32.mrf.mxu0
      %v4633 = vadd.f32 %v3604, %v4632
      %4634 = vmatmul.bf16.gmra.mxu0 %v3415
      %v4635 = vpop.f32.mrf.mxu0
      %v4636 = vadd.f32 %v3604, %v4635
      %v4637 = vpop.f32.mrf.mxu0
      %v4638 = vadd.f32 %v3604, %v4637
      %4639 = vmatmul.bf16.gmra.mxu0 %v3421
      %v4640 = vpop.f32.mrf.mxu0
      %v4641 = vadd.f32 %v3604, %v4640
      %v4642 = vpop.f32.mrf.mxu0
      %v4643 = vadd.f32 %v3604, %v4642
      %4644 = vmatmul.bf16.gmra.mxu0 %v3427
      %v4645 = vpop.f32.mrf.mxu0
      %v4646 = vadd.f32 %v3604, %v4645
      %v4647 = vpop.f32.mrf.mxu0
      %v4648 = vadd.f32 %v3604, %v4647
      %4649 = vmatmul.bf16.gmra.mxu0 %v3433
      %v4650 = vpop.f32.mrf.mxu0
      %v4651 = vadd.f32 %v3604, %v4650
      %v4652 = vpop.f32.mrf.mxu0
      %v4653 = vadd.f32 %v3604, %v4652
      %4654 = vmatmul.bf16.gmra.mxu0 %v3439
      %v4655 = vpop.f32.mrf.mxu0
      %v4656 = vadd.f32 %v3604, %v4655
      %v4657 = vpop.f32.mrf.mxu0
      %v4658 = vadd.f32 %v3604, %v4657
      %4659 = vmatmul.bf16.gmra.mxu0 %v3445
      %v4660 = vpop.f32.mrf.mxu0
      %v4661 = vadd.f32 %v3604, %v4660
      %v4662 = vpop.f32.mrf.mxu0
      %v4663 = vadd.f32 %v3604, %v4662
      %4664 = vmatmul.bf16.gmra.mxu0 %v3451
      %v4665 = vpop.f32.mrf.mxu0
      %v4666 = vadd.f32 %v3604, %v4665
      %v4667 = vpop.f32.mrf.mxu0
      %v4668 = vadd.f32 %v3604, %v4667
      %4669 = vmatmul.bf16.gmra.mxu0 %v3457
      %v4670 = vpop.f32.mrf.mxu0
      %v4671 = vadd.f32 %v3604, %v4670
      %v4672 = vpop.f32.mrf.mxu0
      %v4673 = vadd.f32 %v3604, %v4672
      %4674 = vmatmul.bf16.gmra.mxu0 %v3463
      %v4675 = vpop.f32.mrf.mxu0
      %v4676 = vadd.f32 %v3604, %v4675
      %v4677 = vpop.f32.mrf.mxu0
      %v4678 = vadd.f32 %v3604, %v4677
      %4679 = vmatmul.bf16.gmra.mxu0 %v3469
      %v4680 = vpop.f32.mrf.mxu0
      %v4681 = vadd.f32 %v3604, %v4680
      %v4682 = vpop.f32.mrf.mxu0
      %v4683 = vadd.f32 %v3604, %v4682
      %4684 = vmatmul.bf16.gmra.mxu0 %v3475
      %v4685 = vpop.f32.mrf.mxu0
      %v4686 = vadd.f32 %v3604, %v4685
      %v4687 = vpop.f32.mrf.mxu0
      %v4688 = vadd.f32 %v3604, %v4687
      %4689 = vmatmul.bf16.gmra.mxu0 %v3481
      %v4690 = vpop.f32.mrf.mxu0
      %v4691 = vadd.f32 %v3604, %v4690
      %v4692 = vpop.f32.mrf.mxu0
      %v4693 = vadd.f32 %v3604, %v4692
      %4694 = vmatmul.bf16.gmra.mxu0 %v3487
      %v4695 = vpop.f32.mrf.mxu0
      %v4696 = vadd.f32 %v3604, %v4695
      %v4697 = vpop.f32.mrf.mxu0
      %v4698 = vadd.f32 %v3604, %v4697
      %4699 = vmatmul.bf16.gmra.mxu0 %v3493
      %v4700 = vpop.f32.mrf.mxu0
      %v4701 = vadd.f32 %v3604, %v4700
      %v4702 = vpop.f32.mrf.mxu0
      %v4703 = vadd.f32 %v3604, %v4702
      %4704 = vmatmul.bf16.gmra.mxu0 %v3499
      %v4705 = vpop.f32.mrf.mxu0
      %v4706 = vadd.f32 %v3604, %v4705
      %v4707 = vpop.f32.mrf.mxu0
      %v4708 = vadd.f32 %v3604, %v4707
      %4709 = vdwg.mxu0
      %4710 = vmatpush.bf16.msra.mxu0 %v3926
      %4711 = vmatpush.bf16.msra.mxu0 %v3924
      %4712 = vmatpush.bf16.msra.mxu0 %v3922
      %4713 = vmatpush.bf16.msra.mxu0 %v3920
      %4714 = vmatpush.bf16.msra.mxu0 %v3918
      %4715 = vmatpush.bf16.msra.mxu0 %v3916
      %4716 = vmatpush.bf16.msra.mxu0 %v3914
      %4717 = vmatpush.bf16.msra.mxu0 %v3912
      %4718 = vmatmul.bf16.gmra.mxu0 %v3410
      %v4719 = vpop.f32.mrf.mxu0
      %v4720 = vadd.f32 %v4631, %v4719
      %v4721 = vpop.f32.mrf.mxu0
      %v4722 = vadd.f32 %v4633, %v4721
      %4723 = vmatmul.bf16.gmra.mxu0 %v3416
      %v4724 = vpop.f32.mrf.mxu0
      %v4725 = vadd.f32 %v4636, %v4724
      %v4726 = vpop.f32.mrf.mxu0
      %v4727 = vadd.f32 %v4638, %v4726
      %4728 = vmatmul.bf16.gmra.mxu0 %v3422
      %v4729 = vpop.f32.mrf.mxu0
      %v4730 = vadd.f32 %v4641, %v4729
      %v4731 = vpop.f32.mrf.mxu0
      %v4732 = vadd.f32 %v4643, %v4731
      %4733 = vmatmul.bf16.gmra.mxu0 %v3428
      %v4734 = vpop.f32.mrf.mxu0
      %v4735 = vadd.f32 %v4646, %v4734
      %v4736 = vpop.f32.mrf.mxu0
      %v4737 = vadd.f32 %v4648, %v4736
      %4738 = vmatmul.bf16.gmra.mxu0 %v3434
      %v4739 = vpop.f32.mrf.mxu0
      %v4740 = vadd.f32 %v4651, %v4739
      %v4741 = vpop.f32.mrf.mxu0
      %v4742 = vadd.f32 %v4653, %v4741
      %4743 = vmatmul.bf16.gmra.mxu0 %v3440
      %v4744 = vpop.f32.mrf.mxu0
      %v4745 = vadd.f32 %v4656, %v4744
      %v4746 = vpop.f32.mrf.mxu0
      %v4747 = vadd.f32 %v4658, %v4746
      %4748 = vmatmul.bf16.gmra.mxu0 %v3446
      %v4749 = vpop.f32.mrf.mxu0
      %v4750 = vadd.f32 %v4661, %v4749
      %v4751 = vpop.f32.mrf.mxu0
      %v4752 = vadd.f32 %v4663, %v4751
      %4753 = vmatmul.bf16.gmra.mxu0 %v3452
      %v4754 = vpop.f32.mrf.mxu0
      %v4755 = vadd.f32 %v4666, %v4754
      %v4756 = vpop.f32.mrf.mxu0
      %v4757 = vadd.f32 %v4668, %v4756
      %4758 = vmatmul.bf16.gmra.mxu0 %v3458
      %v4759 = vpop.f32.mrf.mxu0
      %v4760 = vadd.f32 %v4671, %v4759
      %v4761 = vpop.f32.mrf.mxu0
      %v4762 = vadd.f32 %v4673, %v4761
      %4763 = vmatmul.bf16.gmra.mxu0 %v3464
      %v4764 = vpop.f32.mrf.mxu0
      %v4765 = vadd.f32 %v4676, %v4764
      %v4766 = vpop.f32.mrf.mxu0
      %v4767 = vadd.f32 %v4678, %v4766
      %4768 = vmatmul.bf16.gmra.mxu0 %v3470
      %v4769 = vpop.f32.mrf.mxu0
      %v4770 = vadd.f32 %v4681, %v4769
      %v4771 = vpop.f32.mrf.mxu0
      %v4772 = vadd.f32 %v4683, %v4771
      %4773 = vmatmul.bf16.gmra.mxu0 %v3476
      %v4774 = vpop.f32.mrf.mxu0
      %v4775 = vadd.f32 %v4686, %v4774
      %v4776 = vpop.f32.mrf.mxu0
      %v4777 = vadd.f32 %v4688, %v4776
      %4778 = vmatmul.bf16.gmra.mxu0 %v3482
      %v4779 = vpop.f32.mrf.mxu0
      %v4780 = vadd.f32 %v4691, %v4779
      %v4781 = vpop.f32.mrf.mxu0
      %v4782 = vadd.f32 %v4693, %v4781
      %4783 = vmatmul.bf16.gmra.mxu0 %v3488
      %v4784 = vpop.f32.mrf.mxu0
      %v4785 = vadd.f32 %v4696, %v4784
      %v4786 = vpop.f32.mrf.mxu0
      %v4787 = vadd.f32 %v4698, %v4786
      %4788 = vmatmul.bf16.gmra.mxu0 %v3494
      %v4789 = vpop.f32.mrf.mxu0
      %v4790 = vadd.f32 %v4701, %v4789
      %v4791 = vpop.f32.mrf.mxu0
      %v4792 = vadd.f32 %v4703, %v4791
      %4793 = vmatmul.bf16.gmra.mxu0 %v3500
      %v4794 = vpop.f32.mrf.mxu0
      %v4795 = vadd.f32 %v4706, %v4794
      %v4796 = vpop.f32.mrf.mxu0
      %v4797 = vadd.f32 %v4708, %v4796
      %4798 = vdwg.mxu0
      %4799 = vmatpush.bf16.msra.mxu0 %v3942
      %4800 = vmatpush.bf16.msra.mxu0 %v3940
      %4801 = vmatpush.bf16.msra.mxu0 %v3938
      %4802 = vmatpush.bf16.msra.mxu0 %v3936
      %4803 = vmatpush.bf16.msra.mxu0 %v3934
      %4804 = vmatpush.bf16.msra.mxu0 %v3932
      %4805 = vmatpush.bf16.msra.mxu0 %v3930
      %4806 = vmatpush.bf16.msra.mxu0 %v3928
      %4807 = vmatmul.bf16.gmra.mxu0 %v3411
      %v4808 = vpop.f32.mrf.mxu0
      %v4809 = vadd.f32 %v4720, %v4808
      %v4810 = vpop.f32.mrf.mxu0
      %v4811 = vadd.f32 %v4722, %v4810
      %4812 = vmatmul.bf16.gmra.mxu0 %v3417
      %v4813 = vpop.f32.mrf.mxu0
      %v4814 = vadd.f32 %v4725, %v4813
      %v4815 = vpop.f32.mrf.mxu0
      %v4816 = vadd.f32 %v4727, %v4815
      %4817 = vmatmul.bf16.gmra.mxu0 %v3423
      %v4818 = vpop.f32.mrf.mxu0
      %v4819 = vadd.f32 %v4730, %v4818
      %v4820 = vpop.f32.mrf.mxu0
      %v4821 = vadd.f32 %v4732, %v4820
      %4822 = vmatmul.bf16.gmra.mxu0 %v3429
      %v4823 = vpop.f32.mrf.mxu0
      %v4824 = vadd.f32 %v4735, %v4823
      %v4825 = vpop.f32.mrf.mxu0
      %v4826 = vadd.f32 %v4737, %v4825
      %4827 = vmatmul.bf16.gmra.mxu0 %v3435
      %v4828 = vpop.f32.mrf.mxu0
      %v4829 = vadd.f32 %v4740, %v4828
      %v4830 = vpop.f32.mrf.mxu0
      %v4831 = vadd.f32 %v4742, %v4830
      %4832 = vmatmul.bf16.gmra.mxu0 %v3441
      %v4833 = vpop.f32.mrf.mxu0
      %v4834 = vadd.f32 %v4745, %v4833
      %v4835 = vpop.f32.mrf.mxu0
      %v4836 = vadd.f32 %v4747, %v4835
      %4837 = vmatmul.bf16.gmra.mxu0 %v3447
      %v4838 = vpop.f32.mrf.mxu0
      %v4839 = vadd.f32 %v4750, %v4838
      %v4840 = vpop.f32.mrf.mxu0
      %v4841 = vadd.f32 %v4752, %v4840
      %4842 = vmatmul.bf16.gmra.mxu0 %v3453
      %v4843 = vpop.f32.mrf.mxu0
      %v4844 = vadd.f32 %v4755, %v4843
      %v4845 = vpop.f32.mrf.mxu0
      %v4846 = vadd.f32 %v4757, %v4845
      %4847 = vmatmul.bf16.gmra.mxu0 %v3459
      %v4848 = vpop.f32.mrf.mxu0
      %v4849 = vadd.f32 %v4760, %v4848
      %v4850 = vpop.f32.mrf.mxu0
      %v4851 = vadd.f32 %v4762, %v4850
      %4852 = vmatmul.bf16.gmra.mxu0 %v3465
      %v4853 = vpop.f32.mrf.mxu0
      %v4854 = vadd.f32 %v4765, %v4853
      %v4855 = vpop.f32.mrf.mxu0
      %v4856 = vadd.f32 %v4767, %v4855
      %4857 = vmatmul.bf16.gmra.mxu0 %v3471
      %v4858 = vpop.f32.mrf.mxu0
      %v4859 = vadd.f32 %v4770, %v4858
      %v4860 = vpop.f32.mrf.mxu0
      %v4861 = vadd.f32 %v4772, %v4860
      %4862 = vmatmul.bf16.gmra.mxu0 %v3477
      %v4863 = vpop.f32.mrf.mxu0
      %v4864 = vadd.f32 %v4775, %v4863
      %v4865 = vpop.f32.mrf.mxu0
      %v4866 = vadd.f32 %v4777, %v4865
      %4867 = vmatmul.bf16.gmra.mxu0 %v3483
      %v4868 = vpop.f32.mrf.mxu0
      %v4869 = vadd.f32 %v4780, %v4868
      %v4870 = vpop.f32.mrf.mxu0
      %v4871 = vadd.f32 %v4782, %v4870
      %4872 = vmatmul.bf16.gmra.mxu0 %v3489
      %v4873 = vpop.f32.mrf.mxu0
      %v4874 = vadd.f32 %v4785, %v4873
      %v4875 = vpop.f32.mrf.mxu0
      %v4876 = vadd.f32 %v4787, %v4875
      %4877 = vmatmul.bf16.gmra.mxu0 %v3495
      %v4878 = vpop.f32.mrf.mxu0
      %v4879 = vadd.f32 %v4790, %v4878
      %v4880 = vpop.f32.mrf.mxu0
      %v4881 = vadd.f32 %v4792, %v4880
      %4882 = vmatmul.bf16.gmra.mxu0 %v3501
      %v4883 = vpop.f32.mrf.mxu0
      %v4884 = vadd.f32 %v4795, %v4883
      %v4885 = vpop.f32.mrf.mxu0
      %v4886 = vadd.f32 %v4797, %v4885
      %4887 = vdwg.mxu0
      %4888 = vmatpush.bf16.msra.mxu0 %v3958
      %4889 = vmatpush.bf16.msra.mxu0 %v3956
      %4890 = vmatpush.bf16.msra.mxu0 %v3954
      %4891 = vmatpush.bf16.msra.mxu0 %v3952
      %4892 = vmatpush.bf16.msra.mxu0 %v3950
      %4893 = vmatpush.bf16.msra.mxu0 %v3948
      %4894 = vmatpush.bf16.msra.mxu0 %v3946
      %4895 = vmatpush.bf16.msra.mxu0 %v3944
      %4896 = vmatmul.bf16.gmra.mxu0 %v3412
      %v4897 = vpop.f32.mrf.mxu0
      %v4898 = vadd.f32 %v4809, %v4897
      %v4899 = vpop.f32.mrf.mxu0
      %v4900 = vadd.f32 %v4811, %v4899
      %4901 = vmatmul.bf16.gmra.mxu0 %v3418
      %v4902 = vpop.f32.mrf.mxu0
      %v4903 = vadd.f32 %v4814, %v4902
      %v4904 = vpop.f32.mrf.mxu0
      %v4905 = vadd.f32 %v4816, %v4904
      %4906 = vmatmul.bf16.gmra.mxu0 %v3424
      %v4907 = vpop.f32.mrf.mxu0
      %v4908 = vadd.f32 %v4819, %v4907
      %v4909 = vpop.f32.mrf.mxu0
      %v4910 = vadd.f32 %v4821, %v4909
      %4911 = vmatmul.bf16.gmra.mxu0 %v3430
      %v4912 = vpop.f32.mrf.mxu0
      %v4913 = vadd.f32 %v4824, %v4912
      %v4914 = vpop.f32.mrf.mxu0
      %v4915 = vadd.f32 %v4826, %v4914
      %4916 = vmatmul.bf16.gmra.mxu0 %v3436
      %v4917 = vpop.f32.mrf.mxu0
      %v4918 = vadd.f32 %v4829, %v4917
      %v4919 = vpop.f32.mrf.mxu0
      %v4920 = vadd.f32 %v4831, %v4919
      %4921 = vmatmul.bf16.gmra.mxu0 %v3442
      %v4922 = vpop.f32.mrf.mxu0
      %v4923 = vadd.f32 %v4834, %v4922
      %v4924 = vpop.f32.mrf.mxu0
      %v4925 = vadd.f32 %v4836, %v4924
      %4926 = vmatmul.bf16.gmra.mxu0 %v3448
      %v4927 = vpop.f32.mrf.mxu0
      %v4928 = vadd.f32 %v4839, %v4927
      %v4929 = vpop.f32.mrf.mxu0
      %v4930 = vadd.f32 %v4841, %v4929
      %4931 = vmatmul.bf16.gmra.mxu0 %v3454
      %v4932 = vpop.f32.mrf.mxu0
      %v4933 = vadd.f32 %v4844, %v4932
      %v4934 = vpop.f32.mrf.mxu0
      %v4935 = vadd.f32 %v4846, %v4934
      %4936 = vmatmul.bf16.gmra.mxu0 %v3460
      %v4937 = vpop.f32.mrf.mxu0
      %v4938 = vadd.f32 %v4849, %v4937
      %v4939 = vpop.f32.mrf.mxu0
      %v4940 = vadd.f32 %v4851, %v4939
      %4941 = vmatmul.bf16.gmra.mxu0 %v3466
      %v4942 = vpop.f32.mrf.mxu0
      %v4943 = vadd.f32 %v4854, %v4942
      %v4944 = vpop.f32.mrf.mxu0
      %v4945 = vadd.f32 %v4856, %v4944
      %4946 = vmatmul.bf16.gmra.mxu0 %v3472
      %v4947 = vpop.f32.mrf.mxu0
      %v4948 = vadd.f32 %v4859, %v4947
      %v4949 = vpop.f32.mrf.mxu0
      %v4950 = vadd.f32 %v4861, %v4949
      %4951 = vmatmul.bf16.gmra.mxu0 %v3478
      %v4952 = vpop.f32.mrf.mxu0
      %v4953 = vadd.f32 %v4864, %v4952
      %v4954 = vpop.f32.mrf.mxu0
      %v4955 = vadd.f32 %v4866, %v4954
      %4956 = vmatmul.bf16.gmra.mxu0 %v3484
      %v4957 = vpop.f32.mrf.mxu0
      %v4958 = vadd.f32 %v4869, %v4957
      %v4959 = vpop.f32.mrf.mxu0
      %v4960 = vadd.f32 %v4871, %v4959
      %4961 = vmatmul.bf16.gmra.mxu0 %v3490
      %v4962 = vpop.f32.mrf.mxu0
      %v4963 = vadd.f32 %v4874, %v4962
      %v4964 = vpop.f32.mrf.mxu0
      %v4965 = vadd.f32 %v4876, %v4964
      %4966 = vmatmul.bf16.gmra.mxu0 %v3496
      %v4967 = vpop.f32.mrf.mxu0
      %v4968 = vadd.f32 %v4879, %v4967
      %v4969 = vpop.f32.mrf.mxu0
      %v4970 = vadd.f32 %v4881, %v4969
      %4971 = vmatmul.bf16.gmra.mxu0 %v3502
      %v4972 = vpop.f32.mrf.mxu0
      %v4973 = vadd.f32 %v4884, %v4972
      %v4974 = vpop.f32.mrf.mxu0
      %v4975 = vadd.f32 %v4886, %v4974
      %4976 = vdwg.mxu0
      %4977 = vmatpush.bf16.msra.mxu0 %v3974
      %4978 = vmatpush.bf16.msra.mxu0 %v3972
      %4979 = vmatpush.bf16.msra.mxu0 %v3970
      %4980 = vmatpush.bf16.msra.mxu0 %v3968
      %4981 = vmatpush.bf16.msra.mxu0 %v3966
      %4982 = vmatpush.bf16.msra.mxu0 %v3964
      %4983 = vmatpush.bf16.msra.mxu0 %v3962
      %4984 = vmatpush.bf16.msra.mxu0 %v3960
      %4985 = vmatmul.bf16.gmra.mxu0 %v3413
      %v4986 = vpop.f32.mrf.mxu0
      %v4987 = vadd.f32 %v4898, %v4986
      %v4988 = vpop.f32.mrf.mxu0
      %v4989 = vadd.f32 %v4900, %v4988
      %4990 = vmatmul.bf16.gmra.mxu0 %v3419
      %v4991 = vpop.f32.mrf.mxu0
      %v4992 = vadd.f32 %v4903, %v4991
      %v4993 = vpop.f32.mrf.mxu0
      %v4994 = vadd.f32 %v4905, %v4993
      %4995 = vmatmul.bf16.gmra.mxu0 %v3425
      %v4996 = vpop.f32.mrf.mxu0
      %v4997 = vadd.f32 %v4908, %v4996
      %v4998 = vpop.f32.mrf.mxu0
      %v4999 = vadd.f32 %v4910, %v4998
      %5000 = vmatmul.bf16.gmra.mxu0 %v3431
      %v5001 = vpop.f32.mrf.mxu0
      %v5002 = vadd.f32 %v4913, %v5001
      %v5003 = vpop.f32.mrf.mxu0
      %v5004 = vadd.f32 %v4915, %v5003
      %5005 = vmatmul.bf16.gmra.mxu0 %v3437
      %v5006 = vpop.f32.mrf.mxu0
      %v5007 = vadd.f32 %v4918, %v5006
      %v5008 = vpop.f32.mrf.mxu0
      %v5009 = vadd.f32 %v4920, %v5008
      %5010 = vmatmul.bf16.gmra.mxu0 %v3443
      %v5011 = vpop.f32.mrf.mxu0
      %v5012 = vadd.f32 %v4923, %v5011
      %v5013 = vpop.f32.mrf.mxu0
      %v5014 = vadd.f32 %v4925, %v5013
      %5015 = vmatmul.bf16.gmra.mxu0 %v3449
      %v5016 = vpop.f32.mrf.mxu0
      %v5017 = vadd.f32 %v4928, %v5016
      %v5018 = vpop.f32.mrf.mxu0
      %v5019 = vadd.f32 %v4930, %v5018
      %5020 = vmatmul.bf16.gmra.mxu0 %v3455
      %v5021 = vpop.f32.mrf.mxu0
      %v5022 = vadd.f32 %v4933, %v5021
      %v5023 = vpop.f32.mrf.mxu0
      %v5024 = vadd.f32 %v4935, %v5023
      %5025 = vmatmul.bf16.gmra.mxu0 %v3461
      %v5026 = vpop.f32.mrf.mxu0
      %v5027 = vadd.f32 %v4938, %v5026
      %v5028 = vpop.f32.mrf.mxu0
      %v5029 = vadd.f32 %v4940, %v5028
      %5030 = vmatmul.bf16.gmra.mxu0 %v3467
      %v5031 = vpop.f32.mrf.mxu0
      %v5032 = vadd.f32 %v4943, %v5031
      %v5033 = vpop.f32.mrf.mxu0
      %v5034 = vadd.f32 %v4945, %v5033
      %5035 = vmatmul.bf16.gmra.mxu0 %v3473
      %v5036 = vpop.f32.mrf.mxu0
      %v5037 = vadd.f32 %v4948, %v5036
      %v5038 = vpop.f32.mrf.mxu0
      %v5039 = vadd.f32 %v4950, %v5038
      %5040 = vmatmul.bf16.gmra.mxu0 %v3479
      %v5041 = vpop.f32.mrf.mxu0
      %v5042 = vadd.f32 %v4953, %v5041
      %v5043 = vpop.f32.mrf.mxu0
      %v5044 = vadd.f32 %v4955, %v5043
      %5045 = vmatmul.bf16.gmra.mxu0 %v3485
      %v5046 = vpop.f32.mrf.mxu0
      %v5047 = vadd.f32 %v4958, %v5046
      %v5048 = vpop.f32.mrf.mxu0
      %v5049 = vadd.f32 %v4960, %v5048
      %5050 = vmatmul.bf16.gmra.mxu0 %v3491
      %v5051 = vpop.f32.mrf.mxu0
      %v5052 = vadd.f32 %v4963, %v5051
      %v5053 = vpop.f32.mrf.mxu0
      %v5054 = vadd.f32 %v4965, %v5053
      %5055 = vmatmul.bf16.gmra.mxu0 %v3497
      %v5056 = vpop.f32.mrf.mxu0
      %v5057 = vadd.f32 %v4968, %v5056
      %v5058 = vpop.f32.mrf.mxu0
      %v5059 = vadd.f32 %v4970, %v5058
      %5060 = vmatmul.bf16.gmra.mxu0 %v3503
      %v5061 = vpop.f32.mrf.mxu0
      %v5062 = vadd.f32 %v4973, %v5061
      %v5063 = vpop.f32.mrf.mxu0
      %v5064 = vadd.f32 %v4975, %v5063
      %5065 = vdwg.mxu0
      %5066 = vmatpush.bf16.msra.mxu0 %v3990
      %5067 = vmatpush.bf16.msra.mxu0 %v3988
      %5068 = vmatpush.bf16.msra.mxu0 %v3986
      %5069 = vmatpush.bf16.msra.mxu0 %v3984
      %5070 = vmatpush.bf16.msra.mxu0 %v3982
      %5071 = vmatpush.bf16.msra.mxu0 %v3980
      %5072 = vmatpush.bf16.msra.mxu0 %v3978
      %5073 = vmatpush.bf16.msra.mxu0 %v3976
      %5074 = vmatmul.bf16.gmra.mxu0 %v3414
      %v5075 = vpop.f32.mrf.mxu0
      %v5076 = vadd.f32 %v4987, %v5075
      %v5077 = vpop.f32.mrf.mxu0
      %v5078 = vadd.f32 %v4989, %v5077
      %5079 = vmatmul.bf16.gmra.mxu0 %v3420
      %v5080 = vpop.f32.mrf.mxu0
      %v5081 = vadd.f32 %v4992, %v5080
      %v5082 = vpop.f32.mrf.mxu0
      %v5083 = vadd.f32 %v4994, %v5082
      %5084 = vmatmul.bf16.gmra.mxu0 %v3426
      %v5085 = vpop.f32.mrf.mxu0
      %v5086 = vadd.f32 %v4997, %v5085
      %v5087 = vpop.f32.mrf.mxu0
      %v5088 = vadd.f32 %v4999, %v5087
      %5089 = vmatmul.bf16.gmra.mxu0 %v3432
      %v5090 = vpop.f32.mrf.mxu0
      %v5091 = vadd.f32 %v5002, %v5090
      %v5092 = vpop.f32.mrf.mxu0
      %v5093 = vadd.f32 %v5004, %v5092
      %5094 = vmatmul.bf16.gmra.mxu0 %v3438
      %v5095 = vpop.f32.mrf.mxu0
      %v5096 = vadd.f32 %v5007, %v5095
      %v5097 = vpop.f32.mrf.mxu0
      %v5098 = vadd.f32 %v5009, %v5097
      %5099 = vmatmul.bf16.gmra.mxu0 %v3444
      %v5100 = vpop.f32.mrf.mxu0
      %v5101 = vadd.f32 %v5012, %v5100
      %v5102 = vpop.f32.mrf.mxu0
      %v5103 = vadd.f32 %v5014, %v5102
      %5104 = vmatmul.bf16.gmra.mxu0 %v3450
      %v5105 = vpop.f32.mrf.mxu0
      %v5106 = vadd.f32 %v5017, %v5105
      %v5107 = vpop.f32.mrf.mxu0
      %v5108 = vadd.f32 %v5019, %v5107
      %5109 = vmatmul.bf16.gmra.mxu0 %v3456
      %v5110 = vpop.f32.mrf.mxu0
      %v5111 = vadd.f32 %v5022, %v5110
      %v5112 = vpop.f32.mrf.mxu0
      %v5113 = vadd.f32 %v5024, %v5112
      %5114 = vmatmul.bf16.gmra.mxu0 %v3462
      %v5115 = vpop.f32.mrf.mxu0
      %v5116 = vadd.f32 %v5027, %v5115
      %v5117 = vpop.f32.mrf.mxu0
      %v5118 = vadd.f32 %v5029, %v5117
      %5119 = vmatmul.bf16.gmra.mxu0 %v3468
      %v5120 = vpop.f32.mrf.mxu0
      %v5121 = vadd.f32 %v5032, %v5120
      %v5122 = vpop.f32.mrf.mxu0
      %v5123 = vadd.f32 %v5034, %v5122
      %5124 = vmatmul.bf16.gmra.mxu0 %v3474
      %v5125 = vpop.f32.mrf.mxu0
      %v5126 = vadd.f32 %v5037, %v5125
      %v5127 = vpop.f32.mrf.mxu0
      %v5128 = vadd.f32 %v5039, %v5127
      %5129 = vmatmul.bf16.gmra.mxu0 %v3480
      %v5130 = vpop.f32.mrf.mxu0
      %v5131 = vadd.f32 %v5042, %v5130
      %v5132 = vpop.f32.mrf.mxu0
      %v5133 = vadd.f32 %v5044, %v5132
      %5134 = vmatmul.bf16.gmra.mxu0 %v3486
      %v5135 = vpop.f32.mrf.mxu0
      %v5136 = vadd.f32 %v5047, %v5135
      %v5137 = vpop.f32.mrf.mxu0
      %v5138 = vadd.f32 %v5049, %v5137
      %5139 = vmatmul.bf16.gmra.mxu0 %v3492
      %v5140 = vpop.f32.mrf.mxu0
      %v5141 = vadd.f32 %v5052, %v5140
      %v5142 = vpop.f32.mrf.mxu0
      %v5143 = vadd.f32 %v5054, %v5142
      %5144 = vmatmul.bf16.gmra.mxu0 %v3498
      %v5145 = vpop.f32.mrf.mxu0
      %v5146 = vadd.f32 %v5057, %v5145
      %v5147 = vpop.f32.mrf.mxu0
      %v5148 = vadd.f32 %v5059, %v5147
      %5149 = vmatmul.bf16.gmra.mxu0 %v3504
      %v5150 = vpop.f32.mrf.mxu0
      %v5151 = vadd.f32 %v5062, %v5150
      %v5152 = vpop.f32.mrf.mxu0
      %v5153 = vadd.f32 %v5064, %v5152
      %5154 = vdwg.mxu0
      %v5155 = vmax.f32 %v4542, 0.0
      %v5156 = vmax.f32 %v5076, 0.0
      %v5157 = vmax.f32 %v4544, 0.0
      %v5158 = vmax.f32 %v5078, 0.0
      %v5159 = vmax.f32 %v4547, 0.0
      %v5160 = vmax.f32 %v5081, 0.0
      %v5161 = vmax.f32 %v4549, 0.0
      %v5162 = vmax.f32 %v5083, 0.0
      %v5163 = vmax.f32 %v4552, 0.0
      %v5164 = vmax.f32 %v5086, 0.0
      %v5165 = vmax.f32 %v4554, 0.0
      %v5166 = vmax.f32 %v5088, 0.0
      %v5167 = vmax.f32 %v4557, 0.0
      %v5168 = vmax.f32 %v5091, 0.0
      %v5169 = vmax.f32 %v4559, 0.0
      %v5170 = vmax.f32 %v5093, 0.0
      %v5171 = vmax.f32 %v4562, 0.0
      %v5172 = vmax.f32 %v5096, 0.0
      %v5173 = vmax.f32 %v4564, 0.0
      %v5174 = vmax.f32 %v5098, 0.0
      %v5175 = vmax.f32 %v4567, 0.0
      %v5176 = vmax.f32 %v5101, 0.0
      %v5177 = vmax.f32 %v4569, 0.0
      %v5178 = vmax.f32 %v5103, 0.0
      %v5179 = vmax.f32 %v4572, 0.0
      %v5180 = vmax.f32 %v5106, 0.0
      %v5181 = vmax.f32 %v4574, 0.0
      %v5182 = vmax.f32 %v5108, 0.0
      %v5183 = vmax.f32 %v4577, 0.0
      %v5184 = vmax.f32 %v5111, 0.0
      %v5185 = vmax.f32 %v4579, 0.0
      %v5186 = vmax.f32 %v5113, 0.0
      %v5187 = vmax.f32 %v4582, 0.0
      %v5188 = vmax.f32 %v5116, 0.0
      %v5189 = vmax.f32 %v4584, 0.0
      %v5190 = vmax.f32 %v5118, 0.0
      %v5191 = vmax.f32 %v4587, 0.0
      %v5192 = vmax.f32 %v5121, 0.0
      %v5193 = vmax.f32 %v4589, 0.0
      %v5194 = vmax.f32 %v5123, 0.0
      %v5195 = vmax.f32 %v4592, 0.0
      %v5196 = vmax.f32 %v5126, 0.0
      %v5197 = vmax.f32 %v4594, 0.0
      %v5198 = vmax.f32 %v5128, 0.0
      %v5199 = vmax.f32 %v4597, 0.0
      %v5200 = vmax.f32 %v5131, 0.0
      %v5201 = vmax.f32 %v4599, 0.0
      %v5202 = vmax.f32 %v5133, 0.0
      %v5203 = vmax.f32 %v4602, 0.0
      %v5204 = vmax.f32 %v5136, 0.0
      %v5205 = vmax.f32 %v4604, 0.0
      %v5206 = vmax.f32 %v5138, 0.0
      %v5207 = vmax.f32 %v4607, 0.0
      %v5208 = vmax.f32 %v5141, 0.0
      %v5209 = vmax.f32 %v4609, 0.0
      %v5210 = vmax.f32 %v5143, 0.0
      %v5211 = vmax.f32 %v4612, 0.0
      %v5212 = vmax.f32 %v5146, 0.0
      %v5213 = vmax.f32 %v4614, 0.0
      %v5214 = vmax.f32 %v5148, 0.0
      %v5215 = vmax.f32 %v4617, 0.0
      %v5216 = vmax.f32 %v5151, 0.0
      %v5217 = vmax.f32 %v4619, 0.0
      %v5218 = vmax.f32 %v5153, 0.0
      %5283 = vrot.lane.b32.xlu0 %v5155, 96
      %v5284 = vpop.permute.xlu0 %5283
      %5285 = vrot.lane.b32.xlu0 %v5156, 96
      %v5286 = vpop.permute.xlu0 %5285
      %5287 = vrot.lane.b32.xlu0 %v5157, 96
      %v5288 = vpop.permute.xlu0 %5287
      %5289 = vrot.lane.b32.xlu0 %v5158, 96
      %v5290 = vpop.permute.xlu0 %5289
      %5291 = vrot.lane.b32.xlu0 %v5159, 96
      %v5292 = vpop.permute.xlu0 %5291
      %5293 = vrot.lane.b32.xlu0 %v5160, 96
      %v5294 = vpop.permute.xlu0 %5293
      %5295 = vrot.lane.b32.xlu0 %v5161, 96
      %v5296 = vpop.permute.xlu0 %5295
      %5297 = vrot.lane.b32.xlu0 %v5162, 96
      %v5298 = vpop.permute.xlu0 %5297
      %5299 = vrot.lane.b32.xlu0 %v5163, 96
      %v5300 = vpop.permute.xlu0 %5299
      %5301 = vrot.lane.b32.xlu0 %v5164, 96
      %v5302 = vpop.permute.xlu0 %5301
      %5303 = vrot.lane.b32.xlu0 %v5165, 96
      %v5304 = vpop.permute.xlu0 %5303
      %5305 = vrot.lane.b32.xlu0 %v5166, 96
      %v5306 = vpop.permute.xlu0 %5305
      %5307 = vrot.lane.b32.xlu0 %v5167, 96
      %v5308 = vpop.permute.xlu0 %5307
      %5309 = vrot.lane.b32.xlu0 %v5168, 96
      %v5310 = vpop.permute.xlu0 %5309
      %5311 = vrot.lane.b32.xlu0 %v5169, 96
      %v5312 = vpop.permute.xlu0 %5311
      %5313 = vrot.lane.b32.xlu0 %v5170, 96
      %v5314 = vpop.permute.xlu0 %5313
      %5315 = vrot.lane.b32.xlu0 %v5171, 96
      %v5316 = vpop.permute.xlu0 %5315
      %5317 = vrot.lane.b32.xlu0 %v5172, 96
      %v5318 = vpop.permute.xlu0 %5317
      %5319 = vrot.lane.b32.xlu0 %v5173, 96
      %v5320 = vpop.permute.xlu0 %5319
      %5321 = vrot.lane.b32.xlu0 %v5174, 96
      %v5322 = vpop.permute.xlu0 %5321
      %5323 = vrot.lane.b32.xlu0 %v5175, 96
      %v5324 = vpop.permute.xlu0 %5323
      %5325 = vrot.lane.b32.xlu0 %v5176, 96
      %v5326 = vpop.permute.xlu0 %5325
      %5327 = vrot.lane.b32.xlu0 %v5177, 96
      %v5328 = vpop.permute.xlu0 %5327
      %5329 = vrot.lane.b32.xlu0 %v5178, 96
      %v5330 = vpop.permute.xlu0 %5329
      %5331 = vrot.lane.b32.xlu0 %v5179, 96
      %v5332 = vpop.permute.xlu0 %5331
      %5333 = vrot.lane.b32.xlu0 %v5180, 96
      %v5334 = vpop.permute.xlu0 %5333
      %5335 = vrot.lane.b32.xlu0 %v5181, 96
      %v5336 = vpop.permute.xlu0 %5335
      %5337 = vrot.lane.b32.xlu0 %v5182, 96
      %v5338 = vpop.permute.xlu0 %5337
      %5339 = vrot.lane.b32.xlu0 %v5183, 96
      %v5340 = vpop.permute.xlu0 %5339
      %5341 = vrot.lane.b32.xlu0 %v5184, 96
      %v5342 = vpop.permute.xlu0 %5341
      %5343 = vrot.lane.b32.xlu0 %v5185, 96
      %v5344 = vpop.permute.xlu0 %5343
      %5345 = vrot.lane.b32.xlu0 %v5186, 96
      %v5346 = vpop.permute.xlu0 %5345
      %5347 = vrot.lane.b32.xlu0 %v5187, 96
      %v5348 = vpop.permute.xlu0 %5347
      %5349 = vrot.lane.b32.xlu0 %v5188, 96
      %v5350 = vpop.permute.xlu0 %5349
      %5351 = vrot.lane.b32.xlu0 %v5189, 96
      %v5352 = vpop.permute.xlu0 %5351
      %5353 = vrot.lane.b32.xlu0 %v5190, 96
      %v5354 = vpop.permute.xlu0 %5353
      %5355 = vrot.lane.b32.xlu0 %v5191, 96
      %v5356 = vpop.permute.xlu0 %5355
      %5357 = vrot.lane.b32.xlu0 %v5192, 96
      %v5358 = vpop.permute.xlu0 %5357
      %5359 = vrot.lane.b32.xlu0 %v5193, 96
      %v5360 = vpop.permute.xlu0 %5359
      %5361 = vrot.lane.b32.xlu0 %v5194, 96
      %v5362 = vpop.permute.xlu0 %5361
      %5363 = vrot.lane.b32.xlu0 %v5195, 96
      %v5364 = vpop.permute.xlu0 %5363
      %5365 = vrot.lane.b32.xlu0 %v5196, 96
      %v5366 = vpop.permute.xlu0 %5365
      %5367 = vrot.lane.b32.xlu0 %v5197, 96
      %v5368 = vpop.permute.xlu0 %5367
      %5369 = vrot.lane.b32.xlu0 %v5198, 96
      %v5370 = vpop.permute.xlu0 %5369
      %5371 = vrot.lane.b32.xlu0 %v5199, 96
      %v5372 = vpop.permute.xlu0 %5371
      %5373 = vrot.lane.b32.xlu0 %v5200, 96
      %v5374 = vpop.permute.xlu0 %5373
      %5375 = vrot.lane.b32.xlu0 %v5201, 96
      %v5376 = vpop.permute.xlu0 %5375
      %5377 = vrot.lane.b32.xlu0 %v5202, 96
      %v5378 = vpop.permute.xlu0 %5377
      %5379 = vrot.lane.b32.xlu0 %v5203, 96
      %v5380 = vpop.permute.xlu0 %5379
      %5381 = vrot.lane.b32.xlu0 %v5204, 96
      %v5382 = vpop.permute.xlu0 %5381
      %5383 = vrot.lane.b32.xlu0 %v5205, 96
      %v5384 = vpop.permute.xlu0 %5383
      %5385 = vrot.lane.b32.xlu0 %v5206, 96
      %v5386 = vpop.permute.xlu0 %5385
      %5387 = vrot.lane.b32.xlu0 %v5207, 96
      %v5388 = vpop.permute.xlu0 %5387
      %5389 = vrot.lane.b32.xlu0 %v5208, 96
      %v5390 = vpop.permute.xlu0 %5389
      %5391 = vrot.lane.b32.xlu0 %v5209, 96
      %v5392 = vpop.permute.xlu0 %5391
      %5393 = vrot.lane.b32.xlu0 %v5210, 96
      %v5394 = vpop.permute.xlu0 %5393
      %5395 = vrot.lane.b32.xlu0 %v5211, 96
      %v5396 = vpop.permute.xlu0 %5395
      %5397 = vrot.lane.b32.xlu0 %v5212, 96
      %v5398 = vpop.permute.xlu0 %5397
      %5399 = vrot.lane.b32.xlu0 %v5213, 96
      %v5400 = vpop.permute.xlu0 %5399
      %5401 = vrot.lane.b32.xlu0 %v5214, 96
      %v5402 = vpop.permute.xlu0 %5401
      %5403 = vrot.lane.b32.xlu0 %v5215, 96
      %v5404 = vpop.permute.xlu0 %5403
      %5405 = vrot.lane.b32.xlu0 %v5216, 96
      %v5406 = vpop.permute.xlu0 %5405
      %5407 = vrot.lane.b32.xlu0 %v5217, 96
      %v5408 = vpop.permute.xlu0 %5407
      %5409 = vrot.lane.b32.xlu0 %v5218, 96
      %v5410 = vpop.permute.xlu0 %5409
      %vm5411 = vcmask 785408
      %v5412 = vsel %vm5411, %v5284, %v5286
      %v5413 = vsel %vm5411, %v5288, %v5290
      %v5414 = vsel %vm5411, %v5292, %v5294
      %v5415 = vsel %vm5411, %v5296, %v5298
      %v5416 = vsel %vm5411, %v5300, %v5302
      %v5417 = vsel %vm5411, %v5304, %v5306
      %v5418 = vsel %vm5411, %v5308, %v5310
      %v5419 = vsel %vm5411, %v5312, %v5314
      %v5420 = vsel %vm5411, %v5316, %v5318
      %v5421 = vsel %vm5411, %v5320, %v5322
      %v5422 = vsel %vm5411, %v5324, %v5326
      %v5423 = vsel %vm5411, %v5328, %v5330
      %v5424 = vsel %vm5411, %v5332, %v5334
      %v5425 = vsel %vm5411, %v5336, %v5338
      %v5426 = vsel %vm5411, %v5340, %v5342
      %v5427 = vsel %vm5411, %v5344, %v5346
      %v5428 = vsel %vm5411, %v5348, %v5350
      %v5429 = vsel %vm5411, %v5352, %v5354
      %v5430 = vsel %vm5411, %v5356, %v5358
      %v5431 = vsel %vm5411, %v5360, %v5362
      %v5432 = vsel %vm5411, %v5364, %v5366
      %v5433 = vsel %vm5411, %v5368, %v5370
      %v5434 = vsel %vm5411, %v5372, %v5374
      %v5435 = vsel %vm5411, %v5376, %v5378
      %v5436 = vsel %vm5411, %v5380, %v5382
      %v5437 = vsel %vm5411, %v5384, %v5386
      %v5438 = vsel %vm5411, %v5388, %v5390
      %v5439 = vsel %vm5411, %v5392, %v5394
      %v5440 = vsel %vm5411, %v5396, %v5398
      %v5441 = vsel %vm5411, %v5400, %v5402
      %v5442 = vsel %vm5411, %v5404, %v5406
      %v5443 = vsel %vm5411, %v5408, %v5410
      %v5508 = vsel %vm5411, %v5286, 0.0
      %v5509 = vsel %vm5411, %v5290, 0.0
      %v5510 = vsel %vm5411, %v5294, 0.0
      %v5511 = vsel %vm5411, %v5298, 0.0
      %v5512 = vsel %vm5411, %v5302, 0.0
      %v5513 = vsel %vm5411, %v5306, 0.0
      %v5514 = vsel %vm5411, %v5310, 0.0
      %v5515 = vsel %vm5411, %v5314, 0.0
      %v5516 = vsel %vm5411, %v5318, 0.0
      %v5517 = vsel %vm5411, %v5322, 0.0
      %v5518 = vsel %vm5411, %v5326, 0.0
      %v5519 = vsel %vm5411, %v5330, 0.0
      %v5520 = vsel %vm5411, %v5334, 0.0
      %v5521 = vsel %vm5411, %v5338, 0.0
      %v5522 = vsel %vm5411, %v5342, 0.0
      %v5523 = vsel %vm5411, %v5346, 0.0
      %v5524 = vsel %vm5411, %v5350, 0.0
      %v5525 = vsel %vm5411, %v5354, 0.0
      %v5526 = vsel %vm5411, %v5358, 0.0
      %v5527 = vsel %vm5411, %v5362, 0.0
      %v5528 = vsel %vm5411, %v5366, 0.0
      %v5529 = vsel %vm5411, %v5370, 0.0
      %v5530 = vsel %vm5411, %v5374, 0.0
      %v5531 = vsel %vm5411, %v5378, 0.0
      %v5532 = vsel %vm5411, %v5382, 0.0
      %v5533 = vsel %vm5411, %v5386, 0.0
      %v5534 = vsel %vm5411, %v5390, 0.0
      %v5535 = vsel %vm5411, %v5394, 0.0
      %v5536 = vsel %vm5411, %v5398, 0.0
      %v5537 = vsel %vm5411, %v5402, 0.0
      %v5538 = vsel %vm5411, %v5406, 0.0
      %v5539 = vsel %vm5411, %v5410, 0.0
      %v5540 = vmax.f32 %v5155, %v5412
      %v5541 = vmax.f32 %v5156, %v5508
      %v5542 = vmax.f32 %v5157, %v5413
      %v5543 = vmax.f32 %v5158, %v5509
      %v5544 = vmax.f32 %v5159, %v5414
      %v5545 = vmax.f32 %v5160, %v5510
      %v5546 = vmax.f32 %v5161, %v5415
      %v5547 = vmax.f32 %v5162, %v5511
      %v5548 = vmax.f32 %v5163, %v5416
      %v5549 = vmax.f32 %v5164, %v5512
      %v5550 = vmax.f32 %v5165, %v5417
      %v5551 = vmax.f32 %v5166, %v5513
      %v5552 = vmax.f32 %v5167, %v5418
      %v5553 = vmax.f32 %v5168, %v5514
      %v5554 = vmax.f32 %v5169, %v5419
      %v5555 = vmax.f32 %v5170, %v5515
      %v5556 = vmax.f32 %v5171, %v5420
      %v5557 = vmax.f32 %v5172, %v5516
      %v5558 = vmax.f32 %v5173, %v5421
      %v5559 = vmax.f32 %v5174, %v5517
      %v5560 = vmax.f32 %v5175, %v5422
      %v5561 = vmax.f32 %v5176, %v5518
      %v5562 = vmax.f32 %v5177, %v5423
      %v5563 = vmax.f32 %v5178, %v5519
      %v5564 = vmax.f32 %v5179, %v5424
      %v5565 = vmax.f32 %v5180, %v5520
      %v5566 = vmax.f32 %v5181, %v5425
      %v5567 = vmax.f32 %v5182, %v5521
      %v5568 = vmax.f32 %v5183, %v5426
      %v5569 = vmax.f32 %v5184, %v5522
      %v5570 = vmax.f32 %v5185, %v5427
      %v5571 = vmax.f32 %v5186, %v5523
      %v5572 = vmax.f32 %v5187, %v5428
      %v5573 = vmax.f32 %v5188, %v5524
      %v5574 = vmax.f32 %v5189, %v5429
      %v5575 = vmax.f32 %v5190, %v5525
      %v5576 = vmax.f32 %v5191, %v5430
      %v5577 = vmax.f32 %v5192, %v5526
      %v5578 = vmax.f32 %v5193, %v5431
      %v5579 = vmax.f32 %v5194, %v5527
      %v5580 = vmax.f32 %v5195, %v5432
      %v5581 = vmax.f32 %v5196, %v5528
      %v5582 = vmax.f32 %v5197, %v5433
      %v5583 = vmax.f32 %v5198, %v5529
      %v5584 = vmax.f32 %v5199, %v5434
      %v5585 = vmax.f32 %v5200, %v5530
      %v5586 = vmax.f32 %v5201, %v5435
      %v5587 = vmax.f32 %v5202, %v5531
      %v5588 = vmax.f32 %v5203, %v5436
      %v5589 = vmax.f32 %v5204, %v5532
      %v5590 = vmax.f32 %v5205, %v5437
      %v5591 = vmax.f32 %v5206, %v5533
      %v5592 = vmax.f32 %v5207, %v5438
      %v5593 = vmax.f32 %v5208, %v5534
      %v5594 = vmax.f32 %v5209, %v5439
      %v5595 = vmax.f32 %v5210, %v5535
      %v5596 = vmax.f32 %v5211, %v5440
      %v5597 = vmax.f32 %v5212, %v5536
      %v5598 = vmax.f32 %v5213, %v5441
      %v5599 = vmax.f32 %v5214, %v5537
      %v5600 = vmax.f32 %v5215, %v5442
      %v5601 = vmax.f32 %v5216, %v5538
      %v5602 = vmax.f32 %v5217, %v5443
      %v5603 = vmax.f32 %v5218, %v5539
      %v5668 = vrot.slane %v5540, 2
      %v5669 = vrot.slane %v5542, 2
      %v5670 = vsel %vm3088, %v5668, %v5669
      %v5671 = vrot.slane %v5541, 2
      %v5672 = vrot.slane %v5543, 2
      %v5673 = vsel %vm3088, %v5671, %v5672
      %v5674 = vrot.slane %v5544, 2
      %v5675 = vsel %vm3088, %v5669, %v5674
      %v5676 = vrot.slane %v5545, 2
      %v5677 = vsel %vm3088, %v5672, %v5676
      %v5678 = vrot.slane %v5546, 2
      %v5679 = vsel %vm3088, %v5674, %v5678
      %v5680 = vrot.slane %v5547, 2
      %v5681 = vsel %vm3088, %v5676, %v5680
      %v5682 = vrot.slane %v5548, 2
      %v5683 = vsel %vm3088, %v5678, %v5682
      %v5684 = vrot.slane %v5549, 2
      %v5685 = vsel %vm3088, %v5680, %v5684
      %v5686 = vrot.slane %v5550, 2
      %v5687 = vsel %vm3088, %v5682, %v5686
      %v5688 = vrot.slane %v5551, 2
      %v5689 = vsel %vm3088, %v5684, %v5688
      %v5690 = vrot.slane %v5552, 2
      %v5691 = vsel %vm3088, %v5686, %v5690
      %v5692 = vrot.slane %v5553, 2
      %v5693 = vsel %vm3088, %v5688, %v5692
      %v5694 = vrot.slane %v5554, 2
      %v5695 = vsel %vm3088, %v5690, %v5694
      %v5696 = vrot.slane %v5555, 2
      %v5697 = vsel %vm3088, %v5692, %v5696
      %v5698 = vrot.slane %v5556, 2
      %v5699 = vsel %vm3088, %v5694, %v5698
      %v5700 = vrot.slane %v5557, 2
      %v5701 = vsel %vm3088, %v5696, %v5700
      %v5702 = vrot.slane %v5558, 2
      %v5703 = vsel %vm3088, %v5698, %v5702
      %v5704 = vrot.slane %v5559, 2
      %v5705 = vsel %vm3088, %v5700, %v5704
      %v5706 = vrot.slane %v5560, 2
      %v5707 = vsel %vm3088, %v5702, %v5706
      %v5708 = vrot.slane %v5561, 2
      %v5709 = vsel %vm3088, %v5704, %v5708
      %v5710 = vrot.slane %v5562, 2
      %v5711 = vsel %vm3088, %v5706, %v5710
      %v5712 = vrot.slane %v5563, 2
      %v5713 = vsel %vm3088, %v5708, %v5712
      %v5714 = vrot.slane %v5564, 2
      %v5715 = vsel %vm3088, %v5710, %v5714
      %v5716 = vrot.slane %v5565, 2
      %v5717 = vsel %vm3088, %v5712, %v5716
      %v5718 = vrot.slane %v5566, 2
      %v5719 = vsel %vm3088, %v5714, %v5718
      %v5720 = vrot.slane %v5567, 2
      %v5721 = vsel %vm3088, %v5716, %v5720
      %v5722 = vrot.slane %v5568, 2
      %v5723 = vsel %vm3088, %v5718, %v5722
      %v5724 = vrot.slane %v5569, 2
      %v5725 = vsel %vm3088, %v5720, %v5724
      %v5726 = vrot.slane %v5570, 2
      %v5727 = vsel %vm3088, %v5722, %v5726
      %v5728 = vrot.slane %v5571, 2
      %v5729 = vsel %vm3088, %v5724, %v5728
      %v5730 = vrot.slane %v5572, 2
      %v5731 = vsel %vm3088, %v5726, %v5730
      %v5732 = vrot.slane %v5573, 2
      %v5733 = vsel %vm3088, %v5728, %v5732
      %v5734 = vrot.slane %v5574, 2
      %v5735 = vsel %vm3088, %v5730, %v5734
      %v5736 = vrot.slane %v5575, 2
      %v5737 = vsel %vm3088, %v5732, %v5736
      %v5738 = vrot.slane %v5576, 2
      %v5739 = vsel %vm3088, %v5734, %v5738
      %v5740 = vrot.slane %v5577, 2
      %v5741 = vsel %vm3088, %v5736, %v5740
      %v5742 = vrot.slane %v5578, 2
      %v5743 = vsel %vm3088, %v5738, %v5742
      %v5744 = vrot.slane %v5579, 2
      %v5745 = vsel %vm3088, %v5740, %v5744
      %v5746 = vrot.slane %v5580, 2
      %v5747 = vsel %vm3088, %v5742, %v5746
      %v5748 = vrot.slane %v5581, 2
      %v5749 = vsel %vm3088, %v5744, %v5748
      %v5750 = vrot.slane %v5582, 2
      %v5751 = vsel %vm3088, %v5746, %v5750
      %v5752 = vrot.slane %v5583, 2
      %v5753 = vsel %vm3088, %v5748, %v5752
      %v5754 = vrot.slane %v5584, 2
      %v5755 = vsel %vm3088, %v5750, %v5754
      %v5756 = vrot.slane %v5585, 2
      %v5757 = vsel %vm3088, %v5752, %v5756
      %v5758 = vrot.slane %v5586, 2
      %v5759 = vsel %vm3088, %v5754, %v5758
      %v5760 = vrot.slane %v5587, 2
      %v5761 = vsel %vm3088, %v5756, %v5760
      %v5762 = vrot.slane %v5588, 2
      %v5763 = vsel %vm3088, %v5758, %v5762
      %v5764 = vrot.slane %v5589, 2
      %v5765 = vsel %vm3088, %v5760, %v5764
      %v5766 = vrot.slane %v5590, 2
      %v5767 = vsel %vm3088, %v5762, %v5766
      %v5768 = vrot.slane %v5591, 2
      %v5769 = vsel %vm3088, %v5764, %v5768
      %v5770 = vrot.slane %v5592, 2
      %v5771 = vsel %vm3088, %v5766, %v5770
      %v5772 = vrot.slane %v5593, 2
      %v5773 = vsel %vm3088, %v5768, %v5772
      %v5774 = vrot.slane %v5594, 2
      %v5775 = vsel %vm3088, %v5770, %v5774
      %v5776 = vrot.slane %v5595, 2
      %v5777 = vsel %vm3088, %v5772, %v5776
      %v5778 = vrot.slane %v5596, 2
      %v5779 = vsel %vm3088, %v5774, %v5778
      %v5780 = vrot.slane %v5597, 2
      %v5781 = vsel %vm3088, %v5776, %v5780
      %v5782 = vrot.slane %v5598, 2
      %v5783 = vsel %vm3088, %v5778, %v5782
      %v5784 = vrot.slane %v5599, 2
      %v5785 = vsel %vm3088, %v5780, %v5784
      %v5786 = vrot.slane %v5600, 2
      %v5787 = vsel %vm3088, %v5782, %v5786
      %v5788 = vrot.slane %v5601, 2
      %v5789 = vsel %vm3088, %v5784, %v5788
      %v5790 = vrot.slane %v5602, 2
      %v5791 = vsel %vm3088, %v5786, %v5790
      %v5792 = vrot.slane %v5603, 2
      %v5793 = vsel %vm3088, %v5788, %v5792
      %v5858 = vsel %vm3088, %v5790, 0.0
      %v5859 = vsel %vm3088, %v5792, 0.0
      %v5860 = vmax.f32 %v5540, %v5670
      %v5861 = vmax.f32 %v5541, %v5673
      %v5862 = vmax.f32 %v5542, %v5675
      %v5863 = vmax.f32 %v5543, %v5677
      %v5864 = vmax.f32 %v5544, %v5679
      %v5865 = vmax.f32 %v5545, %v5681
      %v5866 = vmax.f32 %v5546, %v5683
      %v5867 = vmax.f32 %v5547, %v5685
      %v5868 = vmax.f32 %v5548, %v5687
      %v5869 = vmax.f32 %v5549, %v5689
      %v5870 = vmax.f32 %v5550, %v5691
      %v5871 = vmax.f32 %v5551, %v5693
      %v5872 = vmax.f32 %v5552, %v5695
      %v5873 = vmax.f32 %v5553, %v5697
      %v5874 = vmax.f32 %v5554, %v5699
      %v5875 = vmax.f32 %v5555, %v5701
      %v5876 = vmax.f32 %v5556, %v5703
      %v5877 = vmax.f32 %v5557, %v5705
      %v5878 = vmax.f32 %v5558, %v5707
      %v5879 = vmax.f32 %v5559, %v5709
      %v5880 = vmax.f32 %v5560, %v5711
      %v5881 = vmax.f32 %v5561, %v5713
      %v5882 = vmax.f32 %v5562, %v5715
      %v5883 = vmax.f32 %v5563, %v5717
      %v5884 = vmax.f32 %v5564, %v5719
      %v5885 = vmax.f32 %v5565, %v5721
      %v5886 = vmax.f32 %v5566, %v5723
      %v5887 = vmax.f32 %v5567, %v5725
      %v5888 = vmax.f32 %v5568, %v5727
      %v5889 = vmax.f32 %v5569, %v5729
      %v5890 = vmax.f32 %v5570, %v5731
      %v5891 = vmax.f32 %v5571, %v5733
      %v5892 = vmax.f32 %v5572, %v5735
      %v5893 = vmax.f32 %v5573, %v5737
      %v5894 = vmax.f32 %v5574, %v5739
      %v5895 = vmax.f32 %v5575, %v5741
      %v5896 = vmax.f32 %v5576, %v5743
      %v5897 = vmax.f32 %v5577, %v5745
      %v5898 = vmax.f32 %v5578, %v5747
      %v5899 = vmax.f32 %v5579, %v5749
      %v5900 = vmax.f32 %v5580, %v5751
      %v5901 = vmax.f32 %v5581, %v5753
      %v5902 = vmax.f32 %v5582, %v5755
      %v5903 = vmax.f32 %v5583, %v5757
      %v5904 = vmax.f32 %v5584, %v5759
      %v5905 = vmax.f32 %v5585, %v5761
      %v5906 = vmax.f32 %v5586, %v5763
      %v5907 = vmax.f32 %v5587, %v5765
      %v5908 = vmax.f32 %v5588, %v5767
      %v5909 = vmax.f32 %v5589, %v5769
      %v5910 = vmax.f32 %v5590, %v5771
      %v5911 = vmax.f32 %v5591, %v5773
      %v5912 = vmax.f32 %v5592, %v5775
      %v5913 = vmax.f32 %v5593, %v5777
      %v5914 = vmax.f32 %v5594, %v5779
      %v5915 = vmax.f32 %v5595, %v5781
      %v5916 = vmax.f32 %v5596, %v5783
      %v5917 = vmax.f32 %v5597, %v5785
      %v5918 = vmax.f32 %v5598, %v5787
      %v5919 = vmax.f32 %v5599, %v5789
      %v5920 = vmax.f32 %v5600, %v5791
      %v5921 = vmax.f32 %v5601, %v5793
      %v5922 = vmax.f32 %v5602, %v5858
      %v5923 = vmax.f32 %v5603, %v5859
      %v5924 = vpack.c.bf16 %v5862, %v5860
      %v5925 = vpack.c.bf16 %v5863, %v5861
      %v5926 = vpack.c.bf16 %v5866, %v5864
      %v5927 = vpack.c.bf16 %v5867, %v5865
      %v5928 = vpack.c.bf16 %v5870, %v5868
      %v5929 = vpack.c.bf16 %v5871, %v5869
      %v5930 = vpack.c.bf16 %v5874, %v5872
      %v5931 = vpack.c.bf16 %v5875, %v5873
      %v5932 = vpack.c.bf16 %v5878, %v5876
      %v5933 = vpack.c.bf16 %v5879, %v5877
      %v5934 = vpack.c.bf16 %v5882, %v5880
      %v5935 = vpack.c.bf16 %v5883, %v5881
      %v5936 = vpack.c.bf16 %v5886, %v5884
      %v5937 = vpack.c.bf16 %v5887, %v5885
      %v5938 = vpack.c.bf16 %v5890, %v5888
      %v5939 = vpack.c.bf16 %v5891, %v5889
      %v5940 = vpack.c.bf16 %v5894, %v5892
      %v5941 = vpack.c.bf16 %v5895, %v5893
      %v5942 = vpack.c.bf16 %v5898, %v5896
      %v5943 = vpack.c.bf16 %v5899, %v5897
      %v5944 = vpack.c.bf16 %v5902, %v5900
      %v5945 = vpack.c.bf16 %v5903, %v5901
      %v5946 = vpack.c.bf16 %v5906, %v5904
      %v5947 = vpack.c.bf16 %v5907, %v5905
      %v5948 = vpack.c.bf16 %v5910, %v5908
      %v5949 = vpack.c.bf16 %v5911, %v5909
      %v5950 = vpack.c.bf16 %v5914, %v5912
      %v5951 = vpack.c.bf16 %v5915, %v5913
      %v5952 = vpack.c.bf16 %v5918, %v5916
      %v5953 = vpack.c.bf16 %v5919, %v5917
      %v5954 = vpack.c.bf16 %v5922, %v5920
      %v5955 = vpack.c.bf16 %v5923, %v5921
      %v5956 = vld [vmem:[%s5] sm:$0xff]
      %v5957 = vld [vmem:[%s5 + $0x8] sm:$0xff]
      %v5958 = vld [vmem:[%s5 + $0x10] sm:$0xff]
      %v5959 = vld [vmem:[%s5 + $0x18] sm:$0xff]
      %v5960 = vld [vmem:[%s5 + $0x20] sm:$0xff]
      %v5961 = vld [vmem:[%s5 + $0x28] sm:$0xff]
      %v5962 = vld [vmem:[%s5 + $0x30] sm:$0xff]
      %v5963 = vld [vmem:[%s5 + $0x38] sm:$0xff]
      %v5964 = vld [vmem:[%s5 + $0x40] sm:$0xff]
      %v5965 = vld [vmem:[%s5 + $0x48] sm:$0xff]
      %v5966 = vld [vmem:[%s5 + $0x50] sm:$0xff]
      %v5967 = vld [vmem:[%s5 + $0x58] sm:$0xff]
      %v5968 = vld [vmem:[%s5 + $0x60] sm:$0xff]
      %v5969 = vld [vmem:[%s5 + $0x68] sm:$0xff]
      %v5970 = vld [vmem:[%s5 + $0x70] sm:$0xff]
      %v5971 = vld [vmem:[%s5 + $0x78] sm:$0xff]
      %v5972 = vld [vmem:[%s5 + $0x80] sm:$0xff]
      %v5973 = vld [vmem:[%s5 + $0x88] sm:$0xff]
      %v5974 = vld [vmem:[%s5 + $0x90] sm:$0xff]
      %v5975 = vld [vmem:[%s5 + $0x98] sm:$0xff]
      %v5976 = vld [vmem:[%s5 + $0xa0] sm:$0xff]
      %v5977 = vld [vmem:[%s5 + $0xa8] sm:$0xff]
      %v5978 = vld [vmem:[%s5 + $0xb0] sm:$0xff]
      %v5979 = vld [vmem:[%s5 + $0xb8] sm:$0xff]
      %v5980 = vld [vmem:[%s5 + $0xc0] sm:$0xff]
      %v5981 = vld [vmem:[%s5 + $0xc8] sm:$0xff]
      %v5982 = vld [vmem:[%s5 + $0xd0] sm:$0xff]
      %v5983 = vld [vmem:[%s5 + $0xd8] sm:$0xff]
      %v5984 = vld [vmem:[%s5 + $0xe0] sm:$0xff]
      %v5985 = vld [vmem:[%s5 + $0xe8] sm:$0xff]
      %v5986 = vld [vmem:[%s5 + $0xf0] sm:$0xff]
      %v5987 = vld [vmem:[%s5 + $0xf8] sm:$0xff]
      %v5988 = vld [vmem:[%s5 + $0x100] sm:$0xff]
      %v5989 = vld [vmem:[%s5 + $0x108] sm:$0xff]
      %v5990 = vld [vmem:[%s5 + $0x110] sm:$0xff]
      %v5991 = vld [vmem:[%s5 + $0x118] sm:$0xff]
      %v5992 = vld [vmem:[%s5 + $0x120] sm:$0xff]
      %v5993 = vld [vmem:[%s5 + $0x128] sm:$0xff]
      %v5994 = vld [vmem:[%s5 + $0x130] sm:$0xff]
      %v5995 = vld [vmem:[%s5 + $0x138] sm:$0xff]
      %v5996 = vld [vmem:[%s5 + $0x140] sm:$0xff]
      %v5997 = vld [vmem:[%s5 + $0x148] sm:$0xff]
      %v5998 = vld [vmem:[%s5 + $0x150] sm:$0xff]
      %v5999 = vld [vmem:[%s5 + $0x158] sm:$0xff]
      %v6000 = vld [vmem:[%s5 + $0x160] sm:$0xff]
      %v6001 = vld [vmem:[%s5 + $0x168] sm:$0xff]
      %v6002 = vld [vmem:[%s5 + $0x170] sm:$0xff]
      %v6003 = vld [vmem:[%s5 + $0x178] sm:$0xff]
      %v6004 = vld [vmem:[%s5 + $0x180] sm:$0xff]
      %v6005 = vld [vmem:[%s5 + $0x188] sm:$0xff]
      %v6006 = vld [vmem:[%s5 + $0x190] sm:$0xff]
      %v6007 = vld [vmem:[%s5 + $0x198] sm:$0xff]
      %v6008 = vld [vmem:[%s5 + $0x1a0] sm:$0xff]
      %v6009 = vld [vmem:[%s5 + $0x1a8] sm:$0xff]
      %v6010 = vld [vmem:[%s5 + $0x1b0] sm:$0xff]
      %v6011 = vld [vmem:[%s5 + $0x1b8] sm:$0xff]
      %v6012 = vld [vmem:[%s5 + $0x1c0] sm:$0xff]
      %v6013 = vld [vmem:[%s5 + $0x1c8] sm:$0xff]
      %v6014 = vld [vmem:[%s5 + $0x1d0] sm:$0xff]
      %v6015 = vld [vmem:[%s5 + $0x1d8] sm:$0xff]
      %v6016 = vld [vmem:[%s5 + $0x1e0] sm:$0xff]
      %v6017 = vld [vmem:[%s5 + $0x1e8] sm:$0xff]
      %v6018 = vld [vmem:[%s5 + $0x1f0] sm:$0xff]
      %v6019 = vld [vmem:[%s5 + $0x1f8] sm:$0xff]
      %v6084 = vunpack.c.l.b16 %v5956
      %v6085 = vunpack.c.h.b16 %v5956
      %v6086 = vunpack.c.l.b16 %v5957
      %v6087 = vunpack.c.h.b16 %v5957
      %v6088 = vunpack.c.l.b16 %v5958
      %v6089 = vunpack.c.h.b16 %v5958
      %v6090 = vunpack.c.l.b16 %v5959
      %v6091 = vunpack.c.h.b16 %v5959
      %v6092 = vunpack.c.l.b16 %v5960
      %v6093 = vunpack.c.h.b16 %v5960
      %v6094 = vunpack.c.l.b16 %v5961
      %v6095 = vunpack.c.h.b16 %v5961
      %v6096 = vunpack.c.l.b16 %v5962
      %v6097 = vunpack.c.h.b16 %v5962
      %v6098 = vunpack.c.l.b16 %v5963
      %v6099 = vunpack.c.h.b16 %v5963
      %v6100 = vunpack.c.l.b16 %v5964
      %v6101 = vunpack.c.h.b16 %v5964
      %v6102 = vunpack.c.l.b16 %v5965
      %v6103 = vunpack.c.h.b16 %v5965
      %v6104 = vunpack.c.l.b16 %v5966
      %v6105 = vunpack.c.h.b16 %v5966
      %v6106 = vunpack.c.l.b16 %v5967
      %v6107 = vunpack.c.h.b16 %v5967
      %v6108 = vunpack.c.l.b16 %v5968
      %v6109 = vunpack.c.h.b16 %v5968
      %v6110 = vunpack.c.l.b16 %v5969
      %v6111 = vunpack.c.h.b16 %v5969
      %v6112 = vunpack.c.l.b16 %v5970
      %v6113 = vunpack.c.h.b16 %v5970
      %v6114 = vunpack.c.l.b16 %v5971
      %v6115 = vunpack.c.h.b16 %v5971
      %v6116 = vunpack.c.l.b16 %v5972
      %v6117 = vunpack.c.h.b16 %v5972
      %v6118 = vunpack.c.l.b16 %v5973
      %v6119 = vunpack.c.h.b16 %v5973
      %v6120 = vunpack.c.l.b16 %v5974
      %v6121 = vunpack.c.h.b16 %v5974
      %v6122 = vunpack.c.l.b16 %v5975
      %v6123 = vunpack.c.h.b16 %v5975
      %v6124 = vunpack.c.l.b16 %v5976
      %v6125 = vunpack.c.h.b16 %v5976
      %v6126 = vunpack.c.l.b16 %v5977
      %v6127 = vunpack.c.h.b16 %v5977
      %v6128 = vunpack.c.l.b16 %v5978
      %v6129 = vunpack.c.h.b16 %v5978
      %v6130 = vunpack.c.l.b16 %v5979
      %v6131 = vunpack.c.h.b16 %v5979
      %v6132 = vunpack.c.l.b16 %v5980
      %v6133 = vunpack.c.h.b16 %v5980
      %v6134 = vunpack.c.l.b16 %v5981
      %v6135 = vunpack.c.h.b16 %v5981
      %v6136 = vunpack.c.l.b16 %v5982
      %v6137 = vunpack.c.h.b16 %v5982
      %v6138 = vunpack.c.l.b16 %v5983
      %v6139 = vunpack.c.h.b16 %v5983
      %v6140 = vunpack.c.l.b16 %v5984
      %v6141 = vunpack.c.h.b16 %v5984
      %v6142 = vunpack.c.l.b16 %v5985
      %v6143 = vunpack.c.h.b16 %v5985
      %v6144 = vunpack.c.l.b16 %v5986
      %v6145 = vunpack.c.h.b16 %v5986
      %v6146 = vunpack.c.l.b16 %v5987
      %v6147 = vunpack.c.h.b16 %v5987
      %v6148 = vunpack.c.l.b16 %v5988
      %v6149 = vunpack.c.h.b16 %v5988
      %v6150 = vunpack.c.l.b16 %v5989
      %v6151 = vunpack.c.h.b16 %v5989
      %v6152 = vunpack.c.l.b16 %v5990
      %v6153 = vunpack.c.h.b16 %v5990
      %v6154 = vunpack.c.l.b16 %v5991
      %v6155 = vunpack.c.h.b16 %v5991
      %v6156 = vunpack.c.l.b16 %v5992
      %v6157 = vunpack.c.h.b16 %v5992
      %v6158 = vunpack.c.l.b16 %v5993
      %v6159 = vunpack.c.h.b16 %v5993
      %v6160 = vunpack.c.l.b16 %v5994
      %v6161 = vunpack.c.h.b16 %v5994
      %v6162 = vunpack.c.l.b16 %v5995
      %v6163 = vunpack.c.h.b16 %v5995
      %v6164 = vunpack.c.l.b16 %v5996
      %v6165 = vunpack.c.h.b16 %v5996
      %v6166 = vunpack.c.l.b16 %v5997
      %v6167 = vunpack.c.h.b16 %v5997
      %v6168 = vunpack.c.l.b16 %v5998
      %v6169 = vunpack.c.h.b16 %v5998
      %v6170 = vunpack.c.l.b16 %v5999
      %v6171 = vunpack.c.h.b16 %v5999
      %v6172 = vunpack.c.l.b16 %v6000
      %v6173 = vunpack.c.h.b16 %v6000
      %v6174 = vunpack.c.l.b16 %v6001
      %v6175 = vunpack.c.h.b16 %v6001
      %v6176 = vunpack.c.l.b16 %v6002
      %v6177 = vunpack.c.h.b16 %v6002
      %v6178 = vunpack.c.l.b16 %v6003
      %v6179 = vunpack.c.h.b16 %v6003
      %v6180 = vunpack.c.l.b16 %v6004
      %v6181 = vunpack.c.h.b16 %v6004
      %v6182 = vunpack.c.l.b16 %v6005
      %v6183 = vunpack.c.h.b16 %v6005
      %v6184 = vunpack.c.l.b16 %v6006
      %v6185 = vunpack.c.h.b16 %v6006
      %v6186 = vunpack.c.l.b16 %v6007
      %v6187 = vunpack.c.h.b16 %v6007
      %v6188 = vunpack.c.l.b16 %v6008
      %v6189 = vunpack.c.h.b16 %v6008
      %v6190 = vunpack.c.l.b16 %v6009
      %v6191 = vunpack.c.h.b16 %v6009
      %v6192 = vunpack.c.l.b16 %v6010
      %v6193 = vunpack.c.h.b16 %v6010
      %v6194 = vunpack.c.l.b16 %v6011
      %v6195 = vunpack.c.h.b16 %v6011
      %v6196 = vunpack.c.l.b16 %v6012
      %v6197 = vunpack.c.h.b16 %v6012
      %v6198 = vunpack.c.l.b16 %v6013
      %v6199 = vunpack.c.h.b16 %v6013
      %v6200 = vunpack.c.l.b16 %v6014
      %v6201 = vunpack.c.h.b16 %v6014
      %v6202 = vunpack.c.l.b16 %v6015
      %v6203 = vunpack.c.h.b16 %v6015
      %v6204 = vunpack.c.l.b16 %v6016
      %v6205 = vunpack.c.h.b16 %v6016
      %v6206 = vunpack.c.l.b16 %v6017
      %v6207 = vunpack.c.h.b16 %v6017
      %v6208 = vunpack.c.l.b16 %v6018
      %v6209 = vunpack.c.h.b16 %v6018
      %v6210 = vunpack.c.l.b16 %v6019
      %v6211 = vunpack.c.h.b16 %v6019
      %v6212 = vpack.c.b16 %v6088, %v6084
      %v6213 = vpack.c.b16 %v6089, %v6085
      %v6214 = vpack.c.b16 %v6090, %v6086
      %v6215 = vpack.c.b16 %v6091, %v6087
      %v6216 = vpack.c.b16 %v6096, %v6092
      %v6217 = vpack.c.b16 %v6097, %v6093
      %v6218 = vpack.c.b16 %v6098, %v6094
      %v6219 = vpack.c.b16 %v6099, %v6095
      %v6220 = vpack.c.b16 %v6104, %v6100
      %v6221 = vpack.c.b16 %v6105, %v6101
      %v6222 = vpack.c.b16 %v6106, %v6102
      %v6223 = vpack.c.b16 %v6107, %v6103
      %v6224 = vpack.c.b16 %v6112, %v6108
      %v6225 = vpack.c.b16 %v6113, %v6109
      %v6226 = vpack.c.b16 %v6114, %v6110
      %v6227 = vpack.c.b16 %v6115, %v6111
      %v6228 = vpack.c.b16 %v6120, %v6116
      %v6229 = vpack.c.b16 %v6121, %v6117
      %v6230 = vpack.c.b16 %v6122, %v6118
      %v6231 = vpack.c.b16 %v6123, %v6119
      %v6232 = vpack.c.b16 %v6128, %v6124
      %v6233 = vpack.c.b16 %v6129, %v6125
      %v6234 = vpack.c.b16 %v6130, %v6126
      %v6235 = vpack.c.b16 %v6131, %v6127
      %v6236 = vpack.c.b16 %v6136, %v6132
      %v6237 = vpack.c.b16 %v6137, %v6133
      %v6238 = vpack.c.b16 %v6138, %v6134
      %v6239 = vpack.c.b16 %v6139, %v6135
      %v6240 = vpack.c.b16 %v6144, %v6140
      %v6241 = vpack.c.b16 %v6145, %v6141
      %v6242 = vpack.c.b16 %v6146, %v6142
      %v6243 = vpack.c.b16 %v6147, %v6143
      %v6244 = vpack.c.b16 %v6152, %v6148
      %v6245 = vpack.c.b16 %v6153, %v6149
      %v6246 = vpack.c.b16 %v6154, %v6150
      %v6247 = vpack.c.b16 %v6155, %v6151
      %v6248 = vpack.c.b16 %v6160, %v6156
      %v6249 = vpack.c.b16 %v6161, %v6157
      %v6250 = vpack.c.b16 %v6162, %v6158
      %v6251 = vpack.c.b16 %v6163, %v6159
      %v6252 = vpack.c.b16 %v6168, %v6164
      %v6253 = vpack.c.b16 %v6169, %v6165
      %v6254 = vpack.c.b16 %v6170, %v6166
      %v6255 = vpack.c.b16 %v6171, %v6167
      %v6256 = vpack.c.b16 %v6176, %v6172
      %v6257 = vpack.c.b16 %v6177, %v6173
      %v6258 = vpack.c.b16 %v6178, %v6174
      %v6259 = vpack.c.b16 %v6179, %v6175
      %v6260 = vpack.c.b16 %v6184, %v6180
      %v6261 = vpack.c.b16 %v6185, %v6181
      %v6262 = vpack.c.b16 %v6186, %v6182
      %v6263 = vpack.c.b16 %v6187, %v6183
      %v6264 = vpack.c.b16 %v6192, %v6188
      %v6265 = vpack.c.b16 %v6193, %v6189
      %v6266 = vpack.c.b16 %v6194, %v6190
      %v6267 = vpack.c.b16 %v6195, %v6191
      %v6268 = vpack.c.b16 %v6200, %v6196
      %v6269 = vpack.c.b16 %v6201, %v6197
      %v6270 = vpack.c.b16 %v6202, %v6198
      %v6271 = vpack.c.b16 %v6203, %v6199
      %v6272 = vpack.c.b16 %v6208, %v6204
      %v6273 = vpack.c.b16 %v6209, %v6205
      %v6274 = vpack.c.b16 %v6210, %v6206
      %v6275 = vpack.c.b16 %v6211, %v6207
      %6340 = vmatpush.bf16.msra.mxu0 %v6240
      %6341 = vmatpush.bf16.msra.mxu0 %v6236
      %6342 = vmatpush.bf16.msra.mxu0 %v6232
      %6343 = vmatpush.bf16.msra.mxu0 %v6228
      %6344 = vmatpush.bf16.msra.mxu0 %v6224
      %6345 = vmatpush.bf16.msra.mxu0 %v6220
      %6346 = vmatpush.bf16.msra.mxu0 %v6216
      %6347 = vmatpush.bf16.msra.mxu0 %v6212
      %6348 = vmatmul.bf16.gmra.mxu0 %v5924
      %v6349 = vpop.f32.mrf.mxu0
      %v6350 = vadd.f32 0.0, %v6349
      %v6351 = vpop.f32.mrf.mxu0
      %v6352 = vadd.f32 0.0, %v6351
      %6353 = vmatmul.bf16.gmra.mxu0 %v5926
      %v6354 = vpop.f32.mrf.mxu0
      %v6355 = vadd.f32 0.0, %v6354
      %v6356 = vpop.f32.mrf.mxu0
      %v6357 = vadd.f32 0.0, %v6356
      %6358 = vmatmul.bf16.gmra.mxu0 %v5928
      %v6359 = vpop.f32.mrf.mxu0
      %v6360 = vadd.f32 0.0, %v6359
      %v6361 = vpop.f32.mrf.mxu0
      %v6362 = vadd.f32 0.0, %v6361
      %6363 = vmatmul.bf16.gmra.mxu0 %v5930
      %v6364 = vpop.f32.mrf.mxu0
      %v6365 = vadd.f32 0.0, %v6364
      %v6366 = vpop.f32.mrf.mxu0
      %v6367 = vadd.f32 0.0, %v6366
      %6368 = vmatmul.bf16.gmra.mxu0 %v5932
      %v6369 = vpop.f32.mrf.mxu0
      %v6370 = vadd.f32 0.0, %v6369
      %v6371 = vpop.f32.mrf.mxu0
      %v6372 = vadd.f32 0.0, %v6371
      %6373 = vmatmul.bf16.gmra.mxu0 %v5934
      %v6374 = vpop.f32.mrf.mxu0
      %v6375 = vadd.f32 0.0, %v6374
      %v6376 = vpop.f32.mrf.mxu0
      %v6377 = vadd.f32 0.0, %v6376
      %6378 = vmatmul.bf16.gmra.mxu0 %v5936
      %v6379 = vpop.f32.mrf.mxu0
      %v6380 = vadd.f32 0.0, %v6379
      %v6381 = vpop.f32.mrf.mxu0
      %v6382 = vadd.f32 0.0, %v6381
      %6383 = vmatmul.bf16.gmra.mxu0 %v5938
      %v6384 = vpop.f32.mrf.mxu0
      %v6385 = vadd.f32 0.0, %v6384
      %v6386 = vpop.f32.mrf.mxu0
      %v6387 = vadd.f32 0.0, %v6386
      %6388 = vmatmul.bf16.gmra.mxu0 %v5940
      %v6389 = vpop.f32.mrf.mxu0
      %v6390 = vadd.f32 0.0, %v6389
      %v6391 = vpop.f32.mrf.mxu0
      %v6392 = vadd.f32 0.0, %v6391
      %6393 = vmatmul.bf16.gmra.mxu0 %v5942
      %v6394 = vpop.f32.mrf.mxu0
      %v6395 = vadd.f32 0.0, %v6394
      %v6396 = vpop.f32.mrf.mxu0
      %v6397 = vadd.f32 0.0, %v6396
      %6398 = vmatmul.bf16.gmra.mxu0 %v5944
      %v6399 = vpop.f32.mrf.mxu0
      %v6400 = vadd.f32 0.0, %v6399
      %v6401 = vpop.f32.mrf.mxu0
      %v6402 = vadd.f32 0.0, %v6401
      %6403 = vmatmul.bf16.gmra.mxu0 %v5946
      %v6404 = vpop.f32.mrf.mxu0
      %v6405 = vadd.f32 0.0, %v6404
      %v6406 = vpop.f32.mrf.mxu0
      %v6407 = vadd.f32 0.0, %v6406
      %6408 = vmatmul.bf16.gmra.mxu0 %v5948
      %v6409 = vpop.f32.mrf.mxu0
      %v6410 = vadd.f32 0.0, %v6409
      %v6411 = vpop.f32.mrf.mxu0
      %v6412 = vadd.f32 0.0, %v6411
      %6413 = vmatmul.bf16.gmra.mxu0 %v5950
      %v6414 = vpop.f32.mrf.mxu0
      %v6415 = vadd.f32 0.0, %v6414
      %v6416 = vpop.f32.mrf.mxu0
      %v6417 = vadd.f32 0.0, %v6416
      %6418 = vmatmul.bf16.gmra.mxu0 %v5952
      %v6419 = vpop.f32.mrf.mxu0
      %v6420 = vadd.f32 0.0, %v6419
      %v6421 = vpop.f32.mrf.mxu0
      %v6422 = vadd.f32 0.0, %v6421
      %6423 = vmatmul.bf16.gmra.mxu0 %v5954
      %v6424 = vpop.f32.mrf.mxu0
      %v6425 = vadd.f32 0.0, %v6424
      %v6426 = vpop.f32.mrf.mxu0
      %v6427 = vadd.f32 0.0, %v6426
      %6428 = vdwg.mxu0
      %6429 = vmatpush.bf16.msra.mxu0 %v6272
      %6430 = vmatpush.bf16.msra.mxu0 %v6268
      %6431 = vmatpush.bf16.msra.mxu0 %v6264
      %6432 = vmatpush.bf16.msra.mxu0 %v6260
      %6433 = vmatpush.bf16.msra.mxu0 %v6256
      %6434 = vmatpush.bf16.msra.mxu0 %v6252
      %6435 = vmatpush.bf16.msra.mxu0 %v6248
      %6436 = vmatpush.bf16.msra.mxu0 %v6244
      %6437 = vmatmul.bf16.gmra.mxu0 %v5925
      %v6438 = vpop.f32.mrf.mxu0
      %v6439 = vadd.f32 %v6350, %v6438
      %v6440 = vpop.f32.mrf.mxu0
      %v6441 = vadd.f32 %v6352, %v6440
      %6442 = vmatmul.bf16.gmra.mxu0 %v5927
      %v6443 = vpop.f32.mrf.mxu0
      %v6444 = vadd.f32 %v6355, %v6443
      %v6445 = vpop.f32.mrf.mxu0
      %v6446 = vadd.f32 %v6357, %v6445
      %6447 = vmatmul.bf16.gmra.mxu0 %v5929
      %v6448 = vpop.f32.mrf.mxu0
      %v6449 = vadd.f32 %v6360, %v6448
      %v6450 = vpop.f32.mrf.mxu0
      %v6451 = vadd.f32 %v6362, %v6450
      %6452 = vmatmul.bf16.gmra.mxu0 %v5931
      %v6453 = vpop.f32.mrf.mxu0
      %v6454 = vadd.f32 %v6365, %v6453
      %v6455 = vpop.f32.mrf.mxu0
      %v6456 = vadd.f32 %v6367, %v6455
      %6457 = vmatmul.bf16.gmra.mxu0 %v5933
      %v6458 = vpop.f32.mrf.mxu0
      %v6459 = vadd.f32 %v6370, %v6458
      %v6460 = vpop.f32.mrf.mxu0
      %v6461 = vadd.f32 %v6372, %v6460
      %6462 = vmatmul.bf16.gmra.mxu0 %v5935
      %v6463 = vpop.f32.mrf.mxu0
      %v6464 = vadd.f32 %v6375, %v6463
      %v6465 = vpop.f32.mrf.mxu0
      %v6466 = vadd.f32 %v6377, %v6465
      %6467 = vmatmul.bf16.gmra.mxu0 %v5937
      %v6468 = vpop.f32.mrf.mxu0
      %v6469 = vadd.f32 %v6380, %v6468
      %v6470 = vpop.f32.mrf.mxu0
      %v6471 = vadd.f32 %v6382, %v6470
      %6472 = vmatmul.bf16.gmra.mxu0 %v5939
      %v6473 = vpop.f32.mrf.mxu0
      %v6474 = vadd.f32 %v6385, %v6473
      %v6475 = vpop.f32.mrf.mxu0
      %v6476 = vadd.f32 %v6387, %v6475
      %6477 = vmatmul.bf16.gmra.mxu0 %v5941
      %v6478 = vpop.f32.mrf.mxu0
      %v6479 = vadd.f32 %v6390, %v6478
      %v6480 = vpop.f32.mrf.mxu0
      %v6481 = vadd.f32 %v6392, %v6480
      %6482 = vmatmul.bf16.gmra.mxu0 %v5943
      %v6483 = vpop.f32.mrf.mxu0
      %v6484 = vadd.f32 %v6395, %v6483
      %v6485 = vpop.f32.mrf.mxu0
      %v6486 = vadd.f32 %v6397, %v6485
      %6487 = vmatmul.bf16.gmra.mxu0 %v5945
      %v6488 = vpop.f32.mrf.mxu0
      %v6489 = vadd.f32 %v6400, %v6488
      %v6490 = vpop.f32.mrf.mxu0
      %v6491 = vadd.f32 %v6402, %v6490
      %6492 = vmatmul.bf16.gmra.mxu0 %v5947
      %v6493 = vpop.f32.mrf.mxu0
      %v6494 = vadd.f32 %v6405, %v6493
      %v6495 = vpop.f32.mrf.mxu0
      %v6496 = vadd.f32 %v6407, %v6495
      %6497 = vmatmul.bf16.gmra.mxu0 %v5949
      %v6498 = vpop.f32.mrf.mxu0
      %v6499 = vadd.f32 %v6410, %v6498
      %v6500 = vpop.f32.mrf.mxu0
      %v6501 = vadd.f32 %v6412, %v6500
      %6502 = vmatmul.bf16.gmra.mxu0 %v5951
      %v6503 = vpop.f32.mrf.mxu0
      %v6504 = vadd.f32 %v6415, %v6503
      %v6505 = vpop.f32.mrf.mxu0
      %v6506 = vadd.f32 %v6417, %v6505
      %6507 = vmatmul.bf16.gmra.mxu0 %v5953
      %v6508 = vpop.f32.mrf.mxu0
      %v6509 = vadd.f32 %v6420, %v6508
      %v6510 = vpop.f32.mrf.mxu0
      %v6511 = vadd.f32 %v6422, %v6510
      %6512 = vmatmul.bf16.gmra.mxu0 %v5955
      %v6513 = vpop.f32.mrf.mxu0
      %v6514 = vadd.f32 %v6425, %v6513
      %v6515 = vpop.f32.mrf.mxu0
      %v6516 = vadd.f32 %v6427, %v6515
      %6517 = vdwg.mxu0
      %6518 = vmatpush.bf16.msra.mxu0 %v6241
      %6519 = vmatpush.bf16.msra.mxu0 %v6237
      %6520 = vmatpush.bf16.msra.mxu0 %v6233
      %6521 = vmatpush.bf16.msra.mxu0 %v6229
      %6522 = vmatpush.bf16.msra.mxu0 %v6225
      %6523 = vmatpush.bf16.msra.mxu0 %v6221
      %6524 = vmatpush.bf16.msra.mxu0 %v6217
      %6525 = vmatpush.bf16.msra.mxu0 %v6213
      %6526 = vmatmul.bf16.gmra.mxu0 %v5924
      %v6527 = vpop.f32.mrf.mxu0
      %v6528 = vadd.f32 0.0, %v6527
      %v6529 = vpop.f32.mrf.mxu0
      %v6530 = vadd.f32 0.0, %v6529
      %6531 = vmatmul.bf16.gmra.mxu0 %v5926
      %v6532 = vpop.f32.mrf.mxu0
      %v6533 = vadd.f32 0.0, %v6532
      %v6534 = vpop.f32.mrf.mxu0
      %v6535 = vadd.f32 0.0, %v6534
      %6536 = vmatmul.bf16.gmra.mxu0 %v5928
      %v6537 = vpop.f32.mrf.mxu0
      %v6538 = vadd.f32 0.0, %v6537
      %v6539 = vpop.f32.mrf.mxu0
      %v6540 = vadd.f32 0.0, %v6539
      %6541 = vmatmul.bf16.gmra.mxu0 %v5930
      %v6542 = vpop.f32.mrf.mxu0
      %v6543 = vadd.f32 0.0, %v6542
      %v6544 = vpop.f32.mrf.mxu0
      %v6545 = vadd.f32 0.0, %v6544
      %6546 = vmatmul.bf16.gmra.mxu0 %v5932
      %v6547 = vpop.f32.mrf.mxu0
      %v6548 = vadd.f32 0.0, %v6547
      %v6549 = vpop.f32.mrf.mxu0
      %v6550 = vadd.f32 0.0, %v6549
      %6551 = vmatmul.bf16.gmra.mxu0 %v5934
      %v6552 = vpop.f32.mrf.mxu0
      %v6553 = vadd.f32 0.0, %v6552
      %v6554 = vpop.f32.mrf.mxu0
      %v6555 = vadd.f32 0.0, %v6554
      %6556 = vmatmul.bf16.gmra.mxu0 %v5936
      %v6557 = vpop.f32.mrf.mxu0
      %v6558 = vadd.f32 0.0, %v6557
      %v6559 = vpop.f32.mrf.mxu0
      %v6560 = vadd.f32 0.0, %v6559
      %6561 = vmatmul.bf16.gmra.mxu0 %v5938
      %v6562 = vpop.f32.mrf.mxu0
      %v6563 = vadd.f32 0.0, %v6562
      %v6564 = vpop.f32.mrf.mxu0
      %v6565 = vadd.f32 0.0, %v6564
      %6566 = vmatmul.bf16.gmra.mxu0 %v5940
      %v6567 = vpop.f32.mrf.mxu0
      %v6568 = vadd.f32 0.0, %v6567
      %v6569 = vpop.f32.mrf.mxu0
      %v6570 = vadd.f32 0.0, %v6569
      %6571 = vmatmul.bf16.gmra.mxu0 %v5942
      %v6572 = vpop.f32.mrf.mxu0
      %v6573 = vadd.f32 0.0, %v6572
      %v6574 = vpop.f32.mrf.mxu0
      %v6575 = vadd.f32 0.0, %v6574
      %6576 = vmatmul.bf16.gmra.mxu0 %v5944
      %v6577 = vpop.f32.mrf.mxu0
      %v6578 = vadd.f32 0.0, %v6577
      %v6579 = vpop.f32.mrf.mxu0
      %v6580 = vadd.f32 0.0, %v6579
      %6581 = vmatmul.bf16.gmra.mxu0 %v5946
      %v6582 = vpop.f32.mrf.mxu0
      %v6583 = vadd.f32 0.0, %v6582
      %v6584 = vpop.f32.mrf.mxu0
      %v6585 = vadd.f32 0.0, %v6584
      %6586 = vmatmul.bf16.gmra.mxu0 %v5948
      %v6587 = vpop.f32.mrf.mxu0
      %v6588 = vadd.f32 0.0, %v6587
      %v6589 = vpop.f32.mrf.mxu0
      %v6590 = vadd.f32 0.0, %v6589
      %6591 = vmatmul.bf16.gmra.mxu0 %v5950
      %v6592 = vpop.f32.mrf.mxu0
      %v6593 = vadd.f32 0.0, %v6592
      %v6594 = vpop.f32.mrf.mxu0
      %v6595 = vadd.f32 0.0, %v6594
      %6596 = vmatmul.bf16.gmra.mxu0 %v5952
      %v6597 = vpop.f32.mrf.mxu0
      %v6598 = vadd.f32 0.0, %v6597
      %v6599 = vpop.f32.mrf.mxu0
      %v6600 = vadd.f32 0.0, %v6599
      %6601 = vmatmul.bf16.gmra.mxu0 %v5954
      %v6602 = vpop.f32.mrf.mxu0
      %v6603 = vadd.f32 0.0, %v6602
      %v6604 = vpop.f32.mrf.mxu0
      %v6605 = vadd.f32 0.0, %v6604
      %6606 = vdwg.mxu0
      %6607 = vmatpush.bf16.msra.mxu0 %v6273
      %6608 = vmatpush.bf16.msra.mxu0 %v6269
      %6609 = vmatpush.bf16.msra.mxu0 %v6265
      %6610 = vmatpush.bf16.msra.mxu0 %v6261
      %6611 = vmatpush.bf16.msra.mxu0 %v6257
      %6612 = vmatpush.bf16.msra.mxu0 %v6253
      %6613 = vmatpush.bf16.msra.mxu0 %v6249
      %6614 = vmatpush.bf16.msra.mxu0 %v6245
      %6615 = vmatmul.bf16.gmra.mxu0 %v5925
      %v6616 = vpop.f32.mrf.mxu0
      %v6617 = vadd.f32 %v6528, %v6616
      %v6618 = vpop.f32.mrf.mxu0
      %v6619 = vadd.f32 %v6530, %v6618
      %6620 = vmatmul.bf16.gmra.mxu0 %v5927
      %v6621 = vpop.f32.mrf.mxu0
      %v6622 = vadd.f32 %v6533, %v6621
      %v6623 = vpop.f32.mrf.mxu0
      %v6624 = vadd.f32 %v6535, %v6623
      %6625 = vmatmul.bf16.gmra.mxu0 %v5929
      %v6626 = vpop.f32.mrf.mxu0
      %v6627 = vadd.f32 %v6538, %v6626
      %v6628 = vpop.f32.mrf.mxu0
      %v6629 = vadd.f32 %v6540, %v6628
      %6630 = vmatmul.bf16.gmra.mxu0 %v5931
      %v6631 = vpop.f32.mrf.mxu0
      %v6632 = vadd.f32 %v6543, %v6631
      %v6633 = vpop.f32.mrf.mxu0
      %v6634 = vadd.f32 %v6545, %v6633
      %6635 = vmatmul.bf16.gmra.mxu0 %v5933
      %v6636 = vpop.f32.mrf.mxu0
      %v6637 = vadd.f32 %v6548, %v6636
      %v6638 = vpop.f32.mrf.mxu0
      %v6639 = vadd.f32 %v6550, %v6638
      %6640 = vmatmul.bf16.gmra.mxu0 %v5935
      %v6641 = vpop.f32.mrf.mxu0
      %v6642 = vadd.f32 %v6553, %v6641
      %v6643 = vpop.f32.mrf.mxu0
      %v6644 = vadd.f32 %v6555, %v6643
      %6645 = vmatmul.bf16.gmra.mxu0 %v5937
      %v6646 = vpop.f32.mrf.mxu0
      %v6647 = vadd.f32 %v6558, %v6646
      %v6648 = vpop.f32.mrf.mxu0
      %v6649 = vadd.f32 %v6560, %v6648
      %6650 = vmatmul.bf16.gmra.mxu0 %v5939
      %v6651 = vpop.f32.mrf.mxu0
      %v6652 = vadd.f32 %v6563, %v6651
      %v6653 = vpop.f32.mrf.mxu0
      %v6654 = vadd.f32 %v6565, %v6653
      %6655 = vmatmul.bf16.gmra.mxu0 %v5941
      %v6656 = vpop.f32.mrf.mxu0
      %v6657 = vadd.f32 %v6568, %v6656
      %v6658 = vpop.f32.mrf.mxu0
      %v6659 = vadd.f32 %v6570, %v6658
      %6660 = vmatmul.bf16.gmra.mxu0 %v5943
      %v6661 = vpop.f32.mrf.mxu0
      %v6662 = vadd.f32 %v6573, %v6661
      %v6663 = vpop.f32.mrf.mxu0
      %v6664 = vadd.f32 %v6575, %v6663
      %6665 = vmatmul.bf16.gmra.mxu0 %v5945
      %v6666 = vpop.f32.mrf.mxu0
      %v6667 = vadd.f32 %v6578, %v6666
      %v6668 = vpop.f32.mrf.mxu0
      %v6669 = vadd.f32 %v6580, %v6668
      %6670 = vmatmul.bf16.gmra.mxu0 %v5947
      %v6671 = vpop.f32.mrf.mxu0
      %v6672 = vadd.f32 %v6583, %v6671
      %v6673 = vpop.f32.mrf.mxu0
      %v6674 = vadd.f32 %v6585, %v6673
      %6675 = vmatmul.bf16.gmra.mxu0 %v5949
      %v6676 = vpop.f32.mrf.mxu0
      %v6677 = vadd.f32 %v6588, %v6676
      %v6678 = vpop.f32.mrf.mxu0
      %v6679 = vadd.f32 %v6590, %v6678
      %6680 = vmatmul.bf16.gmra.mxu0 %v5951
      %v6681 = vpop.f32.mrf.mxu0
      %v6682 = vadd.f32 %v6593, %v6681
      %v6683 = vpop.f32.mrf.mxu0
      %v6684 = vadd.f32 %v6595, %v6683
      %6685 = vmatmul.bf16.gmra.mxu0 %v5953
      %v6686 = vpop.f32.mrf.mxu0
      %v6687 = vadd.f32 %v6598, %v6686
      %v6688 = vpop.f32.mrf.mxu0
      %v6689 = vadd.f32 %v6600, %v6688
      %6690 = vmatmul.bf16.gmra.mxu0 %v5955
      %v6691 = vpop.f32.mrf.mxu0
      %v6692 = vadd.f32 %v6603, %v6691
      %v6693 = vpop.f32.mrf.mxu0
      %v6694 = vadd.f32 %v6605, %v6693
      %6695 = vdwg.mxu0
      %6696 = vmatpush.bf16.msra.mxu0 %v6242
      %6697 = vmatpush.bf16.msra.mxu0 %v6238
      %6698 = vmatpush.bf16.msra.mxu0 %v6234
      %6699 = vmatpush.bf16.msra.mxu0 %v6230
      %6700 = vmatpush.bf16.msra.mxu0 %v6226
      %6701 = vmatpush.bf16.msra.mxu0 %v6222
      %6702 = vmatpush.bf16.msra.mxu0 %v6218
      %6703 = vmatpush.bf16.msra.mxu0 %v6214
      %6704 = vmatmul.bf16.gmra.mxu0 %v5924
      %v6705 = vpop.f32.mrf.mxu0
      %v6706 = vadd.f32 0.0, %v6705
      %v6707 = vpop.f32.mrf.mxu0
      %v6708 = vadd.f32 0.0, %v6707
      %6709 = vmatmul.bf16.gmra.mxu0 %v5926
      %v6710 = vpop.f32.mrf.mxu0
      %v6711 = vadd.f32 0.0, %v6710
      %v6712 = vpop.f32.mrf.mxu0
      %v6713 = vadd.f32 0.0, %v6712
      %6714 = vmatmul.bf16.gmra.mxu0 %v5928
      %v6715 = vpop.f32.mrf.mxu0
      %v6716 = vadd.f32 0.0, %v6715
      %v6717 = vpop.f32.mrf.mxu0
      %v6718 = vadd.f32 0.0, %v6717
      %6719 = vmatmul.bf16.gmra.mxu0 %v5930
      %v6720 = vpop.f32.mrf.mxu0
      %v6721 = vadd.f32 0.0, %v6720
      %v6722 = vpop.f32.mrf.mxu0
      %v6723 = vadd.f32 0.0, %v6722
      %6724 = vmatmul.bf16.gmra.mxu0 %v5932
      %v6725 = vpop.f32.mrf.mxu0
      %v6726 = vadd.f32 0.0, %v6725
      %v6727 = vpop.f32.mrf.mxu0
      %v6728 = vadd.f32 0.0, %v6727
      %6729 = vmatmul.bf16.gmra.mxu0 %v5934
      %v6730 = vpop.f32.mrf.mxu0
      %v6731 = vadd.f32 0.0, %v6730
      %v6732 = vpop.f32.mrf.mxu0
      %v6733 = vadd.f32 0.0, %v6732
      %6734 = vmatmul.bf16.gmra.mxu0 %v5936
      %v6735 = vpop.f32.mrf.mxu0
      %v6736 = vadd.f32 0.0, %v6735
      %v6737 = vpop.f32.mrf.mxu0
      %v6738 = vadd.f32 0.0, %v6737
      %6739 = vmatmul.bf16.gmra.mxu0 %v5938
      %v6740 = vpop.f32.mrf.mxu0
      %v6741 = vadd.f32 0.0, %v6740
      %v6742 = vpop.f32.mrf.mxu0
      %v6743 = vadd.f32 0.0, %v6742
      %6744 = vmatmul.bf16.gmra.mxu0 %v5940
      %v6745 = vpop.f32.mrf.mxu0
      %v6746 = vadd.f32 0.0, %v6745
      %v6747 = vpop.f32.mrf.mxu0
      %v6748 = vadd.f32 0.0, %v6747
      %6749 = vmatmul.bf16.gmra.mxu0 %v5942
      %v6750 = vpop.f32.mrf.mxu0
      %v6751 = vadd.f32 0.0, %v6750
      %v6752 = vpop.f32.mrf.mxu0
      %v6753 = vadd.f32 0.0, %v6752
      %6754 = vmatmul.bf16.gmra.mxu0 %v5944
      %v6755 = vpop.f32.mrf.mxu0
      %v6756 = vadd.f32 0.0, %v6755
      %v6757 = vpop.f32.mrf.mxu0
      %v6758 = vadd.f32 0.0, %v6757
      %6759 = vmatmul.bf16.gmra.mxu0 %v5946
      %v6760 = vpop.f32.mrf.mxu0
      %v6761 = vadd.f32 0.0, %v6760
      %v6762 = vpop.f32.mrf.mxu0
      %v6763 = vadd.f32 0.0, %v6762
      %6764 = vmatmul.bf16.gmra.mxu0 %v5948
      %v6765 = vpop.f32.mrf.mxu0
      %v6766 = vadd.f32 0.0, %v6765
      %v6767 = vpop.f32.mrf.mxu0
      %v6768 = vadd.f32 0.0, %v6767
      %6769 = vmatmul.bf16.gmra.mxu0 %v5950
      %v6770 = vpop.f32.mrf.mxu0
      %v6771 = vadd.f32 0.0, %v6770
      %v6772 = vpop.f32.mrf.mxu0
      %v6773 = vadd.f32 0.0, %v6772
      %6774 = vmatmul.bf16.gmra.mxu0 %v5952
      %v6775 = vpop.f32.mrf.mxu0
      %v6776 = vadd.f32 0.0, %v6775
      %v6777 = vpop.f32.mrf.mxu0
      %v6778 = vadd.f32 0.0, %v6777
      %6779 = vmatmul.bf16.gmra.mxu0 %v5954
      %v6780 = vpop.f32.mrf.mxu0
      %v6781 = vadd.f32 0.0, %v6780
      %v6782 = vpop.f32.mrf.mxu0
      %v6783 = vadd.f32 0.0, %v6782
      %6784 = vdwg.mxu0
      %6785 = vmatpush.bf16.msra.mxu0 %v6274
      %6786 = vmatpush.bf16.msra.mxu0 %v6270
      %6787 = vmatpush.bf16.msra.mxu0 %v6266
      %6788 = vmatpush.bf16.msra.mxu0 %v6262
      %6789 = vmatpush.bf16.msra.mxu0 %v6258
      %6790 = vmatpush.bf16.msra.mxu0 %v6254
      %6791 = vmatpush.bf16.msra.mxu0 %v6250
      %6792 = vmatpush.bf16.msra.mxu0 %v6246
      %6793 = vmatmul.bf16.gmra.mxu0 %v5925
      %v6794 = vpop.f32.mrf.mxu0
      %v6795 = vadd.f32 %v6706, %v6794
      %v6796 = vpop.f32.mrf.mxu0
      %v6797 = vadd.f32 %v6708, %v6796
      %6798 = vmatmul.bf16.gmra.mxu0 %v5927
      %v6799 = vpop.f32.mrf.mxu0
      %v6800 = vadd.f32 %v6711, %v6799
      %v6801 = vpop.f32.mrf.mxu0
      %v6802 = vadd.f32 %v6713, %v6801
      %6803 = vmatmul.bf16.gmra.mxu0 %v5929
      %v6804 = vpop.f32.mrf.mxu0
      %v6805 = vadd.f32 %v6716, %v6804
      %v6806 = vpop.f32.mrf.mxu0
      %v6807 = vadd.f32 %v6718, %v6806
      %6808 = vmatmul.bf16.gmra.mxu0 %v5931
      %v6809 = vpop.f32.mrf.mxu0
      %v6810 = vadd.f32 %v6721, %v6809
      %v6811 = vpop.f32.mrf.mxu0
      %v6812 = vadd.f32 %v6723, %v6811
      %6813 = vmatmul.bf16.gmra.mxu0 %v5933
      %v6814 = vpop.f32.mrf.mxu0
      %v6815 = vadd.f32 %v6726, %v6814
      %v6816 = vpop.f32.mrf.mxu0
      %v6817 = vadd.f32 %v6728, %v6816
      %6818 = vmatmul.bf16.gmra.mxu0 %v5935
      %v6819 = vpop.f32.mrf.mxu0
      %v6820 = vadd.f32 %v6731, %v6819
      %v6821 = vpop.f32.mrf.mxu0
      %v6822 = vadd.f32 %v6733, %v6821
      %6823 = vmatmul.bf16.gmra.mxu0 %v5937
      %v6824 = vpop.f32.mrf.mxu0
      %v6825 = vadd.f32 %v6736, %v6824
      %v6826 = vpop.f32.mrf.mxu0
      %v6827 = vadd.f32 %v6738, %v6826
      %6828 = vmatmul.bf16.gmra.mxu0 %v5939
      %v6829 = vpop.f32.mrf.mxu0
      %v6830 = vadd.f32 %v6741, %v6829
      %v6831 = vpop.f32.mrf.mxu0
      %v6832 = vadd.f32 %v6743, %v6831
      %6833 = vmatmul.bf16.gmra.mxu0 %v5941
      %v6834 = vpop.f32.mrf.mxu0
      %v6835 = vadd.f32 %v6746, %v6834
      %v6836 = vpop.f32.mrf.mxu0
      %v6837 = vadd.f32 %v6748, %v6836
      %6838 = vmatmul.bf16.gmra.mxu0 %v5943
      %v6839 = vpop.f32.mrf.mxu0
      %v6840 = vadd.f32 %v6751, %v6839
      %v6841 = vpop.f32.mrf.mxu0
      %v6842 = vadd.f32 %v6753, %v6841
      %6843 = vmatmul.bf16.gmra.mxu0 %v5945
      %v6844 = vpop.f32.mrf.mxu0
      %v6845 = vadd.f32 %v6756, %v6844
      %v6846 = vpop.f32.mrf.mxu0
      %v6847 = vadd.f32 %v6758, %v6846
      %6848 = vmatmul.bf16.gmra.mxu0 %v5947
      %v6849 = vpop.f32.mrf.mxu0
      %v6850 = vadd.f32 %v6761, %v6849
      %v6851 = vpop.f32.mrf.mxu0
      %v6852 = vadd.f32 %v6763, %v6851
      %6853 = vmatmul.bf16.gmra.mxu0 %v5949
      %v6854 = vpop.f32.mrf.mxu0
      %v6855 = vadd.f32 %v6766, %v6854
      %v6856 = vpop.f32.mrf.mxu0
      %v6857 = vadd.f32 %v6768, %v6856
      %6858 = vmatmul.bf16.gmra.mxu0 %v5951
      %v6859 = vpop.f32.mrf.mxu0
      %v6860 = vadd.f32 %v6771, %v6859
      %v6861 = vpop.f32.mrf.mxu0
      %v6862 = vadd.f32 %v6773, %v6861
      %6863 = vmatmul.bf16.gmra.mxu0 %v5953
      %v6864 = vpop.f32.mrf.mxu0
      %v6865 = vadd.f32 %v6776, %v6864
      %v6866 = vpop.f32.mrf.mxu0
      %v6867 = vadd.f32 %v6778, %v6866
      %6868 = vmatmul.bf16.gmra.mxu0 %v5955
      %v6869 = vpop.f32.mrf.mxu0
      %v6870 = vadd.f32 %v6781, %v6869
      %v6871 = vpop.f32.mrf.mxu0
      %v6872 = vadd.f32 %v6783, %v6871
      %6873 = vdwg.mxu0
      %6874 = vmatpush.bf16.msra.mxu0 %v6243
      %6875 = vmatpush.bf16.msra.mxu0 %v6239
      %6876 = vmatpush.bf16.msra.mxu0 %v6235
      %6877 = vmatpush.bf16.msra.mxu0 %v6231
      %6878 = vmatpush.bf16.msra.mxu0 %v6227
      %6879 = vmatpush.bf16.msra.mxu0 %v6223
      %6880 = vmatpush.bf16.msra.mxu0 %v6219
      %6881 = vmatpush.bf16.msra.mxu0 %v6215
      %6882 = vmatmul.bf16.gmra.mxu0 %v5924
      %v6883 = vpop.f32.mrf.mxu0
      %v6884 = vadd.f32 0.0, %v6883
      %v6885 = vpop.f32.mrf.mxu0
      %v6886 = vadd.f32 0.0, %v6885
      %6887 = vmatmul.bf16.gmra.mxu0 %v5926
      %v6888 = vpop.f32.mrf.mxu0
      %v6889 = vadd.f32 0.0, %v6888
      %v6890 = vpop.f32.mrf.mxu0
      %v6891 = vadd.f32 0.0, %v6890
      %6892 = vmatmul.bf16.gmra.mxu0 %v5928
      %v6893 = vpop.f32.mrf.mxu0
      %v6894 = vadd.f32 0.0, %v6893
      %v6895 = vpop.f32.mrf.mxu0
      %v6896 = vadd.f32 0.0, %v6895
      %6897 = vmatmul.bf16.gmra.mxu0 %v5930
      %v6898 = vpop.f32.mrf.mxu0
      %v6899 = vadd.f32 0.0, %v6898
      %v6900 = vpop.f32.mrf.mxu0
      %v6901 = vadd.f32 0.0, %v6900
      %6902 = vmatmul.bf16.gmra.mxu0 %v5932
      %v6903 = vpop.f32.mrf.mxu0
      %v6904 = vadd.f32 0.0, %v6903
      %v6905 = vpop.f32.mrf.mxu0
      %v6906 = vadd.f32 0.0, %v6905
      %6907 = vmatmul.bf16.gmra.mxu0 %v5934
      %v6908 = vpop.f32.mrf.mxu0
      %v6909 = vadd.f32 0.0, %v6908
      %v6910 = vpop.f32.mrf.mxu0
      %v6911 = vadd.f32 0.0, %v6910
      %6912 = vmatmul.bf16.gmra.mxu0 %v5936
      %v6913 = vpop.f32.mrf.mxu0
      %v6914 = vadd.f32 0.0, %v6913
      %v6915 = vpop.f32.mrf.mxu0
      %v6916 = vadd.f32 0.0, %v6915
      %6917 = vmatmul.bf16.gmra.mxu0 %v5938
      %v6918 = vpop.f32.mrf.mxu0
      %v6919 = vadd.f32 0.0, %v6918
      %v6920 = vpop.f32.mrf.mxu0
      %v6921 = vadd.f32 0.0, %v6920
      %6922 = vmatmul.bf16.gmra.mxu0 %v5940
      %v6923 = vpop.f32.mrf.mxu0
      %v6924 = vadd.f32 0.0, %v6923
      %v6925 = vpop.f32.mrf.mxu0
      %v6926 = vadd.f32 0.0, %v6925
      %6927 = vmatmul.bf16.gmra.mxu0 %v5942
      %v6928 = vpop.f32.mrf.mxu0
      %v6929 = vadd.f32 0.0, %v6928
      %v6930 = vpop.f32.mrf.mxu0
      %v6931 = vadd.f32 0.0, %v6930
      %6932 = vmatmul.bf16.gmra.mxu0 %v5944
      %v6933 = vpop.f32.mrf.mxu0
      %v6934 = vadd.f32 0.0, %v6933
      %v6935 = vpop.f32.mrf.mxu0
      %v6936 = vadd.f32 0.0, %v6935
      %6937 = vmatmul.bf16.gmra.mxu0 %v5946
      %v6938 = vpop.f32.mrf.mxu0
      %v6939 = vadd.f32 0.0, %v6938
      %v6940 = vpop.f32.mrf.mxu0
      %v6941 = vadd.f32 0.0, %v6940
      %6942 = vmatmul.bf16.gmra.mxu0 %v5948
      %v6943 = vpop.f32.mrf.mxu0
      %v6944 = vadd.f32 0.0, %v6943
      %v6945 = vpop.f32.mrf.mxu0
      %v6946 = vadd.f32 0.0, %v6945
      %6947 = vmatmul.bf16.gmra.mxu0 %v5950
      %v6948 = vpop.f32.mrf.mxu0
      %v6949 = vadd.f32 0.0, %v6948
      %v6950 = vpop.f32.mrf.mxu0
      %v6951 = vadd.f32 0.0, %v6950
      %6952 = vmatmul.bf16.gmra.mxu0 %v5952
      %v6953 = vpop.f32.mrf.mxu0
      %v6954 = vadd.f32 0.0, %v6953
      %v6955 = vpop.f32.mrf.mxu0
      %v6956 = vadd.f32 0.0, %v6955
      %6957 = vmatmul.bf16.gmra.mxu0 %v5954
      %v6958 = vpop.f32.mrf.mxu0
      %v6959 = vadd.f32 0.0, %v6958
      %v6960 = vpop.f32.mrf.mxu0
      %v6961 = vadd.f32 0.0, %v6960
      %6962 = vdwg.mxu0
      %6963 = vmatpush.bf16.msra.mxu0 %v6275
      %6964 = vmatpush.bf16.msra.mxu0 %v6271
      %6965 = vmatpush.bf16.msra.mxu0 %v6267
      %6966 = vmatpush.bf16.msra.mxu0 %v6263
      %6967 = vmatpush.bf16.msra.mxu0 %v6259
      %6968 = vmatpush.bf16.msra.mxu0 %v6255
      %6969 = vmatpush.bf16.msra.mxu0 %v6251
      %6970 = vmatpush.bf16.msra.mxu0 %v6247
      %6971 = vmatmul.bf16.gmra.mxu0 %v5925
      %v6972 = vpop.f32.mrf.mxu0
      %v6973 = vadd.f32 %v6884, %v6972
      %v6974 = vpop.f32.mrf.mxu0
      %v6975 = vadd.f32 %v6886, %v6974
      %6976 = vmatmul.bf16.gmra.mxu0 %v5927
      %v6977 = vpop.f32.mrf.mxu0
      %v6978 = vadd.f32 %v6889, %v6977
      %v6979 = vpop.f32.mrf.mxu0
      %v6980 = vadd.f32 %v6891, %v6979
      %6981 = vmatmul.bf16.gmra.mxu0 %v5929
      %v6982 = vpop.f32.mrf.mxu0
      %v6983 = vadd.f32 %v6894, %v6982
      %v6984 = vpop.f32.mrf.mxu0
      %v6985 = vadd.f32 %v6896, %v6984
      %6986 = vmatmul.bf16.gmra.mxu0 %v5931
      %v6987 = vpop.f32.mrf.mxu0
      %v6988 = vadd.f32 %v6899, %v6987
      %v6989 = vpop.f32.mrf.mxu0
      %v6990 = vadd.f32 %v6901, %v6989
      %6991 = vmatmul.bf16.gmra.mxu0 %v5933
      %v6992 = vpop.f32.mrf.mxu0
      %v6993 = vadd.f32 %v6904, %v6992
      %v6994 = vpop.f32.mrf.mxu0
      %v6995 = vadd.f32 %v6906, %v6994
      %6996 = vmatmul.bf16.gmra.mxu0 %v5935
      %v6997 = vpop.f32.mrf.mxu0
      %v6998 = vadd.f32 %v6909, %v6997
      %v6999 = vpop.f32.mrf.mxu0
      %v7000 = vadd.f32 %v6911, %v6999
      %7001 = vmatmul.bf16.gmra.mxu0 %v5937
      %v7002 = vpop.f32.mrf.mxu0
      %v7003 = vadd.f32 %v6914, %v7002
      %v7004 = vpop.f32.mrf.mxu0
      %v7005 = vadd.f32 %v6916, %v7004
      %7006 = vmatmul.bf16.gmra.mxu0 %v5939
      %v7007 = vpop.f32.mrf.mxu0
      %v7008 = vadd.f32 %v6919, %v7007
      %v7009 = vpop.f32.mrf.mxu0
      %v7010 = vadd.f32 %v6921, %v7009
      %7011 = vmatmul.bf16.gmra.mxu0 %v5941
      %v7012 = vpop.f32.mrf.mxu0
      %v7013 = vadd.f32 %v6924, %v7012
      %v7014 = vpop.f32.mrf.mxu0
      %v7015 = vadd.f32 %v6926, %v7014
      %7016 = vmatmul.bf16.gmra.mxu0 %v5943
      %v7017 = vpop.f32.mrf.mxu0
      %v7018 = vadd.f32 %v6929, %v7017
      %v7019 = vpop.f32.mrf.mxu0
      %v7020 = vadd.f32 %v6931, %v7019
      %7021 = vmatmul.bf16.gmra.mxu0 %v5945
      %v7022 = vpop.f32.mrf.mxu0
      %v7023 = vadd.f32 %v6934, %v7022
      %v7024 = vpop.f32.mrf.mxu0
      %v7025 = vadd.f32 %v6936, %v7024
      %7026 = vmatmul.bf16.gmra.mxu0 %v5947
      %v7027 = vpop.f32.mrf.mxu0
      %v7028 = vadd.f32 %v6939, %v7027
      %v7029 = vpop.f32.mrf.mxu0
      %v7030 = vadd.f32 %v6941, %v7029
      %7031 = vmatmul.bf16.gmra.mxu0 %v5949
      %v7032 = vpop.f32.mrf.mxu0
      %v7033 = vadd.f32 %v6944, %v7032
      %v7034 = vpop.f32.mrf.mxu0
      %v7035 = vadd.f32 %v6946, %v7034
      %7036 = vmatmul.bf16.gmra.mxu0 %v5951
      %v7037 = vpop.f32.mrf.mxu0
      %v7038 = vadd.f32 %v6949, %v7037
      %v7039 = vpop.f32.mrf.mxu0
      %v7040 = vadd.f32 %v6951, %v7039
      %7041 = vmatmul.bf16.gmra.mxu0 %v5953
      %v7042 = vpop.f32.mrf.mxu0
      %v7043 = vadd.f32 %v6954, %v7042
      %v7044 = vpop.f32.mrf.mxu0
      %v7045 = vadd.f32 %v6956, %v7044
      %7046 = vmatmul.bf16.gmra.mxu0 %v5955
      %v7047 = vpop.f32.mrf.mxu0
      %v7048 = vadd.f32 %v6959, %v7047
      %v7049 = vpop.f32.mrf.mxu0
      %v7050 = vadd.f32 %v6961, %v7049
      %7051 = vdwg.mxu0
      %v7052 = vsel %vm1006, %v6439, 0.0
      %v7053 = vsel %vm1007, %v6441, 0.0
      %v7054 = vsel %vm1008, %v6444, 0.0
      %v7055 = vsel %vm1009, %v6446, 0.0
      %v7056 = vsel %vm1010, %v6449, 0.0
      %v7057 = vsel %vm1011, %v6451, 0.0
      %v7058 = vsel %vm1012, %v6454, 0.0
      %v7059 = vsel %vm1013, %v6456, 0.0
      %v7060 = vsel %vm1014, %v6459, 0.0
      %v7061 = vsel %vm1015, %v6461, 0.0
      %v7062 = vsel %vm1016, %v6464, 0.0
      %v7063 = vsel %vm1017, %v6466, 0.0
      %v7064 = vsel %vm1018, %v6469, 0.0
      %v7065 = vsel %vm1019, %v6471, 0.0
      %v7066 = vsel %vm1020, %v6474, 0.0
      %v7067 = vsel %vm1021, %v6476, 0.0
      %v7068 = vsel %vm1022, %v6479, 0.0
      %v7069 = vsel %vm1023, %v6481, 0.0
      %v7070 = vsel %vm1024, %v6484, 0.0
      %v7071 = vsel %vm1025, %v6486, 0.0
      %v7072 = vsel %vm1026, %v6489, 0.0
      %v7073 = vsel %vm1027, %v6491, 0.0
      %v7074 = vsel %vm1028, %v6494, 0.0
      %v7075 = vsel %vm1029, %v6496, 0.0
      %v7076 = vsel %vm1030, %v6499, 0.0
      %v7077 = vsel %vm1031, %v6501, 0.0
      %v7078 = vsel %vm1032, %v6504, 0.0
      %v7079 = vsel %vm1033, %v6506, 0.0
      %v7080 = vsel %vm1034, %v6509, 0.0
      %v7081 = vsel %vm1035, %v6511, 0.0
      %v7082 = vsel %vm1036, %v6514, 0.0
      %v7083 = vsel %vm1037, %v6516, 0.0
      %v7084 = vadd.f32 %v7052, 0.0
      %v7085 = vadd.f32 %v7053, 0.0
      %v7086 = vadd.f32 %v7054, 0.0
      %v7087 = vadd.f32 %v7055, 0.0
      %v7088 = vadd.f32 %v7056, 0.0
      %v7089 = vadd.f32 %v7057, 0.0
      %v7090 = vadd.f32 %v7058, 0.0
      %v7091 = vadd.f32 %v7059, 0.0
      %v7092 = vadd.f32 %v7060, 0.0
      %v7093 = vadd.f32 %v7061, 0.0
      %v7094 = vadd.f32 %v7062, 0.0
      %v7095 = vadd.f32 %v7063, 0.0
      %v7096 = vadd.f32 %v7064, 0.0
      %v7097 = vadd.f32 %v7065, 0.0
      %v7098 = vadd.f32 %v7066, 0.0
      %v7099 = vadd.f32 %v7067, 0.0
      %v7100 = vadd.f32 %v7068, 0.0
      %v7101 = vadd.f32 %v7069, 0.0
      %v7102 = vadd.f32 %v7070, 0.0
      %v7103 = vadd.f32 %v7071, 0.0
      %v7104 = vadd.f32 %v7072, 0.0
      %v7105 = vadd.f32 %v7073, 0.0
      %v7106 = vadd.f32 %v7074, 0.0
      %v7107 = vadd.f32 %v7075, 0.0
      %v7108 = vadd.f32 %v7076, 0.0
      %v7109 = vadd.f32 %v7077, 0.0
      %v7110 = vadd.f32 %v7078, 0.0
      %v7111 = vadd.f32 %v7079, 0.0
      %v7112 = vadd.f32 %v7080, 0.0
      %v7113 = vadd.f32 %v7081, 0.0
      %v7114 = vadd.f32 %v7082, 0.0
      %v7115 = vadd.f32 %v7083, 0.0
      %vm7116 = vcmp.eq.s32.totalorder %v781, 4
      %vm7117 = vcmp.eq.s32.totalorder %v782, 4
      %vm7118 = vcmp.eq.s32.totalorder %v783, 4
      %vm7119 = vcmp.eq.s32.totalorder %v784, 4
      %vm7120 = vcmp.eq.s32.totalorder %v785, 4
      %vm7121 = vcmp.eq.s32.totalorder %v786, 4
      %vm7122 = vcmp.eq.s32.totalorder %v787, 4
      %vm7123 = vcmp.eq.s32.totalorder %v788, 4
      %vm7124 = vcmp.eq.s32.totalorder %v789, 4
      %vm7125 = vcmp.eq.s32.totalorder %v790, 4
      %vm7126 = vcmp.eq.s32.totalorder %v791, 4
      %vm7127 = vcmp.eq.s32.totalorder %v792, 4
      %vm7128 = vcmp.eq.s32.totalorder %v793, 4
      %vm7129 = vcmp.eq.s32.totalorder %v794, 4
      %vm7130 = vcmp.eq.s32.totalorder %v795, 4
      %vm7131 = vcmp.eq.s32.totalorder %v796, 4
      %vm7132 = vcmp.eq.s32.totalorder %v797, 4
      %vm7133 = vcmp.eq.s32.totalorder %v798, 4
      %vm7134 = vcmp.eq.s32.totalorder %v799, 4
      %vm7135 = vcmp.eq.s32.totalorder %v800, 4
      %vm7136 = vcmp.eq.s32.totalorder %v801, 4
      %vm7137 = vcmp.eq.s32.totalorder %v802, 4
      %vm7138 = vcmp.eq.s32.totalorder %v803, 4
      %vm7139 = vcmp.eq.s32.totalorder %v804, 4
      %vm7140 = vcmp.eq.s32.totalorder %v805, 4
      %vm7141 = vcmp.eq.s32.totalorder %v806, 4
      %vm7142 = vcmp.eq.s32.totalorder %v807, 4
      %vm7143 = vcmp.eq.s32.totalorder %v808, 4
      %vm7144 = vcmp.eq.s32.totalorder %v809, 4
      %vm7145 = vcmp.eq.s32.totalorder %v810, 4
      %vm7146 = vcmp.eq.s32.totalorder %v811, 4
      %vm7147 = vcmp.eq.s32.totalorder %v812, 4
      %v7148 = vsel %vm7116, 1, 0
      %v7149 = vsel %vm7117, 1, 0
      %v7150 = vsel %vm7118, 1, 0
      %v7151 = vsel %vm7119, 1, 0
      %v7152 = vsel %vm7120, 1, 0
      %v7153 = vsel %vm7121, 1, 0
      %v7154 = vsel %vm7122, 1, 0
      %v7155 = vsel %vm7123, 1, 0
      %v7156 = vsel %vm7124, 1, 0
      %v7157 = vsel %vm7125, 1, 0
      %v7158 = vsel %vm7126, 1, 0
      %v7159 = vsel %vm7127, 1, 0
      %v7160 = vsel %vm7128, 1, 0
      %v7161 = vsel %vm7129, 1, 0
      %v7162 = vsel %vm7130, 1, 0
      %v7163 = vsel %vm7131, 1, 0
      %v7164 = vsel %vm7132, 1, 0
      %v7165 = vsel %vm7133, 1, 0
      %v7166 = vsel %vm7134, 1, 0
      %v7167 = vsel %vm7135, 1, 0
      %v7168 = vsel %vm7136, 1, 0
      %v7169 = vsel %vm7137, 1, 0
      %v7170 = vsel %vm7138, 1, 0
      %v7171 = vsel %vm7139, 1, 0
      %v7172 = vsel %vm7140, 1, 0
      %v7173 = vsel %vm7141, 1, 0
      %v7174 = vsel %vm7142, 1, 0
      %v7175 = vsel %vm7143, 1, 0
      %v7176 = vsel %vm7144, 1, 0
      %v7177 = vsel %vm7145, 1, 0
      %v7178 = vsel %vm7146, 1, 0
      %v7179 = vsel %vm7147, 1, 0
      %vm7180 = vcmp.eq.s32.totalorder %v7148, 1
      %vm7181 = vcmp.eq.s32.totalorder %v7149, 1
      %vm7182 = vcmp.eq.s32.totalorder %v7150, 1
      %vm7183 = vcmp.eq.s32.totalorder %v7151, 1
      %vm7184 = vcmp.eq.s32.totalorder %v7152, 1
      %vm7185 = vcmp.eq.s32.totalorder %v7153, 1
      %vm7186 = vcmp.eq.s32.totalorder %v7154, 1
      %vm7187 = vcmp.eq.s32.totalorder %v7155, 1
      %vm7188 = vcmp.eq.s32.totalorder %v7156, 1
      %vm7189 = vcmp.eq.s32.totalorder %v7157, 1
      %vm7190 = vcmp.eq.s32.totalorder %v7158, 1
      %vm7191 = vcmp.eq.s32.totalorder %v7159, 1
      %vm7192 = vcmp.eq.s32.totalorder %v7160, 1
      %vm7193 = vcmp.eq.s32.totalorder %v7161, 1
      %vm7194 = vcmp.eq.s32.totalorder %v7162, 1
      %vm7195 = vcmp.eq.s32.totalorder %v7163, 1
      %vm7196 = vcmp.eq.s32.totalorder %v7164, 1
      %vm7197 = vcmp.eq.s32.totalorder %v7165, 1
      %vm7198 = vcmp.eq.s32.totalorder %v7166, 1
      %vm7199 = vcmp.eq.s32.totalorder %v7167, 1
      %vm7200 = vcmp.eq.s32.totalorder %v7168, 1
      %vm7201 = vcmp.eq.s32.totalorder %v7169, 1
      %vm7202 = vcmp.eq.s32.totalorder %v7170, 1
      %vm7203 = vcmp.eq.s32.totalorder %v7171, 1
      %vm7204 = vcmp.eq.s32.totalorder %v7172, 1
      %vm7205 = vcmp.eq.s32.totalorder %v7173, 1
      %vm7206 = vcmp.eq.s32.totalorder %v7174, 1
      %vm7207 = vcmp.eq.s32.totalorder %v7175, 1
      %vm7208 = vcmp.eq.s32.totalorder %v7176, 1
      %vm7209 = vcmp.eq.s32.totalorder %v7177, 1
      %vm7210 = vcmp.eq.s32.totalorder %v7178, 1
      %vm7211 = vcmp.eq.s32.totalorder %v7179, 1
      %v7212 = vsel %vm7180, %v6617, 0.0
      %v7213 = vsel %vm7181, %v6619, 0.0
      %v7214 = vsel %vm7182, %v6622, 0.0
      %v7215 = vsel %vm7183, %v6624, 0.0
      %v7216 = vsel %vm7184, %v6627, 0.0
      %v7217 = vsel %vm7185, %v6629, 0.0
      %v7218 = vsel %vm7186, %v6632, 0.0
      %v7219 = vsel %vm7187, %v6634, 0.0
      %v7220 = vsel %vm7188, %v6637, 0.0
      %v7221 = vsel %vm7189, %v6639, 0.0
      %v7222 = vsel %vm7190, %v6642, 0.0
      %v7223 = vsel %vm7191, %v6644, 0.0
      %v7224 = vsel %vm7192, %v6647, 0.0
      %v7225 = vsel %vm7193, %v6649, 0.0
      %v7226 = vsel %vm7194, %v6652, 0.0
      %v7227 = vsel %vm7195, %v6654, 0.0
      %v7228 = vsel %vm7196, %v6657, 0.0
      %v7229 = vsel %vm7197, %v6659, 0.0
      %v7230 = vsel %vm7198, %v6662, 0.0
      %v7231 = vsel %vm7199, %v6664, 0.0
      %v7232 = vsel %vm7200, %v6667, 0.0
      %v7233 = vsel %vm7201, %v6669, 0.0
      %v7234 = vsel %vm7202, %v6672, 0.0
      %v7235 = vsel %vm7203, %v6674, 0.0
      %v7236 = vsel %vm7204, %v6677, 0.0
      %v7237 = vsel %vm7205, %v6679, 0.0
      %v7238 = vsel %vm7206, %v6682, 0.0
      %v7239 = vsel %vm7207, %v6684, 0.0
      %v7240 = vsel %vm7208, %v6687, 0.0
      %v7241 = vsel %vm7209, %v6689, 0.0
      %v7242 = vsel %vm7210, %v6692, 0.0
      %v7243 = vsel %vm7211, %v6694, 0.0
      %v7244 = vadd.f32 %v7084, %v7212
      %v7245 = vadd.f32 %v7085, %v7213
      %v7246 = vadd.f32 %v7086, %v7214
      %v7247 = vadd.f32 %v7087, %v7215
      %v7248 = vadd.f32 %v7088, %v7216
      %v7249 = vadd.f32 %v7089, %v7217
      %v7250 = vadd.f32 %v7090, %v7218
      %v7251 = vadd.f32 %v7091, %v7219
      %v7252 = vadd.f32 %v7092, %v7220
      %v7253 = vadd.f32 %v7093, %v7221
      %v7254 = vadd.f32 %v7094, %v7222
      %v7255 = vadd.f32 %v7095, %v7223
      %v7256 = vadd.f32 %v7096, %v7224
      %v7257 = vadd.f32 %v7097, %v7225
      %v7258 = vadd.f32 %v7098, %v7226
      %v7259 = vadd.f32 %v7099, %v7227
      %v7260 = vadd.f32 %v7100, %v7228
      %v7261 = vadd.f32 %v7101, %v7229
      %v7262 = vadd.f32 %v7102, %v7230
      %v7263 = vadd.f32 %v7103, %v7231
      %v7264 = vadd.f32 %v7104, %v7232
      %v7265 = vadd.f32 %v7105, %v7233
      %v7266 = vadd.f32 %v7106, %v7234
      %v7267 = vadd.f32 %v7107, %v7235
      %v7268 = vadd.f32 %v7108, %v7236
      %v7269 = vadd.f32 %v7109, %v7237
      %v7270 = vadd.f32 %v7110, %v7238
      %v7271 = vadd.f32 %v7111, %v7239
      %v7272 = vadd.f32 %v7112, %v7240
      %v7273 = vadd.f32 %v7113, %v7241
      %v7274 = vadd.f32 %v7114, %v7242
      %v7275 = vadd.f32 %v7115, %v7243
      %vm7276 = vcmp.eq.s32.totalorder %v781, 8
      %vm7277 = vcmp.eq.s32.totalorder %v782, 8
      %vm7278 = vcmp.eq.s32.totalorder %v783, 8
      %vm7279 = vcmp.eq.s32.totalorder %v784, 8
      %vm7280 = vcmp.eq.s32.totalorder %v785, 8
      %vm7281 = vcmp.eq.s32.totalorder %v786, 8
      %vm7282 = vcmp.eq.s32.totalorder %v787, 8
      %vm7283 = vcmp.eq.s32.totalorder %v788, 8
      %vm7284 = vcmp.eq.s32.totalorder %v789, 8
      %vm7285 = vcmp.eq.s32.totalorder %v790, 8
      %vm7286 = vcmp.eq.s32.totalorder %v791, 8
      %vm7287 = vcmp.eq.s32.totalorder %v792, 8
      %vm7288 = vcmp.eq.s32.totalorder %v793, 8
      %vm7289 = vcmp.eq.s32.totalorder %v794, 8
      %vm7290 = vcmp.eq.s32.totalorder %v795, 8
      %vm7291 = vcmp.eq.s32.totalorder %v796, 8
      %vm7292 = vcmp.eq.s32.totalorder %v797, 8
      %vm7293 = vcmp.eq.s32.totalorder %v798, 8
      %vm7294 = vcmp.eq.s32.totalorder %v799, 8
      %vm7295 = vcmp.eq.s32.totalorder %v800, 8
      %vm7296 = vcmp.eq.s32.totalorder %v801, 8
      %vm7297 = vcmp.eq.s32.totalorder %v802, 8
      %vm7298 = vcmp.eq.s32.totalorder %v803, 8
      %vm7299 = vcmp.eq.s32.totalorder %v804, 8
      %vm7300 = vcmp.eq.s32.totalorder %v805, 8
      %vm7301 = vcmp.eq.s32.totalorder %v806, 8
      %vm7302 = vcmp.eq.s32.totalorder %v807, 8
      %vm7303 = vcmp.eq.s32.totalorder %v808, 8
      %vm7304 = vcmp.eq.s32.totalorder %v809, 8
      %vm7305 = vcmp.eq.s32.totalorder %v810, 8
      %vm7306 = vcmp.eq.s32.totalorder %v811, 8
      %vm7307 = vcmp.eq.s32.totalorder %v812, 8
      %v7308 = vsel %vm7276, 1, 0
      %v7309 = vsel %vm7277, 1, 0
      %v7310 = vsel %vm7278, 1, 0
      %v7311 = vsel %vm7279, 1, 0
      %v7312 = vsel %vm7280, 1, 0
      %v7313 = vsel %vm7281, 1, 0
      %v7314 = vsel %vm7282, 1, 0
      %v7315 = vsel %vm7283, 1, 0
      %v7316 = vsel %vm7284, 1, 0
      %v7317 = vsel %vm7285, 1, 0
      %v7318 = vsel %vm7286, 1, 0
      %v7319 = vsel %vm7287, 1, 0
      %v7320 = vsel %vm7288, 1, 0
      %v7321 = vsel %vm7289, 1, 0
      %v7322 = vsel %vm7290, 1, 0
      %v7323 = vsel %vm7291, 1, 0
      %v7324 = vsel %vm7292, 1, 0
      %v7325 = vsel %vm7293, 1, 0
      %v7326 = vsel %vm7294, 1, 0
      %v7327 = vsel %vm7295, 1, 0
      %v7328 = vsel %vm7296, 1, 0
      %v7329 = vsel %vm7297, 1, 0
      %v7330 = vsel %vm7298, 1, 0
      %v7331 = vsel %vm7299, 1, 0
      %v7332 = vsel %vm7300, 1, 0
      %v7333 = vsel %vm7301, 1, 0
      %v7334 = vsel %vm7302, 1, 0
      %v7335 = vsel %vm7303, 1, 0
      %v7336 = vsel %vm7304, 1, 0
      %v7337 = vsel %vm7305, 1, 0
      %v7338 = vsel %vm7306, 1, 0
      %v7339 = vsel %vm7307, 1, 0
      %vm7340 = vcmp.eq.s32.totalorder %v7308, 1
      %vm7341 = vcmp.eq.s32.totalorder %v7309, 1
      %vm7342 = vcmp.eq.s32.totalorder %v7310, 1
      %vm7343 = vcmp.eq.s32.totalorder %v7311, 1
      %vm7344 = vcmp.eq.s32.totalorder %v7312, 1
      %vm7345 = vcmp.eq.s32.totalorder %v7313, 1
      %vm7346 = vcmp.eq.s32.totalorder %v7314, 1
      %vm7347 = vcmp.eq.s32.totalorder %v7315, 1
      %vm7348 = vcmp.eq.s32.totalorder %v7316, 1
      %vm7349 = vcmp.eq.s32.totalorder %v7317, 1
      %vm7350 = vcmp.eq.s32.totalorder %v7318, 1
      %vm7351 = vcmp.eq.s32.totalorder %v7319, 1
      %vm7352 = vcmp.eq.s32.totalorder %v7320, 1
      %vm7353 = vcmp.eq.s32.totalorder %v7321, 1
      %vm7354 = vcmp.eq.s32.totalorder %v7322, 1
      %vm7355 = vcmp.eq.s32.totalorder %v7323, 1
      %vm7356 = vcmp.eq.s32.totalorder %v7324, 1
      %vm7357 = vcmp.eq.s32.totalorder %v7325, 1
      %vm7358 = vcmp.eq.s32.totalorder %v7326, 1
      %vm7359 = vcmp.eq.s32.totalorder %v7327, 1
      %vm7360 = vcmp.eq.s32.totalorder %v7328, 1
      %vm7361 = vcmp.eq.s32.totalorder %v7329, 1
      %vm7362 = vcmp.eq.s32.totalorder %v7330, 1
      %vm7363 = vcmp.eq.s32.totalorder %v7331, 1
      %vm7364 = vcmp.eq.s32.totalorder %v7332, 1
      %vm7365 = vcmp.eq.s32.totalorder %v7333, 1
      %vm7366 = vcmp.eq.s32.totalorder %v7334, 1
      %vm7367 = vcmp.eq.s32.totalorder %v7335, 1
      %vm7368 = vcmp.eq.s32.totalorder %v7336, 1
      %vm7369 = vcmp.eq.s32.totalorder %v7337, 1
      %vm7370 = vcmp.eq.s32.totalorder %v7338, 1
      %vm7371 = vcmp.eq.s32.totalorder %v7339, 1
      %v7372 = vsel %vm7340, %v6795, 0.0
      %v7373 = vsel %vm7341, %v6797, 0.0
      %v7374 = vsel %vm7342, %v6800, 0.0
      %v7375 = vsel %vm7343, %v6802, 0.0
      %v7376 = vsel %vm7344, %v6805, 0.0
      %v7377 = vsel %vm7345, %v6807, 0.0
      %v7378 = vsel %vm7346, %v6810, 0.0
      %v7379 = vsel %vm7347, %v6812, 0.0
      %v7380 = vsel %vm7348, %v6815, 0.0
      %v7381 = vsel %vm7349, %v6817, 0.0
      %v7382 = vsel %vm7350, %v6820, 0.0
      %v7383 = vsel %vm7351, %v6822, 0.0
      %v7384 = vsel %vm7352, %v6825, 0.0
      %v7385 = vsel %vm7353, %v6827, 0.0
      %v7386 = vsel %vm7354, %v6830, 0.0
      %v7387 = vsel %vm7355, %v6832, 0.0
      %v7388 = vsel %vm7356, %v6835, 0.0
      %v7389 = vsel %vm7357, %v6837, 0.0
      %v7390 = vsel %vm7358, %v6840, 0.0
      %v7391 = vsel %vm7359, %v6842, 0.0
      %v7392 = vsel %vm7360, %v6845, 0.0
      %v7393 = vsel %vm7361, %v6847, 0.0
      %v7394 = vsel %vm7362, %v6850, 0.0
      %v7395 = vsel %vm7363, %v6852, 0.0
      %v7396 = vsel %vm7364, %v6855, 0.0
      %v7397 = vsel %vm7365, %v6857, 0.0
      %v7398 = vsel %vm7366, %v6860, 0.0
      %v7399 = vsel %vm7367, %v6862, 0.0
      %v7400 = vsel %vm7368, %v6865, 0.0
      %v7401 = vsel %vm7369, %v6867, 0.0
      %v7402 = vsel %vm7370, %v6870, 0.0
      %v7403 = vsel %vm7371, %v6872, 0.0
      %v7404 = vadd.f32 %v7244, %v7372
      %v7405 = vadd.f32 %v7245, %v7373
      %v7406 = vadd.f32 %v7246, %v7374
      %v7407 = vadd.f32 %v7247, %v7375
      %v7408 = vadd.f32 %v7248, %v7376
      %v7409 = vadd.f32 %v7249, %v7377
      %v7410 = vadd.f32 %v7250, %v7378
      %v7411 = vadd.f32 %v7251, %v7379
      %v7412 = vadd.f32 %v7252, %v7380
      %v7413 = vadd.f32 %v7253, %v7381
      %v7414 = vadd.f32 %v7254, %v7382
      %v7415 = vadd.f32 %v7255, %v7383
      %v7416 = vadd.f32 %v7256, %v7384
      %v7417 = vadd.f32 %v7257, %v7385
      %v7418 = vadd.f32 %v7258, %v7386
      %v7419 = vadd.f32 %v7259, %v7387
      %v7420 = vadd.f32 %v7260, %v7388
      %v7421 = vadd.f32 %v7261, %v7389
      %v7422 = vadd.f32 %v7262, %v7390
      %v7423 = vadd.f32 %v7263, %v7391
      %v7424 = vadd.f32 %v7264, %v7392
      %v7425 = vadd.f32 %v7265, %v7393
      %v7426 = vadd.f32 %v7266, %v7394
      %v7427 = vadd.f32 %v7267, %v7395
      %v7428 = vadd.f32 %v7268, %v7396
      %v7429 = vadd.f32 %v7269, %v7397
      %v7430 = vadd.f32 %v7270, %v7398
      %v7431 = vadd.f32 %v7271, %v7399
      %v7432 = vadd.f32 %v7272, %v7400
      %v7433 = vadd.f32 %v7273, %v7401
      %v7434 = vadd.f32 %v7274, %v7402
      %v7435 = vadd.f32 %v7275, %v7403
      %vm7436 = vcmp.eq.s32.totalorder %v781, 12
      %vm7437 = vcmp.eq.s32.totalorder %v782, 12
      %vm7438 = vcmp.eq.s32.totalorder %v783, 12
      %vm7439 = vcmp.eq.s32.totalorder %v784, 12
      %vm7440 = vcmp.eq.s32.totalorder %v785, 12
      %vm7441 = vcmp.eq.s32.totalorder %v786, 12
      %vm7442 = vcmp.eq.s32.totalorder %v787, 12
      %vm7443 = vcmp.eq.s32.totalorder %v788, 12
      %vm7444 = vcmp.eq.s32.totalorder %v789, 12
      %vm7445 = vcmp.eq.s32.totalorder %v790, 12
      %vm7446 = vcmp.eq.s32.totalorder %v791, 12
      %vm7447 = vcmp.eq.s32.totalorder %v792, 12
      %vm7448 = vcmp.eq.s32.totalorder %v793, 12
      %vm7449 = vcmp.eq.s32.totalorder %v794, 12
      %vm7450 = vcmp.eq.s32.totalorder %v795, 12
      %vm7451 = vcmp.eq.s32.totalorder %v796, 12
      %vm7452 = vcmp.eq.s32.totalorder %v797, 12
      %vm7453 = vcmp.eq.s32.totalorder %v798, 12
      %vm7454 = vcmp.eq.s32.totalorder %v799, 12
      %vm7455 = vcmp.eq.s32.totalorder %v800, 12
      %vm7456 = vcmp.eq.s32.totalorder %v801, 12
      %vm7457 = vcmp.eq.s32.totalorder %v802, 12
      %vm7458 = vcmp.eq.s32.totalorder %v803, 12
      %vm7459 = vcmp.eq.s32.totalorder %v804, 12
      %vm7460 = vcmp.eq.s32.totalorder %v805, 12
      %vm7461 = vcmp.eq.s32.totalorder %v806, 12
      %vm7462 = vcmp.eq.s32.totalorder %v807, 12
      %vm7463 = vcmp.eq.s32.totalorder %v808, 12
      %vm7464 = vcmp.eq.s32.totalorder %v809, 12
      %vm7465 = vcmp.eq.s32.totalorder %v810, 12
      %vm7466 = vcmp.eq.s32.totalorder %v811, 12
      %vm7467 = vcmp.eq.s32.totalorder %v812, 12
      %v7468 = vsel %vm7436, 1, 0
      %v7469 = vsel %vm7437, 1, 0
      %v7470 = vsel %vm7438, 1, 0
      %v7471 = vsel %vm7439, 1, 0
      %v7472 = vsel %vm7440, 1, 0
      %v7473 = vsel %vm7441, 1, 0
      %v7474 = vsel %vm7442, 1, 0
      %v7475 = vsel %vm7443, 1, 0
      %v7476 = vsel %vm7444, 1, 0
      %v7477 = vsel %vm7445, 1, 0
      %v7478 = vsel %vm7446, 1, 0
      %v7479 = vsel %vm7447, 1, 0
      %v7480 = vsel %vm7448, 1, 0
      %v7481 = vsel %vm7449, 1, 0
      %v7482 = vsel %vm7450, 1, 0
      %v7483 = vsel %vm7451, 1, 0
      %v7484 = vsel %vm7452, 1, 0
      %v7485 = vsel %vm7453, 1, 0
      %v7486 = vsel %vm7454, 1, 0
      %v7487 = vsel %vm7455, 1, 0
      %v7488 = vsel %vm7456, 1, 0
      %v7489 = vsel %vm7457, 1, 0
      %v7490 = vsel %vm7458, 1, 0
      %v7491 = vsel %vm7459, 1, 0
      %v7492 = vsel %vm7460, 1, 0
      %v7493 = vsel %vm7461, 1, 0
      %v7494 = vsel %vm7462, 1, 0
      %v7495 = vsel %vm7463, 1, 0
      %v7496 = vsel %vm7464, 1, 0
      %v7497 = vsel %vm7465, 1, 0
      %v7498 = vsel %vm7466, 1, 0
      %v7499 = vsel %vm7467, 1, 0
      %vm7500 = vcmp.eq.s32.totalorder %v7468, 1
      %vm7501 = vcmp.eq.s32.totalorder %v7469, 1
      %vm7502 = vcmp.eq.s32.totalorder %v7470, 1
      %vm7503 = vcmp.eq.s32.totalorder %v7471, 1
      %vm7504 = vcmp.eq.s32.totalorder %v7472, 1
      %vm7505 = vcmp.eq.s32.totalorder %v7473, 1
      %vm7506 = vcmp.eq.s32.totalorder %v7474, 1
      %vm7507 = vcmp.eq.s32.totalorder %v7475, 1
      %vm7508 = vcmp.eq.s32.totalorder %v7476, 1
      %vm7509 = vcmp.eq.s32.totalorder %v7477, 1
      %vm7510 = vcmp.eq.s32.totalorder %v7478, 1
      %vm7511 = vcmp.eq.s32.totalorder %v7479, 1
      %vm7512 = vcmp.eq.s32.totalorder %v7480, 1
      %vm7513 = vcmp.eq.s32.totalorder %v7481, 1
      %vm7514 = vcmp.eq.s32.totalorder %v7482, 1
      %vm7515 = vcmp.eq.s32.totalorder %v7483, 1
      %vm7516 = vcmp.eq.s32.totalorder %v7484, 1
      %vm7517 = vcmp.eq.s32.totalorder %v7485, 1
      %vm7518 = vcmp.eq.s32.totalorder %v7486, 1
      %vm7519 = vcmp.eq.s32.totalorder %v7487, 1
      %vm7520 = vcmp.eq.s32.totalorder %v7488, 1
      %vm7521 = vcmp.eq.s32.totalorder %v7489, 1
      %vm7522 = vcmp.eq.s32.totalorder %v7490, 1
      %vm7523 = vcmp.eq.s32.totalorder %v7491, 1
      %vm7524 = vcmp.eq.s32.totalorder %v7492, 1
      %vm7525 = vcmp.eq.s32.totalorder %v7493, 1
      %vm7526 = vcmp.eq.s32.totalorder %v7494, 1
      %vm7527 = vcmp.eq.s32.totalorder %v7495, 1
      %vm7528 = vcmp.eq.s32.totalorder %v7496, 1
      %vm7529 = vcmp.eq.s32.totalorder %v7497, 1
      %vm7530 = vcmp.eq.s32.totalorder %v7498, 1
      %vm7531 = vcmp.eq.s32.totalorder %v7499, 1
      %v7532 = vsel %vm7500, %v6973, 0.0
      %v7533 = vsel %vm7501, %v6975, 0.0
      %v7534 = vsel %vm7502, %v6978, 0.0
      %v7535 = vsel %vm7503, %v6980, 0.0
      %v7536 = vsel %vm7504, %v6983, 0.0
      %v7537 = vsel %vm7505, %v6985, 0.0
      %v7538 = vsel %vm7506, %v6988, 0.0
      %v7539 = vsel %vm7507, %v6990, 0.0
      %v7540 = vsel %vm7508, %v6993, 0.0
      %v7541 = vsel %vm7509, %v6995, 0.0
      %v7542 = vsel %vm7510, %v6998, 0.0
      %v7543 = vsel %vm7511, %v7000, 0.0
      %v7544 = vsel %vm7512, %v7003, 0.0
      %v7545 = vsel %vm7513, %v7005, 0.0
      %v7546 = vsel %vm7514, %v7008, 0.0
      %v7547 = vsel %vm7515, %v7010, 0.0
      %v7548 = vsel %vm7516, %v7013, 0.0
      %v7549 = vsel %vm7517, %v7015, 0.0
      %v7550 = vsel %vm7518, %v7018, 0.0
      %v7551 = vsel %vm7519, %v7020, 0.0
      %v7552 = vsel %vm7520, %v7023, 0.0
      %v7553 = vsel %vm7521, %v7025, 0.0
      %v7554 = vsel %vm7522, %v7028, 0.0
      %v7555 = vsel %vm7523, %v7030, 0.0
      %v7556 = vsel %vm7524, %v7033, 0.0
      %v7557 = vsel %vm7525, %v7035, 0.0
      %v7558 = vsel %vm7526, %v7038, 0.0
      %v7559 = vsel %vm7527, %v7040, 0.0
      %v7560 = vsel %vm7528, %v7043, 0.0
      %v7561 = vsel %vm7529, %v7045, 0.0
      %v7562 = vsel %vm7530, %v7048, 0.0
      %v7563 = vsel %vm7531, %v7050, 0.0
      %v7564 = vadd.f32 %v7404, %v7532
      %v7565 = vadd.f32 %v7405, %v7533
      %v7566 = vadd.f32 %v7406, %v7534
      %v7567 = vadd.f32 %v7407, %v7535
      %v7568 = vadd.f32 %v7408, %v7536
      %v7569 = vadd.f32 %v7409, %v7537
      %v7570 = vadd.f32 %v7410, %v7538
      %v7571 = vadd.f32 %v7411, %v7539
      %v7572 = vadd.f32 %v7412, %v7540
      %v7573 = vadd.f32 %v7413, %v7541
      %v7574 = vadd.f32 %v7414, %v7542
      %v7575 = vadd.f32 %v7415, %v7543
      %v7576 = vadd.f32 %v7416, %v7544
      %v7577 = vadd.f32 %v7417, %v7545
      %v7578 = vadd.f32 %v7418, %v7546
      %v7579 = vadd.f32 %v7419, %v7547
      %v7580 = vadd.f32 %v7420, %v7548
      %v7581 = vadd.f32 %v7421, %v7549
      %v7582 = vadd.f32 %v7422, %v7550
      %v7583 = vadd.f32 %v7423, %v7551
      %v7584 = vadd.f32 %v7424, %v7552
      %v7585 = vadd.f32 %v7425, %v7553
      %v7586 = vadd.f32 %v7426, %v7554
      %v7587 = vadd.f32 %v7427, %v7555
      %v7588 = vadd.f32 %v7428, %v7556
      %v7589 = vadd.f32 %v7429, %v7557
      %v7590 = vadd.f32 %v7430, %v7558
      %v7591 = vadd.f32 %v7431, %v7559
      %v7592 = vadd.f32 %v7432, %v7560
      %v7593 = vadd.f32 %v7433, %v7561
      %v7594 = vadd.f32 %v7434, %v7562
      %v7595 = vadd.f32 %v7435, %v7563
      %v7596 = vld [vmem:[%s6] sm:$0xff]
      %v7597 = vld [vmem:[%s6 + $0x8] sm:$0xff]
      %v7598 = vpack.c.bf16 %v7565, %v7564
      %v7599 = vpack.c.bf16 %v7567, %v7566
      %v7600 = vpack.c.bf16 %v7569, %v7568
      %v7601 = vpack.c.bf16 %v7571, %v7570
      %v7602 = vpack.c.bf16 %v7573, %v7572
      %v7603 = vpack.c.bf16 %v7575, %v7574
      %v7604 = vpack.c.bf16 %v7577, %v7576
      %v7605 = vpack.c.bf16 %v7579, %v7578
      %v7606 = vpack.c.bf16 %v7581, %v7580
      %v7607 = vpack.c.bf16 %v7583, %v7582
      %v7608 = vpack.c.bf16 %v7585, %v7584
      %v7609 = vpack.c.bf16 %v7587, %v7586
      %v7610 = vpack.c.bf16 %v7589, %v7588
      %v7611 = vpack.c.bf16 %v7591, %v7590
      %v7612 = vpack.c.bf16 %v7593, %v7592
      %v7613 = vpack.c.bf16 %v7595, %v7594
      %v7614 = vld [vmem:[%s7] sm:$0x1]
      %v7616 = vperm.slane %v7614, 0
      %v7620 = vunpack.c.l.b16 %v7596
      %v7621 = vunpack.c.h.b16 %v7596
      %v7622 = vunpack.c.l.b16 %v7597
      %v7623 = vunpack.c.h.b16 %v7597
      %v7624 = vpack.c.b16 %v7622, %v7620
      %v7625 = vpack.c.b16 %v7623, %v7621
      %7628 = vmatpush.bf16.msra.mxu0 %v7605
      %7629 = vmatpush.bf16.msra.mxu0 %v7604
      %7630 = vmatpush.bf16.msra.mxu0 %v7603
      %7631 = vmatpush.bf16.msra.mxu0 %v7602
      %7632 = vmatpush.bf16.msra.mxu0 %v7601
      %7633 = vmatpush.bf16.msra.mxu0 %v7600
      %7634 = vmatpush.bf16.msra.mxu0 %v7599
      %7635 = vmatpush.bf16.msra.mxu0 %v7598
      %7636 = vmatmul.bf16.gmra.mxu0 %v7624
      %v7637 = vpop.f32.mrf.mxu0
      %v7638 = vadd.f32 %v7616, %v7637
      %v7639 = vpop.f32.mrf.mxu0
      %v7640 = vadd.f32 %v7616, %v7639
      %7641 = vdwg.mxu0
      %7642 = vmatpush.bf16.msra.mxu0 %v7613
      %7643 = vmatpush.bf16.msra.mxu0 %v7612
      %7644 = vmatpush.bf16.msra.mxu0 %v7611
      %7645 = vmatpush.bf16.msra.mxu0 %v7610
      %7646 = vmatpush.bf16.msra.mxu0 %v7609
      %7647 = vmatpush.bf16.msra.mxu0 %v7608
      %7648 = vmatpush.bf16.msra.mxu0 %v7607
      %7649 = vmatpush.bf16.msra.mxu0 %v7606
      %7650 = vmatmul.bf16.gmra.mxu0 %v7625
      %v7651 = vpop.f32.mrf.mxu0
      %v7652 = vadd.f32 %v7638, %v7651
      %v7653 = vpop.f32.mrf.mxu0
      %v7654 = vadd.f32 %v7640, %v7653
      %7655 = vdwg.mxu0
      %v7656 = vmax.f32 %v7652, 0.0
      %v7657 = vmax.f32 %v7654, 0.0
      %v7658 = vpack.c.bf16 %v7657, %v7656
      %v7659 = vld [vmem:[%s8] sm:$0xf]
      %v7660 = vld [vmem:[%s8 + $0x4] sm:$0xf]
      %v7661 = vld [vmem:[%s8 + $0x8] sm:$0xf]
      %v7662 = vld [vmem:[%s8 + $0xc] sm:$0xf]
      %v7663 = vld [vmem:[%s8 + $0x10] sm:$0xf]
      %v7664 = vld [vmem:[%s8 + $0x14] sm:$0xf]
      %v7665 = vld [vmem:[%s8 + $0x18] sm:$0xf]
      %v7666 = vld [vmem:[%s8 + $0x1c] sm:$0xf]
      %v7667 = vld [vmem:[%s8 + $0x20] sm:$0xf]
      %v7668 = vld [vmem:[%s8 + $0x24] sm:$0xf]
      %v7669 = vld [vmem:[%s8 + $0x28] sm:$0xf]
      %v7670 = vld [vmem:[%s8 + $0x2c] sm:$0xf]
      %v7671 = vld [vmem:[%s8 + $0x30] sm:$0xf]
      %v7672 = vld [vmem:[%s8 + $0x34] sm:$0xf]
      %v7673 = vld [vmem:[%s8 + $0x38] sm:$0xf]
      %v7674 = vld [vmem:[%s8 + $0x3c] sm:$0xf]
      %v7675 = vld [vmem:[%s9] sm:$0x1]
      %v7677 = vperm.slane %v7675, 0
      %v7695 = vunpack.c.l.b16 %v7659
      %v7696 = vunpack.c.l.b16 %v7660
      %v7697 = vunpack.c.l.b16 %v7661
      %v7698 = vunpack.c.l.b16 %v7662
      %v7699 = vunpack.c.l.b16 %v7663
      %v7700 = vunpack.c.l.b16 %v7664
      %v7701 = vunpack.c.l.b16 %v7665
      %v7702 = vunpack.c.l.b16 %v7666
      %v7703 = vunpack.c.l.b16 %v7667
      %v7704 = vunpack.c.l.b16 %v7668
      %v7705 = vunpack.c.l.b16 %v7669
      %v7706 = vunpack.c.l.b16 %v7670
      %v7707 = vunpack.c.l.b16 %v7671
      %v7708 = vunpack.c.l.b16 %v7672
      %v7709 = vunpack.c.l.b16 %v7673
      %v7710 = vunpack.c.l.b16 %v7674
      %v7711 = vpack.c.b16 %v7696, %v7695
      %v7712 = vpack.c.b16 %v7698, %v7697
      %v7713 = vpack.c.b16 %v7700, %v7699
      %v7714 = vpack.c.b16 %v7702, %v7701
      %v7715 = vpack.c.b16 %v7704, %v7703
      %v7716 = vpack.c.b16 %v7706, %v7705
      %v7717 = vpack.c.b16 %v7708, %v7707
      %v7718 = vpack.c.b16 %v7710, %v7709
      %7727 = vmatpush.bf16.msra.mxu0 %v7718
      %7728 = vmatpush.bf16.msra.mxu0 %v7717
      %7729 = vmatpush.bf16.msra.mxu0 %v7716
      %7730 = vmatpush.bf16.msra.mxu0 %v7715
      %7731 = vmatpush.bf16.msra.mxu0 %v7714
      %7732 = vmatpush.bf16.msra.mxu0 %v7713
      %7733 = vmatpush.bf16.msra.mxu0 %v7712
      %7734 = vmatpush.bf16.msra.mxu0 %v7711
      %7735 = vmatmul.bf16.gmra.mxu0 %v7658
      %v7736 = vpop.f32.mrf.mxu0
      %v7737 = vadd.f32 %v7677, %v7736
      %v7738 = vpop.f32.mrf.mxu0
      %v7739 = vadd.f32 %v7677, %v7738
      %7740 = vdwg.mxu0
      %7741 = vst [vmem:[%s361] sm:$0xff] %v7737
      %7742 = vst [vmem:[%s361 + $0x8] sm:$0xff] %v7739
      %s7743 = smul.u32 2, %s21
      %p7744 = scmp.lt.s32.totalorder %s7743, 3
      %s7745 = scalar_select %p7744, %s7743, 3
      %s7746 = smul.addr %s7745, 8
      %s7747 = scalar_lea.vmem %s10, %s7746
      // Predicated region
      $region61: #{cnn_forward.1} parent=59 // pred_check
        %p7748 = pneg %p254
      $region62: #{cnn_forward.1} parent=59 // pred_check_branch
        %7750 = sbr.rel (%p7748) target = $region64
      $region63: #{cnn_forward.1} parent=59 // pred_region
        %s7751 = smul.u32 2, %s21
      $region64: #{cnn_forward.1} parent=59 // pred_fallthru
        _
    $region60: #{cnn_forward.1} parent=5 // pred_fallthru
      _
    %p7752 = scmp.le.s32.totalorder 2, %s16
    // Predicated region
    $region65: #{cnn_forward.1} parent=5 // pred_check
      %p7753 = pneg %p7752
    $region66: #{cnn_forward.1} parent=5 // pred_check_branch
      %7755 = sbr.rel (%p7753) target = $region68
    $region67: #{cnn_forward.1} parent=5 // pred_region
      %s7756 = ssub.s32 %s16, 2
      // Predicated region
      $region69: #{cnn_forward.1} parent=67 // pred_check
        %p7757 = pneg %p260
      $region70: #{cnn_forward.1} parent=67 // pred_check_branch
        %7759 = sbr.rel (%p7757) target = $region72
      $region71: #{cnn_forward.1} parent=67 // pred_region
        %s7760 = smul.u32 2, %s22
        %p7761 = scmp.lt.s32.totalorder %s7760, 3
        %s7762 = scalar_select %p7761, %s7760, 3
        %s7763 = smul.addr %s7762, 8
        %s7764 = scalar_lea.vmem %s10, %s7763
      $region72: #{cnn_forward.1} parent=67 // pred_fallthru
        _
    $region68: #{cnn_forward.1} parent=5 // pred_fallthru
      _
  $region6: #{cnn_forward.1} parent=0 // loop_footer
    %s20 = sadd.s32 1, %s16
  $region7: #{cnn_forward.1} parent=0 // loop_footer_branch
    %15 = sbr.rel target = $region3
  $region8: #{cnn_forward.1} parent=0 // loop_exit
    _

</llo_original>
